<compile_context>
chip_gen: v7x
topology: tpu7x:2x2x1
jax: 0.10.0
libtpu: 0.0.40
codegen_flags: <defaults>
</compile_context>

<pallas_src>
import functools

import jax
import jax.numpy as jnp
from jax.experimental import pallas as pl
from jax.experimental.pallas import tpu as pltpu


def _lstm_kernel(x_ref, wih0_ref, whh0_ref, b0_ref,
                 w1cat_ref, b1_ref,
                 wd1_ref, bd1_ref, wd2t_ref, bd2_ref,
                 out_ref,
                 pre_ref, h_ref,
                 *, hidden, seq_len, batch):
    H, S, B = hidden, seq_len, batch
    f32 = jnp.float32
    bf16 = jnp.bfloat16

    def gates(pre):
        # One contiguous sigmoid over [i|f] (fewer EUP issue boundaries),
        # then tanh(g) and sigmoid(o).  Gate order matches PyTorch: i, f, g, o.
        sif = jax.nn.sigmoid(pre[:, 0:2 * H])
        i = sif[:, 0:H]
        f = sif[:, H:2 * H]
        g = jnp.tanh(pre[:, 2 * H:3 * H])
        o = jax.nn.sigmoid(pre[:, 3 * H:4 * H])
        return i, f, g, o

    # ---- hoisted layer-0 input projection over ALL timesteps (one big matmul) ----
    pre_ref[...] = (jnp.dot(x_ref[...], wih0_ref[...],
                            preferred_element_type=f32) + b0_ref[...])

    b1 = b1_ref[...]                                   # fused b_ih1 + b_hh1, f32

    # ---- interleaved two-layer recurrence, statically unrolled ----
    h1 = jnp.zeros((B, H), f32)
    c1 = jnp.zeros((B, H), f32)
    h2 = jnp.zeros((B, H), f32)
    c2 = jnp.zeros((B, H), f32)
    for t in range(S):
        # layer-0 cell (input part already hoisted into pre_ref)
        pre1 = (jnp.dot(h1.astype(bf16), whh0_ref[...],
                        preferred_element_type=f32)
                + pre_ref[t * B:(t + 1) * B, :])
        i1, f1, g1, o1 = gates(pre1)
        c1 = f1 * c1 + i1 * g1
        h1 = o1 * jnp.tanh(c1)

        # layer-1 cell: fused input + recurrent matmul, K = 2H fills the
        # 256-deep MXU on v6e/v7x.  (inter-layer dropout = identity in eval)
        lhs2 = jnp.concatenate([h1, h2], axis=-1).astype(bf16)   # (B, 2H)
        pre2 = jnp.dot(lhs2, w1cat_ref[...], preferred_element_type=f32) + b1
        i2, f2, g2, o2 = gates(pre2)
        c2 = f2 * c2 + i2 * g2
        h2 = o2 * jnp.tanh(c2)

        h_ref[t * B:(t + 1) * B, :] = h2               # stash h2[t] for the decoder

    # ---- decoder (hoisted): Linear -> ReLU -> (Dropout=id) -> Linear ----
    y1 = jnp.maximum(
        jnp.dot(h_ref[...].astype(bf16), wd1_ref[...],
                preferred_element_type=f32) + bd1_ref[...], 0.0)   # (S*B, H/2)
    hd = y1.shape[-1]
    # Final (H/2 -> 1) projection as broadcast-multiply + lane reduction so the
    # output is a single lane-dense (S, B) store (no (S*B, 1) column).
    yw = y1 * wd2t_ref[...]                                        # (S*B, H/2)
    out_ref[...] = jnp.sum(yw.reshape(S, B, hd), axis=-1) + bd2_ref[...]


def lstm_model_forward(src, params):
    """src: (B, S, D) batch-first float32.  Returns (B, S), like out.squeeze(-1)."""
    B, S, D = src.shape
    H = params["whh0"].shape[0]
    BP = ((B + 7) // 8) * 8                            # pad batch to f32 sublane minimum

    x = jnp.transpose(src, (1, 0, 2)).astype(jnp.float32)          # (S, B, D) time-major
    if BP != B:
        x = jnp.pad(x, ((0, 0), (0, BP - B), (0, 0)))
    x2d = x.reshape(S * BP, D).astype(jnp.bfloat16)                # (S*B, D) bf16 operand

    bf16 = jnp.bfloat16
    wih0 = params["wih0"].astype(bf16)                             # (D, 4H)
    whh0 = params["whh0"].astype(bf16)                             # (H, 4H)
    w1cat = jnp.concatenate([params["wih1"], params["whh1"]],
                            axis=0).astype(bf16)                   # (2H, 4H)
    wd1 = params["wd1"].astype(bf16)                               # (H, H/2)
    wd2t = params["wd2"].T                                         # (1, H/2) f32

    kernel = functools.partial(_lstm_kernel, hidden=H, seq_len=S, batch=BP)
    vmem = pltpu.MemorySpace.VMEM

    out = pl.pallas_call(
        kernel,
        out_shape=jax.ShapeDtypeStruct((S, BP), jnp.float32),
        in_specs=[pl.BlockSpec(memory_space=vmem)] * 10,
        out_specs=pl.BlockSpec(memory_space=vmem),
        scratch_shapes=[
            pltpu.VMEM((S * BP, 4 * H), jnp.float32),   # hoisted layer-0 pre-activations
            pltpu.VMEM((S * BP, H), jnp.float32),       # h2 stash for the decoder
        ],
    )(x2d, wih0, whh0, params["b0"],
      w1cat, params["b1"],
      wd1, params["bd1"], wd2t, params["bd2"])

    return out[:, :B].T                                            # (B, S)


def init_params(key, input_dim=6, hidden=128):
    """Deterministic synthetic init (PyTorch-style uniform(-1/sqrt(H), 1/sqrt(H))).

    Weights are pre-transposed to (in, out); LSTM biases are the fused b_ih + b_hh.
    When loading a real PyTorch checkpoint, transpose W and sum the two biases.
    """
    bound = 1.0 / float(hidden) ** 0.5
    keys = jax.random.split(key, 10)

    def u(k_, shape):
        return jax.random.uniform(k_, shape, jnp.float32, -bound, bound)

    return {
        # LSTM layer 0 (gate order i, f, g, o along the 4H axis)
        "wih0": u(keys[0], (input_dim, 4 * hidden)),
        "whh0": u(keys[1], (hidden, 4 * hidden)),
        "b0":   u(keys[2], (1, 4 * hidden)),
        # LSTM layer 1
        "wih1": u(keys[3], (hidden, 4 * hidden)),
        "whh1": u(keys[4], (hidden, 4 * hidden)),
        "b1":   u(keys[5], (1, 4 * hidden)),
        # decoder: Linear(H, H//2) -> ReLU -> Dropout -> Linear(H//2, 1)
        "wd1":  u(keys[6], (hidden, hidden // 2)),
        "bd1":  u(keys[7], (1, hidden // 2)),
        "wd2":  u(keys[8], (hidden // 2, 1)),
        "bd2":  u(keys[9], (1, 1)),
    }


def reference_forward(src, p):
    """Pure-JAX f32 reference of the same eval-mode forward pass."""
    B, S, _ = src.shape
    H = p["whh0"].shape[0]

    def cell(x, h, c, wih, whh, b):
        pre = x @ wih + h @ whh + b
        i = jax.nn.sigmoid(pre[:, 0:H])
        f = jax.nn.sigmoid(pre[:, H:2 * H])
        g = jnp.tanh(pre[:, 2 * H:3 * H])
        o = jax.nn.sigmoid(pre[:, 3 * H:4 * H])
        c = f * c + i * g
        h = o * jnp.tanh(c)
        return h, c

    h1 = jnp.zeros((B, H), jnp.float32)
    c1 = jnp.zeros((B, H), jnp.float32)
    h2 = jnp.zeros((B, H), jnp.float32)
    c2 = jnp.zeros((B, H), jnp.float32)
    outs = []
    for t in range(S):
        x_t = src[:, t, :]
        h1, c1 = cell(x_t, h1, c1, p["wih0"], p["whh0"], p["b0"])
        h2, c2 = cell(h1, h2, c2, p["wih1"], p["whh1"], p["b1"])
        y = jnp.maximum(h2 @ p["wd1"] + p["bd1"], 0.0) @ p["wd2"] + p["bd2"]
        outs.append(y[:, 0])
    return jnp.stack(outs, axis=1)                                 # (B, S)


if __name__ == "__main__":
    key = jax.random.PRNGKey(0)
    k_param, k_x = jax.random.split(key)

    batch, seq, input_dim, hidden = 2, 8, 6, 128
    params = init_params(k_param, input_dim=input_dim, hidden=hidden)
    src = jax.random.normal(k_x, (batch, seq, input_dim), jnp.float32)

    out = lstm_model_forward(src, params)
    out = jax.block_until_ready(out)

    ref = reference_forward(src, params)
    assert out.shape == (batch, seq), out.shape
    # bf16 matmul operands with f32 accumulation: tolerance relaxed to 2e-2.
    assert jnp.allclose(out, ref, rtol=2e-2, atol=2e-2), "mismatch vs JAX reference"

    print("KERNEL_OK")
</pallas_src>

<mosaic_0001>
module attributes {stable_mosaic.version = 11 : i64} {
  func.func @_lstm_kernel(%arg0: memref<64x6xbf16, #tpu.memory_space<vmem>>, %arg1: memref<6x512xbf16, #tpu.memory_space<vmem>>, %arg2: memref<128x512xbf16, #tpu.memory_space<vmem>>, %arg3: memref<1x512xf32, #tpu.memory_space<vmem>>, %arg4: memref<256x512xbf16, #tpu.memory_space<vmem>>, %arg5: memref<1x512xf32, #tpu.memory_space<vmem>>, %arg6: memref<128x64xbf16, #tpu.memory_space<vmem>>, %arg7: memref<1x64xf32, #tpu.memory_space<vmem>>, %arg8: memref<1x64xf32, #tpu.memory_space<vmem>>, %arg9: memref<1x1xf32, #tpu.memory_space<vmem>>, %arg10: memref<8x8xf32, #tpu.memory_space<vmem>>, %arg11: memref<64x512xf32, #tpu.memory_space<vmem>>, %arg12: memref<64x128xf32, #tpu.memory_space<vmem>>) attributes {dimension_semantics = [], scalar_prefetch = 0 : i64, scratch_operands = 2 : i64, tpu.core_type = #tpu.core_type<tc>} {
    %c0 = arith.constant 0 : index
    %c0_0 = arith.constant 0 : index
    %0 = vector.load %arg0[%c0, %c0_0] : memref<64x6xbf16, #tpu.memory_space<vmem>>, vector<64x6xbf16>
    %c0_1 = arith.constant 0 : index
    %c0_2 = arith.constant 0 : index
    %1 = vector.load %arg1[%c0_1, %c0_2] : memref<6x512xbf16, #tpu.memory_space<vmem>>, vector<6x512xbf16>
    %cst = arith.constant dense<0.000000e+00> : vector<64x512xf32>
    %2 = tpu.matmul %0, %1, %cst {dimension_numbers = #tpu.dot_dimension_numbers<[1], [0], [0], [1], [0, 0, 1, 1], [], []>} : vector<64x6xbf16>, vector<6x512xbf16>, vector<64x512xf32> -> vector<64x512xf32>
    %c0_3 = arith.constant 0 : index
    %c0_4 = arith.constant 0 : index
    %3 = vector.load %arg3[%c0_3, %c0_4] : memref<1x512xf32, #tpu.memory_space<vmem>>, vector<1x512xf32>
    %4 = vector.broadcast %3 : vector<1x512xf32> to vector<64x512xf32>
    %5 = arith.addf %2, %4 : vector<64x512xf32>
    %c0_5 = arith.constant 0 : index
    %c0_6 = arith.constant 0 : index
    %6 = vector.load %arg11[%c0_5, %c0_6] : memref<64x512xf32, #tpu.memory_space<vmem>>, vector<64x512xf32>
    tpu.vector_store %arg11[%c0_5, %c0_6], %5 {strides = array<i32>} : memref<64x512xf32, #tpu.memory_space<vmem>>, vector<64x512xf32>,
    %c0_7 = arith.constant 0 : index
    %c0_8 = arith.constant 0 : index
    %7 = vector.load %arg5[%c0_7, %c0_8] : memref<1x512xf32, #tpu.memory_space<vmem>>, vector<1x512xf32>
    %cst_9 = arith.constant 0.000000e+00 : f32
    %8 = vector.broadcast %cst_9 : f32 to vector<8x128xf32>
    %cst_10 = arith.constant 0.000000e+00 : f32
    %9 = vector.broadcast %cst_10 : f32 to vector<8x128xf32>
    %cst_11 = arith.constant 0.000000e+00 : f32
    %10 = vector.broadcast %cst_11 : f32 to vector<8x128xf32>
    %cst_12 = arith.constant 0.000000e+00 : f32
    %11 = vector.broadcast %cst_12 : f32 to vector<8x128xf32>
    %12 = arith.truncf %8 : vector<8x128xf32> to vector<8x128xbf16>
    %c0_13 = arith.constant 0 : index
    %c0_14 = arith.constant 0 : index
    %13 = vector.load %arg2[%c0_13, %c0_14] : memref<128x512xbf16, #tpu.memory_space<vmem>>, vector<128x512xbf16>
    %cst_15 = arith.constant dense<0.000000e+00> : vector<8x512xf32>
    %14 = tpu.matmul %12, %13, %cst_15 {dimension_numbers = #tpu.dot_dimension_numbers<[1], [0], [0], [1], [0, 0, 1, 1], [], []>} : vector<8x128xbf16>, vector<128x512xbf16>, vector<8x512xf32> -> vector<8x512xf32>
    %c0_16 = arith.constant 0 : index
    %c0_17 = arith.constant 0 : index
    %15 = vector.load %arg11[%c0_16, %c0_17] : memref<64x512xf32, #tpu.memory_space<vmem>>, vector<8x512xf32>
    %16 = arith.addf %14, %15 : vector<8x512xf32>
    %17 = vector.extract_strided_slice %16 {offsets = [0, 0], sizes = [8, 256], strides = [1, 1]} : vector<8x512xf32> to vector<8x256xf32>
    %18 = arith.negf %17 : vector<8x256xf32>
    %19 = math.exp %18 : vector<8x256xf32>
    %cst_18 = arith.constant 1.000000e+00 : f32
    %20 = vector.broadcast %cst_18 : f32 to vector<8x256xf32>
    %21 = arith.addf %20, %19 : vector<8x256xf32>
    %22 = arith.divf %20, %21 : vector<8x256xf32>
    %23 = vector.extract_strided_slice %22 {offsets = [0, 0], sizes = [8, 128], strides = [1, 1]} : vector<8x256xf32> to vector<8x128xf32>
    %24 = vector.extract_strided_slice %22 {offsets = [0, 128], sizes = [8, 128], strides = [1, 1]} : vector<8x256xf32> to vector<8x128xf32>
    %25 = vector.extract_strided_slice %16 {offsets = [0, 256], sizes = [8, 128], strides = [1, 1]} : vector<8x512xf32> to vector<8x128xf32>
    %26 = math.tanh %25 : vector<8x128xf32>
    %27 = vector.extract_strided_slice %16 {offsets = [0, 384], sizes = [8, 128], strides = [1, 1]} : vector<8x512xf32> to vector<8x128xf32>
    %28 = arith.negf %27 : vector<8x128xf32>
    %29 = math.exp %28 : vector<8x128xf32>
    %cst_19 = arith.constant 1.000000e+00 : f32
    %30 = vector.broadcast %cst_19 : f32 to vector<8x128xf32>
    %31 = arith.addf %30, %29 : vector<8x128xf32>
    %32 = arith.divf %30, %31 : vector<8x128xf32>
    %33 = arith.mulf %24, %9 : vector<8x128xf32>
    %34 = arith.mulf %23, %26 : vector<8x128xf32>
    %35 = arith.addf %33, %34 : vector<8x128xf32>
    %36 = math.tanh %35 : vector<8x128xf32>
    %37 = arith.mulf %32, %36 : vector<8x128xf32>
    %38 = tpu.concatenate %37, %10 in 1 : vector<8x128xf32>, vector<8x128xf32> -> vector<8x256xf32>
    %39 = arith.truncf %38 : vector<8x256xf32> to vector<8x256xbf16>
    %c0_20 = arith.constant 0 : index
    %c0_21 = arith.constant 0 : index
    %40 = vector.load %arg4[%c0_20, %c0_21] : memref<256x512xbf16, #tpu.memory_space<vmem>>, vector<256x512xbf16>
    %cst_22 = arith.constant dense<0.000000e+00> : vector<8x512xf32>
    %41 = tpu.matmul %39, %40, %cst_22 {dimension_numbers = #tpu.dot_dimension_numbers<[1], [0], [0], [1], [0, 0, 1, 1], [], []>} : vector<8x256xbf16>, vector<256x512xbf16>, vector<8x512xf32> -> vector<8x512xf32>
    %42 = vector.broadcast %7 : vector<1x512xf32> to vector<8x512xf32>
    %43 = arith.addf %41, %42 : vector<8x512xf32>
    %44 = vector.extract_strided_slice %43 {offsets = [0, 0], sizes = [8, 256], strides = [1, 1]} : vector<8x512xf32> to vector<8x256xf32>
    %45 = arith.negf %44 : vector<8x256xf32>
    %46 = math.exp %45 : vector<8x256xf32>
    %cst_23 = arith.constant 1.000000e+00 : f32
    %47 = vector.broadcast %cst_23 : f32 to vector<8x256xf32>
    %48 = arith.addf %47, %46 : vector<8x256xf32>
    %49 = arith.divf %47, %48 : vector<8x256xf32>
    %50 = vector.extract_strided_slice %49 {offsets = [0, 0], sizes = [8, 128], strides = [1, 1]} : vector<8x256xf32> to vector<8x128xf32>
    %51 = vector.extract_strided_slice %49 {offsets = [0, 128], sizes = [8, 128], strides = [1, 1]} : vector<8x256xf32> to vector<8x128xf32>
    %52 = vector.extract_strided_slice %43 {offsets = [0, 256], sizes = [8, 128], strides = [1, 1]} : vector<8x512xf32> to vector<8x128xf32>
    %53 = math.tanh %52 : vector<8x128xf32>
    %54 = vector.extract_strided_slice %43 {offsets = [0, 384], sizes = [8, 128], strides = [1, 1]} : vector<8x512xf32> to vector<8x128xf32>
    %55 = arith.negf %54 : vector<8x128xf32>
    %56 = math.exp %55 : vector<8x128xf32>
    %cst_24 = arith.constant 1.000000e+00 : f32
    %57 = vector.broadcast %cst_24 : f32 to vector<8x128xf32>
    %58 = arith.addf %57, %56 : vector<8x128xf32>
    %59 = arith.divf %57, %58 : vector<8x128xf32>
    %60 = arith.mulf %51, %11 : vector<8x128xf32>
    %61 = arith.mulf %50, %53 : vector<8x128xf32>
    %62 = arith.addf %60, %61 : vector<8x128xf32>
    %63 = math.tanh %62 : vector<8x128xf32>
    %64 = arith.mulf %59, %63 : vector<8x128xf32>
    %c0_25 = arith.constant 0 : index
    %c0_26 = arith.constant 0 : index
    %65 = vector.load %arg12[%c0_25, %c0_26] : memref<64x128xf32, #tpu.memory_space<vmem>>, vector<8x128xf32>
    tpu.vector_store %arg12[%c0_25, %c0_26], %64 {strides = array<i32>} : memref<64x128xf32, #tpu.memory_space<vmem>>, vector<8x128xf32>,
    %66 = arith.truncf %37 : vector<8x128xf32> to vector<8x128xbf16>
    %c0_27 = arith.constant 0 : index
    %c0_28 = arith.constant 0 : index
    %67 = vector.load %arg2[%c0_27, %c0_28] : memref<128x512xbf16, #tpu.memory_space<vmem>>, vector<128x512xbf16>
    %cst_29 = arith.constant dense<0.000000e+00> : vector<8x512xf32>
    %68 = tpu.matmul %66, %67, %cst_29 {dimension_numbers = #tpu.dot_dimension_numbers<[1], [0], [0], [1], [0, 0, 1, 1], [], []>} : vector<8x128xbf16>, vector<128x512xbf16>, vector<8x512xf32> -> vector<8x512xf32>
    %c8 = arith.constant 8 : index
    %c0_30 = arith.constant 0 : index
    %69 = vector.load %arg11[%c8, %c0_30] : memref<64x512xf32, #tpu.memory_space<vmem>>, vector<8x512xf32>
    %70 = arith.addf %68, %69 : vector<8x512xf32>
    %71 = vector.extract_strided_slice %70 {offsets = [0, 0], sizes = [8, 256], strides = [1, 1]} : vector<8x512xf32> to vector<8x256xf32>
    %72 = arith.negf %71 : vector<8x256xf32>
    %73 = math.exp %72 : vector<8x256xf32>
    %cst_31 = arith.constant 1.000000e+00 : f32
    %74 = vector.broadcast %cst_31 : f32 to vector<8x256xf32>
    %75 = arith.addf %74, %73 : vector<8x256xf32>
    %76 = arith.divf %74, %75 : vector<8x256xf32>
    %77 = vector.extract_strided_slice %76 {offsets = [0, 0], sizes = [8, 128], strides = [1, 1]} : vector<8x256xf32> to vector<8x128xf32>
    %78 = vector.extract_strided_slice %76 {offsets = [0, 128], sizes = [8, 128], strides = [1, 1]} : vector<8x256xf32> to vector<8x128xf32>
    %79 = vector.extract_strided_slice %70 {offsets = [0, 256], sizes = [8, 128], strides = [1, 1]} : vector<8x512xf32> to vector<8x128xf32>
    %80 = math.tanh %79 : vector<8x128xf32>
    %81 = vector.extract_strided_slice %70 {offsets = [0, 384], sizes = [8, 128], strides = [1, 1]} : vector<8x512xf32> to vector<8x128xf32>
    %82 = arith.negf %81 : vector<8x128xf32>
    %83 = math.exp %82 : vector<8x128xf32>
    %cst_32 = arith.constant 1.000000e+00 : f32
    %84 = vector.broadcast %cst_32 : f32 to vector<8x128xf32>
    %85 = arith.addf %84, %83 : vector<8x128xf32>
    %86 = arith.divf %84, %85 : vector<8x128xf32>
    %87 = arith.mulf %78, %35 : vector<8x128xf32>
    %88 = arith.mulf %77, %80 : vector<8x128xf32>
    %89 = arith.addf %87, %88 : vector<8x128xf32>
    %90 = math.tanh %89 : vector<8x128xf32>
    %91 = arith.mulf %86, %90 : vector<8x128xf32>
    %92 = tpu.concatenate %91, %64 in 1 : vector<8x128xf32>, vector<8x128xf32> -> vector<8x256xf32>
    %93 = arith.truncf %92 : vector<8x256xf32> to vector<8x256xbf16>
    %c0_33 = arith.constant 0 : index
    %c0_34 = arith.constant 0 : index
    %94 = vector.load %arg4[%c0_33, %c0_34] : memref<256x512xbf16, #tpu.memory_space<vmem>>, vector<256x512xbf16>
    %cst_35 = arith.constant dense<0.000000e+00> : vector<8x512xf32>
    %95 = tpu.matmul %93, %94, %cst_35 {dimension_numbers = #tpu.dot_dimension_numbers<[1], [0], [0], [1], [0, 0, 1, 1], [], []>} : vector<8x256xbf16>, vector<256x512xbf16>, vector<8x512xf32> -> vector<8x512xf32>
    %96 = vector.broadcast %7 : vector<1x512xf32> to vector<8x512xf32>
    %97 = arith.addf %95, %96 : vector<8x512xf32>
    %98 = vector.extract_strided_slice %97 {offsets = [0, 0], sizes = [8, 256], strides = [1, 1]} : vector<8x512xf32> to vector<8x256xf32>
    %99 = arith.negf %98 : vector<8x256xf32>
    %100 = math.exp %99 : vector<8x256xf32>
    %cst_36 = arith.constant 1.000000e+00 : f32
    %101 = vector.broadcast %cst_36 : f32 to vector<8x256xf32>
    %102 = arith.addf %101, %100 : vector<8x256xf32>
    %103 = arith.divf %101, %102 : vector<8x256xf32>
    %104 = vector.extract_strided_slice %103 {offsets = [0, 0], sizes = [8, 128], strides = [1, 1]} : vector<8x256xf32> to vector<8x128xf32>
    %105 = vector.extract_strided_slice %103 {offsets = [0, 128], sizes = [8, 128], strides = [1, 1]} : vector<8x256xf32> to vector<8x128xf32>
    %106 = vector.extract_strided_slice %97 {offsets = [0, 256], sizes = [8, 128], strides = [1, 1]} : vector<8x512xf32> to vector<8x128xf32>
    %107 = math.tanh %106 : vector<8x128xf32>
    %108 = vector.extract_strided_slice %97 {offsets = [0, 384], sizes = [8, 128], strides = [1, 1]} : vector<8x512xf32> to vector<8x128xf32>
    %109 = arith.negf %108 : vector<8x128xf32>
    %110 = math.exp %109 : vector<8x128xf32>
    %cst_37 = arith.constant 1.000000e+00 : f32
    %111 = vector.broadcast %cst_37 : f32 to vector<8x128xf32>
    %112 = arith.addf %111, %110 : vector<8x128xf32>
    %113 = arith.divf %111, %112 : vector<8x128xf32>
    %114 = arith.mulf %105, %62 : vector<8x128xf32>
    %115 = arith.mulf %104, %107 : vector<8x128xf32>
    %116 = arith.addf %114, %115 : vector<8x128xf32>
    %117 = math.tanh %116 : vector<8x128xf32>
    %118 = arith.mulf %113, %117 : vector<8x128xf32>
    %c8_38 = arith.constant 8 : index
    %c0_39 = arith.constant 0 : index
    %119 = vector.load %arg12[%c8_38, %c0_39] : memref<64x128xf32, #tpu.memory_space<vmem>>, vector<8x128xf32>
    tpu.vector_store %arg12[%c8_38, %c0_39], %118 {strides = array<i32>} : memref<64x128xf32, #tpu.memory_space<vmem>>, vector<8x128xf32>,
    %120 = arith.truncf %91 : vector<8x128xf32> to vector<8x128xbf16>
    %c0_40 = arith.constant 0 : index
    %c0_41 = arith.constant 0 : index
    %121 = vector.load %arg2[%c0_40, %c0_41] : memref<128x512xbf16, #tpu.memory_space<vmem>>, vector<128x512xbf16>
    %cst_42 = arith.constant dense<0.000000e+00> : vector<8x512xf32>
    %122 = tpu.matmul %120, %121, %cst_42 {dimension_numbers = #tpu.dot_dimension_numbers<[1], [0], [0], [1], [0, 0, 1, 1], [], []>} : vector<8x128xbf16>, vector<128x512xbf16>, vector<8x512xf32> -> vector<8x512xf32>
    %c16 = arith.constant 16 : index
    %c0_43 = arith.constant 0 : index
    %123 = vector.load %arg11[%c16, %c0_43] : memref<64x512xf32, #tpu.memory_space<vmem>>, vector<8x512xf32>
    %124 = arith.addf %122, %123 : vector<8x512xf32>
    %125 = vector.extract_strided_slice %124 {offsets = [0, 0], sizes = [8, 256], strides = [1, 1]} : vector<8x512xf32> to vector<8x256xf32>
    %126 = arith.negf %125 : vector<8x256xf32>
    %127 = math.exp %126 : vector<8x256xf32>
    %cst_44 = arith.constant 1.000000e+00 : f32
    %128 = vector.broadcast %cst_44 : f32 to vector<8x256xf32>
    %129 = arith.addf %128, %127 : vector<8x256xf32>
    %130 = arith.divf %128, %129 : vector<8x256xf32>
    %131 = vector.extract_strided_slice %130 {offsets = [0, 0], sizes = [8, 128], strides = [1, 1]} : vector<8x256xf32> to vector<8x128xf32>
    %132 = vector.extract_strided_slice %130 {offsets = [0, 128], sizes = [8, 128], strides = [1, 1]} : vector<8x256xf32> to vector<8x128xf32>
    %133 = vector.extract_strided_slice %124 {offsets = [0, 256], sizes = [8, 128], strides = [1, 1]} : vector<8x512xf32> to vector<8x128xf32>
    %134 = math.tanh %133 : vector<8x128xf32>
    %135 = vector.extract_strided_slice %124 {offsets = [0, 384], sizes = [8, 128], strides = [1, 1]} : vector<8x512xf32> to vector<8x128xf32>
    %136 = arith.negf %135 : vector<8x128xf32>
    %137 = math.exp %136 : vector<8x128xf32>
    %cst_45 = arith.constant 1.000000e+00 : f32
    %138 = vector.broadcast %cst_45 : f32 to vector<8x128xf32>
    %139 = arith.addf %138, %137 : vector<8x128xf32>
    %140 = arith.divf %138, %139 : vector<8x128xf32>
    %141 = arith.mulf %132, %89 : vector<8x128xf32>
    %142 = arith.mulf %131, %134 : vector<8x128xf32>
    %143 = arith.addf %141, %142 : vector<8x128xf32>
    %144 = math.tanh %143 : vector<8x128xf32>
    %145 = arith.mulf %140, %144 : vector<8x128xf32>
    %146 = tpu.concatenate %145, %118 in 1 : vector<8x128xf32>, vector<8x128xf32> -> vector<8x256xf32>
    %147 = arith.truncf %146 : vector<8x256xf32> to vector<8x256xbf16>
    %c0_46 = arith.constant 0 : index
    %c0_47 = arith.constant 0 : index
    %148 = vector.load %arg4[%c0_46, %c0_47] : memref<256x512xbf16, #tpu.memory_space<vmem>>, vector<256x512xbf16>
    %cst_48 = arith.constant dense<0.000000e+00> : vector<8x512xf32>
    %149 = tpu.matmul %147, %148, %cst_48 {dimension_numbers = #tpu.dot_dimension_numbers<[1], [0], [0], [1], [0, 0, 1, 1], [], []>} : vector<8x256xbf16>, vector<256x512xbf16>, vector<8x512xf32> -> vector<8x512xf32>
    %150 = vector.broadcast %7 : vector<1x512xf32> to vector<8x512xf32>
    %151 = arith.addf %149, %150 : vector<8x512xf32>
    %152 = vector.extract_strided_slice %151 {offsets = [0, 0], sizes = [8, 256], strides = [1, 1]} : vector<8x512xf32> to vector<8x256xf32>
    %153 = arith.negf %152 : vector<8x256xf32>
    %154 = math.exp %153 : vector<8x256xf32>
    %cst_49 = arith.constant 1.000000e+00 : f32
    %155 = vector.broadcast %cst_49 : f32 to vector<8x256xf32>
    %156 = arith.addf %155, %154 : vector<8x256xf32>
    %157 = arith.divf %155, %156 : vector<8x256xf32>
    %158 = vector.extract_strided_slice %157 {offsets = [0, 0], sizes = [8, 128], strides = [1, 1]} : vector<8x256xf32> to vector<8x128xf32>
    %159 = vector.extract_strided_slice %157 {offsets = [0, 128], sizes = [8, 128], strides = [1, 1]} : vector<8x256xf32> to vector<8x128xf32>
    %160 = vector.extract_strided_slice %151 {offsets = [0, 256], sizes = [8, 128], strides = [1, 1]} : vector<8x512xf32> to vector<8x128xf32>
    %161 = math.tanh %160 : vector<8x128xf32>
    %162 = vector.extract_strided_slice %151 {offsets = [0, 384], sizes = [8, 128], strides = [1, 1]} : vector<8x512xf32> to vector<8x128xf32>
    %163 = arith.negf %162 : vector<8x128xf32>
    %164 = math.exp %163 : vector<8x128xf32>
    %cst_50 = arith.constant 1.000000e+00 : f32
    %165 = vector.broadcast %cst_50 : f32 to vector<8x128xf32>
    %166 = arith.addf %165, %164 : vector<8x128xf32>
    %167 = arith.divf %165, %166 : vector<8x128xf32>
    %168 = arith.mulf %159, %116 : vector<8x128xf32>
    %169 = arith.mulf %158, %161 : vector<8x128xf32>
    %170 = arith.addf %168, %169 : vector<8x128xf32>
    %171 = math.tanh %170 : vector<8x128xf32>
    %172 = arith.mulf %167, %171 : vector<8x128xf32>
    %c16_51 = arith.constant 16 : index
    %c0_52 = arith.constant 0 : index
    %173 = vector.load %arg12[%c16_51, %c0_52] : memref<64x128xf32, #tpu.memory_space<vmem>>, vector<8x128xf32>
    tpu.vector_store %arg12[%c16_51, %c0_52], %172 {strides = array<i32>} : memref<64x128xf32, #tpu.memory_space<vmem>>, vector<8x128xf32>,
    %174 = arith.truncf %145 : vector<8x128xf32> to vector<8x128xbf16>
    %c0_53 = arith.constant 0 : index
    %c0_54 = arith.constant 0 : index
    %175 = vector.load %arg2[%c0_53, %c0_54] : memref<128x512xbf16, #tpu.memory_space<vmem>>, vector<128x512xbf16>
    %cst_55 = arith.constant dense<0.000000e+00> : vector<8x512xf32>
    %176 = tpu.matmul %174, %175, %cst_55 {dimension_numbers = #tpu.dot_dimension_numbers<[1], [0], [0], [1], [0, 0, 1, 1], [], []>} : vector<8x128xbf16>, vector<128x512xbf16>, vector<8x512xf32> -> vector<8x512xf32>
    %c24 = arith.constant 24 : index
    %c0_56 = arith.constant 0 : index
    %177 = vector.load %arg11[%c24, %c0_56] : memref<64x512xf32, #tpu.memory_space<vmem>>, vector<8x512xf32>
    %178 = arith.addf %176, %177 : vector<8x512xf32>
    %179 = vector.extract_strided_slice %178 {offsets = [0, 0], sizes = [8, 256], strides = [1, 1]} : vector<8x512xf32> to vector<8x256xf32>
    %180 = arith.negf %179 : vector<8x256xf32>
    %181 = math.exp %180 : vector<8x256xf32>
    %cst_57 = arith.constant 1.000000e+00 : f32
    %182 = vector.broadcast %cst_57 : f32 to vector<8x256xf32>
    %183 = arith.addf %182, %181 : vector<8x256xf32>
    %184 = arith.divf %182, %183 : vector<8x256xf32>
    %185 = vector.extract_strided_slice %184 {offsets = [0, 0], sizes = [8, 128], strides = [1, 1]} : vector<8x256xf32> to vector<8x128xf32>
    %186 = vector.extract_strided_slice %184 {offsets = [0, 128], sizes = [8, 128], strides = [1, 1]} : vector<8x256xf32> to vector<8x128xf32>
    %187 = vector.extract_strided_slice %178 {offsets = [0, 256], sizes = [8, 128], strides = [1, 1]} : vector<8x512xf32> to vector<8x128xf32>
    %188 = math.tanh %187 : vector<8x128xf32>
    %189 = vector.extract_strided_slice %178 {offsets = [0, 384], sizes = [8, 128], strides = [1, 1]} : vector<8x512xf32> to vector<8x128xf32>
    %190 = arith.negf %189 : vector<8x128xf32>
    %191 = math.exp %190 : vector<8x128xf32>
    %cst_58 = arith.constant 1.000000e+00 : f32
    %192 = vector.broadcast %cst_58 : f32 to vector<8x128xf32>
    %193 = arith.addf %192, %191 : vector<8x128xf32>
    %194 = arith.divf %192, %193 : vector<8x128xf32>
    %195 = arith.mulf %186, %143 : vector<8x128xf32>
    %196 = arith.mulf %185, %188 : vector<8x128xf32>
    %197 = arith.addf %195, %196 : vector<8x128xf32>
    %198 = math.tanh %197 : vector<8x128xf32>
    %199 = arith.mulf %194, %198 : vector<8x128xf32>
    %200 = tpu.concatenate %199, %172 in 1 : vector<8x128xf32>, vector<8x128xf32> -> vector<8x256xf32>
    %201 = arith.truncf %200 : vector<8x256xf32> to vector<8x256xbf16>
    %c0_59 = arith.constant 0 : index
    %c0_60 = arith.constant 0 : index
    %202 = vector.load %arg4[%c0_59, %c0_60] : memref<256x512xbf16, #tpu.memory_space<vmem>>, vector<256x512xbf16>
    %cst_61 = arith.constant dense<0.000000e+00> : vector<8x512xf32>
    %203 = tpu.matmul %201, %202, %cst_61 {dimension_numbers = #tpu.dot_dimension_numbers<[1], [0], [0], [1], [0, 0, 1, 1], [], []>} : vector<8x256xbf16>, vector<256x512xbf16>, vector<8x512xf32> -> vector<8x512xf32>
    %204 = vector.broadcast %7 : vector<1x512xf32> to vector<8x512xf32>
    %205 = arith.addf %203, %204 : vector<8x512xf32>
    %206 = vector.extract_strided_slice %205 {offsets = [0, 0], sizes = [8, 256], strides = [1, 1]} : vector<8x512xf32> to vector<8x256xf32>
    %207 = arith.negf %206 : vector<8x256xf32>
    %208 = math.exp %207 : vector<8x256xf32>
    %cst_62 = arith.constant 1.000000e+00 : f32
    %209 = vector.broadcast %cst_62 : f32 to vector<8x256xf32>
    %210 = arith.addf %209, %208 : vector<8x256xf32>
    %211 = arith.divf %209, %210 : vector<8x256xf32>
    %212 = vector.extract_strided_slice %211 {offsets = [0, 0], sizes = [8, 128], strides = [1, 1]} : vector<8x256xf32> to vector<8x128xf32>
    %213 = vector.extract_strided_slice %211 {offsets = [0, 128], sizes = [8, 128], strides = [1, 1]} : vector<8x256xf32> to vector<8x128xf32>
    %214 = vector.extract_strided_slice %205 {offsets = [0, 256], sizes = [8, 128], strides = [1, 1]} : vector<8x512xf32> to vector<8x128xf32>
    %215 = math.tanh %214 : vector<8x128xf32>
    %216 = vector.extract_strided_slice %205 {offsets = [0, 384], sizes = [8, 128], strides = [1, 1]} : vector<8x512xf32> to vector<8x128xf32>
    %217 = arith.negf %216 : vector<8x128xf32>
    %218 = math.exp %217 : vector<8x128xf32>
    %cst_63 = arith.constant 1.000000e+00 : f32
    %219 = vector.broadcast %cst_63 : f32 to vector<8x128xf32>
    %220 = arith.addf %219, %218 : vector<8x128xf32>
    %221 = arith.divf %219, %220 : vector<8x128xf32>
    %222 = arith.mulf %213, %170 : vector<8x128xf32>
    %223 = arith.mulf %212, %215 : vector<8x128xf32>
    %224 = arith.addf %222, %223 : vector<8x128xf32>
    %225 = math.tanh %224 : vector<8x128xf32>
    %226 = arith.mulf %221, %225 : vector<8x128xf32>
    %c24_64 = arith.constant 24 : index
    %c0_65 = arith.constant 0 : index
    %227 = vector.load %arg12[%c24_64, %c0_65] : memref<64x128xf32, #tpu.memory_space<vmem>>, vector<8x128xf32>
    tpu.vector_store %arg12[%c24_64, %c0_65], %226 {strides = array<i32>} : memref<64x128xf32, #tpu.memory_space<vmem>>, vector<8x128xf32>,
    %228 = arith.truncf %199 : vector<8x128xf32> to vector<8x128xbf16>
    %c0_66 = arith.constant 0 : index
    %c0_67 = arith.constant 0 : index
    %229 = vector.load %arg2[%c0_66, %c0_67] : memref<128x512xbf16, #tpu.memory_space<vmem>>, vector<128x512xbf16>
    %cst_68 = arith.constant dense<0.000000e+00> : vector<8x512xf32>
    %230 = tpu.matmul %228, %229, %cst_68 {dimension_numbers = #tpu.dot_dimension_numbers<[1], [0], [0], [1], [0, 0, 1, 1], [], []>} : vector<8x128xbf16>, vector<128x512xbf16>, vector<8x512xf32> -> vector<8x512xf32>
    %c32 = arith.constant 32 : index
    %c0_69 = arith.constant 0 : index
    %231 = vector.load %arg11[%c32, %c0_69] : memref<64x512xf32, #tpu.memory_space<vmem>>, vector<8x512xf32>
    %232 = arith.addf %230, %231 : vector<8x512xf32>
    %233 = vector.extract_strided_slice %232 {offsets = [0, 0], sizes = [8, 256], strides = [1, 1]} : vector<8x512xf32> to vector<8x256xf32>
    %234 = arith.negf %233 : vector<8x256xf32>
    %235 = math.exp %234 : vector<8x256xf32>
    %cst_70 = arith.constant 1.000000e+00 : f32
    %236 = vector.broadcast %cst_70 : f32 to vector<8x256xf32>
    %237 = arith.addf %236, %235 : vector<8x256xf32>
    %238 = arith.divf %236, %237 : vector<8x256xf32>
    %239 = vector.extract_strided_slice %238 {offsets = [0, 0], sizes = [8, 128], strides = [1, 1]} : vector<8x256xf32> to vector<8x128xf32>
    %240 = vector.extract_strided_slice %238 {offsets = [0, 128], sizes = [8, 128], strides = [1, 1]} : vector<8x256xf32> to vector<8x128xf32>
    %241 = vector.extract_strided_slice %232 {offsets = [0, 256], sizes = [8, 128], strides = [1, 1]} : vector<8x512xf32> to vector<8x128xf32>
    %242 = math.tanh %241 : vector<8x128xf32>
    %243 = vector.extract_strided_slice %232 {offsets = [0, 384], sizes = [8, 128], strides = [1, 1]} : vector<8x512xf32> to vector<8x128xf32>
    %244 = arith.negf %243 : vector<8x128xf32>
    %245 = math.exp %244 : vector<8x128xf32>
    %cst_71 = arith.constant 1.000000e+00 : f32
    %246 = vector.broadcast %cst_71 : f32 to vector<8x128xf32>
    %247 = arith.addf %246, %245 : vector<8x128xf32>
    %248 = arith.divf %246, %247 : vector<8x128xf32>
    %249 = arith.mulf %240, %197 : vector<8x128xf32>
    %250 = arith.mulf %239, %242 : vector<8x128xf32>
    %251 = arith.addf %249, %250 : vector<8x128xf32>
    %252 = math.tanh %251 : vector<8x128xf32>
    %253 = arith.mulf %248, %252 : vector<8x128xf32>
    %254 = tpu.concatenate %253, %226 in 1 : vector<8x128xf32>, vector<8x128xf32> -> vector<8x256xf32>
    %255 = arith.truncf %254 : vector<8x256xf32> to vector<8x256xbf16>
    %c0_72 = arith.constant 0 : index
    %c0_73 = arith.constant 0 : index
    %256 = vector.load %arg4[%c0_72, %c0_73] : memref<256x512xbf16, #tpu.memory_space<vmem>>, vector<256x512xbf16>
    %cst_74 = arith.constant dense<0.000000e+00> : vector<8x512xf32>
    %257 = tpu.matmul %255, %256, %cst_74 {dimension_numbers = #tpu.dot_dimension_numbers<[1], [0], [0], [1], [0, 0, 1, 1], [], []>} : vector<8x256xbf16>, vector<256x512xbf16>, vector<8x512xf32> -> vector<8x512xf32>
    %258 = vector.broadcast %7 : vector<1x512xf32> to vector<8x512xf32>
    %259 = arith.addf %257, %258 : vector<8x512xf32>
    %260 = vector.extract_strided_slice %259 {offsets = [0, 0], sizes = [8, 256], strides = [1, 1]} : vector<8x512xf32> to vector<8x256xf32>
    %261 = arith.negf %260 : vector<8x256xf32>
    %262 = math.exp %261 : vector<8x256xf32>
    %cst_75 = arith.constant 1.000000e+00 : f32
    %263 = vector.broadcast %cst_75 : f32 to vector<8x256xf32>
    %264 = arith.addf %263, %262 : vector<8x256xf32>
    %265 = arith.divf %263, %264 : vector<8x256xf32>
    %266 = vector.extract_strided_slice %265 {offsets = [0, 0], sizes = [8, 128], strides = [1, 1]} : vector<8x256xf32> to vector<8x128xf32>
    %267 = vector.extract_strided_slice %265 {offsets = [0, 128], sizes = [8, 128], strides = [1, 1]} : vector<8x256xf32> to vector<8x128xf32>
    %268 = vector.extract_strided_slice %259 {offsets = [0, 256], sizes = [8, 128], strides = [1, 1]} : vector<8x512xf32> to vector<8x128xf32>
    %269 = math.tanh %268 : vector<8x128xf32>
    %270 = vector.extract_strided_slice %259 {offsets = [0, 384], sizes = [8, 128], strides = [1, 1]} : vector<8x512xf32> to vector<8x128xf32>
    %271 = arith.negf %270 : vector<8x128xf32>
    %272 = math.exp %271 : vector<8x128xf32>
    %cst_76 = arith.constant 1.000000e+00 : f32
    %273 = vector.broadcast %cst_76 : f32 to vector<8x128xf32>
    %274 = arith.addf %273, %272 : vector<8x128xf32>
    %275 = arith.divf %273, %274 : vector<8x128xf32>
    %276 = arith.mulf %267, %224 : vector<8x128xf32>
    %277 = arith.mulf %266, %269 : vector<8x128xf32>
    %278 = arith.addf %276, %277 : vector<8x128xf32>
    %279 = math.tanh %278 : vector<8x128xf32>
    %280 = arith.mulf %275, %279 : vector<8x128xf32>
    %c32_77 = arith.constant 32 : index
    %c0_78 = arith.constant 0 : index
    %281 = vector.load %arg12[%c32_77, %c0_78] : memref<64x128xf32, #tpu.memory_space<vmem>>, vector<8x128xf32>
    tpu.vector_store %arg12[%c32_77, %c0_78], %280 {strides = array<i32>} : memref<64x128xf32, #tpu.memory_space<vmem>>, vector<8x128xf32>,
    %282 = arith.truncf %253 : vector<8x128xf32> to vector<8x128xbf16>
    %c0_79 = arith.constant 0 : index
    %c0_80 = arith.constant 0 : index
    %283 = vector.load %arg2[%c0_79, %c0_80] : memref<128x512xbf16, #tpu.memory_space<vmem>>, vector<128x512xbf16>
    %cst_81 = arith.constant dense<0.000000e+00> : vector<8x512xf32>
    %284 = tpu.matmul %282, %283, %cst_81 {dimension_numbers = #tpu.dot_dimension_numbers<[1], [0], [0], [1], [0, 0, 1, 1], [], []>} : vector<8x128xbf16>, vector<128x512xbf16>, vector<8x512xf32> -> vector<8x512xf32>
    %c40 = arith.constant 40 : index
    %c0_82 = arith.constant 0 : index
    %285 = vector.load %arg11[%c40, %c0_82] : memref<64x512xf32, #tpu.memory_space<vmem>>, vector<8x512xf32>
    %286 = arith.addf %284, %285 : vector<8x512xf32>
    %287 = vector.extract_strided_slice %286 {offsets = [0, 0], sizes = [8, 256], strides = [1, 1]} : vector<8x512xf32> to vector<8x256xf32>
    %288 = arith.negf %287 : vector<8x256xf32>
    %289 = math.exp %288 : vector<8x256xf32>
    %cst_83 = arith.constant 1.000000e+00 : f32
    %290 = vector.broadcast %cst_83 : f32 to vector<8x256xf32>
    %291 = arith.addf %290, %289 : vector<8x256xf32>
    %292 = arith.divf %290, %291 : vector<8x256xf32>
    %293 = vector.extract_strided_slice %292 {offsets = [0, 0], sizes = [8, 128], strides = [1, 1]} : vector<8x256xf32> to vector<8x128xf32>
    %294 = vector.extract_strided_slice %292 {offsets = [0, 128], sizes = [8, 128], strides = [1, 1]} : vector<8x256xf32> to vector<8x128xf32>
    %295 = vector.extract_strided_slice %286 {offsets = [0, 256], sizes = [8, 128], strides = [1, 1]} : vector<8x512xf32> to vector<8x128xf32>
    %296 = math.tanh %295 : vector<8x128xf32>
    %297 = vector.extract_strided_slice %286 {offsets = [0, 384], sizes = [8, 128], strides = [1, 1]} : vector<8x512xf32> to vector<8x128xf32>
    %298 = arith.negf %297 : vector<8x128xf32>
    %299 = math.exp %298 : vector<8x128xf32>
    %cst_84 = arith.constant 1.000000e+00 : f32
    %300 = vector.broadcast %cst_84 : f32 to vector<8x128xf32>
    %301 = arith.addf %300, %299 : vector<8x128xf32>
    %302 = arith.divf %300, %301 : vector<8x128xf32>
    %303 = arith.mulf %294, %251 : vector<8x128xf32>
    %304 = arith.mulf %293, %296 : vector<8x128xf32>
    %305 = arith.addf %303, %304 : vector<8x128xf32>
    %306 = math.tanh %305 : vector<8x128xf32>
    %307 = arith.mulf %302, %306 : vector<8x128xf32>
    %308 = tpu.concatenate %307, %280 in 1 : vector<8x128xf32>, vector<8x128xf32> -> vector<8x256xf32>
    %309 = arith.truncf %308 : vector<8x256xf32> to vector<8x256xbf16>
    %c0_85 = arith.constant 0 : index
    %c0_86 = arith.constant 0 : index
    %310 = vector.load %arg4[%c0_85, %c0_86] : memref<256x512xbf16, #tpu.memory_space<vmem>>, vector<256x512xbf16>
    %cst_87 = arith.constant dense<0.000000e+00> : vector<8x512xf32>
    %311 = tpu.matmul %309, %310, %cst_87 {dimension_numbers = #tpu.dot_dimension_numbers<[1], [0], [0], [1], [0, 0, 1, 1], [], []>} : vector<8x256xbf16>, vector<256x512xbf16>, vector<8x512xf32> -> vector<8x512xf32>
    %312 = vector.broadcast %7 : vector<1x512xf32> to vector<8x512xf32>
    %313 = arith.addf %311, %312 : vector<8x512xf32>
    %314 = vector.extract_strided_slice %313 {offsets = [0, 0], sizes = [8, 256], strides = [1, 1]} : vector<8x512xf32> to vector<8x256xf32>
    %315 = arith.negf %314 : vector<8x256xf32>
    %316 = math.exp %315 : vector<8x256xf32>
    %cst_88 = arith.constant 1.000000e+00 : f32
    %317 = vector.broadcast %cst_88 : f32 to vector<8x256xf32>
    %318 = arith.addf %317, %316 : vector<8x256xf32>
    %319 = arith.divf %317, %318 : vector<8x256xf32>
    %320 = vector.extract_strided_slice %319 {offsets = [0, 0], sizes = [8, 128], strides = [1, 1]} : vector<8x256xf32> to vector<8x128xf32>
    %321 = vector.extract_strided_slice %319 {offsets = [0, 128], sizes = [8, 128], strides = [1, 1]} : vector<8x256xf32> to vector<8x128xf32>
    %322 = vector.extract_strided_slice %313 {offsets = [0, 256], sizes = [8, 128], strides = [1, 1]} : vector<8x512xf32> to vector<8x128xf32>
    %323 = math.tanh %322 : vector<8x128xf32>
    %324 = vector.extract_strided_slice %313 {offsets = [0, 384], sizes = [8, 128], strides = [1, 1]} : vector<8x512xf32> to vector<8x128xf32>
    %325 = arith.negf %324 : vector<8x128xf32>
    %326 = math.exp %325 : vector<8x128xf32>
    %cst_89 = arith.constant 1.000000e+00 : f32
    %327 = vector.broadcast %cst_89 : f32 to vector<8x128xf32>
    %328 = arith.addf %327, %326 : vector<8x128xf32>
    %329 = arith.divf %327, %328 : vector<8x128xf32>
    %330 = arith.mulf %321, %278 : vector<8x128xf32>
    %331 = arith.mulf %320, %323 : vector<8x128xf32>
    %332 = arith.addf %330, %331 : vector<8x128xf32>
    %333 = math.tanh %332 : vector<8x128xf32>
    %334 = arith.mulf %329, %333 : vector<8x128xf32>
    %c40_90 = arith.constant 40 : index
    %c0_91 = arith.constant 0 : index
    %335 = vector.load %arg12[%c40_90, %c0_91] : memref<64x128xf32, #tpu.memory_space<vmem>>, vector<8x128xf32>
    tpu.vector_store %arg12[%c40_90, %c0_91], %334 {strides = array<i32>} : memref<64x128xf32, #tpu.memory_space<vmem>>, vector<8x128xf32>,
    %336 = arith.truncf %307 : vector<8x128xf32> to vector<8x128xbf16>
    %c0_92 = arith.constant 0 : index
    %c0_93 = arith.constant 0 : index
    %337 = vector.load %arg2[%c0_92, %c0_93] : memref<128x512xbf16, #tpu.memory_space<vmem>>, vector<128x512xbf16>
    %cst_94 = arith.constant dense<0.000000e+00> : vector<8x512xf32>
    %338 = tpu.matmul %336, %337, %cst_94 {dimension_numbers = #tpu.dot_dimension_numbers<[1], [0], [0], [1], [0, 0, 1, 1], [], []>} : vector<8x128xbf16>, vector<128x512xbf16>, vector<8x512xf32> -> vector<8x512xf32>
    %c48 = arith.constant 48 : index
    %c0_95 = arith.constant 0 : index
    %339 = vector.load %arg11[%c48, %c0_95] : memref<64x512xf32, #tpu.memory_space<vmem>>, vector<8x512xf32>
    %340 = arith.addf %338, %339 : vector<8x512xf32>
    %341 = vector.extract_strided_slice %340 {offsets = [0, 0], sizes = [8, 256], strides = [1, 1]} : vector<8x512xf32> to vector<8x256xf32>
    %342 = arith.negf %341 : vector<8x256xf32>
    %343 = math.exp %342 : vector<8x256xf32>
    %cst_96 = arith.constant 1.000000e+00 : f32
    %344 = vector.broadcast %cst_96 : f32 to vector<8x256xf32>
    %345 = arith.addf %344, %343 : vector<8x256xf32>
    %346 = arith.divf %344, %345 : vector<8x256xf32>
    %347 = vector.extract_strided_slice %346 {offsets = [0, 0], sizes = [8, 128], strides = [1, 1]} : vector<8x256xf32> to vector<8x128xf32>
    %348 = vector.extract_strided_slice %346 {offsets = [0, 128], sizes = [8, 128], strides = [1, 1]} : vector<8x256xf32> to vector<8x128xf32>
    %349 = vector.extract_strided_slice %340 {offsets = [0, 256], sizes = [8, 128], strides = [1, 1]} : vector<8x512xf32> to vector<8x128xf32>
    %350 = math.tanh %349 : vector<8x128xf32>
    %351 = vector.extract_strided_slice %340 {offsets = [0, 384], sizes = [8, 128], strides = [1, 1]} : vector<8x512xf32> to vector<8x128xf32>
    %352 = arith.negf %351 : vector<8x128xf32>
    %353 = math.exp %352 : vector<8x128xf32>
    %cst_97 = arith.constant 1.000000e+00 : f32
    %354 = vector.broadcast %cst_97 : f32 to vector<8x128xf32>
    %355 = arith.addf %354, %353 : vector<8x128xf32>
    %356 = arith.divf %354, %355 : vector<8x128xf32>
    %357 = arith.mulf %348, %305 : vector<8x128xf32>
    %358 = arith.mulf %347, %350 : vector<8x128xf32>
    %359 = arith.addf %357, %358 : vector<8x128xf32>
    %360 = math.tanh %359 : vector<8x128xf32>
    %361 = arith.mulf %356, %360 : vector<8x128xf32>
    %362 = tpu.concatenate %361, %334 in 1 : vector<8x128xf32>, vector<8x128xf32> -> vector<8x256xf32>
    %363 = arith.truncf %362 : vector<8x256xf32> to vector<8x256xbf16>
    %c0_98 = arith.constant 0 : index
    %c0_99 = arith.constant 0 : index
    %364 = vector.load %arg4[%c0_98, %c0_99] : memref<256x512xbf16, #tpu.memory_space<vmem>>, vector<256x512xbf16>
    %cst_100 = arith.constant dense<0.000000e+00> : vector<8x512xf32>
    %365 = tpu.matmul %363, %364, %cst_100 {dimension_numbers = #tpu.dot_dimension_numbers<[1], [0], [0], [1], [0, 0, 1, 1], [], []>} : vector<8x256xbf16>, vector<256x512xbf16>, vector<8x512xf32> -> vector<8x512xf32>
    %366 = vector.broadcast %7 : vector<1x512xf32> to vector<8x512xf32>
    %367 = arith.addf %365, %366 : vector<8x512xf32>
    %368 = vector.extract_strided_slice %367 {offsets = [0, 0], sizes = [8, 256], strides = [1, 1]} : vector<8x512xf32> to vector<8x256xf32>
    %369 = arith.negf %368 : vector<8x256xf32>
    %370 = math.exp %369 : vector<8x256xf32>
    %cst_101 = arith.constant 1.000000e+00 : f32
    %371 = vector.broadcast %cst_101 : f32 to vector<8x256xf32>
    %372 = arith.addf %371, %370 : vector<8x256xf32>
    %373 = arith.divf %371, %372 : vector<8x256xf32>
    %374 = vector.extract_strided_slice %373 {offsets = [0, 0], sizes = [8, 128], strides = [1, 1]} : vector<8x256xf32> to vector<8x128xf32>
    %375 = vector.extract_strided_slice %373 {offsets = [0, 128], sizes = [8, 128], strides = [1, 1]} : vector<8x256xf32> to vector<8x128xf32>
    %376 = vector.extract_strided_slice %367 {offsets = [0, 256], sizes = [8, 128], strides = [1, 1]} : vector<8x512xf32> to vector<8x128xf32>
    %377 = math.tanh %376 : vector<8x128xf32>
    %378 = vector.extract_strided_slice %367 {offsets = [0, 384], sizes = [8, 128], strides = [1, 1]} : vector<8x512xf32> to vector<8x128xf32>
    %379 = arith.negf %378 : vector<8x128xf32>
    %380 = math.exp %379 : vector<8x128xf32>
    %cst_102 = arith.constant 1.000000e+00 : f32
    %381 = vector.broadcast %cst_102 : f32 to vector<8x128xf32>
    %382 = arith.addf %381, %380 : vector<8x128xf32>
    %383 = arith.divf %381, %382 : vector<8x128xf32>
    %384 = arith.mulf %375, %332 : vector<8x128xf32>
    %385 = arith.mulf %374, %377 : vector<8x128xf32>
    %386 = arith.addf %384, %385 : vector<8x128xf32>
    %387 = math.tanh %386 : vector<8x128xf32>
    %388 = arith.mulf %383, %387 : vector<8x128xf32>
    %c48_103 = arith.constant 48 : index
    %c0_104 = arith.constant 0 : index
    %389 = vector.load %arg12[%c48_103, %c0_104] : memref<64x128xf32, #tpu.memory_space<vmem>>, vector<8x128xf32>
    tpu.vector_store %arg12[%c48_103, %c0_104], %388 {strides = array<i32>} : memref<64x128xf32, #tpu.memory_space<vmem>>, vector<8x128xf32>,
    %390 = arith.truncf %361 : vector<8x128xf32> to vector<8x128xbf16>
    %c0_105 = arith.constant 0 : index
    %c0_106 = arith.constant 0 : index
    %391 = vector.load %arg2[%c0_105, %c0_106] : memref<128x512xbf16, #tpu.memory_space<vmem>>, vector<128x512xbf16>
    %cst_107 = arith.constant dense<0.000000e+00> : vector<8x512xf32>
    %392 = tpu.matmul %390, %391, %cst_107 {dimension_numbers = #tpu.dot_dimension_numbers<[1], [0], [0], [1], [0, 0, 1, 1], [], []>} : vector<8x128xbf16>, vector<128x512xbf16>, vector<8x512xf32> -> vector<8x512xf32>
    %c56 = arith.constant 56 : index
    %c0_108 = arith.constant 0 : index
    %393 = vector.load %arg11[%c56, %c0_108] : memref<64x512xf32, #tpu.memory_space<vmem>>, vector<8x512xf32>
    %394 = arith.addf %392, %393 : vector<8x512xf32>
    %395 = vector.extract_strided_slice %394 {offsets = [0, 0], sizes = [8, 256], strides = [1, 1]} : vector<8x512xf32> to vector<8x256xf32>
    %396 = arith.negf %395 : vector<8x256xf32>
    %397 = math.exp %396 : vector<8x256xf32>
    %cst_109 = arith.constant 1.000000e+00 : f32
    %398 = vector.broadcast %cst_109 : f32 to vector<8x256xf32>
    %399 = arith.addf %398, %397 : vector<8x256xf32>
    %400 = arith.divf %398, %399 : vector<8x256xf32>
    %401 = vector.extract_strided_slice %400 {offsets = [0, 0], sizes = [8, 128], strides = [1, 1]} : vector<8x256xf32> to vector<8x128xf32>
    %402 = vector.extract_strided_slice %400 {offsets = [0, 128], sizes = [8, 128], strides = [1, 1]} : vector<8x256xf32> to vector<8x128xf32>
    %403 = vector.extract_strided_slice %394 {offsets = [0, 256], sizes = [8, 128], strides = [1, 1]} : vector<8x512xf32> to vector<8x128xf32>
    %404 = math.tanh %403 : vector<8x128xf32>
    %405 = vector.extract_strided_slice %394 {offsets = [0, 384], sizes = [8, 128], strides = [1, 1]} : vector<8x512xf32> to vector<8x128xf32>
    %406 = arith.negf %405 : vector<8x128xf32>
    %407 = math.exp %406 : vector<8x128xf32>
    %cst_110 = arith.constant 1.000000e+00 : f32
    %408 = vector.broadcast %cst_110 : f32 to vector<8x128xf32>
    %409 = arith.addf %408, %407 : vector<8x128xf32>
    %410 = arith.divf %408, %409 : vector<8x128xf32>
    %411 = arith.mulf %402, %359 : vector<8x128xf32>
    %412 = arith.mulf %401, %404 : vector<8x128xf32>
    %413 = arith.addf %411, %412 : vector<8x128xf32>
    %414 = math.tanh %413 : vector<8x128xf32>
    %415 = arith.mulf %410, %414 : vector<8x128xf32>
    %416 = tpu.concatenate %415, %388 in 1 : vector<8x128xf32>, vector<8x128xf32> -> vector<8x256xf32>
    %417 = arith.truncf %416 : vector<8x256xf32> to vector<8x256xbf16>
    %c0_111 = arith.constant 0 : index
    %c0_112 = arith.constant 0 : index
    %418 = vector.load %arg4[%c0_111, %c0_112] : memref<256x512xbf16, #tpu.memory_space<vmem>>, vector<256x512xbf16>
    %cst_113 = arith.constant dense<0.000000e+00> : vector<8x512xf32>
    %419 = tpu.matmul %417, %418, %cst_113 {dimension_numbers = #tpu.dot_dimension_numbers<[1], [0], [0], [1], [0, 0, 1, 1], [], []>} : vector<8x256xbf16>, vector<256x512xbf16>, vector<8x512xf32> -> vector<8x512xf32>
    %420 = vector.broadcast %7 : vector<1x512xf32> to vector<8x512xf32>
    %421 = arith.addf %419, %420 : vector<8x512xf32>
    %422 = vector.extract_strided_slice %421 {offsets = [0, 0], sizes = [8, 256], strides = [1, 1]} : vector<8x512xf32> to vector<8x256xf32>
    %423 = arith.negf %422 : vector<8x256xf32>
    %424 = math.exp %423 : vector<8x256xf32>
    %cst_114 = arith.constant 1.000000e+00 : f32
    %425 = vector.broadcast %cst_114 : f32 to vector<8x256xf32>
    %426 = arith.addf %425, %424 : vector<8x256xf32>
    %427 = arith.divf %425, %426 : vector<8x256xf32>
    %428 = vector.extract_strided_slice %427 {offsets = [0, 0], sizes = [8, 128], strides = [1, 1]} : vector<8x256xf32> to vector<8x128xf32>
    %429 = vector.extract_strided_slice %427 {offsets = [0, 128], sizes = [8, 128], strides = [1, 1]} : vector<8x256xf32> to vector<8x128xf32>
    %430 = vector.extract_strided_slice %421 {offsets = [0, 256], sizes = [8, 128], strides = [1, 1]} : vector<8x512xf32> to vector<8x128xf32>
    %431 = math.tanh %430 : vector<8x128xf32>
    %432 = vector.extract_strided_slice %421 {offsets = [0, 384], sizes = [8, 128], strides = [1, 1]} : vector<8x512xf32> to vector<8x128xf32>
    %433 = arith.negf %432 : vector<8x128xf32>
    %434 = math.exp %433 : vector<8x128xf32>
    %cst_115 = arith.constant 1.000000e+00 : f32
    %435 = vector.broadcast %cst_115 : f32 to vector<8x128xf32>
    %436 = arith.addf %435, %434 : vector<8x128xf32>
    %437 = arith.divf %435, %436 : vector<8x128xf32>
    %438 = arith.mulf %429, %386 : vector<8x128xf32>
    %439 = arith.mulf %428, %431 : vector<8x128xf32>
    %440 = arith.addf %438, %439 : vector<8x128xf32>
    %441 = math.tanh %440 : vector<8x128xf32>
    %442 = arith.mulf %437, %441 : vector<8x128xf32>
    %c56_116 = arith.constant 56 : index
    %c0_117 = arith.constant 0 : index
    %443 = vector.load %arg12[%c56_116, %c0_117] : memref<64x128xf32, #tpu.memory_space<vmem>>, vector<8x128xf32>
    tpu.vector_store %arg12[%c56_116, %c0_117], %442 {strides = array<i32>} : memref<64x128xf32, #tpu.memory_space<vmem>>, vector<8x128xf32>,
    %c0_118 = arith.constant 0 : index
    %c0_119 = arith.constant 0 : index
    %444 = vector.load %arg12[%c0_118, %c0_119] : memref<64x128xf32, #tpu.memory_space<vmem>>, vector<64x128xf32>
    %445 = arith.truncf %444 : vector<64x128xf32> to vector<64x128xbf16>
    %c0_120 = arith.constant 0 : index
    %c0_121 = arith.constant 0 : index
    %446 = vector.load %arg6[%c0_120, %c0_121] : memref<128x64xbf16, #tpu.memory_space<vmem>>, vector<128x64xbf16>
    %cst_122 = arith.constant dense<0.000000e+00> : vector<64x64xf32>
    %447 = tpu.matmul %445, %446, %cst_122 {dimension_numbers = #tpu.dot_dimension_numbers<[1], [0], [0], [1], [0, 0, 1, 1], [], []>} : vector<64x128xbf16>, vector<128x64xbf16>, vector<64x64xf32> -> vector<64x64xf32>
    %c0_123 = arith.constant 0 : index
    %c0_124 = arith.constant 0 : index
    %448 = vector.load %arg7[%c0_123, %c0_124] : memref<1x64xf32, #tpu.memory_space<vmem>>, vector<1x64xf32>
    %449 = vector.broadcast %448 : vector<1x64xf32> to vector<64x64xf32>
    %450 = arith.addf %447, %449 : vector<64x64xf32>
    %cst_125 = arith.constant 0.000000e+00 : f32
    %451 = vector.broadcast %cst_125 : f32 to vector<64x64xf32>
    %452 = arith.maximumf %450, %451 : vector<64x64xf32>
    %c0_126 = arith.constant 0 : index
    %c0_127 = arith.constant 0 : index
    %453 = vector.load %arg8[%c0_126, %c0_127] : memref<1x64xf32, #tpu.memory_space<vmem>>, vector<1x64xf32>
    %454 = vector.broadcast %453 : vector<1x64xf32> to vector<64x64xf32>
    %455 = arith.mulf %452, %454 : vector<64x64xf32>
    %456 = vector.shape_cast %455 : vector<64x64xf32> to vector<8x8x64xf32>
    %cst_128 = arith.constant dense<0.000000e+00> : vector<8x8xf32>
    %457 = vector.multi_reduction <add>, %456, %cst_128 [2] : vector<8x8x64xf32> to vector<8x8xf32>
    %c0_129 = arith.constant 0 : index
    %c0_130 = arith.constant 0 : index
    %458 = vector.load %arg9[%c0_129, %c0_130] : memref<1x1xf32, #tpu.memory_space<vmem>>, vector<1x1xf32>
    %459 = vector.broadcast %458 : vector<1x1xf32> to vector<8x8xf32>
    %460 = arith.addf %457, %459 : vector<8x8xf32>
    %c0_131 = arith.constant 0 : index
    %c0_132 = arith.constant 0 : index
    %461 = vector.load %arg10[%c0_131, %c0_132] : memref<8x8xf32, #tpu.memory_space<vmem>>, vector<8x8xf32>
    tpu.vector_store %arg10[%c0_131, %c0_132], %460 {strides = array<i32>} : memref<8x8xf32, #tpu.memory_space<vmem>>, vector<8x8xf32>,
    return
  }
}

</mosaic_0001>

<llo_original>
// kernel: tpu_custom_call.1
$region0: #{tpu_custom_call.1}
  #allocation0 [shape = 'u32[]', space=smem, size = 0x4, offset = 0x4, fixed_abs, tag = 'smem constant byte address 0x4 - core index']
  #allocation1 [shape = 'u32[144,128]{1,0:T(1,128)}', space=vmem, size = 0x12000, scoped, tag = 'internal scratch']
  #allocation2 [shape = 'f32[64,512]{1,0:T(8,128)}', space=vmem, size = 0x20000, scoped, tag = 'scratch operand']
  #allocation3 [shape = 'f32[64,128]{1,0:T(8,128)}', space=vmem, size = 0x8000, scoped, tag = 'scratch operand']
  #allocation4 [shape = 'f32[1,1]{1,0:T(1,128)S(1)}', space=vmem, size = 0x200, scoped, tag = 'scoped memory for tpu_custom_call.1']
  %s0 = inlined_call_operand.vmem [shape: bf16[64,6], index: 0, kind: input, shape index: {}]
  %s1 = inlined_call_operand.vmem [shape: bf16[6,512], index: 1, kind: input, shape index: {}]
  %s2 = inlined_call_operand.hbm [shape: bf16[128,512], index: 2, kind: input, shape index: {}]
  %s3 = inlined_call_operand.vmem [shape: f32[1,512], index: 3, kind: input, shape index: {}]
  %s4 = inlined_call_operand.hbm [shape: bf16[256,512], index: 4, kind: input, shape index: {}]
  %s5 = inlined_call_operand.vmem [shape: f32[1,512], index: 5, kind: input, shape index: {}]
  %s6 = inlined_call_operand.vmem [shape: bf16[128,64], index: 6, kind: input, shape index: {}]
  %s7 = inlined_call_operand.vmem [shape: f32[1,64], index: 7, kind: input, shape index: {}]
  %s8 = inlined_call_operand.vmem [shape: f32[1,64], index: 8, kind: input, shape index: {}]
  %s9 = inlined_call_operand.<no memory space> [shape: f32[1,1], index: 9, kind: input, shape index: {}]
  %s10 = inlined_call_operand.hbm [shape: f32[8,8], index: 10, kind: output, shape index: {}]
  %s11 = sld [smem:[#allocation0]]
  $region58: #{tpu_custom_call.1} parent=0
    _
  %s13 = ssub.s32 1, %s11
  %s14 = scalar_select 0, %s13, %s11
  %v15 = vstv %s9
  %16 = vst [vmem:[#allocation4] sm:$0x1] %v15
  $region1: #{tpu_custom_call.1} parent=0
    #allocation5 [shape = 'u8[131072]{0}', space=vmem, size = 0x20000, scoped, tag = 'input window, operand 2, single buffered']
    #allocation6 [shape = 's32[1]{0}', space=sflag, size = 0x4, scoped, tag = 'scoped memory for tpu_custom_call.1']
    #allocation7 [shape = 's32[1]{0}', space=sflag, size = 0x4, scoped, tag = 'scoped memory for tpu_custom_call.1']
    #allocation8 [shape = 'u8[262144]{0}', space=vmem, size = 0x40000, scoped, tag = 'input window, operand 4, single buffered']
    #allocation9 [shape = 's32[1]{0}', space=sflag, size = 0x4, scoped, tag = 'scoped memory for tpu_custom_call.1']
    #allocation10 [shape = 'u8[4096]{0}', space=vmem, size = 0x1000, scoped, tag = 'output window, operand 0, single buffered']
    %17 = vsyncpa [#allocation6], 0
    %18 = vsyncpa [#allocation9], 0
    %19 = vsyncpa [#allocation7], 0
    // Predicated region
    $region2: #{tpu_custom_call.1} parent=1 // pred_check
      _
    $region3: #{tpu_custom_call.1} parent=1 // pred_check_branch
      %21 = sbr.rel (0) target = $region5
    $region4: #{tpu_custom_call.1} parent=1 // pred_region
      _
    $region5: #{tpu_custom_call.1} parent=1 // pred_fallthru
      _
    // Predicated region
    $region6: #{tpu_custom_call.1} parent=1 // pred_check
      _
    $region7: #{tpu_custom_call.1} parent=1 // pred_check_branch
      %23 = sbr.rel (0) target = $region9
    $region8: #{tpu_custom_call.1} parent=1 // pred_region
      _
    $region9: #{tpu_custom_call.1} parent=1 // pred_fallthru
      _
    // Predicated region
    $region10: #{tpu_custom_call.1} parent=1 // pred_check
      _
    $region11: #{tpu_custom_call.1} parent=1 // pred_check_branch
      %25 = sbr.rel (0) target = $region13
    $region12: #{tpu_custom_call.1} parent=1 // pred_region
      %s27 = ssub.s32 4096, 4096
      %28 = vsyncadd [#allocation6], %s27
      %s29 = sshll.u32 [#allocation5], 4
      %s30 = int_to_ptr.vmem [resolvable:$true] %s29
      %35 = dma.hbm_to_vmem [thread:$0]  %s2, 4096, %s30, [#allocation6], 256, 256, 16
    $region13: #{tpu_custom_call.1} parent=1 // pred_fallthru
      _
    // Predicated region
    $region14: #{tpu_custom_call.1} parent=1 // pred_check
      _
    $region15: #{tpu_custom_call.1} parent=1 // pred_check_branch
      %37 = sbr.rel (0) target = $region17
    $region16: #{tpu_custom_call.1} parent=1 // pred_region
      _
    $region17: #{tpu_custom_call.1} parent=1 // pred_fallthru
      _
    // Predicated region
    $region18: #{tpu_custom_call.1} parent=1 // pred_check
      _
    $region19: #{tpu_custom_call.1} parent=1 // pred_check_branch
      %39 = sbr.rel (0) target = $region21
    $region20: #{tpu_custom_call.1} parent=1 // pred_region
      %s41 = ssub.s32 8192, 8192
      %42 = vsyncadd [#allocation9], %s41
      %s43 = sshll.u32 [#allocation8], 4
      %s44 = int_to_ptr.vmem [resolvable:$true] %s43
      %49 = dma.hbm_to_vmem [thread:$0]  %s4, 8192, %s44, [#allocation9], 256, 256, 16
    $region21: #{tpu_custom_call.1} parent=1 // pred_fallthru
      _
    // Predicated region
    $region22: #{tpu_custom_call.1} parent=1 // pred_check
      _
    $region23: #{tpu_custom_call.1} parent=1 // pred_check_branch
      %51 = sbr.rel (0) target = $region25
    $region24: #{tpu_custom_call.1} parent=1 // pred_region
      _
    $region25: #{tpu_custom_call.1} parent=1 // pred_fallthru
      _
    // Predicated region
    $region26: #{tpu_custom_call.1} parent=1 // pred_check
      _
    $region27: #{tpu_custom_call.1} parent=1 // pred_check_branch
      %53 = sbr.rel (0) target = $region29
    $region28: #{tpu_custom_call.1} parent=1 // pred_region
      _
    $region29: #{tpu_custom_call.1} parent=1 // pred_fallthru
      _
    // Predicated region
    $region30: #{tpu_custom_call.1} parent=1 // pred_check
      _
    $region31: #{tpu_custom_call.1} parent=1 // pred_check_branch
      %55 = sbr.rel (0) target = $region33
    $region32: #{tpu_custom_call.1} parent=1 // pred_region
      _
    $region33: #{tpu_custom_call.1} parent=1 // pred_fallthru
      _
    // Predicated region
    $region34: #{tpu_custom_call.1} parent=1 // pred_check
      _
    $region35: #{tpu_custom_call.1} parent=1 // pred_check_branch
      %57 = sbr.rel (0) target = $region37
    $region36: #{tpu_custom_call.1} parent=1 // pred_region
      _
    $region37: #{tpu_custom_call.1} parent=1 // pred_fallthru
      _
    // Predicated region
    $region38: #{tpu_custom_call.1} parent=1 // pred_check
      _
    $region39: #{tpu_custom_call.1} parent=1 // pred_check_branch
      %59 = sbr.rel (0) target = $region41
    $region40: #{tpu_custom_call.1} parent=1 // pred_region
      _
    $region41: #{tpu_custom_call.1} parent=1 // pred_fallthru
      _
    // Predicated region
    $region42: #{tpu_custom_call.1} parent=1 // pred_check
      _
    $region43: #{tpu_custom_call.1} parent=1 // pred_check_branch
      %61 = sbr.rel (0) target = $region45
    $region44: #{tpu_custom_call.1} parent=1 // pred_region
      %62 = dma.done [#allocation6], 4096
    $region45: #{tpu_custom_call.1} parent=1 // pred_fallthru
      _
    // Predicated region
    $region46: #{tpu_custom_call.1} parent=1 // pred_check
      _
    $region47: #{tpu_custom_call.1} parent=1 // pred_check_branch
      %64 = sbr.rel (0) target = $region49
    $region48: #{tpu_custom_call.1} parent=1 // pred_region
      %65 = dma.done [#allocation9], 8192
    $region49: #{tpu_custom_call.1} parent=1 // pred_fallthru
      _
    %v67 = vld [vmem:[%s0] sm:$0xf]
    %v68 = vld [vmem:[%s0 + $0x4] sm:$0xf]
    %v69 = vld [vmem:[%s0 + $0x8] sm:$0xf]
    %v70 = vld [vmem:[%s0 + $0xc] sm:$0xf]
    %v71 = vld [vmem:[%s0 + $0x10] sm:$0xf]
    %v72 = vld [vmem:[%s0 + $0x14] sm:$0xf]
    %v73 = vld [vmem:[%s0 + $0x18] sm:$0xf]
    %v74 = vld [vmem:[%s0 + $0x1c] sm:$0xf]
    %v75 = vld [vmem:[%s1] sm:$0x77]
    %v76 = vld [vmem:[%s1 + $0x8] sm:$0x77]
    %v77 = vld [vmem:[%s3] sm:$0xf]
    %v79 = vlaneseq
    %v80 = vshrl.u32 %v79, 7
    %v81 = vsub.s32 0, %v80
    %v82 = vrot.slane %v77, %v81
    %v83 = vlaneseq
    %v84 = vshrl.u32 %v83, 7
    %v85 = vsub.s32 1, %v84
    %v86 = vrot.slane %v77, %v85
    %v87 = vlaneseq
    %v88 = vshrl.u32 %v87, 7
    %v89 = vsub.s32 2, %v88
    %v90 = vrot.slane %v77, %v89
    %v91 = vlaneseq
    %v92 = vshrl.u32 %v91, 7
    %v93 = vsub.s32 3, %v92
    %v94 = vrot.slane %v77, %v93
    %v107 = vunpack.c.l.b16 %v67
    %v108 = vunpack.c.l.b16 %v68
    %v109 = vunpack.c.l.b16 %v69
    %v110 = vunpack.c.l.b16 %v70
    %v111 = vunpack.c.l.b16 %v71
    %v112 = vunpack.c.l.b16 %v72
    %v113 = vunpack.c.l.b16 %v73
    %v114 = vunpack.c.l.b16 %v74
    %v115 = vpack.c.b16 %v108, %v107
    %v116 = vpack.c.b16 %v110, %v109
    %v117 = vpack.c.b16 %v112, %v111
    %v118 = vpack.c.b16 %v114, %v113
    %v121 = vunpack.c.l.b16 %v75
    %v122 = vunpack.c.h.b16 %v75
    %v123 = vunpack.c.l.b16 %v76
    %v124 = vunpack.c.h.b16 %v76
    %v125 = vpack.c.b16 %v121, %v121
    %v126 = vpack.c.b16 %v122, %v122
    %v127 = vpack.c.b16 %v123, %v123
    %v128 = vpack.c.b16 %v124, %v124
    %vm129 = vcmask 48128
    %v131 = vsel %vm129, %v115, 0
    %v134 = vsel %vm129, %v116, 0
    %v137 = vsel %vm129, %v117, 0
    %v140 = vsel %vm129, %v118, 0
    %vm142 = vcmask 1042432
    %v144 = vsel %vm142, %v125, 0
    %v147 = vsel %vm142, %v126, 0
    %v150 = vsel %vm142, %v127, 0
    %v153 = vsel %vm142, %v128, 0
    %155 = vmatprep.subr.bf16.mxu0 %v147
    %156 = vmatpush1.bf16.msra.mxu0 %v144
    %157 = vmatprep.subr.bf16.mxu0 0
    %158 = vmatpush1.bf16.msra.mxu0 0
    %159 = vmatprep.subr.bf16.mxu0 0
    %160 = vmatpush1.bf16.msra.mxu0 0
    %161 = vmatprep.subr.bf16.mxu0 0
    %162 = vmatpush1.bf16.msra.mxu0 0
    %163 = vmatprep.subr.bf16.mxu0 0
    %164 = vmatpush1.bf16.msra.mxu0 0
    %165 = vmatprep.subr.bf16.mxu0 0
    %166 = vmatpush1.bf16.msra.mxu0 0
    %167 = vmatprep.subr.bf16.mxu0 0
    %168 = vmatpush1.bf16.msra.mxu0 0
    %169 = vmatprep.subr.bf16.mxu0 0
    %170 = vmatpush1.bf16.msra.mxu0 0
    %171 = vmatprep.subr.bf16.mxu0 0
    %172 = vmatpush1.bf16.msra.mxu0 0
    %173 = vmatprep.subr.bf16.mxu0 0
    %174 = vmatpush1.bf16.msra.mxu0 0
    %175 = vmatprep.subr.bf16.mxu0 0
    %176 = vmatpush1.bf16.msra.mxu0 0
    %177 = vmatprep.subr.bf16.mxu0 0
    %178 = vmatpush1.bf16.msra.mxu0 0
    %179 = vmatprep.subr.bf16.mxu0 0
    %180 = vmatpush1.bf16.msra.mxu0 0
    %181 = vmatprep.subr.bf16.mxu0 0
    %182 = vmatpush1.bf16.msra.mxu0 0
    %183 = vmatprep.subr.bf16.mxu0 0
    %184 = vmatpush1.bf16.msra.mxu0 0
    %185 = vmatprep.subr.bf16.mxu0 0
    %186 = vmatpush1.bf16.msra.mxu0 0
    %187 = vmatprep.mubr.bf16.mxu0 0
    %188 = vmatmul.mubr.bf16.gmra.mrb[0].mxu0 %v131
    %v189 = vpop.f32.mrb[0].mxu0
    %v190 = vadd.f32 %v82, %v189
    %v191 = vpop.f32.mrb[0].mxu0
    %v192 = vadd.f32 %v86, %v191
    %v193 = vpop.f32.mrb[0].mxu0
    %v194 = vadd.f32 %v82, %v193
    %v195 = vpop.f32.mrb[0].mxu0
    %v196 = vadd.f32 %v86, %v195
    %197 = vmatprep.mubr.bf16.mxu0 0
    %198 = vmatmul.mubr.bf16.gmra.mrb[0].mxu0 %v134
    %v199 = vpop.f32.mrb[0].mxu0
    %v200 = vadd.f32 %v82, %v199
    %v201 = vpop.f32.mrb[0].mxu0
    %v202 = vadd.f32 %v86, %v201
    %v203 = vpop.f32.mrb[0].mxu0
    %v204 = vadd.f32 %v82, %v203
    %v205 = vpop.f32.mrb[0].mxu0
    %v206 = vadd.f32 %v86, %v205
    %207 = vmatprep.mubr.bf16.mxu0 0
    %208 = vmatmul.mubr.bf16.gmra.mrb[0].mxu0 %v137
    %v209 = vpop.f32.mrb[0].mxu0
    %v210 = vadd.f32 %v82, %v209
    %v211 = vpop.f32.mrb[0].mxu0
    %v212 = vadd.f32 %v86, %v211
    %v213 = vpop.f32.mrb[0].mxu0
    %v214 = vadd.f32 %v82, %v213
    %v215 = vpop.f32.mrb[0].mxu0
    %v216 = vadd.f32 %v86, %v215
    %217 = vmatprep.mubr.bf16.mxu0 0
    %218 = vmatmul.mubr.bf16.gmra.mrb[0].mxu0 %v140
    %v219 = vpop.f32.mrb[0].mxu0
    %v220 = vadd.f32 %v82, %v219
    %v221 = vpop.f32.mrb[0].mxu0
    %v222 = vadd.f32 %v86, %v221
    %v223 = vpop.f32.mrb[0].mxu0
    %v224 = vadd.f32 %v82, %v223
    %v225 = vpop.f32.mrb[0].mxu0
    %v226 = vadd.f32 %v86, %v225
    %227 = vdwg.mxu0
    %228 = vmatprep.subr.bf16.mxu0 %v153
    %229 = vmatpush1.bf16.msra.mxu0 %v150
    %230 = vmatprep.subr.bf16.mxu0 0
    %231 = vmatpush1.bf16.msra.mxu0 0
    %232 = vmatprep.subr.bf16.mxu0 0
    %233 = vmatpush1.bf16.msra.mxu0 0
    %234 = vmatprep.subr.bf16.mxu0 0
    %235 = vmatpush1.bf16.msra.mxu0 0
    %236 = vmatprep.subr.bf16.mxu0 0
    %237 = vmatpush1.bf16.msra.mxu0 0
    %238 = vmatprep.subr.bf16.mxu0 0
    %239 = vmatpush1.bf16.msra.mxu0 0
    %240 = vmatprep.subr.bf16.mxu0 0
    %241 = vmatpush1.bf16.msra.mxu0 0
    %242 = vmatprep.subr.bf16.mxu0 0
    %243 = vmatpush1.bf16.msra.mxu0 0
    %244 = vmatprep.subr.bf16.mxu0 0
    %245 = vmatpush1.bf16.msra.mxu0 0
    %246 = vmatprep.subr.bf16.mxu0 0
    %247 = vmatpush1.bf16.msra.mxu0 0
    %248 = vmatprep.subr.bf16.mxu0 0
    %249 = vmatpush1.bf16.msra.mxu0 0
    %250 = vmatprep.subr.bf16.mxu0 0
    %251 = vmatpush1.bf16.msra.mxu0 0
    %252 = vmatprep.subr.bf16.mxu0 0
    %253 = vmatpush1.bf16.msra.mxu0 0
    %254 = vmatprep.subr.bf16.mxu0 0
    %255 = vmatpush1.bf16.msra.mxu0 0
    %256 = vmatprep.subr.bf16.mxu0 0
    %257 = vmatpush1.bf16.msra.mxu0 0
    %258 = vmatprep.subr.bf16.mxu0 0
    %259 = vmatpush1.bf16.msra.mxu0 0
    %260 = vmatprep.mubr.bf16.mxu0 0
    %261 = vmatmul.mubr.bf16.gmra.mrb[0].mxu0 %v131
    %v262 = vpop.f32.mrb[0].mxu0
    %v263 = vadd.f32 %v90, %v262
    %v264 = vpop.f32.mrb[0].mxu0
    %v265 = vadd.f32 %v94, %v264
    %v266 = vpop.f32.mrb[0].mxu0
    %v267 = vadd.f32 %v90, %v266
    %v268 = vpop.f32.mrb[0].mxu0
    %v269 = vadd.f32 %v94, %v268
    %270 = vmatprep.mubr.bf16.mxu0 0
    %271 = vmatmul.mubr.bf16.gmra.mrb[0].mxu0 %v134
    %v272 = vpop.f32.mrb[0].mxu0
    %v273 = vadd.f32 %v90, %v272
    %v274 = vpop.f32.mrb[0].mxu0
    %v275 = vadd.f32 %v94, %v274
    %v276 = vpop.f32.mrb[0].mxu0
    %v277 = vadd.f32 %v90, %v276
    %v278 = vpop.f32.mrb[0].mxu0
    %v279 = vadd.f32 %v94, %v278
    %280 = vmatprep.mubr.bf16.mxu0 0
    %281 = vmatmul.mubr.bf16.gmra.mrb[0].mxu0 %v137
    %v282 = vpop.f32.mrb[0].mxu0
    %v283 = vadd.f32 %v90, %v282
    %v284 = vpop.f32.mrb[0].mxu0
    %v285 = vadd.f32 %v94, %v284
    %v286 = vpop.f32.mrb[0].mxu0
    %v287 = vadd.f32 %v90, %v286
    %v288 = vpop.f32.mrb[0].mxu0
    %v289 = vadd.f32 %v94, %v288
    %290 = vmatprep.mubr.bf16.mxu0 0
    %291 = vmatmul.mubr.bf16.gmra.mrb[0].mxu0 %v140
    %v292 = vpop.f32.mrb[0].mxu0
    %v293 = vadd.f32 %v90, %v292
    %v294 = vpop.f32.mrb[0].mxu0
    %v295 = vadd.f32 %v94, %v294
    %v296 = vpop.f32.mrb[0].mxu0
    %v297 = vadd.f32 %v90, %v296
    %v298 = vpop.f32.mrb[0].mxu0
    %v299 = vadd.f32 %v94, %v298
    %300 = vdwg.mxu0
    %301 = vst [vmem:[#allocation2] sm:$0xff] %v190
    %302 = vst [vmem:[#allocation2 + $0x8] sm:$0xff] %v192
    %303 = vst [vmem:[#allocation2 + $0x10] sm:$0xff] %v263
    %304 = vst [vmem:[#allocation2 + $0x18] sm:$0xff] %v265
    %305 = vst [vmem:[#allocation2 + $0x20] sm:$0xff] %v194
    %306 = vst [vmem:[#allocation2 + $0x28] sm:$0xff] %v196
    %307 = vst [vmem:[#allocation2 + $0x30] sm:$0xff] %v267
    %308 = vst [vmem:[#allocation2 + $0x38] sm:$0xff] %v269
    %309 = vst [vmem:[#allocation2 + $0x40] sm:$0xff] %v200
    %310 = vst [vmem:[#allocation2 + $0x48] sm:$0xff] %v202
    %311 = vst [vmem:[#allocation2 + $0x50] sm:$0xff] %v273
    %312 = vst [vmem:[#allocation2 + $0x58] sm:$0xff] %v275
    %313 = vst [vmem:[#allocation2 + $0x60] sm:$0xff] %v204
    %314 = vst [vmem:[#allocation2 + $0x68] sm:$0xff] %v206
    %315 = vst [vmem:[#allocation2 + $0x70] sm:$0xff] %v277
    %316 = vst [vmem:[#allocation2 + $0x78] sm:$0xff] %v279
    %317 = vst [vmem:[#allocation2 + $0x80] sm:$0xff] %v210
    %318 = vst [vmem:[#allocation2 + $0x88] sm:$0xff] %v212
    %319 = vst [vmem:[#allocation2 + $0x90] sm:$0xff] %v283
    %320 = vst [vmem:[#allocation2 + $0x98] sm:$0xff] %v285
    %321 = vst [vmem:[#allocation2 + $0xa0] sm:$0xff] %v214
    %322 = vst [vmem:[#allocation2 + $0xa8] sm:$0xff] %v216
    %323 = vst [vmem:[#allocation2 + $0xb0] sm:$0xff] %v287
    %324 = vst [vmem:[#allocation2 + $0xb8] sm:$0xff] %v289
    %325 = vst [vmem:[#allocation2 + $0xc0] sm:$0xff] %v220
    %326 = vst [vmem:[#allocation2 + $0xc8] sm:$0xff] %v222
    %327 = vst [vmem:[#allocation2 + $0xd0] sm:$0xff] %v293
    %328 = vst [vmem:[#allocation2 + $0xd8] sm:$0xff] %v295
    %329 = vst [vmem:[#allocation2 + $0xe0] sm:$0xff] %v224
    %330 = vst [vmem:[#allocation2 + $0xe8] sm:$0xff] %v226
    %331 = vst [vmem:[#allocation2 + $0xf0] sm:$0xff] %v297
    %332 = vst [vmem:[#allocation2 + $0xf8] sm:$0xff] %v299
    %v333 = vld [vmem:[%s5] sm:$0xf]
    %v334 = vld [vmem:[#allocation5] sm:$0xff]
    %v335 = vld [vmem:[#allocation5 + $0x8] sm:$0xff]
    %v336 = vld [vmem:[#allocation5 + $0x10] sm:$0xff]
    %v337 = vld [vmem:[#allocation5 + $0x18] sm:$0xff]
    %v338 = vld [vmem:[#allocation5 + $0x20] sm:$0xff]
    %v339 = vld [vmem:[#allocation5 + $0x28] sm:$0xff]
    %v340 = vld [vmem:[#allocation5 + $0x30] sm:$0xff]
    %v341 = vld [vmem:[#allocation5 + $0x38] sm:$0xff]
    %v342 = vld [vmem:[#allocation5 + $0x40] sm:$0xff]
    %v343 = vld [vmem:[#allocation5 + $0x48] sm:$0xff]
    %v344 = vld [vmem:[#allocation5 + $0x50] sm:$0xff]
    %v345 = vld [vmem:[#allocation5 + $0x58] sm:$0xff]
    %v346 = vld [vmem:[#allocation5 + $0x60] sm:$0xff]
    %v347 = vld [vmem:[#allocation5 + $0x68] sm:$0xff]
    %v348 = vld [vmem:[#allocation5 + $0x70] sm:$0xff]
    %v349 = vld [vmem:[#allocation5 + $0x78] sm:$0xff]
    %v350 = vld [vmem:[#allocation5 + $0x80] sm:$0xff]
    %v351 = vld [vmem:[#allocation5 + $0x88] sm:$0xff]
    %v352 = vld [vmem:[#allocation5 + $0x90] sm:$0xff]
    %v353 = vld [vmem:[#allocation5 + $0x98] sm:$0xff]
    %v354 = vld [vmem:[#allocation5 + $0xa0] sm:$0xff]
    %v355 = vld [vmem:[#allocation5 + $0xa8] sm:$0xff]
    %v356 = vld [vmem:[#allocation5 + $0xb0] sm:$0xff]
    %v357 = vld [vmem:[#allocation5 + $0xb8] sm:$0xff]
    %v358 = vld [vmem:[#allocation5 + $0xc0] sm:$0xff]
    %v359 = vld [vmem:[#allocation5 + $0xc8] sm:$0xff]
    %v360 = vld [vmem:[#allocation5 + $0xd0] sm:$0xff]
    %v361 = vld [vmem:[#allocation5 + $0xd8] sm:$0xff]
    %v362 = vld [vmem:[#allocation5 + $0xe0] sm:$0xff]
    %v363 = vld [vmem:[#allocation5 + $0xe8] sm:$0xff]
    %v364 = vld [vmem:[#allocation5 + $0xf0] sm:$0xff]
    %v365 = vld [vmem:[#allocation5 + $0xf8] sm:$0xff]
    %v366 = vld [vmem:[#allocation2] sm:$0xff]
    %v367 = vld [vmem:[#allocation2 + $0x8] sm:$0xff]
    %v368 = vld [vmem:[#allocation2 + $0x10] sm:$0xff]
    %v369 = vld [vmem:[#allocation2 + $0x18] sm:$0xff]
    %v402 = vunpack.c.l.b16 %v334
    %v403 = vunpack.c.h.b16 %v334
    %v404 = vunpack.c.l.b16 %v335
    %v405 = vunpack.c.h.b16 %v335
    %v406 = vunpack.c.l.b16 %v336
    %v407 = vunpack.c.h.b16 %v336
    %v408 = vunpack.c.l.b16 %v337
    %v409 = vunpack.c.h.b16 %v337
    %v410 = vunpack.c.l.b16 %v338
    %v411 = vunpack.c.h.b16 %v338
    %v412 = vunpack.c.l.b16 %v339
    %v413 = vunpack.c.h.b16 %v339
    %v414 = vunpack.c.l.b16 %v340
    %v415 = vunpack.c.h.b16 %v340
    %v416 = vunpack.c.l.b16 %v341
    %v417 = vunpack.c.h.b16 %v341
    %v418 = vunpack.c.l.b16 %v342
    %v419 = vunpack.c.h.b16 %v342
    %v420 = vunpack.c.l.b16 %v343
    %v421 = vunpack.c.h.b16 %v343
    %v422 = vunpack.c.l.b16 %v344
    %v423 = vunpack.c.h.b16 %v344
    %v424 = vunpack.c.l.b16 %v345
    %v425 = vunpack.c.h.b16 %v345
    %v426 = vunpack.c.l.b16 %v346
    %v427 = vunpack.c.h.b16 %v346
    %v428 = vunpack.c.l.b16 %v347
    %v429 = vunpack.c.h.b16 %v347
    %v430 = vunpack.c.l.b16 %v348
    %v431 = vunpack.c.h.b16 %v348
    %v432 = vunpack.c.l.b16 %v349
    %v433 = vunpack.c.h.b16 %v349
    %v434 = vunpack.c.l.b16 %v350
    %v435 = vunpack.c.h.b16 %v350
    %v436 = vunpack.c.l.b16 %v351
    %v437 = vunpack.c.h.b16 %v351
    %v438 = vunpack.c.l.b16 %v352
    %v439 = vunpack.c.h.b16 %v352
    %v440 = vunpack.c.l.b16 %v353
    %v441 = vunpack.c.h.b16 %v353
    %v442 = vunpack.c.l.b16 %v354
    %v443 = vunpack.c.h.b16 %v354
    %v444 = vunpack.c.l.b16 %v355
    %v445 = vunpack.c.h.b16 %v355
    %v446 = vunpack.c.l.b16 %v356
    %v447 = vunpack.c.h.b16 %v356
    %v448 = vunpack.c.l.b16 %v357
    %v449 = vunpack.c.h.b16 %v357
    %v450 = vunpack.c.l.b16 %v358
    %v451 = vunpack.c.h.b16 %v358
    %v452 = vunpack.c.l.b16 %v359
    %v453 = vunpack.c.h.b16 %v359
    %v454 = vunpack.c.l.b16 %v360
    %v455 = vunpack.c.h.b16 %v360
    %v456 = vunpack.c.l.b16 %v361
    %v457 = vunpack.c.h.b16 %v361
    %v458 = vunpack.c.l.b16 %v362
    %v459 = vunpack.c.h.b16 %v362
    %v460 = vunpack.c.l.b16 %v363
    %v461 = vunpack.c.h.b16 %v363
    %v462 = vunpack.c.l.b16 %v364
    %v463 = vunpack.c.h.b16 %v364
    %v464 = vunpack.c.l.b16 %v365
    %v465 = vunpack.c.h.b16 %v365
    %v466 = vpack.c.b16 %v406, %v402
    %v467 = vpack.c.b16 %v407, %v403
    %v468 = vpack.c.b16 %v408, %v404
    %v469 = vpack.c.b16 %v409, %v405
    %v470 = vpack.c.b16 %v414, %v410
    %v471 = vpack.c.b16 %v415, %v411
    %v472 = vpack.c.b16 %v416, %v412
    %v473 = vpack.c.b16 %v417, %v413
    %v474 = vpack.c.b16 %v422, %v418
    %v475 = vpack.c.b16 %v423, %v419
    %v476 = vpack.c.b16 %v424, %v420
    %v477 = vpack.c.b16 %v425, %v421
    %v478 = vpack.c.b16 %v430, %v426
    %v479 = vpack.c.b16 %v431, %v427
    %v480 = vpack.c.b16 %v432, %v428
    %v481 = vpack.c.b16 %v433, %v429
    %v482 = vpack.c.b16 %v438, %v434
    %v483 = vpack.c.b16 %v439, %v435
    %v484 = vpack.c.b16 %v440, %v436
    %v485 = vpack.c.b16 %v441, %v437
    %v486 = vpack.c.b16 %v446, %v442
    %v487 = vpack.c.b16 %v447, %v443
    %v488 = vpack.c.b16 %v448, %v444
    %v489 = vpack.c.b16 %v449, %v445
    %v490 = vpack.c.b16 %v454, %v450
    %v491 = vpack.c.b16 %v455, %v451
    %v492 = vpack.c.b16 %v456, %v452
    %v493 = vpack.c.b16 %v457, %v453
    %v494 = vpack.c.b16 %v462, %v458
    %v495 = vpack.c.b16 %v463, %v459
    %v496 = vpack.c.b16 %v464, %v460
    %v497 = vpack.c.b16 %v465, %v461
    %530 = vmatprep.subr.bf16.mxu0 %v467
    %531 = vmatpush1.bf16.msra.mxu0 %v466
    %532 = vmatprep.subr.bf16.mxu0 %v471
    %533 = vmatpush1.bf16.msra.mxu0 %v470
    %534 = vmatprep.subr.bf16.mxu0 %v475
    %535 = vmatpush1.bf16.msra.mxu0 %v474
    %536 = vmatprep.subr.bf16.mxu0 %v479
    %537 = vmatpush1.bf16.msra.mxu0 %v478
    %538 = vmatprep.subr.bf16.mxu0 %v483
    %539 = vmatpush1.bf16.msra.mxu0 %v482
    %540 = vmatprep.subr.bf16.mxu0 %v487
    %541 = vmatpush1.bf16.msra.mxu0 %v486
    %542 = vmatprep.subr.bf16.mxu0 %v491
    %543 = vmatpush1.bf16.msra.mxu0 %v490
    %544 = vmatprep.subr.bf16.mxu0 %v495
    %545 = vmatpush1.bf16.msra.mxu0 %v494
    %546 = vmatprep.subr.bf16.mxu0 0
    %547 = vmatpush1.bf16.msra.mxu0 0
    %548 = vmatprep.subr.bf16.mxu0 0
    %549 = vmatpush1.bf16.msra.mxu0 0
    %550 = vmatprep.subr.bf16.mxu0 0
    %551 = vmatpush1.bf16.msra.mxu0 0
    %552 = vmatprep.subr.bf16.mxu0 0
    %553 = vmatpush1.bf16.msra.mxu0 0
    %554 = vmatprep.subr.bf16.mxu0 0
    %555 = vmatpush1.bf16.msra.mxu0 0
    %556 = vmatprep.subr.bf16.mxu0 0
    %557 = vmatpush1.bf16.msra.mxu0 0
    %558 = vmatprep.subr.bf16.mxu0 0
    %559 = vmatpush1.bf16.msra.mxu0 0
    %560 = vmatprep.subr.bf16.mxu0 0
    %561 = vmatpush1.bf16.msra.mxu0 0
    %562 = vmatprep.mubr.bf16.mxu0 0
    %563 = vmatmul.mubr.bf16.gmra.mrb[0].mxu0 0
    %v564 = vpop.f32.mrb[0].mxu0
    %v565 = vadd.f32 %v366, %v564
    %v566 = vpop.f32.mrb[0].mxu0
    %v567 = vadd.f32 %v367, %v566
    %v568 = vpop.f32.mrb[0].mxu0
    %v569 = vpop.f32.mrb[0].mxu0
    %570 = vdwg.mxu0
    %571 = vmatprep.subr.bf16.mxu0 %v469
    %572 = vmatpush1.bf16.msra.mxu0 %v468
    %573 = vmatprep.subr.bf16.mxu0 %v473
    %574 = vmatpush1.bf16.msra.mxu0 %v472
    %575 = vmatprep.subr.bf16.mxu0 %v477
    %576 = vmatpush1.bf16.msra.mxu0 %v476
    %577 = vmatprep.subr.bf16.mxu0 %v481
    %578 = vmatpush1.bf16.msra.mxu0 %v480
    %579 = vmatprep.subr.bf16.mxu0 %v485
    %580 = vmatpush1.bf16.msra.mxu0 %v484
    %581 = vmatprep.subr.bf16.mxu0 %v489
    %582 = vmatpush1.bf16.msra.mxu0 %v488
    %583 = vmatprep.subr.bf16.mxu0 %v493
    %584 = vmatpush1.bf16.msra.mxu0 %v492
    %585 = vmatprep.subr.bf16.mxu0 %v497
    %586 = vmatpush1.bf16.msra.mxu0 %v496
    %587 = vmatprep.subr.bf16.mxu0 0
    %588 = vmatpush1.bf16.msra.mxu0 0
    %589 = vmatprep.subr.bf16.mxu0 0
    %590 = vmatpush1.bf16.msra.mxu0 0
    %591 = vmatprep.subr.bf16.mxu0 0
    %592 = vmatpush1.bf16.msra.mxu0 0
    %593 = vmatprep.subr.bf16.mxu0 0
    %594 = vmatpush1.bf16.msra.mxu0 0
    %595 = vmatprep.subr.bf16.mxu0 0
    %596 = vmatpush1.bf16.msra.mxu0 0
    %597 = vmatprep.subr.bf16.mxu0 0
    %598 = vmatpush1.bf16.msra.mxu0 0
    %599 = vmatprep.subr.bf16.mxu0 0
    %600 = vmatpush1.bf16.msra.mxu0 0
    %601 = vmatprep.subr.bf16.mxu0 0
    %602 = vmatpush1.bf16.msra.mxu0 0
    %603 = vmatprep.mubr.bf16.mxu0 0
    %604 = vmatmul.mubr.bf16.gmra.mrb[0].mxu0 0
    %v605 = vpop.f32.mrb[0].mxu0
    %v606 = vadd.f32 %v368, %v605
    %v607 = vpop.f32.mrb[0].mxu0
    %v608 = vadd.f32 %v369, %v607
    %v609 = vpop.f32.mrb[0].mxu0
    %v610 = vpop.f32.mrb[0].mxu0
    %611 = vdwg.mxu0
    %v612 = vxor.u32 %v565, 2147483648
    %v613 = vxor.u32 %v567, 2147483648
    %v614 = vmul.f32 %v612, 1.442695
    %v615 = vpow.pop %v614
    %v616 = vmul.f32 %v613, 1.442695
    %v617 = vpow.pop %v616
    %v618 = vadd.f32 %v615, 1.0
    %v619 = vadd.f32 %v617, 1.0
    %v620 = vrcp.pop %v618
    %v621 = vmul.f32 1.0, %v620
    %v622 = vrcp.pop %v619
    %v623 = vmul.f32 1.0, %v622
    %v624 = vtanh.pop %v606
    %v625 = vxor.u32 %v608, 2147483648
    %v626 = vmul.f32 %v625, 1.442695
    %v627 = vpow.pop %v626
    %v628 = vadd.f32 %v627, 1.0
    %v629 = vrcp.pop %v628
    %v630 = vmul.f32 1.0, %v629
    %v631 = vmul.f32 %v623, 0.0
    %v632 = vmul.f32 %v621, %v624
    %v633 = vadd.f32 %v631, %v632
    %v634 = vtanh.pop %v633
    %v635 = vmul.f32 %v630, %v634
    %v636 = vpack.c.bf16 %v635, %v635
    %v637 = vpack.c.bf16 0.0, 0.0
    %v638 = vld [vmem:[#allocation8] sm:$0xff]
    %v639 = vld [vmem:[#allocation8 + $0x8] sm:$0xff]
    %v640 = vld [vmem:[#allocation8 + $0x10] sm:$0xff]
    %v641 = vld [vmem:[#allocation8 + $0x18] sm:$0xff]
    %v642 = vld [vmem:[#allocation8 + $0x20] sm:$0xff]
    %v643 = vld [vmem:[#allocation8 + $0x28] sm:$0xff]
    %v644 = vld [vmem:[#allocation8 + $0x30] sm:$0xff]
    %v645 = vld [vmem:[#allocation8 + $0x38] sm:$0xff]
    %v646 = vld [vmem:[#allocation8 + $0x40] sm:$0xff]
    %v647 = vld [vmem:[#allocation8 + $0x48] sm:$0xff]
    %v648 = vld [vmem:[#allocation8 + $0x50] sm:$0xff]
    %v649 = vld [vmem:[#allocation8 + $0x58] sm:$0xff]
    %v650 = vld [vmem:[#allocation8 + $0x60] sm:$0xff]
    %v651 = vld [vmem:[#allocation8 + $0x68] sm:$0xff]
    %v652 = vld [vmem:[#allocation8 + $0x70] sm:$0xff]
    %v653 = vld [vmem:[#allocation8 + $0x78] sm:$0xff]
    %v654 = vld [vmem:[#allocation8 + $0x80] sm:$0xff]
    %v655 = vld [vmem:[#allocation8 + $0x88] sm:$0xff]
    %v656 = vld [vmem:[#allocation8 + $0x90] sm:$0xff]
    %v657 = vld [vmem:[#allocation8 + $0x98] sm:$0xff]
    %v658 = vld [vmem:[#allocation8 + $0xa0] sm:$0xff]
    %v659 = vld [vmem:[#allocation8 + $0xa8] sm:$0xff]
    %v660 = vld [vmem:[#allocation8 + $0xb0] sm:$0xff]
    %v661 = vld [vmem:[#allocation8 + $0xb8] sm:$0xff]
    %v662 = vld [vmem:[#allocation8 + $0xc0] sm:$0xff]
    %v663 = vld [vmem:[#allocation8 + $0xc8] sm:$0xff]
    %v664 = vld [vmem:[#allocation8 + $0xd0] sm:$0xff]
    %v665 = vld [vmem:[#allocation8 + $0xd8] sm:$0xff]
    %v666 = vld [vmem:[#allocation8 + $0xe0] sm:$0xff]
    %v667 = vld [vmem:[#allocation8 + $0xe8] sm:$0xff]
    %v668 = vld [vmem:[#allocation8 + $0xf0] sm:$0xff]
    %v669 = vld [vmem:[#allocation8 + $0xf8] sm:$0xff]
    %v670 = vld [vmem:[#allocation8 + $0x100] sm:$0xff]
    %v671 = vld [vmem:[#allocation8 + $0x108] sm:$0xff]
    %v672 = vld [vmem:[#allocation8 + $0x110] sm:$0xff]
    %v673 = vld [vmem:[#allocation8 + $0x118] sm:$0xff]
    %v674 = vld [vmem:[#allocation8 + $0x120] sm:$0xff]
    %v675 = vld [vmem:[#allocation8 + $0x128] sm:$0xff]
    %v676 = vld [vmem:[#allocation8 + $0x130] sm:$0xff]
    %v677 = vld [vmem:[#allocation8 + $0x138] sm:$0xff]
    %v678 = vld [vmem:[#allocation8 + $0x140] sm:$0xff]
    %v679 = vld [vmem:[#allocation8 + $0x148] sm:$0xff]
    %v680 = vld [vmem:[#allocation8 + $0x150] sm:$0xff]
    %v681 = vld [vmem:[#allocation8 + $0x158] sm:$0xff]
    %v682 = vld [vmem:[#allocation8 + $0x160] sm:$0xff]
    %v683 = vld [vmem:[#allocation8 + $0x168] sm:$0xff]
    %v684 = vld [vmem:[#allocation8 + $0x170] sm:$0xff]
    %v685 = vld [vmem:[#allocation8 + $0x178] sm:$0xff]
    %v686 = vld [vmem:[#allocation8 + $0x180] sm:$0xff]
    %v687 = vld [vmem:[#allocation8 + $0x188] sm:$0xff]
    %v688 = vld [vmem:[#allocation8 + $0x190] sm:$0xff]
    %v689 = vld [vmem:[#allocation8 + $0x198] sm:$0xff]
    %v690 = vld [vmem:[#allocation8 + $0x1a0] sm:$0xff]
    %v691 = vld [vmem:[#allocation8 + $0x1a8] sm:$0xff]
    %v692 = vld [vmem:[#allocation8 + $0x1b0] sm:$0xff]
    %v693 = vld [vmem:[#allocation8 + $0x1b8] sm:$0xff]
    %v694 = vld [vmem:[#allocation8 + $0x1c0] sm:$0xff]
    %v695 = vld [vmem:[#allocation8 + $0x1c8] sm:$0xff]
    %v696 = vld [vmem:[#allocation8 + $0x1d0] sm:$0xff]
    %v697 = vld [vmem:[#allocation8 + $0x1d8] sm:$0xff]
    %v698 = vld [vmem:[#allocation8 + $0x1e0] sm:$0xff]
    %v699 = vld [vmem:[#allocation8 + $0x1e8] sm:$0xff]
    %v700 = vld [vmem:[#allocation8 + $0x1f0] sm:$0xff]
    %v701 = vld [vmem:[#allocation8 + $0x1f8] sm:$0xff]
    %v703 = vlaneseq
    %v704 = vshrl.u32 %v703, 7
    %v705 = vsub.s32 0, %v704
    %v706 = vrot.slane %v333, %v705
    %v707 = vlaneseq
    %v708 = vshrl.u32 %v707, 7
    %v709 = vsub.s32 1, %v708
    %v710 = vrot.slane %v333, %v709
    %v711 = vlaneseq
    %v712 = vshrl.u32 %v711, 7
    %v713 = vsub.s32 2, %v712
    %v714 = vrot.slane %v333, %v713
    %v715 = vlaneseq
    %v716 = vshrl.u32 %v715, 7
    %v717 = vsub.s32 3, %v716
    %v718 = vrot.slane %v333, %v717
    %v787 = vunpack.c.l.b16 %v638
    %v788 = vunpack.c.h.b16 %v638
    %v789 = vunpack.c.l.b16 %v639
    %v790 = vunpack.c.h.b16 %v639
    %v791 = vunpack.c.l.b16 %v640
    %v792 = vunpack.c.h.b16 %v640
    %v793 = vunpack.c.l.b16 %v641
    %v794 = vunpack.c.h.b16 %v641
    %v795 = vunpack.c.l.b16 %v642
    %v796 = vunpack.c.h.b16 %v642
    %v797 = vunpack.c.l.b16 %v643
    %v798 = vunpack.c.h.b16 %v643
    %v799 = vunpack.c.l.b16 %v644
    %v800 = vunpack.c.h.b16 %v644
    %v801 = vunpack.c.l.b16 %v645
    %v802 = vunpack.c.h.b16 %v645
    %v803 = vunpack.c.l.b16 %v646
    %v804 = vunpack.c.h.b16 %v646
    %v805 = vunpack.c.l.b16 %v647
    %v806 = vunpack.c.h.b16 %v647
    %v807 = vunpack.c.l.b16 %v648
    %v808 = vunpack.c.h.b16 %v648
    %v809 = vunpack.c.l.b16 %v649
    %v810 = vunpack.c.h.b16 %v649
    %v811 = vunpack.c.l.b16 %v650
    %v812 = vunpack.c.h.b16 %v650
    %v813 = vunpack.c.l.b16 %v651
    %v814 = vunpack.c.h.b16 %v651
    %v815 = vunpack.c.l.b16 %v652
    %v816 = vunpack.c.h.b16 %v652
    %v817 = vunpack.c.l.b16 %v653
    %v818 = vunpack.c.h.b16 %v653
    %v819 = vunpack.c.l.b16 %v654
    %v820 = vunpack.c.h.b16 %v654
    %v821 = vunpack.c.l.b16 %v655
    %v822 = vunpack.c.h.b16 %v655
    %v823 = vunpack.c.l.b16 %v656
    %v824 = vunpack.c.h.b16 %v656
    %v825 = vunpack.c.l.b16 %v657
    %v826 = vunpack.c.h.b16 %v657
    %v827 = vunpack.c.l.b16 %v658
    %v828 = vunpack.c.h.b16 %v658
    %v829 = vunpack.c.l.b16 %v659
    %v830 = vunpack.c.h.b16 %v659
    %v831 = vunpack.c.l.b16 %v660
    %v832 = vunpack.c.h.b16 %v660
    %v833 = vunpack.c.l.b16 %v661
    %v834 = vunpack.c.h.b16 %v661
    %v835 = vunpack.c.l.b16 %v662
    %v836 = vunpack.c.h.b16 %v662
    %v837 = vunpack.c.l.b16 %v663
    %v838 = vunpack.c.h.b16 %v663
    %v839 = vunpack.c.l.b16 %v664
    %v840 = vunpack.c.h.b16 %v664
    %v841 = vunpack.c.l.b16 %v665
    %v842 = vunpack.c.h.b16 %v665
    %v843 = vunpack.c.l.b16 %v666
    %v844 = vunpack.c.h.b16 %v666
    %v845 = vunpack.c.l.b16 %v667
    %v846 = vunpack.c.h.b16 %v667
    %v847 = vunpack.c.l.b16 %v668
    %v848 = vunpack.c.h.b16 %v668
    %v849 = vunpack.c.l.b16 %v669
    %v850 = vunpack.c.h.b16 %v669
    %v851 = vunpack.c.l.b16 %v670
    %v852 = vunpack.c.h.b16 %v670
    %v853 = vunpack.c.l.b16 %v671
    %v854 = vunpack.c.h.b16 %v671
    %v855 = vunpack.c.l.b16 %v672
    %v856 = vunpack.c.h.b16 %v672
    %v857 = vunpack.c.l.b16 %v673
    %v858 = vunpack.c.h.b16 %v673
    %v859 = vunpack.c.l.b16 %v674
    %v860 = vunpack.c.h.b16 %v674
    %v861 = vunpack.c.l.b16 %v675
    %v862 = vunpack.c.h.b16 %v675
    %v863 = vunpack.c.l.b16 %v676
    %v864 = vunpack.c.h.b16 %v676
    %v865 = vunpack.c.l.b16 %v677
    %v866 = vunpack.c.h.b16 %v677
    %v867 = vunpack.c.l.b16 %v678
    %v868 = vunpack.c.h.b16 %v678
    %v869 = vunpack.c.l.b16 %v679
    %v870 = vunpack.c.h.b16 %v679
    %v871 = vunpack.c.l.b16 %v680
    %v872 = vunpack.c.h.b16 %v680
    %v873 = vunpack.c.l.b16 %v681
    %v874 = vunpack.c.h.b16 %v681
    %v875 = vunpack.c.l.b16 %v682
    %v876 = vunpack.c.h.b16 %v682
    %v877 = vunpack.c.l.b16 %v683
    %v878 = vunpack.c.h.b16 %v683
    %v879 = vunpack.c.l.b16 %v684
    %v880 = vunpack.c.h.b16 %v684
    %v881 = vunpack.c.l.b16 %v685
    %v882 = vunpack.c.h.b16 %v685
    %v883 = vunpack.c.l.b16 %v686
    %v884 = vunpack.c.h.b16 %v686
    %v885 = vunpack.c.l.b16 %v687
    %v886 = vunpack.c.h.b16 %v687
    %v887 = vunpack.c.l.b16 %v688
    %v888 = vunpack.c.h.b16 %v688
    %v889 = vunpack.c.l.b16 %v689
    %v890 = vunpack.c.h.b16 %v689
    %v891 = vunpack.c.l.b16 %v690
    %v892 = vunpack.c.h.b16 %v690
    %v893 = vunpack.c.l.b16 %v691
    %v894 = vunpack.c.h.b16 %v691
    %v895 = vunpack.c.l.b16 %v692
    %v896 = vunpack.c.h.b16 %v692
    %v897 = vunpack.c.l.b16 %v693
    %v898 = vunpack.c.h.b16 %v693
    %v899 = vunpack.c.l.b16 %v694
    %v900 = vunpack.c.h.b16 %v694
    %v901 = vunpack.c.l.b16 %v695
    %v902 = vunpack.c.h.b16 %v695
    %v903 = vunpack.c.l.b16 %v696
    %v904 = vunpack.c.h.b16 %v696
    %v905 = vunpack.c.l.b16 %v697
    %v906 = vunpack.c.h.b16 %v697
    %v907 = vunpack.c.l.b16 %v698
    %v908 = vunpack.c.h.b16 %v698
    %v909 = vunpack.c.l.b16 %v699
    %v910 = vunpack.c.h.b16 %v699
    %v911 = vunpack.c.l.b16 %v700
    %v912 = vunpack.c.h.b16 %v700
    %v913 = vunpack.c.l.b16 %v701
    %v914 = vunpack.c.h.b16 %v701
    %v915 = vpack.c.b16 %v791, %v787
    %v916 = vpack.c.b16 %v792, %v788
    %v917 = vpack.c.b16 %v793, %v789
    %v918 = vpack.c.b16 %v794, %v790
    %v919 = vpack.c.b16 %v799, %v795
    %v920 = vpack.c.b16 %v800, %v796
    %v921 = vpack.c.b16 %v801, %v797
    %v922 = vpack.c.b16 %v802, %v798
    %v923 = vpack.c.b16 %v807, %v803
    %v924 = vpack.c.b16 %v808, %v804
    %v925 = vpack.c.b16 %v809, %v805
    %v926 = vpack.c.b16 %v810, %v806
    %v927 = vpack.c.b16 %v815, %v811
    %v928 = vpack.c.b16 %v816, %v812
    %v929 = vpack.c.b16 %v817, %v813
    %v930 = vpack.c.b16 %v818, %v814
    %v931 = vpack.c.b16 %v823, %v819
    %v932 = vpack.c.b16 %v824, %v820
    %v933 = vpack.c.b16 %v825, %v821
    %v934 = vpack.c.b16 %v826, %v822
    %v935 = vpack.c.b16 %v831, %v827
    %v936 = vpack.c.b16 %v832, %v828
    %v937 = vpack.c.b16 %v833, %v829
    %v938 = vpack.c.b16 %v834, %v830
    %v939 = vpack.c.b16 %v839, %v835
    %v940 = vpack.c.b16 %v840, %v836
    %v941 = vpack.c.b16 %v841, %v837
    %v942 = vpack.c.b16 %v842, %v838
    %v943 = vpack.c.b16 %v847, %v843
    %v944 = vpack.c.b16 %v848, %v844
    %v945 = vpack.c.b16 %v849, %v845
    %v946 = vpack.c.b16 %v850, %v846
    %v947 = vpack.c.b16 %v855, %v851
    %v948 = vpack.c.b16 %v856, %v852
    %v949 = vpack.c.b16 %v857, %v853
    %v950 = vpack.c.b16 %v858, %v854
    %v951 = vpack.c.b16 %v863, %v859
    %v952 = vpack.c.b16 %v864, %v860
    %v953 = vpack.c.b16 %v865, %v861
    %v954 = vpack.c.b16 %v866, %v862
    %v955 = vpack.c.b16 %v871, %v867
    %v956 = vpack.c.b16 %v872, %v868
    %v957 = vpack.c.b16 %v873, %v869
    %v958 = vpack.c.b16 %v874, %v870
    %v959 = vpack.c.b16 %v879, %v875
    %v960 = vpack.c.b16 %v880, %v876
    %v961 = vpack.c.b16 %v881, %v877
    %v962 = vpack.c.b16 %v882, %v878
    %v963 = vpack.c.b16 %v887, %v883
    %v964 = vpack.c.b16 %v888, %v884
    %v965 = vpack.c.b16 %v889, %v885
    %v966 = vpack.c.b16 %v890, %v886
    %v967 = vpack.c.b16 %v895, %v891
    %v968 = vpack.c.b16 %v896, %v892
    %v969 = vpack.c.b16 %v897, %v893
    %v970 = vpack.c.b16 %v898, %v894
    %v971 = vpack.c.b16 %v903, %v899
    %v972 = vpack.c.b16 %v904, %v900
    %v973 = vpack.c.b16 %v905, %v901
    %v974 = vpack.c.b16 %v906, %v902
    %v975 = vpack.c.b16 %v911, %v907
    %v976 = vpack.c.b16 %v912, %v908
    %v977 = vpack.c.b16 %v913, %v909
    %v978 = vpack.c.b16 %v914, %v910
    %1043 = vmatprep.subr.bf16.mxu0 %v916
    %1044 = vmatpush1.bf16.msra.mxu0 %v915
    %1045 = vmatprep.subr.bf16.mxu0 %v920
    %1046 = vmatpush1.bf16.msra.mxu0 %v919
    %1047 = vmatprep.subr.bf16.mxu0 %v924
    %1048 = vmatpush1.bf16.msra.mxu0 %v923
    %1049 = vmatprep.subr.bf16.mxu0 %v928
    %1050 = vmatpush1.bf16.msra.mxu0 %v927
    %1051 = vmatprep.subr.bf16.mxu0 %v932
    %1052 = vmatpush1.bf16.msra.mxu0 %v931
    %1053 = vmatprep.subr.bf16.mxu0 %v936
    %1054 = vmatpush1.bf16.msra.mxu0 %v935
    %1055 = vmatprep.subr.bf16.mxu0 %v940
    %1056 = vmatpush1.bf16.msra.mxu0 %v939
    %1057 = vmatprep.subr.bf16.mxu0 %v944
    %1058 = vmatpush1.bf16.msra.mxu0 %v943
    %1059 = vmatprep.subr.bf16.mxu0 %v948
    %1060 = vmatpush1.bf16.msra.mxu0 %v947
    %1061 = vmatprep.subr.bf16.mxu0 %v952
    %1062 = vmatpush1.bf16.msra.mxu0 %v951
    %1063 = vmatprep.subr.bf16.mxu0 %v956
    %1064 = vmatpush1.bf16.msra.mxu0 %v955
    %1065 = vmatprep.subr.bf16.mxu0 %v960
    %1066 = vmatpush1.bf16.msra.mxu0 %v959
    %1067 = vmatprep.subr.bf16.mxu0 %v964
    %1068 = vmatpush1.bf16.msra.mxu0 %v963
    %1069 = vmatprep.subr.bf16.mxu0 %v968
    %1070 = vmatpush1.bf16.msra.mxu0 %v967
    %1071 = vmatprep.subr.bf16.mxu0 %v972
    %1072 = vmatpush1.bf16.msra.mxu0 %v971
    %1073 = vmatprep.subr.bf16.mxu0 %v976
    %1074 = vmatpush1.bf16.msra.mxu0 %v975
    %1075 = vmatprep.mubr.bf16.mxu0 %v637
    %1076 = vmatmul.mubr.bf16.gmra.mrb[0].mxu0 %v636
    %v1077 = vpop.f32.mrb[0].mxu0
    %v1078 = vadd.f32 %v706, %v1077
    %v1079 = vpop.f32.mrb[0].mxu0
    %v1080 = vadd.f32 %v710, %v1079
    %v1081 = vpop.f32.mrb[0].mxu0
    %v1082 = vpop.f32.mrb[0].mxu0
    %1083 = vdwg.mxu0
    %1084 = vmatprep.subr.bf16.mxu0 %v918
    %1085 = vmatpush1.bf16.msra.mxu0 %v917
    %1086 = vmatprep.subr.bf16.mxu0 %v922
    %1087 = vmatpush1.bf16.msra.mxu0 %v921
    %1088 = vmatprep.subr.bf16.mxu0 %v926
    %1089 = vmatpush1.bf16.msra.mxu0 %v925
    %1090 = vmatprep.subr.bf16.mxu0 %v930
    %1091 = vmatpush1.bf16.msra.mxu0 %v929
    %1092 = vmatprep.subr.bf16.mxu0 %v934
    %1093 = vmatpush1.bf16.msra.mxu0 %v933
    %1094 = vmatprep.subr.bf16.mxu0 %v938
    %1095 = vmatpush1.bf16.msra.mxu0 %v937
    %1096 = vmatprep.subr.bf16.mxu0 %v942
    %1097 = vmatpush1.bf16.msra.mxu0 %v941
    %1098 = vmatprep.subr.bf16.mxu0 %v946
    %1099 = vmatpush1.bf16.msra.mxu0 %v945
    %1100 = vmatprep.subr.bf16.mxu0 %v950
    %1101 = vmatpush1.bf16.msra.mxu0 %v949
    %1102 = vmatprep.subr.bf16.mxu0 %v954
    %1103 = vmatpush1.bf16.msra.mxu0 %v953
    %1104 = vmatprep.subr.bf16.mxu0 %v958
    %1105 = vmatpush1.bf16.msra.mxu0 %v957
    %1106 = vmatprep.subr.bf16.mxu0 %v962
    %1107 = vmatpush1.bf16.msra.mxu0 %v961
    %1108 = vmatprep.subr.bf16.mxu0 %v966
    %1109 = vmatpush1.bf16.msra.mxu0 %v965
    %1110 = vmatprep.subr.bf16.mxu0 %v970
    %1111 = vmatpush1.bf16.msra.mxu0 %v969
    %1112 = vmatprep.subr.bf16.mxu0 %v974
    %1113 = vmatpush1.bf16.msra.mxu0 %v973
    %1114 = vmatprep.subr.bf16.mxu0 %v978
    %1115 = vmatpush1.bf16.msra.mxu0 %v977
    %1116 = vmatprep.mubr.bf16.mxu0 %v637
    %1117 = vmatmul.mubr.bf16.gmra.mrb[0].mxu0 %v636
    %v1118 = vpop.f32.mrb[0].mxu0
    %v1119 = vadd.f32 %v714, %v1118
    %v1120 = vpop.f32.mrb[0].mxu0
    %v1121 = vadd.f32 %v718, %v1120
    %v1122 = vpop.f32.mrb[0].mxu0
    %v1123 = vpop.f32.mrb[0].mxu0
    %1124 = vdwg.mxu0
    %v1125 = vxor.u32 %v1078, 2147483648
    %v1126 = vxor.u32 %v1080, 2147483648
    %v1127 = vmul.f32 %v1125, 1.442695
    %v1128 = vpow.pop %v1127
    %v1129 = vmul.f32 %v1126, 1.442695
    %v1130 = vpow.pop %v1129
    %v1131 = vadd.f32 %v1128, 1.0
    %v1132 = vadd.f32 %v1130, 1.0
    %v1133 = vrcp.pop %v1131
    %v1134 = vmul.f32 1.0, %v1133
    %v1135 = vrcp.pop %v1132
    %v1136 = vmul.f32 1.0, %v1135
    %v1137 = vtanh.pop %v1119
    %v1138 = vxor.u32 %v1121, 2147483648
    %v1139 = vmul.f32 %v1138, 1.442695
    %v1140 = vpow.pop %v1139
    %v1141 = vadd.f32 %v1140, 1.0
    %v1142 = vrcp.pop %v1141
    %v1143 = vmul.f32 1.0, %v1142
    %v1144 = vmul.f32 %v1136, 0.0
    %v1145 = vmul.f32 %v1134, %v1137
    %v1146 = vadd.f32 %v1144, %v1145
    %v1147 = vtanh.pop %v1146
    %v1148 = vmul.f32 %v1143, %v1147
    %1149 = vst [vmem:[#allocation3] sm:$0xff] %v1148
    %v1150 = vld [vmem:[#allocation5] sm:$0xff]
    %v1151 = vld [vmem:[#allocation5 + $0x8] sm:$0xff]
    %v1152 = vld [vmem:[#allocation5 + $0x10] sm:$0xff]
    %v1153 = vld [vmem:[#allocation5 + $0x18] sm:$0xff]
    %v1154 = vld [vmem:[#allocation5 + $0x20] sm:$0xff]
    %v1155 = vld [vmem:[#allocation5 + $0x28] sm:$0xff]
    %v1156 = vld [vmem:[#allocation5 + $0x30] sm:$0xff]
    %v1157 = vld [vmem:[#allocation5 + $0x38] sm:$0xff]
    %v1158 = vld [vmem:[#allocation5 + $0x40] sm:$0xff]
    %v1159 = vld [vmem:[#allocation5 + $0x48] sm:$0xff]
    %v1160 = vld [vmem:[#allocation5 + $0x50] sm:$0xff]
    %v1161 = vld [vmem:[#allocation5 + $0x58] sm:$0xff]
    %v1162 = vld [vmem:[#allocation5 + $0x60] sm:$0xff]
    %v1163 = vld [vmem:[#allocation5 + $0x68] sm:$0xff]
    %v1164 = vld [vmem:[#allocation5 + $0x70] sm:$0xff]
    %v1165 = vld [vmem:[#allocation5 + $0x78] sm:$0xff]
    %v1166 = vld [vmem:[#allocation5 + $0x80] sm:$0xff]
    %v1167 = vld [vmem:[#allocation5 + $0x88] sm:$0xff]
    %v1168 = vld [vmem:[#allocation5 + $0x90] sm:$0xff]
    %v1169 = vld [vmem:[#allocation5 + $0x98] sm:$0xff]
    %v1170 = vld [vmem:[#allocation5 + $0xa0] sm:$0xff]
    %v1171 = vld [vmem:[#allocation5 + $0xa8] sm:$0xff]
    %v1172 = vld [vmem:[#allocation5 + $0xb0] sm:$0xff]
    %v1173 = vld [vmem:[#allocation5 + $0xb8] sm:$0xff]
    %v1174 = vld [vmem:[#allocation5 + $0xc0] sm:$0xff]
    %v1175 = vld [vmem:[#allocation5 + $0xc8] sm:$0xff]
    %v1176 = vld [vmem:[#allocation5 + $0xd0] sm:$0xff]
    %v1177 = vld [vmem:[#allocation5 + $0xd8] sm:$0xff]
    %v1178 = vld [vmem:[#allocation5 + $0xe0] sm:$0xff]
    %v1179 = vld [vmem:[#allocation5 + $0xe8] sm:$0xff]
    %v1180 = vld [vmem:[#allocation5 + $0xf0] sm:$0xff]
    %v1181 = vld [vmem:[#allocation5 + $0xf8] sm:$0xff]
    %v1182 = vld [vmem:[#allocation2 + $0x20] sm:$0xff]
    %v1183 = vld [vmem:[#allocation2 + $0x28] sm:$0xff]
    %v1184 = vld [vmem:[#allocation2 + $0x30] sm:$0xff]
    %v1185 = vld [vmem:[#allocation2 + $0x38] sm:$0xff]
    %v1218 = vunpack.c.l.b16 %v1150
    %v1219 = vunpack.c.h.b16 %v1150
    %v1220 = vunpack.c.l.b16 %v1151
    %v1221 = vunpack.c.h.b16 %v1151
    %v1222 = vunpack.c.l.b16 %v1152
    %v1223 = vunpack.c.h.b16 %v1152
    %v1224 = vunpack.c.l.b16 %v1153
    %v1225 = vunpack.c.h.b16 %v1153
    %v1226 = vunpack.c.l.b16 %v1154
    %v1227 = vunpack.c.h.b16 %v1154
    %v1228 = vunpack.c.l.b16 %v1155
    %v1229 = vunpack.c.h.b16 %v1155
    %v1230 = vunpack.c.l.b16 %v1156
    %v1231 = vunpack.c.h.b16 %v1156
    %v1232 = vunpack.c.l.b16 %v1157
    %v1233 = vunpack.c.h.b16 %v1157
    %v1234 = vunpack.c.l.b16 %v1158
    %v1235 = vunpack.c.h.b16 %v1158
    %v1236 = vunpack.c.l.b16 %v1159
    %v1237 = vunpack.c.h.b16 %v1159
    %v1238 = vunpack.c.l.b16 %v1160
    %v1239 = vunpack.c.h.b16 %v1160
    %v1240 = vunpack.c.l.b16 %v1161
    %v1241 = vunpack.c.h.b16 %v1161
    %v1242 = vunpack.c.l.b16 %v1162
    %v1243 = vunpack.c.h.b16 %v1162
    %v1244 = vunpack.c.l.b16 %v1163
    %v1245 = vunpack.c.h.b16 %v1163
    %v1246 = vunpack.c.l.b16 %v1164
    %v1247 = vunpack.c.h.b16 %v1164
    %v1248 = vunpack.c.l.b16 %v1165
    %v1249 = vunpack.c.h.b16 %v1165
    %v1250 = vunpack.c.l.b16 %v1166
    %v1251 = vunpack.c.h.b16 %v1166
    %v1252 = vunpack.c.l.b16 %v1167
    %v1253 = vunpack.c.h.b16 %v1167
    %v1254 = vunpack.c.l.b16 %v1168
    %v1255 = vunpack.c.h.b16 %v1168
    %v1256 = vunpack.c.l.b16 %v1169
    %v1257 = vunpack.c.h.b16 %v1169
    %v1258 = vunpack.c.l.b16 %v1170
    %v1259 = vunpack.c.h.b16 %v1170
    %v1260 = vunpack.c.l.b16 %v1171
    %v1261 = vunpack.c.h.b16 %v1171
    %v1262 = vunpack.c.l.b16 %v1172
    %v1263 = vunpack.c.h.b16 %v1172
    %v1264 = vunpack.c.l.b16 %v1173
    %v1265 = vunpack.c.h.b16 %v1173
    %v1266 = vunpack.c.l.b16 %v1174
    %v1267 = vunpack.c.h.b16 %v1174
    %v1268 = vunpack.c.l.b16 %v1175
    %v1269 = vunpack.c.h.b16 %v1175
    %v1270 = vunpack.c.l.b16 %v1176
    %v1271 = vunpack.c.h.b16 %v1176
    %v1272 = vunpack.c.l.b16 %v1177
    %v1273 = vunpack.c.h.b16 %v1177
    %v1274 = vunpack.c.l.b16 %v1178
    %v1275 = vunpack.c.h.b16 %v1178
    %v1276 = vunpack.c.l.b16 %v1179
    %v1277 = vunpack.c.h.b16 %v1179
    %v1278 = vunpack.c.l.b16 %v1180
    %v1279 = vunpack.c.h.b16 %v1180
    %v1280 = vunpack.c.l.b16 %v1181
    %v1281 = vunpack.c.h.b16 %v1181
    %v1282 = vpack.c.b16 %v1222, %v1218
    %v1283 = vpack.c.b16 %v1223, %v1219
    %v1284 = vpack.c.b16 %v1224, %v1220
    %v1285 = vpack.c.b16 %v1225, %v1221
    %v1286 = vpack.c.b16 %v1230, %v1226
    %v1287 = vpack.c.b16 %v1231, %v1227
    %v1288 = vpack.c.b16 %v1232, %v1228
    %v1289 = vpack.c.b16 %v1233, %v1229
    %v1290 = vpack.c.b16 %v1238, %v1234
    %v1291 = vpack.c.b16 %v1239, %v1235
    %v1292 = vpack.c.b16 %v1240, %v1236
    %v1293 = vpack.c.b16 %v1241, %v1237
    %v1294 = vpack.c.b16 %v1246, %v1242
    %v1295 = vpack.c.b16 %v1247, %v1243
    %v1296 = vpack.c.b16 %v1248, %v1244
    %v1297 = vpack.c.b16 %v1249, %v1245
    %v1298 = vpack.c.b16 %v1254, %v1250
    %v1299 = vpack.c.b16 %v1255, %v1251
    %v1300 = vpack.c.b16 %v1256, %v1252
    %v1301 = vpack.c.b16 %v1257, %v1253
    %v1302 = vpack.c.b16 %v1262, %v1258
    %v1303 = vpack.c.b16 %v1263, %v1259
    %v1304 = vpack.c.b16 %v1264, %v1260
    %v1305 = vpack.c.b16 %v1265, %v1261
    %v1306 = vpack.c.b16 %v1270, %v1266
    %v1307 = vpack.c.b16 %v1271, %v1267
    %v1308 = vpack.c.b16 %v1272, %v1268
    %v1309 = vpack.c.b16 %v1273, %v1269
    %v1310 = vpack.c.b16 %v1278, %v1274
    %v1311 = vpack.c.b16 %v1279, %v1275
    %v1312 = vpack.c.b16 %v1280, %v1276
    %v1313 = vpack.c.b16 %v1281, %v1277
    %1346 = vmatprep.subr.bf16.mxu0 %v1283
    %1347 = vmatpush1.bf16.msra.mxu0 %v1282
    %1348 = vmatprep.subr.bf16.mxu0 %v1287
    %1349 = vmatpush1.bf16.msra.mxu0 %v1286
    %1350 = vmatprep.subr.bf16.mxu0 %v1291
    %1351 = vmatpush1.bf16.msra.mxu0 %v1290
    %1352 = vmatprep.subr.bf16.mxu0 %v1295
    %1353 = vmatpush1.bf16.msra.mxu0 %v1294
    %1354 = vmatprep.subr.bf16.mxu0 %v1299
    %1355 = vmatpush1.bf16.msra.mxu0 %v1298
    %1356 = vmatprep.subr.bf16.mxu0 %v1303
    %1357 = vmatpush1.bf16.msra.mxu0 %v1302
    %1358 = vmatprep.subr.bf16.mxu0 %v1307
    %1359 = vmatpush1.bf16.msra.mxu0 %v1306
    %1360 = vmatprep.subr.bf16.mxu0 %v1311
    %1361 = vmatpush1.bf16.msra.mxu0 %v1310
    %1362 = vmatprep.subr.bf16.mxu0 0
    %1363 = vmatpush1.bf16.msra.mxu0 0
    %1364 = vmatprep.subr.bf16.mxu0 0
    %1365 = vmatpush1.bf16.msra.mxu0 0
    %1366 = vmatprep.subr.bf16.mxu0 0
    %1367 = vmatpush1.bf16.msra.mxu0 0
    %1368 = vmatprep.subr.bf16.mxu0 0
    %1369 = vmatpush1.bf16.msra.mxu0 0
    %1370 = vmatprep.subr.bf16.mxu0 0
    %1371 = vmatpush1.bf16.msra.mxu0 0
    %1372 = vmatprep.subr.bf16.mxu0 0
    %1373 = vmatpush1.bf16.msra.mxu0 0
    %1374 = vmatprep.subr.bf16.mxu0 0
    %1375 = vmatpush1.bf16.msra.mxu0 0
    %1376 = vmatprep.subr.bf16.mxu0 0
    %1377 = vmatpush1.bf16.msra.mxu0 0
    %1378 = vmatprep.mubr.bf16.mxu0 0
    %1379 = vmatmul.mubr.bf16.gmra.mrb[0].mxu0 %v636
    %v1380 = vpop.f32.mrb[0].mxu0
    %v1381 = vadd.f32 %v1182, %v1380
    %v1382 = vpop.f32.mrb[0].mxu0
    %v1383 = vadd.f32 %v1183, %v1382
    %v1384 = vpop.f32.mrb[0].mxu0
    %v1385 = vpop.f32.mrb[0].mxu0
    %1386 = vdwg.mxu0
    %1387 = vmatprep.subr.bf16.mxu0 %v1285
    %1388 = vmatpush1.bf16.msra.mxu0 %v1284
    %1389 = vmatprep.subr.bf16.mxu0 %v1289
    %1390 = vmatpush1.bf16.msra.mxu0 %v1288
    %1391 = vmatprep.subr.bf16.mxu0 %v1293
    %1392 = vmatpush1.bf16.msra.mxu0 %v1292
    %1393 = vmatprep.subr.bf16.mxu0 %v1297
    %1394 = vmatpush1.bf16.msra.mxu0 %v1296
    %1395 = vmatprep.subr.bf16.mxu0 %v1301
    %1396 = vmatpush1.bf16.msra.mxu0 %v1300
    %1397 = vmatprep.subr.bf16.mxu0 %v1305
    %1398 = vmatpush1.bf16.msra.mxu0 %v1304
    %1399 = vmatprep.subr.bf16.mxu0 %v1309
    %1400 = vmatpush1.bf16.msra.mxu0 %v1308
    %1401 = vmatprep.subr.bf16.mxu0 %v1313
    %1402 = vmatpush1.bf16.msra.mxu0 %v1312
    %1403 = vmatprep.subr.bf16.mxu0 0
    %1404 = vmatpush1.bf16.msra.mxu0 0
    %1405 = vmatprep.subr.bf16.mxu0 0
    %1406 = vmatpush1.bf16.msra.mxu0 0
    %1407 = vmatprep.subr.bf16.mxu0 0
    %1408 = vmatpush1.bf16.msra.mxu0 0
    %1409 = vmatprep.subr.bf16.mxu0 0
    %1410 = vmatpush1.bf16.msra.mxu0 0
    %1411 = vmatprep.subr.bf16.mxu0 0
    %1412 = vmatpush1.bf16.msra.mxu0 0
    %1413 = vmatprep.subr.bf16.mxu0 0
    %1414 = vmatpush1.bf16.msra.mxu0 0
    %1415 = vmatprep.subr.bf16.mxu0 0
    %1416 = vmatpush1.bf16.msra.mxu0 0
    %1417 = vmatprep.subr.bf16.mxu0 0
    %1418 = vmatpush1.bf16.msra.mxu0 0
    %1419 = vmatprep.mubr.bf16.mxu0 0
    %1420 = vmatmul.mubr.bf16.gmra.mrb[0].mxu0 %v636
    %v1421 = vpop.f32.mrb[0].mxu0
    %v1422 = vadd.f32 %v1184, %v1421
    %v1423 = vpop.f32.mrb[0].mxu0
    %v1424 = vadd.f32 %v1185, %v1423
    %v1425 = vpop.f32.mrb[0].mxu0
    %v1426 = vpop.f32.mrb[0].mxu0
    %1427 = vdwg.mxu0
    %v1428 = vxor.u32 %v1381, 2147483648
    %v1429 = vxor.u32 %v1383, 2147483648
    %v1430 = vmul.f32 %v1428, 1.442695
    %v1431 = vpow.pop %v1430
    %v1432 = vmul.f32 %v1429, 1.442695
    %v1433 = vpow.pop %v1432
    %v1434 = vadd.f32 %v1431, 1.0
    %v1435 = vadd.f32 %v1433, 1.0
    %v1436 = vrcp.pop %v1434
    %v1437 = vmul.f32 1.0, %v1436
    %v1438 = vrcp.pop %v1435
    %v1439 = vmul.f32 1.0, %v1438
    %v1440 = vtanh.pop %v1422
    %v1441 = vxor.u32 %v1424, 2147483648
    %v1442 = vmul.f32 %v1441, 1.442695
    %v1443 = vpow.pop %v1442
    %v1444 = vadd.f32 %v1443, 1.0
    %v1445 = vrcp.pop %v1444
    %v1446 = vmul.f32 1.0, %v1445
    %v1447 = vmul.f32 %v1439, %v633
    %v1448 = vmul.f32 %v1437, %v1440
    %v1449 = vadd.f32 %v1447, %v1448
    %v1450 = vtanh.pop %v1449
    %v1451 = vmul.f32 %v1446, %v1450
    %v1452 = vpack.c.bf16 %v1451, %v1451
    %v1453 = vpack.c.bf16 %v1148, %v1148
    %v1454 = vld [vmem:[#allocation8] sm:$0xff]
    %v1455 = vld [vmem:[#allocation8 + $0x8] sm:$0xff]
    %v1456 = vld [vmem:[#allocation8 + $0x10] sm:$0xff]
    %v1457 = vld [vmem:[#allocation8 + $0x18] sm:$0xff]
    %v1458 = vld [vmem:[#allocation8 + $0x20] sm:$0xff]
    %v1459 = vld [vmem:[#allocation8 + $0x28] sm:$0xff]
    %v1460 = vld [vmem:[#allocation8 + $0x30] sm:$0xff]
    %v1461 = vld [vmem:[#allocation8 + $0x38] sm:$0xff]
    %v1462 = vld [vmem:[#allocation8 + $0x40] sm:$0xff]
    %v1463 = vld [vmem:[#allocation8 + $0x48] sm:$0xff]
    %v1464 = vld [vmem:[#allocation8 + $0x50] sm:$0xff]
    %v1465 = vld [vmem:[#allocation8 + $0x58] sm:$0xff]
    %v1466 = vld [vmem:[#allocation8 + $0x60] sm:$0xff]
    %v1467 = vld [vmem:[#allocation8 + $0x68] sm:$0xff]
    %v1468 = vld [vmem:[#allocation8 + $0x70] sm:$0xff]
    %v1469 = vld [vmem:[#allocation8 + $0x78] sm:$0xff]
    %v1470 = vld [vmem:[#allocation8 + $0x80] sm:$0xff]
    %v1471 = vld [vmem:[#allocation8 + $0x88] sm:$0xff]
    %v1472 = vld [vmem:[#allocation8 + $0x90] sm:$0xff]
    %v1473 = vld [vmem:[#allocation8 + $0x98] sm:$0xff]
    %v1474 = vld [vmem:[#allocation8 + $0xa0] sm:$0xff]
    %v1475 = vld [vmem:[#allocation8 + $0xa8] sm:$0xff]
    %v1476 = vld [vmem:[#allocation8 + $0xb0] sm:$0xff]
    %v1477 = vld [vmem:[#allocation8 + $0xb8] sm:$0xff]
    %v1478 = vld [vmem:[#allocation8 + $0xc0] sm:$0xff]
    %v1479 = vld [vmem:[#allocation8 + $0xc8] sm:$0xff]
    %v1480 = vld [vmem:[#allocation8 + $0xd0] sm:$0xff]
    %v1481 = vld [vmem:[#allocation8 + $0xd8] sm:$0xff]
    %v1482 = vld [vmem:[#allocation8 + $0xe0] sm:$0xff]
    %v1483 = vld [vmem:[#allocation8 + $0xe8] sm:$0xff]
    %v1484 = vld [vmem:[#allocation8 + $0xf0] sm:$0xff]
    %v1485 = vld [vmem:[#allocation8 + $0xf8] sm:$0xff]
    %v1486 = vld [vmem:[#allocation8 + $0x100] sm:$0xff]
    %v1487 = vld [vmem:[#allocation8 + $0x108] sm:$0xff]
    %v1488 = vld [vmem:[#allocation8 + $0x110] sm:$0xff]
    %v1489 = vld [vmem:[#allocation8 + $0x118] sm:$0xff]
    %v1490 = vld [vmem:[#allocation8 + $0x120] sm:$0xff]
    %v1491 = vld [vmem:[#allocation8 + $0x128] sm:$0xff]
    %v1492 = vld [vmem:[#allocation8 + $0x130] sm:$0xff]
    %v1493 = vld [vmem:[#allocation8 + $0x138] sm:$0xff]
    %v1494 = vld [vmem:[#allocation8 + $0x140] sm:$0xff]
    %v1495 = vld [vmem:[#allocation8 + $0x148] sm:$0xff]
    %v1496 = vld [vmem:[#allocation8 + $0x150] sm:$0xff]
    %v1497 = vld [vmem:[#allocation8 + $0x158] sm:$0xff]
    %v1498 = vld [vmem:[#allocation8 + $0x160] sm:$0xff]
    %v1499 = vld [vmem:[#allocation8 + $0x168] sm:$0xff]
    %v1500 = vld [vmem:[#allocation8 + $0x170] sm:$0xff]
    %v1501 = vld [vmem:[#allocation8 + $0x178] sm:$0xff]
    %v1502 = vld [vmem:[#allocation8 + $0x180] sm:$0xff]
    %v1503 = vld [vmem:[#allocation8 + $0x188] sm:$0xff]
    %v1504 = vld [vmem:[#allocation8 + $0x190] sm:$0xff]
    %v1505 = vld [vmem:[#allocation8 + $0x198] sm:$0xff]
    %v1506 = vld [vmem:[#allocation8 + $0x1a0] sm:$0xff]
    %v1507 = vld [vmem:[#allocation8 + $0x1a8] sm:$0xff]
    %v1508 = vld [vmem:[#allocation8 + $0x1b0] sm:$0xff]
    %v1509 = vld [vmem:[#allocation8 + $0x1b8] sm:$0xff]
    %v1510 = vld [vmem:[#allocation8 + $0x1c0] sm:$0xff]
    %v1511 = vld [vmem:[#allocation8 + $0x1c8] sm:$0xff]
    %v1512 = vld [vmem:[#allocation8 + $0x1d0] sm:$0xff]
    %v1513 = vld [vmem:[#allocation8 + $0x1d8] sm:$0xff]
    %v1514 = vld [vmem:[#allocation8 + $0x1e0] sm:$0xff]
    %v1515 = vld [vmem:[#allocation8 + $0x1e8] sm:$0xff]
    %v1516 = vld [vmem:[#allocation8 + $0x1f0] sm:$0xff]
    %v1517 = vld [vmem:[#allocation8 + $0x1f8] sm:$0xff]
    %v1582 = vunpack.c.l.b16 %v1454
    %v1583 = vunpack.c.h.b16 %v1454
    %v1584 = vunpack.c.l.b16 %v1455
    %v1585 = vunpack.c.h.b16 %v1455
    %v1586 = vunpack.c.l.b16 %v1456
    %v1587 = vunpack.c.h.b16 %v1456
    %v1588 = vunpack.c.l.b16 %v1457
    %v1589 = vunpack.c.h.b16 %v1457
    %v1590 = vunpack.c.l.b16 %v1458
    %v1591 = vunpack.c.h.b16 %v1458
    %v1592 = vunpack.c.l.b16 %v1459
    %v1593 = vunpack.c.h.b16 %v1459
    %v1594 = vunpack.c.l.b16 %v1460
    %v1595 = vunpack.c.h.b16 %v1460
    %v1596 = vunpack.c.l.b16 %v1461
    %v1597 = vunpack.c.h.b16 %v1461
    %v1598 = vunpack.c.l.b16 %v1462
    %v1599 = vunpack.c.h.b16 %v1462
    %v1600 = vunpack.c.l.b16 %v1463
    %v1601 = vunpack.c.h.b16 %v1463
    %v1602 = vunpack.c.l.b16 %v1464
    %v1603 = vunpack.c.h.b16 %v1464
    %v1604 = vunpack.c.l.b16 %v1465
    %v1605 = vunpack.c.h.b16 %v1465
    %v1606 = vunpack.c.l.b16 %v1466
    %v1607 = vunpack.c.h.b16 %v1466
    %v1608 = vunpack.c.l.b16 %v1467
    %v1609 = vunpack.c.h.b16 %v1467
    %v1610 = vunpack.c.l.b16 %v1468
    %v1611 = vunpack.c.h.b16 %v1468
    %v1612 = vunpack.c.l.b16 %v1469
    %v1613 = vunpack.c.h.b16 %v1469
    %v1614 = vunpack.c.l.b16 %v1470
    %v1615 = vunpack.c.h.b16 %v1470
    %v1616 = vunpack.c.l.b16 %v1471
    %v1617 = vunpack.c.h.b16 %v1471
    %v1618 = vunpack.c.l.b16 %v1472
    %v1619 = vunpack.c.h.b16 %v1472
    %v1620 = vunpack.c.l.b16 %v1473
    %v1621 = vunpack.c.h.b16 %v1473
    %v1622 = vunpack.c.l.b16 %v1474
    %v1623 = vunpack.c.h.b16 %v1474
    %v1624 = vunpack.c.l.b16 %v1475
    %v1625 = vunpack.c.h.b16 %v1475
    %v1626 = vunpack.c.l.b16 %v1476
    %v1627 = vunpack.c.h.b16 %v1476
    %v1628 = vunpack.c.l.b16 %v1477
    %v1629 = vunpack.c.h.b16 %v1477
    %v1630 = vunpack.c.l.b16 %v1478
    %v1631 = vunpack.c.h.b16 %v1478
    %v1632 = vunpack.c.l.b16 %v1479
    %v1633 = vunpack.c.h.b16 %v1479
    %v1634 = vunpack.c.l.b16 %v1480
    %v1635 = vunpack.c.h.b16 %v1480
    %v1636 = vunpack.c.l.b16 %v1481
    %v1637 = vunpack.c.h.b16 %v1481
    %v1638 = vunpack.c.l.b16 %v1482
    %v1639 = vunpack.c.h.b16 %v1482
    %v1640 = vunpack.c.l.b16 %v1483
    %v1641 = vunpack.c.h.b16 %v1483
    %v1642 = vunpack.c.l.b16 %v1484
    %v1643 = vunpack.c.h.b16 %v1484
    %v1644 = vunpack.c.l.b16 %v1485
    %v1645 = vunpack.c.h.b16 %v1485
    %v1646 = vunpack.c.l.b16 %v1486
    %v1647 = vunpack.c.h.b16 %v1486
    %v1648 = vunpack.c.l.b16 %v1487
    %v1649 = vunpack.c.h.b16 %v1487
    %v1650 = vunpack.c.l.b16 %v1488
    %v1651 = vunpack.c.h.b16 %v1488
    %v1652 = vunpack.c.l.b16 %v1489
    %v1653 = vunpack.c.h.b16 %v1489
    %v1654 = vunpack.c.l.b16 %v1490
    %v1655 = vunpack.c.h.b16 %v1490
    %v1656 = vunpack.c.l.b16 %v1491
    %v1657 = vunpack.c.h.b16 %v1491
    %v1658 = vunpack.c.l.b16 %v1492
    %v1659 = vunpack.c.h.b16 %v1492
    %v1660 = vunpack.c.l.b16 %v1493
    %v1661 = vunpack.c.h.b16 %v1493
    %v1662 = vunpack.c.l.b16 %v1494
    %v1663 = vunpack.c.h.b16 %v1494
    %v1664 = vunpack.c.l.b16 %v1495
    %v1665 = vunpack.c.h.b16 %v1495
    %v1666 = vunpack.c.l.b16 %v1496
    %v1667 = vunpack.c.h.b16 %v1496
    %v1668 = vunpack.c.l.b16 %v1497
    %v1669 = vunpack.c.h.b16 %v1497
    %v1670 = vunpack.c.l.b16 %v1498
    %v1671 = vunpack.c.h.b16 %v1498
    %v1672 = vunpack.c.l.b16 %v1499
    %v1673 = vunpack.c.h.b16 %v1499
    %v1674 = vunpack.c.l.b16 %v1500
    %v1675 = vunpack.c.h.b16 %v1500
    %v1676 = vunpack.c.l.b16 %v1501
    %v1677 = vunpack.c.h.b16 %v1501
    %v1678 = vunpack.c.l.b16 %v1502
    %v1679 = vunpack.c.h.b16 %v1502
    %v1680 = vunpack.c.l.b16 %v1503
    %v1681 = vunpack.c.h.b16 %v1503
    %v1682 = vunpack.c.l.b16 %v1504
    %v1683 = vunpack.c.h.b16 %v1504
    %v1684 = vunpack.c.l.b16 %v1505
    %v1685 = vunpack.c.h.b16 %v1505
    %v1686 = vunpack.c.l.b16 %v1506
    %v1687 = vunpack.c.h.b16 %v1506
    %v1688 = vunpack.c.l.b16 %v1507
    %v1689 = vunpack.c.h.b16 %v1507
    %v1690 = vunpack.c.l.b16 %v1508
    %v1691 = vunpack.c.h.b16 %v1508
    %v1692 = vunpack.c.l.b16 %v1509
    %v1693 = vunpack.c.h.b16 %v1509
    %v1694 = vunpack.c.l.b16 %v1510
    %v1695 = vunpack.c.h.b16 %v1510
    %v1696 = vunpack.c.l.b16 %v1511
    %v1697 = vunpack.c.h.b16 %v1511
    %v1698 = vunpack.c.l.b16 %v1512
    %v1699 = vunpack.c.h.b16 %v1512
    %v1700 = vunpack.c.l.b16 %v1513
    %v1701 = vunpack.c.h.b16 %v1513
    %v1702 = vunpack.c.l.b16 %v1514
    %v1703 = vunpack.c.h.b16 %v1514
    %v1704 = vunpack.c.l.b16 %v1515
    %v1705 = vunpack.c.h.b16 %v1515
    %v1706 = vunpack.c.l.b16 %v1516
    %v1707 = vunpack.c.h.b16 %v1516
    %v1708 = vunpack.c.l.b16 %v1517
    %v1709 = vunpack.c.h.b16 %v1517
    %v1710 = vpack.c.b16 %v1586, %v1582
    %v1711 = vpack.c.b16 %v1587, %v1583
    %v1712 = vpack.c.b16 %v1588, %v1584
    %v1713 = vpack.c.b16 %v1589, %v1585
    %v1714 = vpack.c.b16 %v1594, %v1590
    %v1715 = vpack.c.b16 %v1595, %v1591
    %v1716 = vpack.c.b16 %v1596, %v1592
    %v1717 = vpack.c.b16 %v1597, %v1593
    %v1718 = vpack.c.b16 %v1602, %v1598
    %v1719 = vpack.c.b16 %v1603, %v1599
    %v1720 = vpack.c.b16 %v1604, %v1600
    %v1721 = vpack.c.b16 %v1605, %v1601
    %v1722 = vpack.c.b16 %v1610, %v1606
    %v1723 = vpack.c.b16 %v1611, %v1607
    %v1724 = vpack.c.b16 %v1612, %v1608
    %v1725 = vpack.c.b16 %v1613, %v1609
    %v1726 = vpack.c.b16 %v1618, %v1614
    %v1727 = vpack.c.b16 %v1619, %v1615
    %v1728 = vpack.c.b16 %v1620, %v1616
    %v1729 = vpack.c.b16 %v1621, %v1617
    %v1730 = vpack.c.b16 %v1626, %v1622
    %v1731 = vpack.c.b16 %v1627, %v1623
    %v1732 = vpack.c.b16 %v1628, %v1624
    %v1733 = vpack.c.b16 %v1629, %v1625
    %v1734 = vpack.c.b16 %v1634, %v1630
    %v1735 = vpack.c.b16 %v1635, %v1631
    %v1736 = vpack.c.b16 %v1636, %v1632
    %v1737 = vpack.c.b16 %v1637, %v1633
    %v1738 = vpack.c.b16 %v1642, %v1638
    %v1739 = vpack.c.b16 %v1643, %v1639
    %v1740 = vpack.c.b16 %v1644, %v1640
    %v1741 = vpack.c.b16 %v1645, %v1641
    %v1742 = vpack.c.b16 %v1650, %v1646
    %v1743 = vpack.c.b16 %v1651, %v1647
    %v1744 = vpack.c.b16 %v1652, %v1648
    %v1745 = vpack.c.b16 %v1653, %v1649
    %v1746 = vpack.c.b16 %v1658, %v1654
    %v1747 = vpack.c.b16 %v1659, %v1655
    %v1748 = vpack.c.b16 %v1660, %v1656
    %v1749 = vpack.c.b16 %v1661, %v1657
    %v1750 = vpack.c.b16 %v1666, %v1662
    %v1751 = vpack.c.b16 %v1667, %v1663
    %v1752 = vpack.c.b16 %v1668, %v1664
    %v1753 = vpack.c.b16 %v1669, %v1665
    %v1754 = vpack.c.b16 %v1674, %v1670
    %v1755 = vpack.c.b16 %v1675, %v1671
    %v1756 = vpack.c.b16 %v1676, %v1672
    %v1757 = vpack.c.b16 %v1677, %v1673
    %v1758 = vpack.c.b16 %v1682, %v1678
    %v1759 = vpack.c.b16 %v1683, %v1679
    %v1760 = vpack.c.b16 %v1684, %v1680
    %v1761 = vpack.c.b16 %v1685, %v1681
    %v1762 = vpack.c.b16 %v1690, %v1686
    %v1763 = vpack.c.b16 %v1691, %v1687
    %v1764 = vpack.c.b16 %v1692, %v1688
    %v1765 = vpack.c.b16 %v1693, %v1689
    %v1766 = vpack.c.b16 %v1698, %v1694
    %v1767 = vpack.c.b16 %v1699, %v1695
    %v1768 = vpack.c.b16 %v1700, %v1696
    %v1769 = vpack.c.b16 %v1701, %v1697
    %v1770 = vpack.c.b16 %v1706, %v1702
    %v1771 = vpack.c.b16 %v1707, %v1703
    %v1772 = vpack.c.b16 %v1708, %v1704
    %v1773 = vpack.c.b16 %v1709, %v1705
    %1838 = vmatprep.subr.bf16.mxu0 %v1711
    %1839 = vmatpush1.bf16.msra.mxu0 %v1710
    %1840 = vmatprep.subr.bf16.mxu0 %v1715
    %1841 = vmatpush1.bf16.msra.mxu0 %v1714
    %1842 = vmatprep.subr.bf16.mxu0 %v1719
    %1843 = vmatpush1.bf16.msra.mxu0 %v1718
    %1844 = vmatprep.subr.bf16.mxu0 %v1723
    %1845 = vmatpush1.bf16.msra.mxu0 %v1722
    %1846 = vmatprep.subr.bf16.mxu0 %v1727
    %1847 = vmatpush1.bf16.msra.mxu0 %v1726
    %1848 = vmatprep.subr.bf16.mxu0 %v1731
    %1849 = vmatpush1.bf16.msra.mxu0 %v1730
    %1850 = vmatprep.subr.bf16.mxu0 %v1735
    %1851 = vmatpush1.bf16.msra.mxu0 %v1734
    %1852 = vmatprep.subr.bf16.mxu0 %v1739
    %1853 = vmatpush1.bf16.msra.mxu0 %v1738
    %1854 = vmatprep.subr.bf16.mxu0 %v1743
    %1855 = vmatpush1.bf16.msra.mxu0 %v1742
    %1856 = vmatprep.subr.bf16.mxu0 %v1747
    %1857 = vmatpush1.bf16.msra.mxu0 %v1746
    %1858 = vmatprep.subr.bf16.mxu0 %v1751
    %1859 = vmatpush1.bf16.msra.mxu0 %v1750
    %1860 = vmatprep.subr.bf16.mxu0 %v1755
    %1861 = vmatpush1.bf16.msra.mxu0 %v1754
    %1862 = vmatprep.subr.bf16.mxu0 %v1759
    %1863 = vmatpush1.bf16.msra.mxu0 %v1758
    %1864 = vmatprep.subr.bf16.mxu0 %v1763
    %1865 = vmatpush1.bf16.msra.mxu0 %v1762
    %1866 = vmatprep.subr.bf16.mxu0 %v1767
    %1867 = vmatpush1.bf16.msra.mxu0 %v1766
    %1868 = vmatprep.subr.bf16.mxu0 %v1771
    %1869 = vmatpush1.bf16.msra.mxu0 %v1770
    %1870 = vmatprep.mubr.bf16.mxu0 %v1453
    %1871 = vmatmul.mubr.bf16.gmra.mrb[0].mxu0 %v1452
    %v1872 = vpop.f32.mrb[0].mxu0
    %v1873 = vadd.f32 %v706, %v1872
    %v1874 = vpop.f32.mrb[0].mxu0
    %v1875 = vadd.f32 %v710, %v1874
    %v1876 = vpop.f32.mrb[0].mxu0
    %v1877 = vpop.f32.mrb[0].mxu0
    %1878 = vdwg.mxu0
    %1879 = vmatprep.subr.bf16.mxu0 %v1713
    %1880 = vmatpush1.bf16.msra.mxu0 %v1712
    %1881 = vmatprep.subr.bf16.mxu0 %v1717
    %1882 = vmatpush1.bf16.msra.mxu0 %v1716
    %1883 = vmatprep.subr.bf16.mxu0 %v1721
    %1884 = vmatpush1.bf16.msra.mxu0 %v1720
    %1885 = vmatprep.subr.bf16.mxu0 %v1725
    %1886 = vmatpush1.bf16.msra.mxu0 %v1724
    %1887 = vmatprep.subr.bf16.mxu0 %v1729
    %1888 = vmatpush1.bf16.msra.mxu0 %v1728
    %1889 = vmatprep.subr.bf16.mxu0 %v1733
    %1890 = vmatpush1.bf16.msra.mxu0 %v1732
    %1891 = vmatprep.subr.bf16.mxu0 %v1737
    %1892 = vmatpush1.bf16.msra.mxu0 %v1736
    %1893 = vmatprep.subr.bf16.mxu0 %v1741
    %1894 = vmatpush1.bf16.msra.mxu0 %v1740
    %1895 = vmatprep.subr.bf16.mxu0 %v1745
    %1896 = vmatpush1.bf16.msra.mxu0 %v1744
    %1897 = vmatprep.subr.bf16.mxu0 %v1749
    %1898 = vmatpush1.bf16.msra.mxu0 %v1748
    %1899 = vmatprep.subr.bf16.mxu0 %v1753
    %1900 = vmatpush1.bf16.msra.mxu0 %v1752
    %1901 = vmatprep.subr.bf16.mxu0 %v1757
    %1902 = vmatpush1.bf16.msra.mxu0 %v1756
    %1903 = vmatprep.subr.bf16.mxu0 %v1761
    %1904 = vmatpush1.bf16.msra.mxu0 %v1760
    %1905 = vmatprep.subr.bf16.mxu0 %v1765
    %1906 = vmatpush1.bf16.msra.mxu0 %v1764
    %1907 = vmatprep.subr.bf16.mxu0 %v1769
    %1908 = vmatpush1.bf16.msra.mxu0 %v1768
    %1909 = vmatprep.subr.bf16.mxu0 %v1773
    %1910 = vmatpush1.bf16.msra.mxu0 %v1772
    %1911 = vmatprep.mubr.bf16.mxu0 %v1453
    %1912 = vmatmul.mubr.bf16.gmra.mrb[0].mxu0 %v1452
    %v1913 = vpop.f32.mrb[0].mxu0
    %v1914 = vadd.f32 %v714, %v1913
    %v1915 = vpop.f32.mrb[0].mxu0
    %v1916 = vadd.f32 %v718, %v1915
    %v1917 = vpop.f32.mrb[0].mxu0
    %v1918 = vpop.f32.mrb[0].mxu0
    %1919 = vdwg.mxu0
    %v1920 = vxor.u32 %v1873, 2147483648
    %v1921 = vxor.u32 %v1875, 2147483648
    %v1922 = vmul.f32 %v1920, 1.442695
    %v1923 = vpow.pop %v1922
    %v1924 = vmul.f32 %v1921, 1.442695
    %v1925 = vpow.pop %v1924
    %v1926 = vadd.f32 %v1923, 1.0
    %v1927 = vadd.f32 %v1925, 1.0
    %v1928 = vrcp.pop %v1926
    %v1929 = vmul.f32 1.0, %v1928
    %v1930 = vrcp.pop %v1927
    %v1931 = vmul.f32 1.0, %v1930
    %v1932 = vtanh.pop %v1914
    %v1933 = vxor.u32 %v1916, 2147483648
    %v1934 = vmul.f32 %v1933, 1.442695
    %v1935 = vpow.pop %v1934
    %v1936 = vadd.f32 %v1935, 1.0
    %v1937 = vrcp.pop %v1936
    %v1938 = vmul.f32 1.0, %v1937
    %v1939 = vmul.f32 %v1931, %v1146
    %v1940 = vmul.f32 %v1929, %v1932
    %v1941 = vadd.f32 %v1939, %v1940
    %v1942 = vtanh.pop %v1941
    %v1943 = vmul.f32 %v1938, %v1942
    %1944 = vst [vmem:[#allocation3 + $0x8] sm:$0xff] %v1943
    %v1945 = vld [vmem:[#allocation5] sm:$0xff]
    %v1946 = vld [vmem:[#allocation5 + $0x8] sm:$0xff]
    %v1947 = vld [vmem:[#allocation5 + $0x10] sm:$0xff]
    %v1948 = vld [vmem:[#allocation5 + $0x18] sm:$0xff]
    %v1949 = vld [vmem:[#allocation5 + $0x20] sm:$0xff]
    %v1950 = vld [vmem:[#allocation5 + $0x28] sm:$0xff]
    %v1951 = vld [vmem:[#allocation5 + $0x30] sm:$0xff]
    %v1952 = vld [vmem:[#allocation5 + $0x38] sm:$0xff]
    %v1953 = vld [vmem:[#allocation5 + $0x40] sm:$0xff]
    %v1954 = vld [vmem:[#allocation5 + $0x48] sm:$0xff]
    %v1955 = vld [vmem:[#allocation5 + $0x50] sm:$0xff]
    %v1956 = vld [vmem:[#allocation5 + $0x58] sm:$0xff]
    %v1957 = vld [vmem:[#allocation5 + $0x60] sm:$0xff]
    %v1958 = vld [vmem:[#allocation5 + $0x68] sm:$0xff]
    %v1959 = vld [vmem:[#allocation5 + $0x70] sm:$0xff]
    %v1960 = vld [vmem:[#allocation5 + $0x78] sm:$0xff]
    %v1961 = vld [vmem:[#allocation5 + $0x80] sm:$0xff]
    %v1962 = vld [vmem:[#allocation5 + $0x88] sm:$0xff]
    %v1963 = vld [vmem:[#allocation5 + $0x90] sm:$0xff]
    %v1964 = vld [vmem:[#allocation5 + $0x98] sm:$0xff]
    %v1965 = vld [vmem:[#allocation5 + $0xa0] sm:$0xff]
    %v1966 = vld [vmem:[#allocation5 + $0xa8] sm:$0xff]
    %v1967 = vld [vmem:[#allocation5 + $0xb0] sm:$0xff]
    %v1968 = vld [vmem:[#allocation5 + $0xb8] sm:$0xff]
    %v1969 = vld [vmem:[#allocation5 + $0xc0] sm:$0xff]
    %v1970 = vld [vmem:[#allocation5 + $0xc8] sm:$0xff]
    %v1971 = vld [vmem:[#allocation5 + $0xd0] sm:$0xff]
    %v1972 = vld [vmem:[#allocation5 + $0xd8] sm:$0xff]
    %v1973 = vld [vmem:[#allocation5 + $0xe0] sm:$0xff]
    %v1974 = vld [vmem:[#allocation5 + $0xe8] sm:$0xff]
    %v1975 = vld [vmem:[#allocation5 + $0xf0] sm:$0xff]
    %v1976 = vld [vmem:[#allocation5 + $0xf8] sm:$0xff]
    %v1977 = vld [vmem:[#allocation2 + $0x40] sm:$0xff]
    %v1978 = vld [vmem:[#allocation2 + $0x48] sm:$0xff]
    %v1979 = vld [vmem:[#allocation2 + $0x50] sm:$0xff]
    %v1980 = vld [vmem:[#allocation2 + $0x58] sm:$0xff]
    %v2013 = vunpack.c.l.b16 %v1945
    %v2014 = vunpack.c.h.b16 %v1945
    %v2015 = vunpack.c.l.b16 %v1946
    %v2016 = vunpack.c.h.b16 %v1946
    %v2017 = vunpack.c.l.b16 %v1947
    %v2018 = vunpack.c.h.b16 %v1947
    %v2019 = vunpack.c.l.b16 %v1948
    %v2020 = vunpack.c.h.b16 %v1948
    %v2021 = vunpack.c.l.b16 %v1949
    %v2022 = vunpack.c.h.b16 %v1949
    %v2023 = vunpack.c.l.b16 %v1950
    %v2024 = vunpack.c.h.b16 %v1950
    %v2025 = vunpack.c.l.b16 %v1951
    %v2026 = vunpack.c.h.b16 %v1951
    %v2027 = vunpack.c.l.b16 %v1952
    %v2028 = vunpack.c.h.b16 %v1952
    %v2029 = vunpack.c.l.b16 %v1953
    %v2030 = vunpack.c.h.b16 %v1953
    %v2031 = vunpack.c.l.b16 %v1954
    %v2032 = vunpack.c.h.b16 %v1954
    %v2033 = vunpack.c.l.b16 %v1955
    %v2034 = vunpack.c.h.b16 %v1955
    %v2035 = vunpack.c.l.b16 %v1956
    %v2036 = vunpack.c.h.b16 %v1956
    %v2037 = vunpack.c.l.b16 %v1957
    %v2038 = vunpack.c.h.b16 %v1957
    %v2039 = vunpack.c.l.b16 %v1958
    %v2040 = vunpack.c.h.b16 %v1958
    %v2041 = vunpack.c.l.b16 %v1959
    %v2042 = vunpack.c.h.b16 %v1959
    %v2043 = vunpack.c.l.b16 %v1960
    %v2044 = vunpack.c.h.b16 %v1960
    %v2045 = vunpack.c.l.b16 %v1961
    %v2046 = vunpack.c.h.b16 %v1961
    %v2047 = vunpack.c.l.b16 %v1962
    %v2048 = vunpack.c.h.b16 %v1962
    %v2049 = vunpack.c.l.b16 %v1963
    %v2050 = vunpack.c.h.b16 %v1963
    %v2051 = vunpack.c.l.b16 %v1964
    %v2052 = vunpack.c.h.b16 %v1964
    %v2053 = vunpack.c.l.b16 %v1965
    %v2054 = vunpack.c.h.b16 %v1965
    %v2055 = vunpack.c.l.b16 %v1966
    %v2056 = vunpack.c.h.b16 %v1966
    %v2057 = vunpack.c.l.b16 %v1967
    %v2058 = vunpack.c.h.b16 %v1967
    %v2059 = vunpack.c.l.b16 %v1968
    %v2060 = vunpack.c.h.b16 %v1968
    %v2061 = vunpack.c.l.b16 %v1969
    %v2062 = vunpack.c.h.b16 %v1969
    %v2063 = vunpack.c.l.b16 %v1970
    %v2064 = vunpack.c.h.b16 %v1970
    %v2065 = vunpack.c.l.b16 %v1971
    %v2066 = vunpack.c.h.b16 %v1971
    %v2067 = vunpack.c.l.b16 %v1972
    %v2068 = vunpack.c.h.b16 %v1972
    %v2069 = vunpack.c.l.b16 %v1973
    %v2070 = vunpack.c.h.b16 %v1973
    %v2071 = vunpack.c.l.b16 %v1974
    %v2072 = vunpack.c.h.b16 %v1974
    %v2073 = vunpack.c.l.b16 %v1975
    %v2074 = vunpack.c.h.b16 %v1975
    %v2075 = vunpack.c.l.b16 %v1976
    %v2076 = vunpack.c.h.b16 %v1976
    %v2077 = vpack.c.b16 %v2017, %v2013
    %v2078 = vpack.c.b16 %v2018, %v2014
    %v2079 = vpack.c.b16 %v2019, %v2015
    %v2080 = vpack.c.b16 %v2020, %v2016
    %v2081 = vpack.c.b16 %v2025, %v2021
    %v2082 = vpack.c.b16 %v2026, %v2022
    %v2083 = vpack.c.b16 %v2027, %v2023
    %v2084 = vpack.c.b16 %v2028, %v2024
    %v2085 = vpack.c.b16 %v2033, %v2029
    %v2086 = vpack.c.b16 %v2034, %v2030
    %v2087 = vpack.c.b16 %v2035, %v2031
    %v2088 = vpack.c.b16 %v2036, %v2032
    %v2089 = vpack.c.b16 %v2041, %v2037
    %v2090 = vpack.c.b16 %v2042, %v2038
    %v2091 = vpack.c.b16 %v2043, %v2039
    %v2092 = vpack.c.b16 %v2044, %v2040
    %v2093 = vpack.c.b16 %v2049, %v2045
    %v2094 = vpack.c.b16 %v2050, %v2046
    %v2095 = vpack.c.b16 %v2051, %v2047
    %v2096 = vpack.c.b16 %v2052, %v2048
    %v2097 = vpack.c.b16 %v2057, %v2053
    %v2098 = vpack.c.b16 %v2058, %v2054
    %v2099 = vpack.c.b16 %v2059, %v2055
    %v2100 = vpack.c.b16 %v2060, %v2056
    %v2101 = vpack.c.b16 %v2065, %v2061
    %v2102 = vpack.c.b16 %v2066, %v2062
    %v2103 = vpack.c.b16 %v2067, %v2063
    %v2104 = vpack.c.b16 %v2068, %v2064
    %v2105 = vpack.c.b16 %v2073, %v2069
    %v2106 = vpack.c.b16 %v2074, %v2070
    %v2107 = vpack.c.b16 %v2075, %v2071
    %v2108 = vpack.c.b16 %v2076, %v2072
    %2141 = vmatprep.subr.bf16.mxu0 %v2078
    %2142 = vmatpush1.bf16.msra.mxu0 %v2077
    %2143 = vmatprep.subr.bf16.mxu0 %v2082
    %2144 = vmatpush1.bf16.msra.mxu0 %v2081
    %2145 = vmatprep.subr.bf16.mxu0 %v2086
    %2146 = vmatpush1.bf16.msra.mxu0 %v2085
    %2147 = vmatprep.subr.bf16.mxu0 %v2090
    %2148 = vmatpush1.bf16.msra.mxu0 %v2089
    %2149 = vmatprep.subr.bf16.mxu0 %v2094
    %2150 = vmatpush1.bf16.msra.mxu0 %v2093
    %2151 = vmatprep.subr.bf16.mxu0 %v2098
    %2152 = vmatpush1.bf16.msra.mxu0 %v2097
    %2153 = vmatprep.subr.bf16.mxu0 %v2102
    %2154 = vmatpush1.bf16.msra.mxu0 %v2101
    %2155 = vmatprep.subr.bf16.mxu0 %v2106
    %2156 = vmatpush1.bf16.msra.mxu0 %v2105
    %2157 = vmatprep.subr.bf16.mxu0 0
    %2158 = vmatpush1.bf16.msra.mxu0 0
    %2159 = vmatprep.subr.bf16.mxu0 0
    %2160 = vmatpush1.bf16.msra.mxu0 0
    %2161 = vmatprep.subr.bf16.mxu0 0
    %2162 = vmatpush1.bf16.msra.mxu0 0
    %2163 = vmatprep.subr.bf16.mxu0 0
    %2164 = vmatpush1.bf16.msra.mxu0 0
    %2165 = vmatprep.subr.bf16.mxu0 0
    %2166 = vmatpush1.bf16.msra.mxu0 0
    %2167 = vmatprep.subr.bf16.mxu0 0
    %2168 = vmatpush1.bf16.msra.mxu0 0
    %2169 = vmatprep.subr.bf16.mxu0 0
    %2170 = vmatpush1.bf16.msra.mxu0 0
    %2171 = vmatprep.subr.bf16.mxu0 0
    %2172 = vmatpush1.bf16.msra.mxu0 0
    %2173 = vmatprep.mubr.bf16.mxu0 0
    %2174 = vmatmul.mubr.bf16.gmra.mrb[0].mxu0 %v1452
    %v2175 = vpop.f32.mrb[0].mxu0
    %v2176 = vadd.f32 %v1977, %v2175
    %v2177 = vpop.f32.mrb[0].mxu0
    %v2178 = vadd.f32 %v1978, %v2177
    %v2179 = vpop.f32.mrb[0].mxu0
    %v2180 = vpop.f32.mrb[0].mxu0
    %2181 = vdwg.mxu0
    %2182 = vmatprep.subr.bf16.mxu0 %v2080
    %2183 = vmatpush1.bf16.msra.mxu0 %v2079
    %2184 = vmatprep.subr.bf16.mxu0 %v2084
    %2185 = vmatpush1.bf16.msra.mxu0 %v2083
    %2186 = vmatprep.subr.bf16.mxu0 %v2088
    %2187 = vmatpush1.bf16.msra.mxu0 %v2087
    %2188 = vmatprep.subr.bf16.mxu0 %v2092
    %2189 = vmatpush1.bf16.msra.mxu0 %v2091
    %2190 = vmatprep.subr.bf16.mxu0 %v2096
    %2191 = vmatpush1.bf16.msra.mxu0 %v2095
    %2192 = vmatprep.subr.bf16.mxu0 %v2100
    %2193 = vmatpush1.bf16.msra.mxu0 %v2099
    %2194 = vmatprep.subr.bf16.mxu0 %v2104
    %2195 = vmatpush1.bf16.msra.mxu0 %v2103
    %2196 = vmatprep.subr.bf16.mxu0 %v2108
    %2197 = vmatpush1.bf16.msra.mxu0 %v2107
    %2198 = vmatprep.subr.bf16.mxu0 0
    %2199 = vmatpush1.bf16.msra.mxu0 0
    %2200 = vmatprep.subr.bf16.mxu0 0
    %2201 = vmatpush1.bf16.msra.mxu0 0
    %2202 = vmatprep.subr.bf16.mxu0 0
    %2203 = vmatpush1.bf16.msra.mxu0 0
    %2204 = vmatprep.subr.bf16.mxu0 0
    %2205 = vmatpush1.bf16.msra.mxu0 0
    %2206 = vmatprep.subr.bf16.mxu0 0
    %2207 = vmatpush1.bf16.msra.mxu0 0
    %2208 = vmatprep.subr.bf16.mxu0 0
    %2209 = vmatpush1.bf16.msra.mxu0 0
    %2210 = vmatprep.subr.bf16.mxu0 0
    %2211 = vmatpush1.bf16.msra.mxu0 0
    %2212 = vmatprep.subr.bf16.mxu0 0
    %2213 = vmatpush1.bf16.msra.mxu0 0
    %2214 = vmatprep.mubr.bf16.mxu0 0
    %2215 = vmatmul.mubr.bf16.gmra.mrb[0].mxu0 %v1452
    %v2216 = vpop.f32.mrb[0].mxu0
    %v2217 = vadd.f32 %v1979, %v2216
    %v2218 = vpop.f32.mrb[0].mxu0
    %v2219 = vadd.f32 %v1980, %v2218
    %v2220 = vpop.f32.mrb[0].mxu0
    %v2221 = vpop.f32.mrb[0].mxu0
    %2222 = vdwg.mxu0
    %v2223 = vxor.u32 %v2176, 2147483648
    %v2224 = vxor.u32 %v2178, 2147483648
    %v2225 = vmul.f32 %v2223, 1.442695
    %v2226 = vpow.pop %v2225
    %v2227 = vmul.f32 %v2224, 1.442695
    %v2228 = vpow.pop %v2227
    %v2229 = vadd.f32 %v2226, 1.0
    %v2230 = vadd.f32 %v2228, 1.0
    %v2231 = vrcp.pop %v2229
    %v2232 = vmul.f32 1.0, %v2231
    %v2233 = vrcp.pop %v2230
    %v2234 = vmul.f32 1.0, %v2233
    %v2235 = vtanh.pop %v2217
    %v2236 = vxor.u32 %v2219, 2147483648
    %v2237 = vmul.f32 %v2236, 1.442695
    %v2238 = vpow.pop %v2237
    %v2239 = vadd.f32 %v2238, 1.0
    %v2240 = vrcp.pop %v2239
    %v2241 = vmul.f32 1.0, %v2240
    %v2242 = vmul.f32 %v2234, %v1449
    %v2243 = vmul.f32 %v2232, %v2235
    %v2244 = vadd.f32 %v2242, %v2243
    %v2245 = vtanh.pop %v2244
    %v2246 = vmul.f32 %v2241, %v2245
    %v2247 = vpack.c.bf16 %v2246, %v2246
    %v2248 = vpack.c.bf16 %v1943, %v1943
    %v2249 = vld [vmem:[#allocation8] sm:$0xff]
    %v2250 = vld [vmem:[#allocation8 + $0x8] sm:$0xff]
    %v2251 = vld [vmem:[#allocation8 + $0x10] sm:$0xff]
    %v2252 = vld [vmem:[#allocation8 + $0x18] sm:$0xff]
    %v2253 = vld [vmem:[#allocation8 + $0x20] sm:$0xff]
    %v2254 = vld [vmem:[#allocation8 + $0x28] sm:$0xff]
    %v2255 = vld [vmem:[#allocation8 + $0x30] sm:$0xff]
    %v2256 = vld [vmem:[#allocation8 + $0x38] sm:$0xff]
    %v2257 = vld [vmem:[#allocation8 + $0x40] sm:$0xff]
    %v2258 = vld [vmem:[#allocation8 + $0x48] sm:$0xff]
    %v2259 = vld [vmem:[#allocation8 + $0x50] sm:$0xff]
    %v2260 = vld [vmem:[#allocation8 + $0x58] sm:$0xff]
    %v2261 = vld [vmem:[#allocation8 + $0x60] sm:$0xff]
    %v2262 = vld [vmem:[#allocation8 + $0x68] sm:$0xff]
    %v2263 = vld [vmem:[#allocation8 + $0x70] sm:$0xff]
    %v2264 = vld [vmem:[#allocation8 + $0x78] sm:$0xff]
    %v2265 = vld [vmem:[#allocation8 + $0x80] sm:$0xff]
    %v2266 = vld [vmem:[#allocation8 + $0x88] sm:$0xff]
    %v2267 = vld [vmem:[#allocation8 + $0x90] sm:$0xff]
    %v2268 = vld [vmem:[#allocation8 + $0x98] sm:$0xff]
    %v2269 = vld [vmem:[#allocation8 + $0xa0] sm:$0xff]
    %v2270 = vld [vmem:[#allocation8 + $0xa8] sm:$0xff]
    %v2271 = vld [vmem:[#allocation8 + $0xb0] sm:$0xff]
    %v2272 = vld [vmem:[#allocation8 + $0xb8] sm:$0xff]
    %v2273 = vld [vmem:[#allocation8 + $0xc0] sm:$0xff]
    %v2274 = vld [vmem:[#allocation8 + $0xc8] sm:$0xff]
    %v2275 = vld [vmem:[#allocation8 + $0xd0] sm:$0xff]
    %v2276 = vld [vmem:[#allocation8 + $0xd8] sm:$0xff]
    %v2277 = vld [vmem:[#allocation8 + $0xe0] sm:$0xff]
    %v2278 = vld [vmem:[#allocation8 + $0xe8] sm:$0xff]
    %v2279 = vld [vmem:[#allocation8 + $0xf0] sm:$0xff]
    %v2280 = vld [vmem:[#allocation8 + $0xf8] sm:$0xff]
    %v2281 = vld [vmem:[#allocation8 + $0x100] sm:$0xff]
    %v2282 = vld [vmem:[#allocation8 + $0x108] sm:$0xff]
    %v2283 = vld [vmem:[#allocation8 + $0x110] sm:$0xff]
    %v2284 = vld [vmem:[#allocation8 + $0x118] sm:$0xff]
    %v2285 = vld [vmem:[#allocation8 + $0x120] sm:$0xff]
    %v2286 = vld [vmem:[#allocation8 + $0x128] sm:$0xff]
    %v2287 = vld [vmem:[#allocation8 + $0x130] sm:$0xff]
    %v2288 = vld [vmem:[#allocation8 + $0x138] sm:$0xff]
    %v2289 = vld [vmem:[#allocation8 + $0x140] sm:$0xff]
    %v2290 = vld [vmem:[#allocation8 + $0x148] sm:$0xff]
    %v2291 = vld [vmem:[#allocation8 + $0x150] sm:$0xff]
    %v2292 = vld [vmem:[#allocation8 + $0x158] sm:$0xff]
    %v2293 = vld [vmem:[#allocation8 + $0x160] sm:$0xff]
    %v2294 = vld [vmem:[#allocation8 + $0x168] sm:$0xff]
    %v2295 = vld [vmem:[#allocation8 + $0x170] sm:$0xff]
    %v2296 = vld [vmem:[#allocation8 + $0x178] sm:$0xff]
    %v2297 = vld [vmem:[#allocation8 + $0x180] sm:$0xff]
    %v2298 = vld [vmem:[#allocation8 + $0x188] sm:$0xff]
    %v2299 = vld [vmem:[#allocation8 + $0x190] sm:$0xff]
    %v2300 = vld [vmem:[#allocation8 + $0x198] sm:$0xff]
    %v2301 = vld [vmem:[#allocation8 + $0x1a0] sm:$0xff]
    %v2302 = vld [vmem:[#allocation8 + $0x1a8] sm:$0xff]
    %v2303 = vld [vmem:[#allocation8 + $0x1b0] sm:$0xff]
    %v2304 = vld [vmem:[#allocation8 + $0x1b8] sm:$0xff]
    %v2305 = vld [vmem:[#allocation8 + $0x1c0] sm:$0xff]
    %v2306 = vld [vmem:[#allocation8 + $0x1c8] sm:$0xff]
    %v2307 = vld [vmem:[#allocation8 + $0x1d0] sm:$0xff]
    %v2308 = vld [vmem:[#allocation8 + $0x1d8] sm:$0xff]
    %v2309 = vld [vmem:[#allocation8 + $0x1e0] sm:$0xff]
    %v2310 = vld [vmem:[#allocation8 + $0x1e8] sm:$0xff]
    %v2311 = vld [vmem:[#allocation8 + $0x1f0] sm:$0xff]
    %v2312 = vld [vmem:[#allocation8 + $0x1f8] sm:$0xff]
    %v2377 = vunpack.c.l.b16 %v2249
    %v2378 = vunpack.c.h.b16 %v2249
    %v2379 = vunpack.c.l.b16 %v2250
    %v2380 = vunpack.c.h.b16 %v2250
    %v2381 = vunpack.c.l.b16 %v2251
    %v2382 = vunpack.c.h.b16 %v2251
    %v2383 = vunpack.c.l.b16 %v2252
    %v2384 = vunpack.c.h.b16 %v2252
    %v2385 = vunpack.c.l.b16 %v2253
    %v2386 = vunpack.c.h.b16 %v2253
    %v2387 = vunpack.c.l.b16 %v2254
    %v2388 = vunpack.c.h.b16 %v2254
    %v2389 = vunpack.c.l.b16 %v2255
    %v2390 = vunpack.c.h.b16 %v2255
    %v2391 = vunpack.c.l.b16 %v2256
    %v2392 = vunpack.c.h.b16 %v2256
    %v2393 = vunpack.c.l.b16 %v2257
    %v2394 = vunpack.c.h.b16 %v2257
    %v2395 = vunpack.c.l.b16 %v2258
    %v2396 = vunpack.c.h.b16 %v2258
    %v2397 = vunpack.c.l.b16 %v2259
    %v2398 = vunpack.c.h.b16 %v2259
    %v2399 = vunpack.c.l.b16 %v2260
    %v2400 = vunpack.c.h.b16 %v2260
    %v2401 = vunpack.c.l.b16 %v2261
    %v2402 = vunpack.c.h.b16 %v2261
    %v2403 = vunpack.c.l.b16 %v2262
    %v2404 = vunpack.c.h.b16 %v2262
    %v2405 = vunpack.c.l.b16 %v2263
    %v2406 = vunpack.c.h.b16 %v2263
    %v2407 = vunpack.c.l.b16 %v2264
    %v2408 = vunpack.c.h.b16 %v2264
    %v2409 = vunpack.c.l.b16 %v2265
    %v2410 = vunpack.c.h.b16 %v2265
    %v2411 = vunpack.c.l.b16 %v2266
    %v2412 = vunpack.c.h.b16 %v2266
    %v2413 = vunpack.c.l.b16 %v2267
    %v2414 = vunpack.c.h.b16 %v2267
    %v2415 = vunpack.c.l.b16 %v2268
    %v2416 = vunpack.c.h.b16 %v2268
    %v2417 = vunpack.c.l.b16 %v2269
    %v2418 = vunpack.c.h.b16 %v2269
    %v2419 = vunpack.c.l.b16 %v2270
    %v2420 = vunpack.c.h.b16 %v2270
    %v2421 = vunpack.c.l.b16 %v2271
    %v2422 = vunpack.c.h.b16 %v2271
    %v2423 = vunpack.c.l.b16 %v2272
    %v2424 = vunpack.c.h.b16 %v2272
    %v2425 = vunpack.c.l.b16 %v2273
    %v2426 = vunpack.c.h.b16 %v2273
    %v2427 = vunpack.c.l.b16 %v2274
    %v2428 = vunpack.c.h.b16 %v2274
    %v2429 = vunpack.c.l.b16 %v2275
    %v2430 = vunpack.c.h.b16 %v2275
    %v2431 = vunpack.c.l.b16 %v2276
    %v2432 = vunpack.c.h.b16 %v2276
    %v2433 = vunpack.c.l.b16 %v2277
    %v2434 = vunpack.c.h.b16 %v2277
    %v2435 = vunpack.c.l.b16 %v2278
    %v2436 = vunpack.c.h.b16 %v2278
    %v2437 = vunpack.c.l.b16 %v2279
    %v2438 = vunpack.c.h.b16 %v2279
    %v2439 = vunpack.c.l.b16 %v2280
    %v2440 = vunpack.c.h.b16 %v2280
    %v2441 = vunpack.c.l.b16 %v2281
    %v2442 = vunpack.c.h.b16 %v2281
    %v2443 = vunpack.c.l.b16 %v2282
    %v2444 = vunpack.c.h.b16 %v2282
    %v2445 = vunpack.c.l.b16 %v2283
    %v2446 = vunpack.c.h.b16 %v2283
    %v2447 = vunpack.c.l.b16 %v2284
    %v2448 = vunpack.c.h.b16 %v2284
    %v2449 = vunpack.c.l.b16 %v2285
    %v2450 = vunpack.c.h.b16 %v2285
    %v2451 = vunpack.c.l.b16 %v2286
    %v2452 = vunpack.c.h.b16 %v2286
    %v2453 = vunpack.c.l.b16 %v2287
    %v2454 = vunpack.c.h.b16 %v2287
    %v2455 = vunpack.c.l.b16 %v2288
    %v2456 = vunpack.c.h.b16 %v2288
    %v2457 = vunpack.c.l.b16 %v2289
    %v2458 = vunpack.c.h.b16 %v2289
    %v2459 = vunpack.c.l.b16 %v2290
    %v2460 = vunpack.c.h.b16 %v2290
    %v2461 = vunpack.c.l.b16 %v2291
    %v2462 = vunpack.c.h.b16 %v2291
    %v2463 = vunpack.c.l.b16 %v2292
    %v2464 = vunpack.c.h.b16 %v2292
    %v2465 = vunpack.c.l.b16 %v2293
    %v2466 = vunpack.c.h.b16 %v2293
    %v2467 = vunpack.c.l.b16 %v2294
    %v2468 = vunpack.c.h.b16 %v2294
    %v2469 = vunpack.c.l.b16 %v2295
    %v2470 = vunpack.c.h.b16 %v2295
    %v2471 = vunpack.c.l.b16 %v2296
    %v2472 = vunpack.c.h.b16 %v2296
    %v2473 = vunpack.c.l.b16 %v2297
    %v2474 = vunpack.c.h.b16 %v2297
    %v2475 = vunpack.c.l.b16 %v2298
    %v2476 = vunpack.c.h.b16 %v2298
    %v2477 = vunpack.c.l.b16 %v2299
    %v2478 = vunpack.c.h.b16 %v2299
    %v2479 = vunpack.c.l.b16 %v2300
    %v2480 = vunpack.c.h.b16 %v2300
    %v2481 = vunpack.c.l.b16 %v2301
    %v2482 = vunpack.c.h.b16 %v2301
    %v2483 = vunpack.c.l.b16 %v2302
    %v2484 = vunpack.c.h.b16 %v2302
    %v2485 = vunpack.c.l.b16 %v2303
    %v2486 = vunpack.c.h.b16 %v2303
    %v2487 = vunpack.c.l.b16 %v2304
    %v2488 = vunpack.c.h.b16 %v2304
    %v2489 = vunpack.c.l.b16 %v2305
    %v2490 = vunpack.c.h.b16 %v2305
    %v2491 = vunpack.c.l.b16 %v2306
    %v2492 = vunpack.c.h.b16 %v2306
    %v2493 = vunpack.c.l.b16 %v2307
    %v2494 = vunpack.c.h.b16 %v2307
    %v2495 = vunpack.c.l.b16 %v2308
    %v2496 = vunpack.c.h.b16 %v2308
    %v2497 = vunpack.c.l.b16 %v2309
    %v2498 = vunpack.c.h.b16 %v2309
    %v2499 = vunpack.c.l.b16 %v2310
    %v2500 = vunpack.c.h.b16 %v2310
    %v2501 = vunpack.c.l.b16 %v2311
    %v2502 = vunpack.c.h.b16 %v2311
    %v2503 = vunpack.c.l.b16 %v2312
    %v2504 = vunpack.c.h.b16 %v2312
    %v2505 = vpack.c.b16 %v2381, %v2377
    %v2506 = vpack.c.b16 %v2382, %v2378
    %v2507 = vpack.c.b16 %v2383, %v2379
    %v2508 = vpack.c.b16 %v2384, %v2380
    %v2509 = vpack.c.b16 %v2389, %v2385
    %v2510 = vpack.c.b16 %v2390, %v2386
    %v2511 = vpack.c.b16 %v2391, %v2387
    %v2512 = vpack.c.b16 %v2392, %v2388
    %v2513 = vpack.c.b16 %v2397, %v2393
    %v2514 = vpack.c.b16 %v2398, %v2394
    %v2515 = vpack.c.b16 %v2399, %v2395
    %v2516 = vpack.c.b16 %v2400, %v2396
    %v2517 = vpack.c.b16 %v2405, %v2401
    %v2518 = vpack.c.b16 %v2406, %v2402
    %v2519 = vpack.c.b16 %v2407, %v2403
    %v2520 = vpack.c.b16 %v2408, %v2404
    %v2521 = vpack.c.b16 %v2413, %v2409
    %v2522 = vpack.c.b16 %v2414, %v2410
    %v2523 = vpack.c.b16 %v2415, %v2411
    %v2524 = vpack.c.b16 %v2416, %v2412
    %v2525 = vpack.c.b16 %v2421, %v2417
    %v2526 = vpack.c.b16 %v2422, %v2418
    %v2527 = vpack.c.b16 %v2423, %v2419
    %v2528 = vpack.c.b16 %v2424, %v2420
    %v2529 = vpack.c.b16 %v2429, %v2425
    %v2530 = vpack.c.b16 %v2430, %v2426
    %v2531 = vpack.c.b16 %v2431, %v2427
    %v2532 = vpack.c.b16 %v2432, %v2428
    %v2533 = vpack.c.b16 %v2437, %v2433
    %v2534 = vpack.c.b16 %v2438, %v2434
    %v2535 = vpack.c.b16 %v2439, %v2435
    %v2536 = vpack.c.b16 %v2440, %v2436
    %v2537 = vpack.c.b16 %v2445, %v2441
    %v2538 = vpack.c.b16 %v2446, %v2442
    %v2539 = vpack.c.b16 %v2447, %v2443
    %v2540 = vpack.c.b16 %v2448, %v2444
    %v2541 = vpack.c.b16 %v2453, %v2449
    %v2542 = vpack.c.b16 %v2454, %v2450
    %v2543 = vpack.c.b16 %v2455, %v2451
    %v2544 = vpack.c.b16 %v2456, %v2452
    %v2545 = vpack.c.b16 %v2461, %v2457
    %v2546 = vpack.c.b16 %v2462, %v2458
    %v2547 = vpack.c.b16 %v2463, %v2459
    %v2548 = vpack.c.b16 %v2464, %v2460
    %v2549 = vpack.c.b16 %v2469, %v2465
    %v2550 = vpack.c.b16 %v2470, %v2466
    %v2551 = vpack.c.b16 %v2471, %v2467
    %v2552 = vpack.c.b16 %v2472, %v2468
    %v2553 = vpack.c.b16 %v2477, %v2473
    %v2554 = vpack.c.b16 %v2478, %v2474
    %v2555 = vpack.c.b16 %v2479, %v2475
    %v2556 = vpack.c.b16 %v2480, %v2476
    %v2557 = vpack.c.b16 %v2485, %v2481
    %v2558 = vpack.c.b16 %v2486, %v2482
    %v2559 = vpack.c.b16 %v2487, %v2483
    %v2560 = vpack.c.b16 %v2488, %v2484
    %v2561 = vpack.c.b16 %v2493, %v2489
    %v2562 = vpack.c.b16 %v2494, %v2490
    %v2563 = vpack.c.b16 %v2495, %v2491
    %v2564 = vpack.c.b16 %v2496, %v2492
    %v2565 = vpack.c.b16 %v2501, %v2497
    %v2566 = vpack.c.b16 %v2502, %v2498
    %v2567 = vpack.c.b16 %v2503, %v2499
    %v2568 = vpack.c.b16 %v2504, %v2500
    %2633 = vmatprep.subr.bf16.mxu0 %v2506
    %2634 = vmatpush1.bf16.msra.mxu0 %v2505
    %2635 = vmatprep.subr.bf16.mxu0 %v2510
    %2636 = vmatpush1.bf16.msra.mxu0 %v2509
    %2637 = vmatprep.subr.bf16.mxu0 %v2514
    %2638 = vmatpush1.bf16.msra.mxu0 %v2513
    %2639 = vmatprep.subr.bf16.mxu0 %v2518
    %2640 = vmatpush1.bf16.msra.mxu0 %v2517
    %2641 = vmatprep.subr.bf16.mxu0 %v2522
    %2642 = vmatpush1.bf16.msra.mxu0 %v2521
    %2643 = vmatprep.subr.bf16.mxu0 %v2526
    %2644 = vmatpush1.bf16.msra.mxu0 %v2525
    %2645 = vmatprep.subr.bf16.mxu0 %v2530
    %2646 = vmatpush1.bf16.msra.mxu0 %v2529
    %2647 = vmatprep.subr.bf16.mxu0 %v2534
    %2648 = vmatpush1.bf16.msra.mxu0 %v2533
    %2649 = vmatprep.subr.bf16.mxu0 %v2538
    %2650 = vmatpush1.bf16.msra.mxu0 %v2537
    %2651 = vmatprep.subr.bf16.mxu0 %v2542
    %2652 = vmatpush1.bf16.msra.mxu0 %v2541
    %2653 = vmatprep.subr.bf16.mxu0 %v2546
    %2654 = vmatpush1.bf16.msra.mxu0 %v2545
    %2655 = vmatprep.subr.bf16.mxu0 %v2550
    %2656 = vmatpush1.bf16.msra.mxu0 %v2549
    %2657 = vmatprep.subr.bf16.mxu0 %v2554
    %2658 = vmatpush1.bf16.msra.mxu0 %v2553
    %2659 = vmatprep.subr.bf16.mxu0 %v2558
    %2660 = vmatpush1.bf16.msra.mxu0 %v2557
    %2661 = vmatprep.subr.bf16.mxu0 %v2562
    %2662 = vmatpush1.bf16.msra.mxu0 %v2561
    %2663 = vmatprep.subr.bf16.mxu0 %v2566
    %2664 = vmatpush1.bf16.msra.mxu0 %v2565
    %2665 = vmatprep.mubr.bf16.mxu0 %v2248
    %2666 = vmatmul.mubr.bf16.gmra.mrb[0].mxu0 %v2247
    %v2667 = vpop.f32.mrb[0].mxu0
    %v2668 = vadd.f32 %v706, %v2667
    %v2669 = vpop.f32.mrb[0].mxu0
    %v2670 = vadd.f32 %v710, %v2669
    %v2671 = vpop.f32.mrb[0].mxu0
    %v2672 = vpop.f32.mrb[0].mxu0
    %2673 = vdwg.mxu0
    %2674 = vmatprep.subr.bf16.mxu0 %v2508
    %2675 = vmatpush1.bf16.msra.mxu0 %v2507
    %2676 = vmatprep.subr.bf16.mxu0 %v2512
    %2677 = vmatpush1.bf16.msra.mxu0 %v2511
    %2678 = vmatprep.subr.bf16.mxu0 %v2516
    %2679 = vmatpush1.bf16.msra.mxu0 %v2515
    %2680 = vmatprep.subr.bf16.mxu0 %v2520
    %2681 = vmatpush1.bf16.msra.mxu0 %v2519
    %2682 = vmatprep.subr.bf16.mxu0 %v2524
    %2683 = vmatpush1.bf16.msra.mxu0 %v2523
    %2684 = vmatprep.subr.bf16.mxu0 %v2528
    %2685 = vmatpush1.bf16.msra.mxu0 %v2527
    %2686 = vmatprep.subr.bf16.mxu0 %v2532
    %2687 = vmatpush1.bf16.msra.mxu0 %v2531
    %2688 = vmatprep.subr.bf16.mxu0 %v2536
    %2689 = vmatpush1.bf16.msra.mxu0 %v2535
    %2690 = vmatprep.subr.bf16.mxu0 %v2540
    %2691 = vmatpush1.bf16.msra.mxu0 %v2539
    %2692 = vmatprep.subr.bf16.mxu0 %v2544
    %2693 = vmatpush1.bf16.msra.mxu0 %v2543
    %2694 = vmatprep.subr.bf16.mxu0 %v2548
    %2695 = vmatpush1.bf16.msra.mxu0 %v2547
    %2696 = vmatprep.subr.bf16.mxu0 %v2552
    %2697 = vmatpush1.bf16.msra.mxu0 %v2551
    %2698 = vmatprep.subr.bf16.mxu0 %v2556
    %2699 = vmatpush1.bf16.msra.mxu0 %v2555
    %2700 = vmatprep.subr.bf16.mxu0 %v2560
    %2701 = vmatpush1.bf16.msra.mxu0 %v2559
    %2702 = vmatprep.subr.bf16.mxu0 %v2564
    %2703 = vmatpush1.bf16.msra.mxu0 %v2563
    %2704 = vmatprep.subr.bf16.mxu0 %v2568
    %2705 = vmatpush1.bf16.msra.mxu0 %v2567
    %2706 = vmatprep.mubr.bf16.mxu0 %v2248
    %2707 = vmatmul.mubr.bf16.gmra.mrb[0].mxu0 %v2247
    %v2708 = vpop.f32.mrb[0].mxu0
    %v2709 = vadd.f32 %v714, %v2708
    %v2710 = vpop.f32.mrb[0].mxu0
    %v2711 = vadd.f32 %v718, %v2710
    %v2712 = vpop.f32.mrb[0].mxu0
    %v2713 = vpop.f32.mrb[0].mxu0
    %2714 = vdwg.mxu0
    %v2715 = vxor.u32 %v2668, 2147483648
    %v2716 = vxor.u32 %v2670, 2147483648
    %v2717 = vmul.f32 %v2715, 1.442695
    %v2718 = vpow.pop %v2717
    %v2719 = vmul.f32 %v2716, 1.442695
    %v2720 = vpow.pop %v2719
    %v2721 = vadd.f32 %v2718, 1.0
    %v2722 = vadd.f32 %v2720, 1.0
    %v2723 = vrcp.pop %v2721
    %v2724 = vmul.f32 1.0, %v2723
    %v2725 = vrcp.pop %v2722
    %v2726 = vmul.f32 1.0, %v2725
    %v2727 = vtanh.pop %v2709
    %v2728 = vxor.u32 %v2711, 2147483648
    %v2729 = vmul.f32 %v2728, 1.442695
    %v2730 = vpow.pop %v2729
    %v2731 = vadd.f32 %v2730, 1.0
    %v2732 = vrcp.pop %v2731
    %v2733 = vmul.f32 1.0, %v2732
    %v2734 = vmul.f32 %v2726, %v1941
    %v2735 = vmul.f32 %v2724, %v2727
    %v2736 = vadd.f32 %v2734, %v2735
    %v2737 = vtanh.pop %v2736
    %v2738 = vmul.f32 %v2733, %v2737
    %2739 = vst [vmem:[#allocation3 + $0x10] sm:$0xff] %v2738
    %v2740 = vld [vmem:[#allocation5] sm:$0xff]
    %v2741 = vld [vmem:[#allocation5 + $0x8] sm:$0xff]
    %v2742 = vld [vmem:[#allocation5 + $0x10] sm:$0xff]
    %v2743 = vld [vmem:[#allocation5 + $0x18] sm:$0xff]
    %v2744 = vld [vmem:[#allocation5 + $0x20] sm:$0xff]
    %v2745 = vld [vmem:[#allocation5 + $0x28] sm:$0xff]
    %v2746 = vld [vmem:[#allocation5 + $0x30] sm:$0xff]
    %v2747 = vld [vmem:[#allocation5 + $0x38] sm:$0xff]
    %v2748 = vld [vmem:[#allocation5 + $0x40] sm:$0xff]
    %v2749 = vld [vmem:[#allocation5 + $0x48] sm:$0xff]
    %v2750 = vld [vmem:[#allocation5 + $0x50] sm:$0xff]
    %v2751 = vld [vmem:[#allocation5 + $0x58] sm:$0xff]
    %v2752 = vld [vmem:[#allocation5 + $0x60] sm:$0xff]
    %v2753 = vld [vmem:[#allocation5 + $0x68] sm:$0xff]
    %v2754 = vld [vmem:[#allocation5 + $0x70] sm:$0xff]
    %v2755 = vld [vmem:[#allocation5 + $0x78] sm:$0xff]
    %v2756 = vld [vmem:[#allocation5 + $0x80] sm:$0xff]
    %v2757 = vld [vmem:[#allocation5 + $0x88] sm:$0xff]
    %v2758 = vld [vmem:[#allocation5 + $0x90] sm:$0xff]
    %v2759 = vld [vmem:[#allocation5 + $0x98] sm:$0xff]
    %v2760 = vld [vmem:[#allocation5 + $0xa0] sm:$0xff]
    %v2761 = vld [vmem:[#allocation5 + $0xa8] sm:$0xff]
    %v2762 = vld [vmem:[#allocation5 + $0xb0] sm:$0xff]
    %v2763 = vld [vmem:[#allocation5 + $0xb8] sm:$0xff]
    %v2764 = vld [vmem:[#allocation5 + $0xc0] sm:$0xff]
    %v2765 = vld [vmem:[#allocation5 + $0xc8] sm:$0xff]
    %v2766 = vld [vmem:[#allocation5 + $0xd0] sm:$0xff]
    %v2767 = vld [vmem:[#allocation5 + $0xd8] sm:$0xff]
    %v2768 = vld [vmem:[#allocation5 + $0xe0] sm:$0xff]
    %v2769 = vld [vmem:[#allocation5 + $0xe8] sm:$0xff]
    %v2770 = vld [vmem:[#allocation5 + $0xf0] sm:$0xff]
    %v2771 = vld [vmem:[#allocation5 + $0xf8] sm:$0xff]
    %v2772 = vld [vmem:[#allocation2 + $0x60] sm:$0xff]
    %v2773 = vld [vmem:[#allocation2 + $0x68] sm:$0xff]
    %v2774 = vld [vmem:[#allocation2 + $0x70] sm:$0xff]
    %v2775 = vld [vmem:[#allocation2 + $0x78] sm:$0xff]
    %v2808 = vunpack.c.l.b16 %v2740
    %v2809 = vunpack.c.h.b16 %v2740
    %v2810 = vunpack.c.l.b16 %v2741
    %v2811 = vunpack.c.h.b16 %v2741
    %v2812 = vunpack.c.l.b16 %v2742
    %v2813 = vunpack.c.h.b16 %v2742
    %v2814 = vunpack.c.l.b16 %v2743
    %v2815 = vunpack.c.h.b16 %v2743
    %v2816 = vunpack.c.l.b16 %v2744
    %v2817 = vunpack.c.h.b16 %v2744
    %v2818 = vunpack.c.l.b16 %v2745
    %v2819 = vunpack.c.h.b16 %v2745
    %v2820 = vunpack.c.l.b16 %v2746
    %v2821 = vunpack.c.h.b16 %v2746
    %v2822 = vunpack.c.l.b16 %v2747
    %v2823 = vunpack.c.h.b16 %v2747
    %v2824 = vunpack.c.l.b16 %v2748
    %v2825 = vunpack.c.h.b16 %v2748
    %v2826 = vunpack.c.l.b16 %v2749
    %v2827 = vunpack.c.h.b16 %v2749
    %v2828 = vunpack.c.l.b16 %v2750
    %v2829 = vunpack.c.h.b16 %v2750
    %v2830 = vunpack.c.l.b16 %v2751
    %v2831 = vunpack.c.h.b16 %v2751
    %v2832 = vunpack.c.l.b16 %v2752
    %v2833 = vunpack.c.h.b16 %v2752
    %v2834 = vunpack.c.l.b16 %v2753
    %v2835 = vunpack.c.h.b16 %v2753
    %v2836 = vunpack.c.l.b16 %v2754
    %v2837 = vunpack.c.h.b16 %v2754
    %v2838 = vunpack.c.l.b16 %v2755
    %v2839 = vunpack.c.h.b16 %v2755
    %v2840 = vunpack.c.l.b16 %v2756
    %v2841 = vunpack.c.h.b16 %v2756
    %v2842 = vunpack.c.l.b16 %v2757
    %v2843 = vunpack.c.h.b16 %v2757
    %v2844 = vunpack.c.l.b16 %v2758
    %v2845 = vunpack.c.h.b16 %v2758
    %v2846 = vunpack.c.l.b16 %v2759
    %v2847 = vunpack.c.h.b16 %v2759
    %v2848 = vunpack.c.l.b16 %v2760
    %v2849 = vunpack.c.h.b16 %v2760
    %v2850 = vunpack.c.l.b16 %v2761
    %v2851 = vunpack.c.h.b16 %v2761
    %v2852 = vunpack.c.l.b16 %v2762
    %v2853 = vunpack.c.h.b16 %v2762
    %v2854 = vunpack.c.l.b16 %v2763
    %v2855 = vunpack.c.h.b16 %v2763
    %v2856 = vunpack.c.l.b16 %v2764
    %v2857 = vunpack.c.h.b16 %v2764
    %v2858 = vunpack.c.l.b16 %v2765
    %v2859 = vunpack.c.h.b16 %v2765
    %v2860 = vunpack.c.l.b16 %v2766
    %v2861 = vunpack.c.h.b16 %v2766
    %v2862 = vunpack.c.l.b16 %v2767
    %v2863 = vunpack.c.h.b16 %v2767
    %v2864 = vunpack.c.l.b16 %v2768
    %v2865 = vunpack.c.h.b16 %v2768
    %v2866 = vunpack.c.l.b16 %v2769
    %v2867 = vunpack.c.h.b16 %v2769
    %v2868 = vunpack.c.l.b16 %v2770
    %v2869 = vunpack.c.h.b16 %v2770
    %v2870 = vunpack.c.l.b16 %v2771
    %v2871 = vunpack.c.h.b16 %v2771
    %v2872 = vpack.c.b16 %v2812, %v2808
    %v2873 = vpack.c.b16 %v2813, %v2809
    %v2874 = vpack.c.b16 %v2814, %v2810
    %v2875 = vpack.c.b16 %v2815, %v2811
    %v2876 = vpack.c.b16 %v2820, %v2816
    %v2877 = vpack.c.b16 %v2821, %v2817
    %v2878 = vpack.c.b16 %v2822, %v2818
    %v2879 = vpack.c.b16 %v2823, %v2819
    %v2880 = vpack.c.b16 %v2828, %v2824
    %v2881 = vpack.c.b16 %v2829, %v2825
    %v2882 = vpack.c.b16 %v2830, %v2826
    %v2883 = vpack.c.b16 %v2831, %v2827
    %v2884 = vpack.c.b16 %v2836, %v2832
    %v2885 = vpack.c.b16 %v2837, %v2833
    %v2886 = vpack.c.b16 %v2838, %v2834
    %v2887 = vpack.c.b16 %v2839, %v2835
    %v2888 = vpack.c.b16 %v2844, %v2840
    %v2889 = vpack.c.b16 %v2845, %v2841
    %v2890 = vpack.c.b16 %v2846, %v2842
    %v2891 = vpack.c.b16 %v2847, %v2843
    %v2892 = vpack.c.b16 %v2852, %v2848
    %v2893 = vpack.c.b16 %v2853, %v2849
    %v2894 = vpack.c.b16 %v2854, %v2850
    %v2895 = vpack.c.b16 %v2855, %v2851
    %v2896 = vpack.c.b16 %v2860, %v2856
    %v2897 = vpack.c.b16 %v2861, %v2857
    %v2898 = vpack.c.b16 %v2862, %v2858
    %v2899 = vpack.c.b16 %v2863, %v2859
    %v2900 = vpack.c.b16 %v2868, %v2864
    %v2901 = vpack.c.b16 %v2869, %v2865
    %v2902 = vpack.c.b16 %v2870, %v2866
    %v2903 = vpack.c.b16 %v2871, %v2867
    %2936 = vmatprep.subr.bf16.mxu0 %v2873
    %2937 = vmatpush1.bf16.msra.mxu0 %v2872
    %2938 = vmatprep.subr.bf16.mxu0 %v2877
    %2939 = vmatpush1.bf16.msra.mxu0 %v2876
    %2940 = vmatprep.subr.bf16.mxu0 %v2881
    %2941 = vmatpush1.bf16.msra.mxu0 %v2880
    %2942 = vmatprep.subr.bf16.mxu0 %v2885
    %2943 = vmatpush1.bf16.msra.mxu0 %v2884
    %2944 = vmatprep.subr.bf16.mxu0 %v2889
    %2945 = vmatpush1.bf16.msra.mxu0 %v2888
    %2946 = vmatprep.subr.bf16.mxu0 %v2893
    %2947 = vmatpush1.bf16.msra.mxu0 %v2892
    %2948 = vmatprep.subr.bf16.mxu0 %v2897
    %2949 = vmatpush1.bf16.msra.mxu0 %v2896
    %2950 = vmatprep.subr.bf16.mxu0 %v2901
    %2951 = vmatpush1.bf16.msra.mxu0 %v2900
    %2952 = vmatprep.subr.bf16.mxu0 0
    %2953 = vmatpush1.bf16.msra.mxu0 0
    %2954 = vmatprep.subr.bf16.mxu0 0
    %2955 = vmatpush1.bf16.msra.mxu0 0
    %2956 = vmatprep.subr.bf16.mxu0 0
    %2957 = vmatpush1.bf16.msra.mxu0 0
    %2958 = vmatprep.subr.bf16.mxu0 0
    %2959 = vmatpush1.bf16.msra.mxu0 0
    %2960 = vmatprep.subr.bf16.mxu0 0
    %2961 = vmatpush1.bf16.msra.mxu0 0
    %2962 = vmatprep.subr.bf16.mxu0 0
    %2963 = vmatpush1.bf16.msra.mxu0 0
    %2964 = vmatprep.subr.bf16.mxu0 0
    %2965 = vmatpush1.bf16.msra.mxu0 0
    %2966 = vmatprep.subr.bf16.mxu0 0
    %2967 = vmatpush1.bf16.msra.mxu0 0
    %2968 = vmatprep.mubr.bf16.mxu0 0
    %2969 = vmatmul.mubr.bf16.gmra.mrb[0].mxu0 %v2247
    %v2970 = vpop.f32.mrb[0].mxu0
    %v2971 = vadd.f32 %v2772, %v2970
    %v2972 = vpop.f32.mrb[0].mxu0
    %v2973 = vadd.f32 %v2773, %v2972
    %v2974 = vpop.f32.mrb[0].mxu0
    %v2975 = vpop.f32.mrb[0].mxu0
    %2976 = vdwg.mxu0
    %2977 = vmatprep.subr.bf16.mxu0 %v2875
    %2978 = vmatpush1.bf16.msra.mxu0 %v2874
    %2979 = vmatprep.subr.bf16.mxu0 %v2879
    %2980 = vmatpush1.bf16.msra.mxu0 %v2878
    %2981 = vmatprep.subr.bf16.mxu0 %v2883
    %2982 = vmatpush1.bf16.msra.mxu0 %v2882
    %2983 = vmatprep.subr.bf16.mxu0 %v2887
    %2984 = vmatpush1.bf16.msra.mxu0 %v2886
    %2985 = vmatprep.subr.bf16.mxu0 %v2891
    %2986 = vmatpush1.bf16.msra.mxu0 %v2890
    %2987 = vmatprep.subr.bf16.mxu0 %v2895
    %2988 = vmatpush1.bf16.msra.mxu0 %v2894
    %2989 = vmatprep.subr.bf16.mxu0 %v2899
    %2990 = vmatpush1.bf16.msra.mxu0 %v2898
    %2991 = vmatprep.subr.bf16.mxu0 %v2903
    %2992 = vmatpush1.bf16.msra.mxu0 %v2902
    %2993 = vmatprep.subr.bf16.mxu0 0
    %2994 = vmatpush1.bf16.msra.mxu0 0
    %2995 = vmatprep.subr.bf16.mxu0 0
    %2996 = vmatpush1.bf16.msra.mxu0 0
    %2997 = vmatprep.subr.bf16.mxu0 0
    %2998 = vmatpush1.bf16.msra.mxu0 0
    %2999 = vmatprep.subr.bf16.mxu0 0
    %3000 = vmatpush1.bf16.msra.mxu0 0
    %3001 = vmatprep.subr.bf16.mxu0 0
    %3002 = vmatpush1.bf16.msra.mxu0 0
    %3003 = vmatprep.subr.bf16.mxu0 0
    %3004 = vmatpush1.bf16.msra.mxu0 0
    %3005 = vmatprep.subr.bf16.mxu0 0
    %3006 = vmatpush1.bf16.msra.mxu0 0
    %3007 = vmatprep.subr.bf16.mxu0 0
    %3008 = vmatpush1.bf16.msra.mxu0 0
    %3009 = vmatprep.mubr.bf16.mxu0 0
    %3010 = vmatmul.mubr.bf16.gmra.mrb[0].mxu0 %v2247
    %v3011 = vpop.f32.mrb[0].mxu0
    %v3012 = vadd.f32 %v2774, %v3011
    %v3013 = vpop.f32.mrb[0].mxu0
    %v3014 = vadd.f32 %v2775, %v3013
    %v3015 = vpop.f32.mrb[0].mxu0
    %v3016 = vpop.f32.mrb[0].mxu0
    %3017 = vdwg.mxu0
    %v3018 = vxor.u32 %v2971, 2147483648
    %v3019 = vxor.u32 %v2973, 2147483648
    %v3020 = vmul.f32 %v3018, 1.442695
    %v3021 = vpow.pop %v3020
    %v3022 = vmul.f32 %v3019, 1.442695
    %v3023 = vpow.pop %v3022
    %v3024 = vadd.f32 %v3021, 1.0
    %v3025 = vadd.f32 %v3023, 1.0
    %v3026 = vrcp.pop %v3024
    %v3027 = vmul.f32 1.0, %v3026
    %v3028 = vrcp.pop %v3025
    %v3029 = vmul.f32 1.0, %v3028
    %v3030 = vtanh.pop %v3012
    %v3031 = vxor.u32 %v3014, 2147483648
    %v3032 = vmul.f32 %v3031, 1.442695
    %v3033 = vpow.pop %v3032
    %v3034 = vadd.f32 %v3033, 1.0
    %v3035 = vrcp.pop %v3034
    %v3036 = vmul.f32 1.0, %v3035
    %v3037 = vmul.f32 %v3029, %v2244
    %v3038 = vmul.f32 %v3027, %v3030
    %v3039 = vadd.f32 %v3037, %v3038
    %v3040 = vtanh.pop %v3039
    %v3041 = vmul.f32 %v3036, %v3040
    %v3042 = vpack.c.bf16 %v3041, %v3041
    %v3043 = vpack.c.bf16 %v2738, %v2738
    %v3044 = vld [vmem:[#allocation8] sm:$0xff]
    %v3045 = vld [vmem:[#allocation8 + $0x8] sm:$0xff]
    %v3046 = vld [vmem:[#allocation8 + $0x10] sm:$0xff]
    %v3047 = vld [vmem:[#allocation8 + $0x18] sm:$0xff]
    %v3048 = vld [vmem:[#allocation8 + $0x20] sm:$0xff]
    %v3049 = vld [vmem:[#allocation8 + $0x28] sm:$0xff]
    %v3050 = vld [vmem:[#allocation8 + $0x30] sm:$0xff]
    %v3051 = vld [vmem:[#allocation8 + $0x38] sm:$0xff]
    %v3052 = vld [vmem:[#allocation8 + $0x40] sm:$0xff]
    %v3053 = vld [vmem:[#allocation8 + $0x48] sm:$0xff]
    %v3054 = vld [vmem:[#allocation8 + $0x50] sm:$0xff]
    %v3055 = vld [vmem:[#allocation8 + $0x58] sm:$0xff]
    %v3056 = vld [vmem:[#allocation8 + $0x60] sm:$0xff]
    %v3057 = vld [vmem:[#allocation8 + $0x68] sm:$0xff]
    %v3058 = vld [vmem:[#allocation8 + $0x70] sm:$0xff]
    %v3059 = vld [vmem:[#allocation8 + $0x78] sm:$0xff]
    %v3060 = vld [vmem:[#allocation8 + $0x80] sm:$0xff]
    %v3061 = vld [vmem:[#allocation8 + $0x88] sm:$0xff]
    %v3062 = vld [vmem:[#allocation8 + $0x90] sm:$0xff]
    %v3063 = vld [vmem:[#allocation8 + $0x98] sm:$0xff]
    %v3064 = vld [vmem:[#allocation8 + $0xa0] sm:$0xff]
    %v3065 = vld [vmem:[#allocation8 + $0xa8] sm:$0xff]
    %v3066 = vld [vmem:[#allocation8 + $0xb0] sm:$0xff]
    %v3067 = vld [vmem:[#allocation8 + $0xb8] sm:$0xff]
    %v3068 = vld [vmem:[#allocation8 + $0xc0] sm:$0xff]
    %v3069 = vld [vmem:[#allocation8 + $0xc8] sm:$0xff]
    %v3070 = vld [vmem:[#allocation8 + $0xd0] sm:$0xff]
    %v3071 = vld [vmem:[#allocation8 + $0xd8] sm:$0xff]
    %v3072 = vld [vmem:[#allocation8 + $0xe0] sm:$0xff]
    %v3073 = vld [vmem:[#allocation8 + $0xe8] sm:$0xff]
    %v3074 = vld [vmem:[#allocation8 + $0xf0] sm:$0xff]
    %v3075 = vld [vmem:[#allocation8 + $0xf8] sm:$0xff]
    %v3076 = vld [vmem:[#allocation8 + $0x100] sm:$0xff]
    %v3077 = vld [vmem:[#allocation8 + $0x108] sm:$0xff]
    %v3078 = vld [vmem:[#allocation8 + $0x110] sm:$0xff]
    %v3079 = vld [vmem:[#allocation8 + $0x118] sm:$0xff]
    %v3080 = vld [vmem:[#allocation8 + $0x120] sm:$0xff]
    %v3081 = vld [vmem:[#allocation8 + $0x128] sm:$0xff]
    %v3082 = vld [vmem:[#allocation8 + $0x130] sm:$0xff]
    %v3083 = vld [vmem:[#allocation8 + $0x138] sm:$0xff]
    %v3084 = vld [vmem:[#allocation8 + $0x140] sm:$0xff]
    %v3085 = vld [vmem:[#allocation8 + $0x148] sm:$0xff]
    %v3086 = vld [vmem:[#allocation8 + $0x150] sm:$0xff]
    %v3087 = vld [vmem:[#allocation8 + $0x158] sm:$0xff]
    %v3088 = vld [vmem:[#allocation8 + $0x160] sm:$0xff]
    %v3089 = vld [vmem:[#allocation8 + $0x168] sm:$0xff]
    %v3090 = vld [vmem:[#allocation8 + $0x170] sm:$0xff]
    %v3091 = vld [vmem:[#allocation8 + $0x178] sm:$0xff]
    %v3092 = vld [vmem:[#allocation8 + $0x180] sm:$0xff]
    %v3093 = vld [vmem:[#allocation8 + $0x188] sm:$0xff]
    %v3094 = vld [vmem:[#allocation8 + $0x190] sm:$0xff]
    %v3095 = vld [vmem:[#allocation8 + $0x198] sm:$0xff]
    %v3096 = vld [vmem:[#allocation8 + $0x1a0] sm:$0xff]
    %v3097 = vld [vmem:[#allocation8 + $0x1a8] sm:$0xff]
    %v3098 = vld [vmem:[#allocation8 + $0x1b0] sm:$0xff]
    %v3099 = vld [vmem:[#allocation8 + $0x1b8] sm:$0xff]
    %v3100 = vld [vmem:[#allocation8 + $0x1c0] sm:$0xff]
    %v3101 = vld [vmem:[#allocation8 + $0x1c8] sm:$0xff]
    %v3102 = vld [vmem:[#allocation8 + $0x1d0] sm:$0xff]
    %v3103 = vld [vmem:[#allocation8 + $0x1d8] sm:$0xff]
    %v3104 = vld [vmem:[#allocation8 + $0x1e0] sm:$0xff]
    %v3105 = vld [vmem:[#allocation8 + $0x1e8] sm:$0xff]
    %v3106 = vld [vmem:[#allocation8 + $0x1f0] sm:$0xff]
    %v3107 = vld [vmem:[#allocation8 + $0x1f8] sm:$0xff]
    %v3172 = vunpack.c.l.b16 %v3044
    %v3173 = vunpack.c.h.b16 %v3044
    %v3174 = vunpack.c.l.b16 %v3045
    %v3175 = vunpack.c.h.b16 %v3045
    %v3176 = vunpack.c.l.b16 %v3046
    %v3177 = vunpack.c.h.b16 %v3046
    %v3178 = vunpack.c.l.b16 %v3047
    %v3179 = vunpack.c.h.b16 %v3047
    %v3180 = vunpack.c.l.b16 %v3048
    %v3181 = vunpack.c.h.b16 %v3048
    %v3182 = vunpack.c.l.b16 %v3049
    %v3183 = vunpack.c.h.b16 %v3049
    %v3184 = vunpack.c.l.b16 %v3050
    %v3185 = vunpack.c.h.b16 %v3050
    %v3186 = vunpack.c.l.b16 %v3051
    %v3187 = vunpack.c.h.b16 %v3051
    %v3188 = vunpack.c.l.b16 %v3052
    %v3189 = vunpack.c.h.b16 %v3052
    %v3190 = vunpack.c.l.b16 %v3053
    %v3191 = vunpack.c.h.b16 %v3053
    %v3192 = vunpack.c.l.b16 %v3054
    %v3193 = vunpack.c.h.b16 %v3054
    %v3194 = vunpack.c.l.b16 %v3055
    %v3195 = vunpack.c.h.b16 %v3055
    %v3196 = vunpack.c.l.b16 %v3056
    %v3197 = vunpack.c.h.b16 %v3056
    %v3198 = vunpack.c.l.b16 %v3057
    %v3199 = vunpack.c.h.b16 %v3057
    %v3200 = vunpack.c.l.b16 %v3058
    %v3201 = vunpack.c.h.b16 %v3058
    %v3202 = vunpack.c.l.b16 %v3059
    %v3203 = vunpack.c.h.b16 %v3059
    %v3204 = vunpack.c.l.b16 %v3060
    %v3205 = vunpack.c.h.b16 %v3060
    %v3206 = vunpack.c.l.b16 %v3061
    %v3207 = vunpack.c.h.b16 %v3061
    %v3208 = vunpack.c.l.b16 %v3062
    %v3209 = vunpack.c.h.b16 %v3062
    %v3210 = vunpack.c.l.b16 %v3063
    %v3211 = vunpack.c.h.b16 %v3063
    %v3212 = vunpack.c.l.b16 %v3064
    %v3213 = vunpack.c.h.b16 %v3064
    %v3214 = vunpack.c.l.b16 %v3065
    %v3215 = vunpack.c.h.b16 %v3065
    %v3216 = vunpack.c.l.b16 %v3066
    %v3217 = vunpack.c.h.b16 %v3066
    %v3218 = vunpack.c.l.b16 %v3067
    %v3219 = vunpack.c.h.b16 %v3067
    %v3220 = vunpack.c.l.b16 %v3068
    %v3221 = vunpack.c.h.b16 %v3068
    %v3222 = vunpack.c.l.b16 %v3069
    %v3223 = vunpack.c.h.b16 %v3069
    %v3224 = vunpack.c.l.b16 %v3070
    %v3225 = vunpack.c.h.b16 %v3070
    %v3226 = vunpack.c.l.b16 %v3071
    %v3227 = vunpack.c.h.b16 %v3071
    %v3228 = vunpack.c.l.b16 %v3072
    %v3229 = vunpack.c.h.b16 %v3072
    %v3230 = vunpack.c.l.b16 %v3073
    %v3231 = vunpack.c.h.b16 %v3073
    %v3232 = vunpack.c.l.b16 %v3074
    %v3233 = vunpack.c.h.b16 %v3074
    %v3234 = vunpack.c.l.b16 %v3075
    %v3235 = vunpack.c.h.b16 %v3075
    %v3236 = vunpack.c.l.b16 %v3076
    %v3237 = vunpack.c.h.b16 %v3076
    %v3238 = vunpack.c.l.b16 %v3077
    %v3239 = vunpack.c.h.b16 %v3077
    %v3240 = vunpack.c.l.b16 %v3078
    %v3241 = vunpack.c.h.b16 %v3078
    %v3242 = vunpack.c.l.b16 %v3079
    %v3243 = vunpack.c.h.b16 %v3079
    %v3244 = vunpack.c.l.b16 %v3080
    %v3245 = vunpack.c.h.b16 %v3080
    %v3246 = vunpack.c.l.b16 %v3081
    %v3247 = vunpack.c.h.b16 %v3081
    %v3248 = vunpack.c.l.b16 %v3082
    %v3249 = vunpack.c.h.b16 %v3082
    %v3250 = vunpack.c.l.b16 %v3083
    %v3251 = vunpack.c.h.b16 %v3083
    %v3252 = vunpack.c.l.b16 %v3084
    %v3253 = vunpack.c.h.b16 %v3084
    %v3254 = vunpack.c.l.b16 %v3085
    %v3255 = vunpack.c.h.b16 %v3085
    %v3256 = vunpack.c.l.b16 %v3086
    %v3257 = vunpack.c.h.b16 %v3086
    %v3258 = vunpack.c.l.b16 %v3087
    %v3259 = vunpack.c.h.b16 %v3087
    %v3260 = vunpack.c.l.b16 %v3088
    %v3261 = vunpack.c.h.b16 %v3088
    %v3262 = vunpack.c.l.b16 %v3089
    %v3263 = vunpack.c.h.b16 %v3089
    %v3264 = vunpack.c.l.b16 %v3090
    %v3265 = vunpack.c.h.b16 %v3090
    %v3266 = vunpack.c.l.b16 %v3091
    %v3267 = vunpack.c.h.b16 %v3091
    %v3268 = vunpack.c.l.b16 %v3092
    %v3269 = vunpack.c.h.b16 %v3092
    %v3270 = vunpack.c.l.b16 %v3093
    %v3271 = vunpack.c.h.b16 %v3093
    %v3272 = vunpack.c.l.b16 %v3094
    %v3273 = vunpack.c.h.b16 %v3094
    %v3274 = vunpack.c.l.b16 %v3095
    %v3275 = vunpack.c.h.b16 %v3095
    %v3276 = vunpack.c.l.b16 %v3096
    %v3277 = vunpack.c.h.b16 %v3096
    %v3278 = vunpack.c.l.b16 %v3097
    %v3279 = vunpack.c.h.b16 %v3097
    %v3280 = vunpack.c.l.b16 %v3098
    %v3281 = vunpack.c.h.b16 %v3098
    %v3282 = vunpack.c.l.b16 %v3099
    %v3283 = vunpack.c.h.b16 %v3099
    %v3284 = vunpack.c.l.b16 %v3100
    %v3285 = vunpack.c.h.b16 %v3100
    %v3286 = vunpack.c.l.b16 %v3101
    %v3287 = vunpack.c.h.b16 %v3101
    %v3288 = vunpack.c.l.b16 %v3102
    %v3289 = vunpack.c.h.b16 %v3102
    %v3290 = vunpack.c.l.b16 %v3103
    %v3291 = vunpack.c.h.b16 %v3103
    %v3292 = vunpack.c.l.b16 %v3104
    %v3293 = vunpack.c.h.b16 %v3104
    %v3294 = vunpack.c.l.b16 %v3105
    %v3295 = vunpack.c.h.b16 %v3105
    %v3296 = vunpack.c.l.b16 %v3106
    %v3297 = vunpack.c.h.b16 %v3106
    %v3298 = vunpack.c.l.b16 %v3107
    %v3299 = vunpack.c.h.b16 %v3107
    %v3300 = vpack.c.b16 %v3176, %v3172
    %v3301 = vpack.c.b16 %v3177, %v3173
    %v3302 = vpack.c.b16 %v3178, %v3174
    %v3303 = vpack.c.b16 %v3179, %v3175
    %v3304 = vpack.c.b16 %v3184, %v3180
    %v3305 = vpack.c.b16 %v3185, %v3181
    %v3306 = vpack.c.b16 %v3186, %v3182
    %v3307 = vpack.c.b16 %v3187, %v3183
    %v3308 = vpack.c.b16 %v3192, %v3188
    %v3309 = vpack.c.b16 %v3193, %v3189
    %v3310 = vpack.c.b16 %v3194, %v3190
    %v3311 = vpack.c.b16 %v3195, %v3191
    %v3312 = vpack.c.b16 %v3200, %v3196
    %v3313 = vpack.c.b16 %v3201, %v3197
    %v3314 = vpack.c.b16 %v3202, %v3198
    %v3315 = vpack.c.b16 %v3203, %v3199
    %v3316 = vpack.c.b16 %v3208, %v3204
    %v3317 = vpack.c.b16 %v3209, %v3205
    %v3318 = vpack.c.b16 %v3210, %v3206
    %v3319 = vpack.c.b16 %v3211, %v3207
    %v3320 = vpack.c.b16 %v3216, %v3212
    %v3321 = vpack.c.b16 %v3217, %v3213
    %v3322 = vpack.c.b16 %v3218, %v3214
    %v3323 = vpack.c.b16 %v3219, %v3215
    %v3324 = vpack.c.b16 %v3224, %v3220
    %v3325 = vpack.c.b16 %v3225, %v3221
    %v3326 = vpack.c.b16 %v3226, %v3222
    %v3327 = vpack.c.b16 %v3227, %v3223
    %v3328 = vpack.c.b16 %v3232, %v3228
    %v3329 = vpack.c.b16 %v3233, %v3229
    %v3330 = vpack.c.b16 %v3234, %v3230
    %v3331 = vpack.c.b16 %v3235, %v3231
    %v3332 = vpack.c.b16 %v3240, %v3236
    %v3333 = vpack.c.b16 %v3241, %v3237
    %v3334 = vpack.c.b16 %v3242, %v3238
    %v3335 = vpack.c.b16 %v3243, %v3239
    %v3336 = vpack.c.b16 %v3248, %v3244
    %v3337 = vpack.c.b16 %v3249, %v3245
    %v3338 = vpack.c.b16 %v3250, %v3246
    %v3339 = vpack.c.b16 %v3251, %v3247
    %v3340 = vpack.c.b16 %v3256, %v3252
    %v3341 = vpack.c.b16 %v3257, %v3253
    %v3342 = vpack.c.b16 %v3258, %v3254
    %v3343 = vpack.c.b16 %v3259, %v3255
    %v3344 = vpack.c.b16 %v3264, %v3260
    %v3345 = vpack.c.b16 %v3265, %v3261
    %v3346 = vpack.c.b16 %v3266, %v3262
    %v3347 = vpack.c.b16 %v3267, %v3263
    %v3348 = vpack.c.b16 %v3272, %v3268
    %v3349 = vpack.c.b16 %v3273, %v3269
    %v3350 = vpack.c.b16 %v3274, %v3270
    %v3351 = vpack.c.b16 %v3275, %v3271
    %v3352 = vpack.c.b16 %v3280, %v3276
    %v3353 = vpack.c.b16 %v3281, %v3277
    %v3354 = vpack.c.b16 %v3282, %v3278
    %v3355 = vpack.c.b16 %v3283, %v3279
    %v3356 = vpack.c.b16 %v3288, %v3284
    %v3357 = vpack.c.b16 %v3289, %v3285
    %v3358 = vpack.c.b16 %v3290, %v3286
    %v3359 = vpack.c.b16 %v3291, %v3287
    %v3360 = vpack.c.b16 %v3296, %v3292
    %v3361 = vpack.c.b16 %v3297, %v3293
    %v3362 = vpack.c.b16 %v3298, %v3294
    %v3363 = vpack.c.b16 %v3299, %v3295
    %3428 = vmatprep.subr.bf16.mxu0 %v3301
    %3429 = vmatpush1.bf16.msra.mxu0 %v3300
    %3430 = vmatprep.subr.bf16.mxu0 %v3305
    %3431 = vmatpush1.bf16.msra.mxu0 %v3304
    %3432 = vmatprep.subr.bf16.mxu0 %v3309
    %3433 = vmatpush1.bf16.msra.mxu0 %v3308
    %3434 = vmatprep.subr.bf16.mxu0 %v3313
    %3435 = vmatpush1.bf16.msra.mxu0 %v3312
    %3436 = vmatprep.subr.bf16.mxu0 %v3317
    %3437 = vmatpush1.bf16.msra.mxu0 %v3316
    %3438 = vmatprep.subr.bf16.mxu0 %v3321
    %3439 = vmatpush1.bf16.msra.mxu0 %v3320
    %3440 = vmatprep.subr.bf16.mxu0 %v3325
    %3441 = vmatpush1.bf16.msra.mxu0 %v3324
    %3442 = vmatprep.subr.bf16.mxu0 %v3329
    %3443 = vmatpush1.bf16.msra.mxu0 %v3328
    %3444 = vmatprep.subr.bf16.mxu0 %v3333
    %3445 = vmatpush1.bf16.msra.mxu0 %v3332
    %3446 = vmatprep.subr.bf16.mxu0 %v3337
    %3447 = vmatpush1.bf16.msra.mxu0 %v3336
    %3448 = vmatprep.subr.bf16.mxu0 %v3341
    %3449 = vmatpush1.bf16.msra.mxu0 %v3340
    %3450 = vmatprep.subr.bf16.mxu0 %v3345
    %3451 = vmatpush1.bf16.msra.mxu0 %v3344
    %3452 = vmatprep.subr.bf16.mxu0 %v3349
    %3453 = vmatpush1.bf16.msra.mxu0 %v3348
    %3454 = vmatprep.subr.bf16.mxu0 %v3353
    %3455 = vmatpush1.bf16.msra.mxu0 %v3352
    %3456 = vmatprep.subr.bf16.mxu0 %v3357
    %3457 = vmatpush1.bf16.msra.mxu0 %v3356
    %3458 = vmatprep.subr.bf16.mxu0 %v3361
    %3459 = vmatpush1.bf16.msra.mxu0 %v3360
    %3460 = vmatprep.mubr.bf16.mxu0 %v3043
    %3461 = vmatmul.mubr.bf16.gmra.mrb[0].mxu0 %v3042
    %v3462 = vpop.f32.mrb[0].mxu0
    %v3463 = vadd.f32 %v706, %v3462
    %v3464 = vpop.f32.mrb[0].mxu0
    %v3465 = vadd.f32 %v710, %v3464
    %v3466 = vpop.f32.mrb[0].mxu0
    %v3467 = vpop.f32.mrb[0].mxu0
    %3468 = vdwg.mxu0
    %3469 = vmatprep.subr.bf16.mxu0 %v3303
    %3470 = vmatpush1.bf16.msra.mxu0 %v3302
    %3471 = vmatprep.subr.bf16.mxu0 %v3307
    %3472 = vmatpush1.bf16.msra.mxu0 %v3306
    %3473 = vmatprep.subr.bf16.mxu0 %v3311
    %3474 = vmatpush1.bf16.msra.mxu0 %v3310
    %3475 = vmatprep.subr.bf16.mxu0 %v3315
    %3476 = vmatpush1.bf16.msra.mxu0 %v3314
    %3477 = vmatprep.subr.bf16.mxu0 %v3319
    %3478 = vmatpush1.bf16.msra.mxu0 %v3318
    %3479 = vmatprep.subr.bf16.mxu0 %v3323
    %3480 = vmatpush1.bf16.msra.mxu0 %v3322
    %3481 = vmatprep.subr.bf16.mxu0 %v3327
    %3482 = vmatpush1.bf16.msra.mxu0 %v3326
    %3483 = vmatprep.subr.bf16.mxu0 %v3331
    %3484 = vmatpush1.bf16.msra.mxu0 %v3330
    %3485 = vmatprep.subr.bf16.mxu0 %v3335
    %3486 = vmatpush1.bf16.msra.mxu0 %v3334
    %3487 = vmatprep.subr.bf16.mxu0 %v3339
    %3488 = vmatpush1.bf16.msra.mxu0 %v3338
    %3489 = vmatprep.subr.bf16.mxu0 %v3343
    %3490 = vmatpush1.bf16.msra.mxu0 %v3342
    %3491 = vmatprep.subr.bf16.mxu0 %v3347
    %3492 = vmatpush1.bf16.msra.mxu0 %v3346
    %3493 = vmatprep.subr.bf16.mxu0 %v3351
    %3494 = vmatpush1.bf16.msra.mxu0 %v3350
    %3495 = vmatprep.subr.bf16.mxu0 %v3355
    %3496 = vmatpush1.bf16.msra.mxu0 %v3354
    %3497 = vmatprep.subr.bf16.mxu0 %v3359
    %3498 = vmatpush1.bf16.msra.mxu0 %v3358
    %3499 = vmatprep.subr.bf16.mxu0 %v3363
    %3500 = vmatpush1.bf16.msra.mxu0 %v3362
    %3501 = vmatprep.mubr.bf16.mxu0 %v3043
    %3502 = vmatmul.mubr.bf16.gmra.mrb[0].mxu0 %v3042
    %v3503 = vpop.f32.mrb[0].mxu0
    %v3504 = vadd.f32 %v714, %v3503
    %v3505 = vpop.f32.mrb[0].mxu0
    %v3506 = vadd.f32 %v718, %v3505
    %v3507 = vpop.f32.mrb[0].mxu0
    %v3508 = vpop.f32.mrb[0].mxu0
    %3509 = vdwg.mxu0
    %v3510 = vxor.u32 %v3463, 2147483648
    %v3511 = vxor.u32 %v3465, 2147483648
    %v3512 = vmul.f32 %v3510, 1.442695
    %v3513 = vpow.pop %v3512
    %v3514 = vmul.f32 %v3511, 1.442695
    %v3515 = vpow.pop %v3514
    %v3516 = vadd.f32 %v3513, 1.0
    %v3517 = vadd.f32 %v3515, 1.0
    %v3518 = vrcp.pop %v3516
    %v3519 = vmul.f32 1.0, %v3518
    %v3520 = vrcp.pop %v3517
    %v3521 = vmul.f32 1.0, %v3520
    %v3522 = vtanh.pop %v3504
    %v3523 = vxor.u32 %v3506, 2147483648
    %v3524 = vmul.f32 %v3523, 1.442695
    %v3525 = vpow.pop %v3524
    %v3526 = vadd.f32 %v3525, 1.0
    %v3527 = vrcp.pop %v3526
    %v3528 = vmul.f32 1.0, %v3527
    %v3529 = vmul.f32 %v3521, %v2736
    %v3530 = vmul.f32 %v3519, %v3522
    %v3531 = vadd.f32 %v3529, %v3530
    %v3532 = vtanh.pop %v3531
    %v3533 = vmul.f32 %v3528, %v3532
    %3534 = vst [vmem:[#allocation3 + $0x18] sm:$0xff] %v3533
    %v3535 = vld [vmem:[#allocation5] sm:$0xff]
    %v3536 = vld [vmem:[#allocation5 + $0x8] sm:$0xff]
    %v3537 = vld [vmem:[#allocation5 + $0x10] sm:$0xff]
    %v3538 = vld [vmem:[#allocation5 + $0x18] sm:$0xff]
    %v3539 = vld [vmem:[#allocation5 + $0x20] sm:$0xff]
    %v3540 = vld [vmem:[#allocation5 + $0x28] sm:$0xff]
    %v3541 = vld [vmem:[#allocation5 + $0x30] sm:$0xff]
    %v3542 = vld [vmem:[#allocation5 + $0x38] sm:$0xff]
    %v3543 = vld [vmem:[#allocation5 + $0x40] sm:$0xff]
    %v3544 = vld [vmem:[#allocation5 + $0x48] sm:$0xff]
    %v3545 = vld [vmem:[#allocation5 + $0x50] sm:$0xff]
    %v3546 = vld [vmem:[#allocation5 + $0x58] sm:$0xff]
    %v3547 = vld [vmem:[#allocation5 + $0x60] sm:$0xff]
    %v3548 = vld [vmem:[#allocation5 + $0x68] sm:$0xff]
    %v3549 = vld [vmem:[#allocation5 + $0x70] sm:$0xff]
    %v3550 = vld [vmem:[#allocation5 + $0x78] sm:$0xff]
    %v3551 = vld [vmem:[#allocation5 + $0x80] sm:$0xff]
    %v3552 = vld [vmem:[#allocation5 + $0x88] sm:$0xff]
    %v3553 = vld [vmem:[#allocation5 + $0x90] sm:$0xff]
    %v3554 = vld [vmem:[#allocation5 + $0x98] sm:$0xff]
    %v3555 = vld [vmem:[#allocation5 + $0xa0] sm:$0xff]
    %v3556 = vld [vmem:[#allocation5 + $0xa8] sm:$0xff]
    %v3557 = vld [vmem:[#allocation5 + $0xb0] sm:$0xff]
    %v3558 = vld [vmem:[#allocation5 + $0xb8] sm:$0xff]
    %v3559 = vld [vmem:[#allocation5 + $0xc0] sm:$0xff]
    %v3560 = vld [vmem:[#allocation5 + $0xc8] sm:$0xff]
    %v3561 = vld [vmem:[#allocation5 + $0xd0] sm:$0xff]
    %v3562 = vld [vmem:[#allocation5 + $0xd8] sm:$0xff]
    %v3563 = vld [vmem:[#allocation5 + $0xe0] sm:$0xff]
    %v3564 = vld [vmem:[#allocation5 + $0xe8] sm:$0xff]
    %v3565 = vld [vmem:[#allocation5 + $0xf0] sm:$0xff]
    %v3566 = vld [vmem:[#allocation5 + $0xf8] sm:$0xff]
    %v3567 = vld [vmem:[#allocation2 + $0x80] sm:$0xff]
    %v3568 = vld [vmem:[#allocation2 + $0x88] sm:$0xff]
    %v3569 = vld [vmem:[#allocation2 + $0x90] sm:$0xff]
    %v3570 = vld [vmem:[#allocation2 + $0x98] sm:$0xff]
    %v3603 = vunpack.c.l.b16 %v3535
    %v3604 = vunpack.c.h.b16 %v3535
    %v3605 = vunpack.c.l.b16 %v3536
    %v3606 = vunpack.c.h.b16 %v3536
    %v3607 = vunpack.c.l.b16 %v3537
    %v3608 = vunpack.c.h.b16 %v3537
    %v3609 = vunpack.c.l.b16 %v3538
    %v3610 = vunpack.c.h.b16 %v3538
    %v3611 = vunpack.c.l.b16 %v3539
    %v3612 = vunpack.c.h.b16 %v3539
    %v3613 = vunpack.c.l.b16 %v3540
    %v3614 = vunpack.c.h.b16 %v3540
    %v3615 = vunpack.c.l.b16 %v3541
    %v3616 = vunpack.c.h.b16 %v3541
    %v3617 = vunpack.c.l.b16 %v3542
    %v3618 = vunpack.c.h.b16 %v3542
    %v3619 = vunpack.c.l.b16 %v3543
    %v3620 = vunpack.c.h.b16 %v3543
    %v3621 = vunpack.c.l.b16 %v3544
    %v3622 = vunpack.c.h.b16 %v3544
    %v3623 = vunpack.c.l.b16 %v3545
    %v3624 = vunpack.c.h.b16 %v3545
    %v3625 = vunpack.c.l.b16 %v3546
    %v3626 = vunpack.c.h.b16 %v3546
    %v3627 = vunpack.c.l.b16 %v3547
    %v3628 = vunpack.c.h.b16 %v3547
    %v3629 = vunpack.c.l.b16 %v3548
    %v3630 = vunpack.c.h.b16 %v3548
    %v3631 = vunpack.c.l.b16 %v3549
    %v3632 = vunpack.c.h.b16 %v3549
    %v3633 = vunpack.c.l.b16 %v3550
    %v3634 = vunpack.c.h.b16 %v3550
    %v3635 = vunpack.c.l.b16 %v3551
    %v3636 = vunpack.c.h.b16 %v3551
    %v3637 = vunpack.c.l.b16 %v3552
    %v3638 = vunpack.c.h.b16 %v3552
    %v3639 = vunpack.c.l.b16 %v3553
    %v3640 = vunpack.c.h.b16 %v3553
    %v3641 = vunpack.c.l.b16 %v3554
    %v3642 = vunpack.c.h.b16 %v3554
    %v3643 = vunpack.c.l.b16 %v3555
    %v3644 = vunpack.c.h.b16 %v3555
    %v3645 = vunpack.c.l.b16 %v3556
    %v3646 = vunpack.c.h.b16 %v3556
    %v3647 = vunpack.c.l.b16 %v3557
    %v3648 = vunpack.c.h.b16 %v3557
    %v3649 = vunpack.c.l.b16 %v3558
    %v3650 = vunpack.c.h.b16 %v3558
    %v3651 = vunpack.c.l.b16 %v3559
    %v3652 = vunpack.c.h.b16 %v3559
    %v3653 = vunpack.c.l.b16 %v3560
    %v3654 = vunpack.c.h.b16 %v3560
    %v3655 = vunpack.c.l.b16 %v3561
    %v3656 = vunpack.c.h.b16 %v3561
    %v3657 = vunpack.c.l.b16 %v3562
    %v3658 = vunpack.c.h.b16 %v3562
    %v3659 = vunpack.c.l.b16 %v3563
    %v3660 = vunpack.c.h.b16 %v3563
    %v3661 = vunpack.c.l.b16 %v3564
    %v3662 = vunpack.c.h.b16 %v3564
    %v3663 = vunpack.c.l.b16 %v3565
    %v3664 = vunpack.c.h.b16 %v3565
    %v3665 = vunpack.c.l.b16 %v3566
    %v3666 = vunpack.c.h.b16 %v3566
    %v3667 = vpack.c.b16 %v3607, %v3603
    %v3668 = vpack.c.b16 %v3608, %v3604
    %v3669 = vpack.c.b16 %v3609, %v3605
    %v3670 = vpack.c.b16 %v3610, %v3606
    %v3671 = vpack.c.b16 %v3615, %v3611
    %v3672 = vpack.c.b16 %v3616, %v3612
    %v3673 = vpack.c.b16 %v3617, %v3613
    %v3674 = vpack.c.b16 %v3618, %v3614
    %v3675 = vpack.c.b16 %v3623, %v3619
    %v3676 = vpack.c.b16 %v3624, %v3620
    %v3677 = vpack.c.b16 %v3625, %v3621
    %v3678 = vpack.c.b16 %v3626, %v3622
    %v3679 = vpack.c.b16 %v3631, %v3627
    %v3680 = vpack.c.b16 %v3632, %v3628
    %v3681 = vpack.c.b16 %v3633, %v3629
    %v3682 = vpack.c.b16 %v3634, %v3630
    %v3683 = vpack.c.b16 %v3639, %v3635
    %v3684 = vpack.c.b16 %v3640, %v3636
    %v3685 = vpack.c.b16 %v3641, %v3637
    %v3686 = vpack.c.b16 %v3642, %v3638
    %v3687 = vpack.c.b16 %v3647, %v3643
    %v3688 = vpack.c.b16 %v3648, %v3644
    %v3689 = vpack.c.b16 %v3649, %v3645
    %v3690 = vpack.c.b16 %v3650, %v3646
    %v3691 = vpack.c.b16 %v3655, %v3651
    %v3692 = vpack.c.b16 %v3656, %v3652
    %v3693 = vpack.c.b16 %v3657, %v3653
    %v3694 = vpack.c.b16 %v3658, %v3654
    %v3695 = vpack.c.b16 %v3663, %v3659
    %v3696 = vpack.c.b16 %v3664, %v3660
    %v3697 = vpack.c.b16 %v3665, %v3661
    %v3698 = vpack.c.b16 %v3666, %v3662
    %3731 = vmatprep.subr.bf16.mxu0 %v3668
    %3732 = vmatpush1.bf16.msra.mxu0 %v3667
    %3733 = vmatprep.subr.bf16.mxu0 %v3672
    %3734 = vmatpush1.bf16.msra.mxu0 %v3671
    %3735 = vmatprep.subr.bf16.mxu0 %v3676
    %3736 = vmatpush1.bf16.msra.mxu0 %v3675
    %3737 = vmatprep.subr.bf16.mxu0 %v3680
    %3738 = vmatpush1.bf16.msra.mxu0 %v3679
    %3739 = vmatprep.subr.bf16.mxu0 %v3684
    %3740 = vmatpush1.bf16.msra.mxu0 %v3683
    %3741 = vmatprep.subr.bf16.mxu0 %v3688
    %3742 = vmatpush1.bf16.msra.mxu0 %v3687
    %3743 = vmatprep.subr.bf16.mxu0 %v3692
    %3744 = vmatpush1.bf16.msra.mxu0 %v3691
    %3745 = vmatprep.subr.bf16.mxu0 %v3696
    %3746 = vmatpush1.bf16.msra.mxu0 %v3695
    %3747 = vmatprep.subr.bf16.mxu0 0
    %3748 = vmatpush1.bf16.msra.mxu0 0
    %3749 = vmatprep.subr.bf16.mxu0 0
    %3750 = vmatpush1.bf16.msra.mxu0 0
    %3751 = vmatprep.subr.bf16.mxu0 0
    %3752 = vmatpush1.bf16.msra.mxu0 0
    %3753 = vmatprep.subr.bf16.mxu0 0
    %3754 = vmatpush1.bf16.msra.mxu0 0
    %3755 = vmatprep.subr.bf16.mxu0 0
    %3756 = vmatpush1.bf16.msra.mxu0 0
    %3757 = vmatprep.subr.bf16.mxu0 0
    %3758 = vmatpush1.bf16.msra.mxu0 0
    %3759 = vmatprep.subr.bf16.mxu0 0
    %3760 = vmatpush1.bf16.msra.mxu0 0
    %3761 = vmatprep.subr.bf16.mxu0 0
    %3762 = vmatpush1.bf16.msra.mxu0 0
    %3763 = vmatprep.mubr.bf16.mxu0 0
    %3764 = vmatmul.mubr.bf16.gmra.mrb[0].mxu0 %v3042
    %v3765 = vpop.f32.mrb[0].mxu0
    %v3766 = vadd.f32 %v3567, %v3765
    %v3767 = vpop.f32.mrb[0].mxu0
    %v3768 = vadd.f32 %v3568, %v3767
    %v3769 = vpop.f32.mrb[0].mxu0
    %v3770 = vpop.f32.mrb[0].mxu0
    %3771 = vdwg.mxu0
    %3772 = vmatprep.subr.bf16.mxu0 %v3670
    %3773 = vmatpush1.bf16.msra.mxu0 %v3669
    %3774 = vmatprep.subr.bf16.mxu0 %v3674
    %3775 = vmatpush1.bf16.msra.mxu0 %v3673
    %3776 = vmatprep.subr.bf16.mxu0 %v3678
    %3777 = vmatpush1.bf16.msra.mxu0 %v3677
    %3778 = vmatprep.subr.bf16.mxu0 %v3682
    %3779 = vmatpush1.bf16.msra.mxu0 %v3681
    %3780 = vmatprep.subr.bf16.mxu0 %v3686
    %3781 = vmatpush1.bf16.msra.mxu0 %v3685
    %3782 = vmatprep.subr.bf16.mxu0 %v3690
    %3783 = vmatpush1.bf16.msra.mxu0 %v3689
    %3784 = vmatprep.subr.bf16.mxu0 %v3694
    %3785 = vmatpush1.bf16.msra.mxu0 %v3693
    %3786 = vmatprep.subr.bf16.mxu0 %v3698
    %3787 = vmatpush1.bf16.msra.mxu0 %v3697
    %3788 = vmatprep.subr.bf16.mxu0 0
    %3789 = vmatpush1.bf16.msra.mxu0 0
    %3790 = vmatprep.subr.bf16.mxu0 0
    %3791 = vmatpush1.bf16.msra.mxu0 0
    %3792 = vmatprep.subr.bf16.mxu0 0
    %3793 = vmatpush1.bf16.msra.mxu0 0
    %3794 = vmatprep.subr.bf16.mxu0 0
    %3795 = vmatpush1.bf16.msra.mxu0 0
    %3796 = vmatprep.subr.bf16.mxu0 0
    %3797 = vmatpush1.bf16.msra.mxu0 0
    %3798 = vmatprep.subr.bf16.mxu0 0
    %3799 = vmatpush1.bf16.msra.mxu0 0
    %3800 = vmatprep.subr.bf16.mxu0 0
    %3801 = vmatpush1.bf16.msra.mxu0 0
    %3802 = vmatprep.subr.bf16.mxu0 0
    %3803 = vmatpush1.bf16.msra.mxu0 0
    %3804 = vmatprep.mubr.bf16.mxu0 0
    %3805 = vmatmul.mubr.bf16.gmra.mrb[0].mxu0 %v3042
    %v3806 = vpop.f32.mrb[0].mxu0
    %v3807 = vadd.f32 %v3569, %v3806
    %v3808 = vpop.f32.mrb[0].mxu0
    %v3809 = vadd.f32 %v3570, %v3808
    %v3810 = vpop.f32.mrb[0].mxu0
    %v3811 = vpop.f32.mrb[0].mxu0
    %3812 = vdwg.mxu0
    %v3813 = vxor.u32 %v3766, 2147483648
    %v3814 = vxor.u32 %v3768, 2147483648
    %v3815 = vmul.f32 %v3813, 1.442695
    %v3816 = vpow.pop %v3815
    %v3817 = vmul.f32 %v3814, 1.442695
    %v3818 = vpow.pop %v3817
    %v3819 = vadd.f32 %v3816, 1.0
    %v3820 = vadd.f32 %v3818, 1.0
    %v3821 = vrcp.pop %v3819
    %v3822 = vmul.f32 1.0, %v3821
    %v3823 = vrcp.pop %v3820
    %v3824 = vmul.f32 1.0, %v3823
    %v3825 = vtanh.pop %v3807
    %v3826 = vxor.u32 %v3809, 2147483648
    %v3827 = vmul.f32 %v3826, 1.442695
    %v3828 = vpow.pop %v3827
    %v3829 = vadd.f32 %v3828, 1.0
    %v3830 = vrcp.pop %v3829
    %v3831 = vmul.f32 1.0, %v3830
    %v3832 = vmul.f32 %v3824, %v3039
    %v3833 = vmul.f32 %v3822, %v3825
    %v3834 = vadd.f32 %v3832, %v3833
    %v3835 = vtanh.pop %v3834
    %v3836 = vmul.f32 %v3831, %v3835
    %v3837 = vpack.c.bf16 %v3836, %v3836
    %v3838 = vpack.c.bf16 %v3533, %v3533
    %v3839 = vld [vmem:[#allocation8] sm:$0xff]
    %v3840 = vld [vmem:[#allocation8 + $0x8] sm:$0xff]
    %v3841 = vld [vmem:[#allocation8 + $0x10] sm:$0xff]
    %v3842 = vld [vmem:[#allocation8 + $0x18] sm:$0xff]
    %v3843 = vld [vmem:[#allocation8 + $0x20] sm:$0xff]
    %v3844 = vld [vmem:[#allocation8 + $0x28] sm:$0xff]
    %v3845 = vld [vmem:[#allocation8 + $0x30] sm:$0xff]
    %v3846 = vld [vmem:[#allocation8 + $0x38] sm:$0xff]
    %v3847 = vld [vmem:[#allocation8 + $0x40] sm:$0xff]
    %v3848 = vld [vmem:[#allocation8 + $0x48] sm:$0xff]
    %v3849 = vld [vmem:[#allocation8 + $0x50] sm:$0xff]
    %v3850 = vld [vmem:[#allocation8 + $0x58] sm:$0xff]
    %v3851 = vld [vmem:[#allocation8 + $0x60] sm:$0xff]
    %v3852 = vld [vmem:[#allocation8 + $0x68] sm:$0xff]
    %v3853 = vld [vmem:[#allocation8 + $0x70] sm:$0xff]
    %v3854 = vld [vmem:[#allocation8 + $0x78] sm:$0xff]
    %v3855 = vld [vmem:[#allocation8 + $0x80] sm:$0xff]
    %v3856 = vld [vmem:[#allocation8 + $0x88] sm:$0xff]
    %v3857 = vld [vmem:[#allocation8 + $0x90] sm:$0xff]
    %v3858 = vld [vmem:[#allocation8 + $0x98] sm:$0xff]
    %v3859 = vld [vmem:[#allocation8 + $0xa0] sm:$0xff]
    %v3860 = vld [vmem:[#allocation8 + $0xa8] sm:$0xff]
    %v3861 = vld [vmem:[#allocation8 + $0xb0] sm:$0xff]
    %v3862 = vld [vmem:[#allocation8 + $0xb8] sm:$0xff]
    %v3863 = vld [vmem:[#allocation8 + $0xc0] sm:$0xff]
    %v3864 = vld [vmem:[#allocation8 + $0xc8] sm:$0xff]
    %v3865 = vld [vmem:[#allocation8 + $0xd0] sm:$0xff]
    %v3866 = vld [vmem:[#allocation8 + $0xd8] sm:$0xff]
    %v3867 = vld [vmem:[#allocation8 + $0xe0] sm:$0xff]
    %v3868 = vld [vmem:[#allocation8 + $0xe8] sm:$0xff]
    %v3869 = vld [vmem:[#allocation8 + $0xf0] sm:$0xff]
    %v3870 = vld [vmem:[#allocation8 + $0xf8] sm:$0xff]
    %v3871 = vld [vmem:[#allocation8 + $0x100] sm:$0xff]
    %v3872 = vld [vmem:[#allocation8 + $0x108] sm:$0xff]
    %v3873 = vld [vmem:[#allocation8 + $0x110] sm:$0xff]
    %v3874 = vld [vmem:[#allocation8 + $0x118] sm:$0xff]
    %v3875 = vld [vmem:[#allocation8 + $0x120] sm:$0xff]
    %v3876 = vld [vmem:[#allocation8 + $0x128] sm:$0xff]
    %v3877 = vld [vmem:[#allocation8 + $0x130] sm:$0xff]
    %v3878 = vld [vmem:[#allocation8 + $0x138] sm:$0xff]
    %v3879 = vld [vmem:[#allocation8 + $0x140] sm:$0xff]
    %v3880 = vld [vmem:[#allocation8 + $0x148] sm:$0xff]
    %v3881 = vld [vmem:[#allocation8 + $0x150] sm:$0xff]
    %v3882 = vld [vmem:[#allocation8 + $0x158] sm:$0xff]
    %v3883 = vld [vmem:[#allocation8 + $0x160] sm:$0xff]
    %v3884 = vld [vmem:[#allocation8 + $0x168] sm:$0xff]
    %v3885 = vld [vmem:[#allocation8 + $0x170] sm:$0xff]
    %v3886 = vld [vmem:[#allocation8 + $0x178] sm:$0xff]
    %v3887 = vld [vmem:[#allocation8 + $0x180] sm:$0xff]
    %v3888 = vld [vmem:[#allocation8 + $0x188] sm:$0xff]
    %v3889 = vld [vmem:[#allocation8 + $0x190] sm:$0xff]
    %v3890 = vld [vmem:[#allocation8 + $0x198] sm:$0xff]
    %v3891 = vld [vmem:[#allocation8 + $0x1a0] sm:$0xff]
    %v3892 = vld [vmem:[#allocation8 + $0x1a8] sm:$0xff]
    %v3893 = vld [vmem:[#allocation8 + $0x1b0] sm:$0xff]
    %v3894 = vld [vmem:[#allocation8 + $0x1b8] sm:$0xff]
    %v3895 = vld [vmem:[#allocation8 + $0x1c0] sm:$0xff]
    %v3896 = vld [vmem:[#allocation8 + $0x1c8] sm:$0xff]
    %v3897 = vld [vmem:[#allocation8 + $0x1d0] sm:$0xff]
    %v3898 = vld [vmem:[#allocation8 + $0x1d8] sm:$0xff]
    %v3899 = vld [vmem:[#allocation8 + $0x1e0] sm:$0xff]
    %v3900 = vld [vmem:[#allocation8 + $0x1e8] sm:$0xff]
    %v3901 = vld [vmem:[#allocation8 + $0x1f0] sm:$0xff]
    %v3902 = vld [vmem:[#allocation8 + $0x1f8] sm:$0xff]
    %v3967 = vunpack.c.l.b16 %v3839
    %v3968 = vunpack.c.h.b16 %v3839
    %v3969 = vunpack.c.l.b16 %v3840
    %v3970 = vunpack.c.h.b16 %v3840
    %v3971 = vunpack.c.l.b16 %v3841
    %v3972 = vunpack.c.h.b16 %v3841
    %v3973 = vunpack.c.l.b16 %v3842
    %v3974 = vunpack.c.h.b16 %v3842
    %v3975 = vunpack.c.l.b16 %v3843
    %v3976 = vunpack.c.h.b16 %v3843
    %v3977 = vunpack.c.l.b16 %v3844
    %v3978 = vunpack.c.h.b16 %v3844
    %v3979 = vunpack.c.l.b16 %v3845
    %v3980 = vunpack.c.h.b16 %v3845
    %v3981 = vunpack.c.l.b16 %v3846
    %v3982 = vunpack.c.h.b16 %v3846
    %v3983 = vunpack.c.l.b16 %v3847
    %v3984 = vunpack.c.h.b16 %v3847
    %v3985 = vunpack.c.l.b16 %v3848
    %v3986 = vunpack.c.h.b16 %v3848
    %v3987 = vunpack.c.l.b16 %v3849
    %v3988 = vunpack.c.h.b16 %v3849
    %v3989 = vunpack.c.l.b16 %v3850
    %v3990 = vunpack.c.h.b16 %v3850
    %v3991 = vunpack.c.l.b16 %v3851
    %v3992 = vunpack.c.h.b16 %v3851
    %v3993 = vunpack.c.l.b16 %v3852
    %v3994 = vunpack.c.h.b16 %v3852
    %v3995 = vunpack.c.l.b16 %v3853
    %v3996 = vunpack.c.h.b16 %v3853
    %v3997 = vunpack.c.l.b16 %v3854
    %v3998 = vunpack.c.h.b16 %v3854
    %v3999 = vunpack.c.l.b16 %v3855
    %v4000 = vunpack.c.h.b16 %v3855
    %v4001 = vunpack.c.l.b16 %v3856
    %v4002 = vunpack.c.h.b16 %v3856
    %v4003 = vunpack.c.l.b16 %v3857
    %v4004 = vunpack.c.h.b16 %v3857
    %v4005 = vunpack.c.l.b16 %v3858
    %v4006 = vunpack.c.h.b16 %v3858
    %v4007 = vunpack.c.l.b16 %v3859
    %v4008 = vunpack.c.h.b16 %v3859
    %v4009 = vunpack.c.l.b16 %v3860
    %v4010 = vunpack.c.h.b16 %v3860
    %v4011 = vunpack.c.l.b16 %v3861
    %v4012 = vunpack.c.h.b16 %v3861
    %v4013 = vunpack.c.l.b16 %v3862
    %v4014 = vunpack.c.h.b16 %v3862
    %v4015 = vunpack.c.l.b16 %v3863
    %v4016 = vunpack.c.h.b16 %v3863
    %v4017 = vunpack.c.l.b16 %v3864
    %v4018 = vunpack.c.h.b16 %v3864
    %v4019 = vunpack.c.l.b16 %v3865
    %v4020 = vunpack.c.h.b16 %v3865
    %v4021 = vunpack.c.l.b16 %v3866
    %v4022 = vunpack.c.h.b16 %v3866
    %v4023 = vunpack.c.l.b16 %v3867
    %v4024 = vunpack.c.h.b16 %v3867
    %v4025 = vunpack.c.l.b16 %v3868
    %v4026 = vunpack.c.h.b16 %v3868
    %v4027 = vunpack.c.l.b16 %v3869
    %v4028 = vunpack.c.h.b16 %v3869
    %v4029 = vunpack.c.l.b16 %v3870
    %v4030 = vunpack.c.h.b16 %v3870
    %v4031 = vunpack.c.l.b16 %v3871
    %v4032 = vunpack.c.h.b16 %v3871
    %v4033 = vunpack.c.l.b16 %v3872
    %v4034 = vunpack.c.h.b16 %v3872
    %v4035 = vunpack.c.l.b16 %v3873
    %v4036 = vunpack.c.h.b16 %v3873
    %v4037 = vunpack.c.l.b16 %v3874
    %v4038 = vunpack.c.h.b16 %v3874
    %v4039 = vunpack.c.l.b16 %v3875
    %v4040 = vunpack.c.h.b16 %v3875
    %v4041 = vunpack.c.l.b16 %v3876
    %v4042 = vunpack.c.h.b16 %v3876
    %v4043 = vunpack.c.l.b16 %v3877
    %v4044 = vunpack.c.h.b16 %v3877
    %v4045 = vunpack.c.l.b16 %v3878
    %v4046 = vunpack.c.h.b16 %v3878
    %v4047 = vunpack.c.l.b16 %v3879
    %v4048 = vunpack.c.h.b16 %v3879
    %v4049 = vunpack.c.l.b16 %v3880
    %v4050 = vunpack.c.h.b16 %v3880
    %v4051 = vunpack.c.l.b16 %v3881
    %v4052 = vunpack.c.h.b16 %v3881
    %v4053 = vunpack.c.l.b16 %v3882
    %v4054 = vunpack.c.h.b16 %v3882
    %v4055 = vunpack.c.l.b16 %v3883
    %v4056 = vunpack.c.h.b16 %v3883
    %v4057 = vunpack.c.l.b16 %v3884
    %v4058 = vunpack.c.h.b16 %v3884
    %v4059 = vunpack.c.l.b16 %v3885
    %v4060 = vunpack.c.h.b16 %v3885
    %v4061 = vunpack.c.l.b16 %v3886
    %v4062 = vunpack.c.h.b16 %v3886
    %v4063 = vunpack.c.l.b16 %v3887
    %v4064 = vunpack.c.h.b16 %v3887
    %v4065 = vunpack.c.l.b16 %v3888
    %v4066 = vunpack.c.h.b16 %v3888
    %v4067 = vunpack.c.l.b16 %v3889
    %v4068 = vunpack.c.h.b16 %v3889
    %v4069 = vunpack.c.l.b16 %v3890
    %v4070 = vunpack.c.h.b16 %v3890
    %v4071 = vunpack.c.l.b16 %v3891
    %v4072 = vunpack.c.h.b16 %v3891
    %v4073 = vunpack.c.l.b16 %v3892
    %v4074 = vunpack.c.h.b16 %v3892
    %v4075 = vunpack.c.l.b16 %v3893
    %v4076 = vunpack.c.h.b16 %v3893
    %v4077 = vunpack.c.l.b16 %v3894
    %v4078 = vunpack.c.h.b16 %v3894
    %v4079 = vunpack.c.l.b16 %v3895
    %v4080 = vunpack.c.h.b16 %v3895
    %v4081 = vunpack.c.l.b16 %v3896
    %v4082 = vunpack.c.h.b16 %v3896
    %v4083 = vunpack.c.l.b16 %v3897
    %v4084 = vunpack.c.h.b16 %v3897
    %v4085 = vunpack.c.l.b16 %v3898
    %v4086 = vunpack.c.h.b16 %v3898
    %v4087 = vunpack.c.l.b16 %v3899
    %v4088 = vunpack.c.h.b16 %v3899
    %v4089 = vunpack.c.l.b16 %v3900
    %v4090 = vunpack.c.h.b16 %v3900
    %v4091 = vunpack.c.l.b16 %v3901
    %v4092 = vunpack.c.h.b16 %v3901
    %v4093 = vunpack.c.l.b16 %v3902
    %v4094 = vunpack.c.h.b16 %v3902
    %v4095 = vpack.c.b16 %v3971, %v3967
    %v4096 = vpack.c.b16 %v3972, %v3968
    %v4097 = vpack.c.b16 %v3973, %v3969
    %v4098 = vpack.c.b16 %v3974, %v3970
    %v4099 = vpack.c.b16 %v3979, %v3975
    %v4100 = vpack.c.b16 %v3980, %v3976
    %v4101 = vpack.c.b16 %v3981, %v3977
    %v4102 = vpack.c.b16 %v3982, %v3978
    %v4103 = vpack.c.b16 %v3987, %v3983
    %v4104 = vpack.c.b16 %v3988, %v3984
    %v4105 = vpack.c.b16 %v3989, %v3985
    %v4106 = vpack.c.b16 %v3990, %v3986
    %v4107 = vpack.c.b16 %v3995, %v3991
    %v4108 = vpack.c.b16 %v3996, %v3992
    %v4109 = vpack.c.b16 %v3997, %v3993
    %v4110 = vpack.c.b16 %v3998, %v3994
    %v4111 = vpack.c.b16 %v4003, %v3999
    %v4112 = vpack.c.b16 %v4004, %v4000
    %v4113 = vpack.c.b16 %v4005, %v4001
    %v4114 = vpack.c.b16 %v4006, %v4002
    %v4115 = vpack.c.b16 %v4011, %v4007
    %v4116 = vpack.c.b16 %v4012, %v4008
    %v4117 = vpack.c.b16 %v4013, %v4009
    %v4118 = vpack.c.b16 %v4014, %v4010
    %v4119 = vpack.c.b16 %v4019, %v4015
    %v4120 = vpack.c.b16 %v4020, %v4016
    %v4121 = vpack.c.b16 %v4021, %v4017
    %v4122 = vpack.c.b16 %v4022, %v4018
    %v4123 = vpack.c.b16 %v4027, %v4023
    %v4124 = vpack.c.b16 %v4028, %v4024
    %v4125 = vpack.c.b16 %v4029, %v4025
    %v4126 = vpack.c.b16 %v4030, %v4026
    %v4127 = vpack.c.b16 %v4035, %v4031
    %v4128 = vpack.c.b16 %v4036, %v4032
    %v4129 = vpack.c.b16 %v4037, %v4033
    %v4130 = vpack.c.b16 %v4038, %v4034
    %v4131 = vpack.c.b16 %v4043, %v4039
    %v4132 = vpack.c.b16 %v4044, %v4040
    %v4133 = vpack.c.b16 %v4045, %v4041
    %v4134 = vpack.c.b16 %v4046, %v4042
    %v4135 = vpack.c.b16 %v4051, %v4047
    %v4136 = vpack.c.b16 %v4052, %v4048
    %v4137 = vpack.c.b16 %v4053, %v4049
    %v4138 = vpack.c.b16 %v4054, %v4050
    %v4139 = vpack.c.b16 %v4059, %v4055
    %v4140 = vpack.c.b16 %v4060, %v4056
    %v4141 = vpack.c.b16 %v4061, %v4057
    %v4142 = vpack.c.b16 %v4062, %v4058
    %v4143 = vpack.c.b16 %v4067, %v4063
    %v4144 = vpack.c.b16 %v4068, %v4064
    %v4145 = vpack.c.b16 %v4069, %v4065
    %v4146 = vpack.c.b16 %v4070, %v4066
    %v4147 = vpack.c.b16 %v4075, %v4071
    %v4148 = vpack.c.b16 %v4076, %v4072
    %v4149 = vpack.c.b16 %v4077, %v4073
    %v4150 = vpack.c.b16 %v4078, %v4074
    %v4151 = vpack.c.b16 %v4083, %v4079
    %v4152 = vpack.c.b16 %v4084, %v4080
    %v4153 = vpack.c.b16 %v4085, %v4081
    %v4154 = vpack.c.b16 %v4086, %v4082
    %v4155 = vpack.c.b16 %v4091, %v4087
    %v4156 = vpack.c.b16 %v4092, %v4088
    %v4157 = vpack.c.b16 %v4093, %v4089
    %v4158 = vpack.c.b16 %v4094, %v4090
    %4223 = vmatprep.subr.bf16.mxu0 %v4096
    %4224 = vmatpush1.bf16.msra.mxu0 %v4095
    %4225 = vmatprep.subr.bf16.mxu0 %v4100
    %4226 = vmatpush1.bf16.msra.mxu0 %v4099
    %4227 = vmatprep.subr.bf16.mxu0 %v4104
    %4228 = vmatpush1.bf16.msra.mxu0 %v4103
    %4229 = vmatprep.subr.bf16.mxu0 %v4108
    %4230 = vmatpush1.bf16.msra.mxu0 %v4107
    %4231 = vmatprep.subr.bf16.mxu0 %v4112
    %4232 = vmatpush1.bf16.msra.mxu0 %v4111
    %4233 = vmatprep.subr.bf16.mxu0 %v4116
    %4234 = vmatpush1.bf16.msra.mxu0 %v4115
    %4235 = vmatprep.subr.bf16.mxu0 %v4120
    %4236 = vmatpush1.bf16.msra.mxu0 %v4119
    %4237 = vmatprep.subr.bf16.mxu0 %v4124
    %4238 = vmatpush1.bf16.msra.mxu0 %v4123
    %4239 = vmatprep.subr.bf16.mxu0 %v4128
    %4240 = vmatpush1.bf16.msra.mxu0 %v4127
    %4241 = vmatprep.subr.bf16.mxu0 %v4132
    %4242 = vmatpush1.bf16.msra.mxu0 %v4131
    %4243 = vmatprep.subr.bf16.mxu0 %v4136
    %4244 = vmatpush1.bf16.msra.mxu0 %v4135
    %4245 = vmatprep.subr.bf16.mxu0 %v4140
    %4246 = vmatpush1.bf16.msra.mxu0 %v4139
    %4247 = vmatprep.subr.bf16.mxu0 %v4144
    %4248 = vmatpush1.bf16.msra.mxu0 %v4143
    %4249 = vmatprep.subr.bf16.mxu0 %v4148
    %4250 = vmatpush1.bf16.msra.mxu0 %v4147
    %4251 = vmatprep.subr.bf16.mxu0 %v4152
    %4252 = vmatpush1.bf16.msra.mxu0 %v4151
    %4253 = vmatprep.subr.bf16.mxu0 %v4156
    %4254 = vmatpush1.bf16.msra.mxu0 %v4155
    %4255 = vmatprep.mubr.bf16.mxu0 %v3838
    %4256 = vmatmul.mubr.bf16.gmra.mrb[0].mxu0 %v3837
    %v4257 = vpop.f32.mrb[0].mxu0
    %v4258 = vadd.f32 %v706, %v4257
    %v4259 = vpop.f32.mrb[0].mxu0
    %v4260 = vadd.f32 %v710, %v4259
    %v4261 = vpop.f32.mrb[0].mxu0
    %v4262 = vpop.f32.mrb[0].mxu0
    %4263 = vdwg.mxu0
    %4264 = vmatprep.subr.bf16.mxu0 %v4098
    %4265 = vmatpush1.bf16.msra.mxu0 %v4097
    %4266 = vmatprep.subr.bf16.mxu0 %v4102
    %4267 = vmatpush1.bf16.msra.mxu0 %v4101
    %4268 = vmatprep.subr.bf16.mxu0 %v4106
    %4269 = vmatpush1.bf16.msra.mxu0 %v4105
    %4270 = vmatprep.subr.bf16.mxu0 %v4110
    %4271 = vmatpush1.bf16.msra.mxu0 %v4109
    %4272 = vmatprep.subr.bf16.mxu0 %v4114
    %4273 = vmatpush1.bf16.msra.mxu0 %v4113
    %4274 = vmatprep.subr.bf16.mxu0 %v4118
    %4275 = vmatpush1.bf16.msra.mxu0 %v4117
    %4276 = vmatprep.subr.bf16.mxu0 %v4122
    %4277 = vmatpush1.bf16.msra.mxu0 %v4121
    %4278 = vmatprep.subr.bf16.mxu0 %v4126
    %4279 = vmatpush1.bf16.msra.mxu0 %v4125
    %4280 = vmatprep.subr.bf16.mxu0 %v4130
    %4281 = vmatpush1.bf16.msra.mxu0 %v4129
    %4282 = vmatprep.subr.bf16.mxu0 %v4134
    %4283 = vmatpush1.bf16.msra.mxu0 %v4133
    %4284 = vmatprep.subr.bf16.mxu0 %v4138
    %4285 = vmatpush1.bf16.msra.mxu0 %v4137
    %4286 = vmatprep.subr.bf16.mxu0 %v4142
    %4287 = vmatpush1.bf16.msra.mxu0 %v4141
    %4288 = vmatprep.subr.bf16.mxu0 %v4146
    %4289 = vmatpush1.bf16.msra.mxu0 %v4145
    %4290 = vmatprep.subr.bf16.mxu0 %v4150
    %4291 = vmatpush1.bf16.msra.mxu0 %v4149
    %4292 = vmatprep.subr.bf16.mxu0 %v4154
    %4293 = vmatpush1.bf16.msra.mxu0 %v4153
    %4294 = vmatprep.subr.bf16.mxu0 %v4158
    %4295 = vmatpush1.bf16.msra.mxu0 %v4157
    %4296 = vmatprep.mubr.bf16.mxu0 %v3838
    %4297 = vmatmul.mubr.bf16.gmra.mrb[0].mxu0 %v3837
    %v4298 = vpop.f32.mrb[0].mxu0
    %v4299 = vadd.f32 %v714, %v4298
    %v4300 = vpop.f32.mrb[0].mxu0
    %v4301 = vadd.f32 %v718, %v4300
    %v4302 = vpop.f32.mrb[0].mxu0
    %v4303 = vpop.f32.mrb[0].mxu0
    %4304 = vdwg.mxu0
    %v4305 = vxor.u32 %v4258, 2147483648
    %v4306 = vxor.u32 %v4260, 2147483648
    %v4307 = vmul.f32 %v4305, 1.442695
    %v4308 = vpow.pop %v4307
    %v4309 = vmul.f32 %v4306, 1.442695
    %v4310 = vpow.pop %v4309
    %v4311 = vadd.f32 %v4308, 1.0
    %v4312 = vadd.f32 %v4310, 1.0
    %v4313 = vrcp.pop %v4311
    %v4314 = vmul.f32 1.0, %v4313
    %v4315 = vrcp.pop %v4312
    %v4316 = vmul.f32 1.0, %v4315
    %v4317 = vtanh.pop %v4299
    %v4318 = vxor.u32 %v4301, 2147483648
    %v4319 = vmul.f32 %v4318, 1.442695
    %v4320 = vpow.pop %v4319
    %v4321 = vadd.f32 %v4320, 1.0
    %v4322 = vrcp.pop %v4321
    %v4323 = vmul.f32 1.0, %v4322
    %v4324 = vmul.f32 %v4316, %v3531
    %v4325 = vmul.f32 %v4314, %v4317
    %v4326 = vadd.f32 %v4324, %v4325
    %v4327 = vtanh.pop %v4326
    %v4328 = vmul.f32 %v4323, %v4327
    %4329 = vst [vmem:[#allocation3 + $0x20] sm:$0xff] %v4328
    %v4330 = vld [vmem:[#allocation5] sm:$0xff]
    %v4331 = vld [vmem:[#allocation5 + $0x8] sm:$0xff]
    %v4332 = vld [vmem:[#allocation5 + $0x10] sm:$0xff]
    %v4333 = vld [vmem:[#allocation5 + $0x18] sm:$0xff]
    %v4334 = vld [vmem:[#allocation5 + $0x20] sm:$0xff]
    %v4335 = vld [vmem:[#allocation5 + $0x28] sm:$0xff]
    %v4336 = vld [vmem:[#allocation5 + $0x30] sm:$0xff]
    %v4337 = vld [vmem:[#allocation5 + $0x38] sm:$0xff]
    %v4338 = vld [vmem:[#allocation5 + $0x40] sm:$0xff]
    %v4339 = vld [vmem:[#allocation5 + $0x48] sm:$0xff]
    %v4340 = vld [vmem:[#allocation5 + $0x50] sm:$0xff]
    %v4341 = vld [vmem:[#allocation5 + $0x58] sm:$0xff]
    %v4342 = vld [vmem:[#allocation5 + $0x60] sm:$0xff]
    %v4343 = vld [vmem:[#allocation5 + $0x68] sm:$0xff]
    %v4344 = vld [vmem:[#allocation5 + $0x70] sm:$0xff]
    %v4345 = vld [vmem:[#allocation5 + $0x78] sm:$0xff]
    %v4346 = vld [vmem:[#allocation5 + $0x80] sm:$0xff]
    %v4347 = vld [vmem:[#allocation5 + $0x88] sm:$0xff]
    %v4348 = vld [vmem:[#allocation5 + $0x90] sm:$0xff]
    %v4349 = vld [vmem:[#allocation5 + $0x98] sm:$0xff]
    %v4350 = vld [vmem:[#allocation5 + $0xa0] sm:$0xff]
    %v4351 = vld [vmem:[#allocation5 + $0xa8] sm:$0xff]
    %v4352 = vld [vmem:[#allocation5 + $0xb0] sm:$0xff]
    %v4353 = vld [vmem:[#allocation5 + $0xb8] sm:$0xff]
    %v4354 = vld [vmem:[#allocation5 + $0xc0] sm:$0xff]
    %v4355 = vld [vmem:[#allocation5 + $0xc8] sm:$0xff]
    %v4356 = vld [vmem:[#allocation5 + $0xd0] sm:$0xff]
    %v4357 = vld [vmem:[#allocation5 + $0xd8] sm:$0xff]
    %v4358 = vld [vmem:[#allocation5 + $0xe0] sm:$0xff]
    %v4359 = vld [vmem:[#allocation5 + $0xe8] sm:$0xff]
    %v4360 = vld [vmem:[#allocation5 + $0xf0] sm:$0xff]
    %v4361 = vld [vmem:[#allocation5 + $0xf8] sm:$0xff]
    %v4362 = vld [vmem:[#allocation2 + $0xa0] sm:$0xff]
    %v4363 = vld [vmem:[#allocation2 + $0xa8] sm:$0xff]
    %v4364 = vld [vmem:[#allocation2 + $0xb0] sm:$0xff]
    %v4365 = vld [vmem:[#allocation2 + $0xb8] sm:$0xff]
    %v4398 = vunpack.c.l.b16 %v4330
    %v4399 = vunpack.c.h.b16 %v4330
    %v4400 = vunpack.c.l.b16 %v4331
    %v4401 = vunpack.c.h.b16 %v4331
    %v4402 = vunpack.c.l.b16 %v4332
    %v4403 = vunpack.c.h.b16 %v4332
    %v4404 = vunpack.c.l.b16 %v4333
    %v4405 = vunpack.c.h.b16 %v4333
    %v4406 = vunpack.c.l.b16 %v4334
    %v4407 = vunpack.c.h.b16 %v4334
    %v4408 = vunpack.c.l.b16 %v4335
    %v4409 = vunpack.c.h.b16 %v4335
    %v4410 = vunpack.c.l.b16 %v4336
    %v4411 = vunpack.c.h.b16 %v4336
    %v4412 = vunpack.c.l.b16 %v4337
    %v4413 = vunpack.c.h.b16 %v4337
    %v4414 = vunpack.c.l.b16 %v4338
    %v4415 = vunpack.c.h.b16 %v4338
    %v4416 = vunpack.c.l.b16 %v4339
    %v4417 = vunpack.c.h.b16 %v4339
    %v4418 = vunpack.c.l.b16 %v4340
    %v4419 = vunpack.c.h.b16 %v4340
    %v4420 = vunpack.c.l.b16 %v4341
    %v4421 = vunpack.c.h.b16 %v4341
    %v4422 = vunpack.c.l.b16 %v4342
    %v4423 = vunpack.c.h.b16 %v4342
    %v4424 = vunpack.c.l.b16 %v4343
    %v4425 = vunpack.c.h.b16 %v4343
    %v4426 = vunpack.c.l.b16 %v4344
    %v4427 = vunpack.c.h.b16 %v4344
    %v4428 = vunpack.c.l.b16 %v4345
    %v4429 = vunpack.c.h.b16 %v4345
    %v4430 = vunpack.c.l.b16 %v4346
    %v4431 = vunpack.c.h.b16 %v4346
    %v4432 = vunpack.c.l.b16 %v4347
    %v4433 = vunpack.c.h.b16 %v4347
    %v4434 = vunpack.c.l.b16 %v4348
    %v4435 = vunpack.c.h.b16 %v4348
    %v4436 = vunpack.c.l.b16 %v4349
    %v4437 = vunpack.c.h.b16 %v4349
    %v4438 = vunpack.c.l.b16 %v4350
    %v4439 = vunpack.c.h.b16 %v4350
    %v4440 = vunpack.c.l.b16 %v4351
    %v4441 = vunpack.c.h.b16 %v4351
    %v4442 = vunpack.c.l.b16 %v4352
    %v4443 = vunpack.c.h.b16 %v4352
    %v4444 = vunpack.c.l.b16 %v4353
    %v4445 = vunpack.c.h.b16 %v4353
    %v4446 = vunpack.c.l.b16 %v4354
    %v4447 = vunpack.c.h.b16 %v4354
    %v4448 = vunpack.c.l.b16 %v4355
    %v4449 = vunpack.c.h.b16 %v4355
    %v4450 = vunpack.c.l.b16 %v4356
    %v4451 = vunpack.c.h.b16 %v4356
    %v4452 = vunpack.c.l.b16 %v4357
    %v4453 = vunpack.c.h.b16 %v4357
    %v4454 = vunpack.c.l.b16 %v4358
    %v4455 = vunpack.c.h.b16 %v4358
    %v4456 = vunpack.c.l.b16 %v4359
    %v4457 = vunpack.c.h.b16 %v4359
    %v4458 = vunpack.c.l.b16 %v4360
    %v4459 = vunpack.c.h.b16 %v4360
    %v4460 = vunpack.c.l.b16 %v4361
    %v4461 = vunpack.c.h.b16 %v4361
    %v4462 = vpack.c.b16 %v4402, %v4398
    %v4463 = vpack.c.b16 %v4403, %v4399
    %v4464 = vpack.c.b16 %v4404, %v4400
    %v4465 = vpack.c.b16 %v4405, %v4401
    %v4466 = vpack.c.b16 %v4410, %v4406
    %v4467 = vpack.c.b16 %v4411, %v4407
    %v4468 = vpack.c.b16 %v4412, %v4408
    %v4469 = vpack.c.b16 %v4413, %v4409
    %v4470 = vpack.c.b16 %v4418, %v4414
    %v4471 = vpack.c.b16 %v4419, %v4415
    %v4472 = vpack.c.b16 %v4420, %v4416
    %v4473 = vpack.c.b16 %v4421, %v4417
    %v4474 = vpack.c.b16 %v4426, %v4422
    %v4475 = vpack.c.b16 %v4427, %v4423
    %v4476 = vpack.c.b16 %v4428, %v4424
    %v4477 = vpack.c.b16 %v4429, %v4425
    %v4478 = vpack.c.b16 %v4434, %v4430
    %v4479 = vpack.c.b16 %v4435, %v4431
    %v4480 = vpack.c.b16 %v4436, %v4432
    %v4481 = vpack.c.b16 %v4437, %v4433
    %v4482 = vpack.c.b16 %v4442, %v4438
    %v4483 = vpack.c.b16 %v4443, %v4439
    %v4484 = vpack.c.b16 %v4444, %v4440
    %v4485 = vpack.c.b16 %v4445, %v4441
    %v4486 = vpack.c.b16 %v4450, %v4446
    %v4487 = vpack.c.b16 %v4451, %v4447
    %v4488 = vpack.c.b16 %v4452, %v4448
    %v4489 = vpack.c.b16 %v4453, %v4449
    %v4490 = vpack.c.b16 %v4458, %v4454
    %v4491 = vpack.c.b16 %v4459, %v4455
    %v4492 = vpack.c.b16 %v4460, %v4456
    %v4493 = vpack.c.b16 %v4461, %v4457
    %4526 = vmatprep.subr.bf16.mxu0 %v4463
    %4527 = vmatpush1.bf16.msra.mxu0 %v4462
    %4528 = vmatprep.subr.bf16.mxu0 %v4467
    %4529 = vmatpush1.bf16.msra.mxu0 %v4466
    %4530 = vmatprep.subr.bf16.mxu0 %v4471
    %4531 = vmatpush1.bf16.msra.mxu0 %v4470
    %4532 = vmatprep.subr.bf16.mxu0 %v4475
    %4533 = vmatpush1.bf16.msra.mxu0 %v4474
    %4534 = vmatprep.subr.bf16.mxu0 %v4479
    %4535 = vmatpush1.bf16.msra.mxu0 %v4478
    %4536 = vmatprep.subr.bf16.mxu0 %v4483
    %4537 = vmatpush1.bf16.msra.mxu0 %v4482
    %4538 = vmatprep.subr.bf16.mxu0 %v4487
    %4539 = vmatpush1.bf16.msra.mxu0 %v4486
    %4540 = vmatprep.subr.bf16.mxu0 %v4491
    %4541 = vmatpush1.bf16.msra.mxu0 %v4490
    %4542 = vmatprep.subr.bf16.mxu0 0
    %4543 = vmatpush1.bf16.msra.mxu0 0
    %4544 = vmatprep.subr.bf16.mxu0 0
    %4545 = vmatpush1.bf16.msra.mxu0 0
    %4546 = vmatprep.subr.bf16.mxu0 0
    %4547 = vmatpush1.bf16.msra.mxu0 0
    %4548 = vmatprep.subr.bf16.mxu0 0
    %4549 = vmatpush1.bf16.msra.mxu0 0
    %4550 = vmatprep.subr.bf16.mxu0 0
    %4551 = vmatpush1.bf16.msra.mxu0 0
    %4552 = vmatprep.subr.bf16.mxu0 0
    %4553 = vmatpush1.bf16.msra.mxu0 0
    %4554 = vmatprep.subr.bf16.mxu0 0
    %4555 = vmatpush1.bf16.msra.mxu0 0
    %4556 = vmatprep.subr.bf16.mxu0 0
    %4557 = vmatpush1.bf16.msra.mxu0 0
    %4558 = vmatprep.mubr.bf16.mxu0 0
    %4559 = vmatmul.mubr.bf16.gmra.mrb[0].mxu0 %v3837
    %v4560 = vpop.f32.mrb[0].mxu0
    %v4561 = vadd.f32 %v4362, %v4560
    %v4562 = vpop.f32.mrb[0].mxu0
    %v4563 = vadd.f32 %v4363, %v4562
    %v4564 = vpop.f32.mrb[0].mxu0
    %v4565 = vpop.f32.mrb[0].mxu0
    %4566 = vdwg.mxu0
    %4567 = vmatprep.subr.bf16.mxu0 %v4465
    %4568 = vmatpush1.bf16.msra.mxu0 %v4464
    %4569 = vmatprep.subr.bf16.mxu0 %v4469
    %4570 = vmatpush1.bf16.msra.mxu0 %v4468
    %4571 = vmatprep.subr.bf16.mxu0 %v4473
    %4572 = vmatpush1.bf16.msra.mxu0 %v4472
    %4573 = vmatprep.subr.bf16.mxu0 %v4477
    %4574 = vmatpush1.bf16.msra.mxu0 %v4476
    %4575 = vmatprep.subr.bf16.mxu0 %v4481
    %4576 = vmatpush1.bf16.msra.mxu0 %v4480
    %4577 = vmatprep.subr.bf16.mxu0 %v4485
    %4578 = vmatpush1.bf16.msra.mxu0 %v4484
    %4579 = vmatprep.subr.bf16.mxu0 %v4489
    %4580 = vmatpush1.bf16.msra.mxu0 %v4488
    %4581 = vmatprep.subr.bf16.mxu0 %v4493
    %4582 = vmatpush1.bf16.msra.mxu0 %v4492
    %4583 = vmatprep.subr.bf16.mxu0 0
    %4584 = vmatpush1.bf16.msra.mxu0 0
    %4585 = vmatprep.subr.bf16.mxu0 0
    %4586 = vmatpush1.bf16.msra.mxu0 0
    %4587 = vmatprep.subr.bf16.mxu0 0
    %4588 = vmatpush1.bf16.msra.mxu0 0
    %4589 = vmatprep.subr.bf16.mxu0 0
    %4590 = vmatpush1.bf16.msra.mxu0 0
    %4591 = vmatprep.subr.bf16.mxu0 0
    %4592 = vmatpush1.bf16.msra.mxu0 0
    %4593 = vmatprep.subr.bf16.mxu0 0
    %4594 = vmatpush1.bf16.msra.mxu0 0
    %4595 = vmatprep.subr.bf16.mxu0 0
    %4596 = vmatpush1.bf16.msra.mxu0 0
    %4597 = vmatprep.subr.bf16.mxu0 0
    %4598 = vmatpush1.bf16.msra.mxu0 0
    %4599 = vmatprep.mubr.bf16.mxu0 0
    %4600 = vmatmul.mubr.bf16.gmra.mrb[0].mxu0 %v3837
    %v4601 = vpop.f32.mrb[0].mxu0
    %v4602 = vadd.f32 %v4364, %v4601
    %v4603 = vpop.f32.mrb[0].mxu0
    %v4604 = vadd.f32 %v4365, %v4603
    %v4605 = vpop.f32.mrb[0].mxu0
    %v4606 = vpop.f32.mrb[0].mxu0
    %4607 = vdwg.mxu0
    %v4608 = vxor.u32 %v4561, 2147483648
    %v4609 = vxor.u32 %v4563, 2147483648
    %v4610 = vmul.f32 %v4608, 1.442695
    %v4611 = vpow.pop %v4610
    %v4612 = vmul.f32 %v4609, 1.442695
    %v4613 = vpow.pop %v4612
    %v4614 = vadd.f32 %v4611, 1.0
    %v4615 = vadd.f32 %v4613, 1.0
    %v4616 = vrcp.pop %v4614
    %v4617 = vmul.f32 1.0, %v4616
    %v4618 = vrcp.pop %v4615
    %v4619 = vmul.f32 1.0, %v4618
    %v4620 = vtanh.pop %v4602
    %v4621 = vxor.u32 %v4604, 2147483648
    %v4622 = vmul.f32 %v4621, 1.442695
    %v4623 = vpow.pop %v4622
    %v4624 = vadd.f32 %v4623, 1.0
    %v4625 = vrcp.pop %v4624
    %v4626 = vmul.f32 1.0, %v4625
    %v4627 = vmul.f32 %v4619, %v3834
    %v4628 = vmul.f32 %v4617, %v4620
    %v4629 = vadd.f32 %v4627, %v4628
    %v4630 = vtanh.pop %v4629
    %v4631 = vmul.f32 %v4626, %v4630
    %v4632 = vpack.c.bf16 %v4631, %v4631
    %v4633 = vpack.c.bf16 %v4328, %v4328
    %v4634 = vld [vmem:[#allocation8] sm:$0xff]
    %v4635 = vld [vmem:[#allocation8 + $0x8] sm:$0xff]
    %v4636 = vld [vmem:[#allocation8 + $0x10] sm:$0xff]
    %v4637 = vld [vmem:[#allocation8 + $0x18] sm:$0xff]
    %v4638 = vld [vmem:[#allocation8 + $0x20] sm:$0xff]
    %v4639 = vld [vmem:[#allocation8 + $0x28] sm:$0xff]
    %v4640 = vld [vmem:[#allocation8 + $0x30] sm:$0xff]
    %v4641 = vld [vmem:[#allocation8 + $0x38] sm:$0xff]
    %v4642 = vld [vmem:[#allocation8 + $0x40] sm:$0xff]
    %v4643 = vld [vmem:[#allocation8 + $0x48] sm:$0xff]
    %v4644 = vld [vmem:[#allocation8 + $0x50] sm:$0xff]
    %v4645 = vld [vmem:[#allocation8 + $0x58] sm:$0xff]
    %v4646 = vld [vmem:[#allocation8 + $0x60] sm:$0xff]
    %v4647 = vld [vmem:[#allocation8 + $0x68] sm:$0xff]
    %v4648 = vld [vmem:[#allocation8 + $0x70] sm:$0xff]
    %v4649 = vld [vmem:[#allocation8 + $0x78] sm:$0xff]
    %v4650 = vld [vmem:[#allocation8 + $0x80] sm:$0xff]
    %v4651 = vld [vmem:[#allocation8 + $0x88] sm:$0xff]
    %v4652 = vld [vmem:[#allocation8 + $0x90] sm:$0xff]
    %v4653 = vld [vmem:[#allocation8 + $0x98] sm:$0xff]
    %v4654 = vld [vmem:[#allocation8 + $0xa0] sm:$0xff]
    %v4655 = vld [vmem:[#allocation8 + $0xa8] sm:$0xff]
    %v4656 = vld [vmem:[#allocation8 + $0xb0] sm:$0xff]
    %v4657 = vld [vmem:[#allocation8 + $0xb8] sm:$0xff]
    %v4658 = vld [vmem:[#allocation8 + $0xc0] sm:$0xff]
    %v4659 = vld [vmem:[#allocation8 + $0xc8] sm:$0xff]
    %v4660 = vld [vmem:[#allocation8 + $0xd0] sm:$0xff]
    %v4661 = vld [vmem:[#allocation8 + $0xd8] sm:$0xff]
    %v4662 = vld [vmem:[#allocation8 + $0xe0] sm:$0xff]
    %v4663 = vld [vmem:[#allocation8 + $0xe8] sm:$0xff]
    %v4664 = vld [vmem:[#allocation8 + $0xf0] sm:$0xff]
    %v4665 = vld [vmem:[#allocation8 + $0xf8] sm:$0xff]
    %v4666 = vld [vmem:[#allocation8 + $0x100] sm:$0xff]
    %v4667 = vld [vmem:[#allocation8 + $0x108] sm:$0xff]
    %v4668 = vld [vmem:[#allocation8 + $0x110] sm:$0xff]
    %v4669 = vld [vmem:[#allocation8 + $0x118] sm:$0xff]
    %v4670 = vld [vmem:[#allocation8 + $0x120] sm:$0xff]
    %v4671 = vld [vmem:[#allocation8 + $0x128] sm:$0xff]
    %v4672 = vld [vmem:[#allocation8 + $0x130] sm:$0xff]
    %v4673 = vld [vmem:[#allocation8 + $0x138] sm:$0xff]
    %v4674 = vld [vmem:[#allocation8 + $0x140] sm:$0xff]
    %v4675 = vld [vmem:[#allocation8 + $0x148] sm:$0xff]
    %v4676 = vld [vmem:[#allocation8 + $0x150] sm:$0xff]
    %v4677 = vld [vmem:[#allocation8 + $0x158] sm:$0xff]
    %v4678 = vld [vmem:[#allocation8 + $0x160] sm:$0xff]
    %v4679 = vld [vmem:[#allocation8 + $0x168] sm:$0xff]
    %v4680 = vld [vmem:[#allocation8 + $0x170] sm:$0xff]
    %v4681 = vld [vmem:[#allocation8 + $0x178] sm:$0xff]
    %v4682 = vld [vmem:[#allocation8 + $0x180] sm:$0xff]
    %v4683 = vld [vmem:[#allocation8 + $0x188] sm:$0xff]
    %v4684 = vld [vmem:[#allocation8 + $0x190] sm:$0xff]
    %v4685 = vld [vmem:[#allocation8 + $0x198] sm:$0xff]
    %v4686 = vld [vmem:[#allocation8 + $0x1a0] sm:$0xff]
    %v4687 = vld [vmem:[#allocation8 + $0x1a8] sm:$0xff]
    %v4688 = vld [vmem:[#allocation8 + $0x1b0] sm:$0xff]
    %v4689 = vld [vmem:[#allocation8 + $0x1b8] sm:$0xff]
    %v4690 = vld [vmem:[#allocation8 + $0x1c0] sm:$0xff]
    %v4691 = vld [vmem:[#allocation8 + $0x1c8] sm:$0xff]
    %v4692 = vld [vmem:[#allocation8 + $0x1d0] sm:$0xff]
    %v4693 = vld [vmem:[#allocation8 + $0x1d8] sm:$0xff]
    %v4694 = vld [vmem:[#allocation8 + $0x1e0] sm:$0xff]
    %v4695 = vld [vmem:[#allocation8 + $0x1e8] sm:$0xff]
    %v4696 = vld [vmem:[#allocation8 + $0x1f0] sm:$0xff]
    %v4697 = vld [vmem:[#allocation8 + $0x1f8] sm:$0xff]
    %v4762 = vunpack.c.l.b16 %v4634
    %v4763 = vunpack.c.h.b16 %v4634
    %v4764 = vunpack.c.l.b16 %v4635
    %v4765 = vunpack.c.h.b16 %v4635
    %v4766 = vunpack.c.l.b16 %v4636
    %v4767 = vunpack.c.h.b16 %v4636
    %v4768 = vunpack.c.l.b16 %v4637
    %v4769 = vunpack.c.h.b16 %v4637
    %v4770 = vunpack.c.l.b16 %v4638
    %v4771 = vunpack.c.h.b16 %v4638
    %v4772 = vunpack.c.l.b16 %v4639
    %v4773 = vunpack.c.h.b16 %v4639
    %v4774 = vunpack.c.l.b16 %v4640
    %v4775 = vunpack.c.h.b16 %v4640
    %v4776 = vunpack.c.l.b16 %v4641
    %v4777 = vunpack.c.h.b16 %v4641
    %v4778 = vunpack.c.l.b16 %v4642
    %v4779 = vunpack.c.h.b16 %v4642
    %v4780 = vunpack.c.l.b16 %v4643
    %v4781 = vunpack.c.h.b16 %v4643
    %v4782 = vunpack.c.l.b16 %v4644
    %v4783 = vunpack.c.h.b16 %v4644
    %v4784 = vunpack.c.l.b16 %v4645
    %v4785 = vunpack.c.h.b16 %v4645
    %v4786 = vunpack.c.l.b16 %v4646
    %v4787 = vunpack.c.h.b16 %v4646
    %v4788 = vunpack.c.l.b16 %v4647
    %v4789 = vunpack.c.h.b16 %v4647
    %v4790 = vunpack.c.l.b16 %v4648
    %v4791 = vunpack.c.h.b16 %v4648
    %v4792 = vunpack.c.l.b16 %v4649
    %v4793 = vunpack.c.h.b16 %v4649
    %v4794 = vunpack.c.l.b16 %v4650
    %v4795 = vunpack.c.h.b16 %v4650
    %v4796 = vunpack.c.l.b16 %v4651
    %v4797 = vunpack.c.h.b16 %v4651
    %v4798 = vunpack.c.l.b16 %v4652
    %v4799 = vunpack.c.h.b16 %v4652
    %v4800 = vunpack.c.l.b16 %v4653
    %v4801 = vunpack.c.h.b16 %v4653
    %v4802 = vunpack.c.l.b16 %v4654
    %v4803 = vunpack.c.h.b16 %v4654
    %v4804 = vunpack.c.l.b16 %v4655
    %v4805 = vunpack.c.h.b16 %v4655
    %v4806 = vunpack.c.l.b16 %v4656
    %v4807 = vunpack.c.h.b16 %v4656
    %v4808 = vunpack.c.l.b16 %v4657
    %v4809 = vunpack.c.h.b16 %v4657
    %v4810 = vunpack.c.l.b16 %v4658
    %v4811 = vunpack.c.h.b16 %v4658
    %v4812 = vunpack.c.l.b16 %v4659
    %v4813 = vunpack.c.h.b16 %v4659
    %v4814 = vunpack.c.l.b16 %v4660
    %v4815 = vunpack.c.h.b16 %v4660
    %v4816 = vunpack.c.l.b16 %v4661
    %v4817 = vunpack.c.h.b16 %v4661
    %v4818 = vunpack.c.l.b16 %v4662
    %v4819 = vunpack.c.h.b16 %v4662
    %v4820 = vunpack.c.l.b16 %v4663
    %v4821 = vunpack.c.h.b16 %v4663
    %v4822 = vunpack.c.l.b16 %v4664
    %v4823 = vunpack.c.h.b16 %v4664
    %v4824 = vunpack.c.l.b16 %v4665
    %v4825 = vunpack.c.h.b16 %v4665
    %v4826 = vunpack.c.l.b16 %v4666
    %v4827 = vunpack.c.h.b16 %v4666
    %v4828 = vunpack.c.l.b16 %v4667
    %v4829 = vunpack.c.h.b16 %v4667
    %v4830 = vunpack.c.l.b16 %v4668
    %v4831 = vunpack.c.h.b16 %v4668
    %v4832 = vunpack.c.l.b16 %v4669
    %v4833 = vunpack.c.h.b16 %v4669
    %v4834 = vunpack.c.l.b16 %v4670
    %v4835 = vunpack.c.h.b16 %v4670
    %v4836 = vunpack.c.l.b16 %v4671
    %v4837 = vunpack.c.h.b16 %v4671
    %v4838 = vunpack.c.l.b16 %v4672
    %v4839 = vunpack.c.h.b16 %v4672
    %v4840 = vunpack.c.l.b16 %v4673
    %v4841 = vunpack.c.h.b16 %v4673
    %v4842 = vunpack.c.l.b16 %v4674
    %v4843 = vunpack.c.h.b16 %v4674
    %v4844 = vunpack.c.l.b16 %v4675
    %v4845 = vunpack.c.h.b16 %v4675
    %v4846 = vunpack.c.l.b16 %v4676
    %v4847 = vunpack.c.h.b16 %v4676
    %v4848 = vunpack.c.l.b16 %v4677
    %v4849 = vunpack.c.h.b16 %v4677
    %v4850 = vunpack.c.l.b16 %v4678
    %v4851 = vunpack.c.h.b16 %v4678
    %v4852 = vunpack.c.l.b16 %v4679
    %v4853 = vunpack.c.h.b16 %v4679
    %v4854 = vunpack.c.l.b16 %v4680
    %v4855 = vunpack.c.h.b16 %v4680
    %v4856 = vunpack.c.l.b16 %v4681
    %v4857 = vunpack.c.h.b16 %v4681
    %v4858 = vunpack.c.l.b16 %v4682
    %v4859 = vunpack.c.h.b16 %v4682
    %v4860 = vunpack.c.l.b16 %v4683
    %v4861 = vunpack.c.h.b16 %v4683
    %v4862 = vunpack.c.l.b16 %v4684
    %v4863 = vunpack.c.h.b16 %v4684
    %v4864 = vunpack.c.l.b16 %v4685
    %v4865 = vunpack.c.h.b16 %v4685
    %v4866 = vunpack.c.l.b16 %v4686
    %v4867 = vunpack.c.h.b16 %v4686
    %v4868 = vunpack.c.l.b16 %v4687
    %v4869 = vunpack.c.h.b16 %v4687
    %v4870 = vunpack.c.l.b16 %v4688
    %v4871 = vunpack.c.h.b16 %v4688
    %v4872 = vunpack.c.l.b16 %v4689
    %v4873 = vunpack.c.h.b16 %v4689
    %v4874 = vunpack.c.l.b16 %v4690
    %v4875 = vunpack.c.h.b16 %v4690
    %v4876 = vunpack.c.l.b16 %v4691
    %v4877 = vunpack.c.h.b16 %v4691
    %v4878 = vunpack.c.l.b16 %v4692
    %v4879 = vunpack.c.h.b16 %v4692
    %v4880 = vunpack.c.l.b16 %v4693
    %v4881 = vunpack.c.h.b16 %v4693
    %v4882 = vunpack.c.l.b16 %v4694
    %v4883 = vunpack.c.h.b16 %v4694
    %v4884 = vunpack.c.l.b16 %v4695
    %v4885 = vunpack.c.h.b16 %v4695
    %v4886 = vunpack.c.l.b16 %v4696
    %v4887 = vunpack.c.h.b16 %v4696
    %v4888 = vunpack.c.l.b16 %v4697
    %v4889 = vunpack.c.h.b16 %v4697
    %v4890 = vpack.c.b16 %v4766, %v4762
    %v4891 = vpack.c.b16 %v4767, %v4763
    %v4892 = vpack.c.b16 %v4768, %v4764
    %v4893 = vpack.c.b16 %v4769, %v4765
    %v4894 = vpack.c.b16 %v4774, %v4770
    %v4895 = vpack.c.b16 %v4775, %v4771
    %v4896 = vpack.c.b16 %v4776, %v4772
    %v4897 = vpack.c.b16 %v4777, %v4773
    %v4898 = vpack.c.b16 %v4782, %v4778
    %v4899 = vpack.c.b16 %v4783, %v4779
    %v4900 = vpack.c.b16 %v4784, %v4780
    %v4901 = vpack.c.b16 %v4785, %v4781
    %v4902 = vpack.c.b16 %v4790, %v4786
    %v4903 = vpack.c.b16 %v4791, %v4787
    %v4904 = vpack.c.b16 %v4792, %v4788
    %v4905 = vpack.c.b16 %v4793, %v4789
    %v4906 = vpack.c.b16 %v4798, %v4794
    %v4907 = vpack.c.b16 %v4799, %v4795
    %v4908 = vpack.c.b16 %v4800, %v4796
    %v4909 = vpack.c.b16 %v4801, %v4797
    %v4910 = vpack.c.b16 %v4806, %v4802
    %v4911 = vpack.c.b16 %v4807, %v4803
    %v4912 = vpack.c.b16 %v4808, %v4804
    %v4913 = vpack.c.b16 %v4809, %v4805
    %v4914 = vpack.c.b16 %v4814, %v4810
    %v4915 = vpack.c.b16 %v4815, %v4811
    %v4916 = vpack.c.b16 %v4816, %v4812
    %v4917 = vpack.c.b16 %v4817, %v4813
    %v4918 = vpack.c.b16 %v4822, %v4818
    %v4919 = vpack.c.b16 %v4823, %v4819
    %v4920 = vpack.c.b16 %v4824, %v4820
    %v4921 = vpack.c.b16 %v4825, %v4821
    %v4922 = vpack.c.b16 %v4830, %v4826
    %v4923 = vpack.c.b16 %v4831, %v4827
    %v4924 = vpack.c.b16 %v4832, %v4828
    %v4925 = vpack.c.b16 %v4833, %v4829
    %v4926 = vpack.c.b16 %v4838, %v4834
    %v4927 = vpack.c.b16 %v4839, %v4835
    %v4928 = vpack.c.b16 %v4840, %v4836
    %v4929 = vpack.c.b16 %v4841, %v4837
    %v4930 = vpack.c.b16 %v4846, %v4842
    %v4931 = vpack.c.b16 %v4847, %v4843
    %v4932 = vpack.c.b16 %v4848, %v4844
    %v4933 = vpack.c.b16 %v4849, %v4845
    %v4934 = vpack.c.b16 %v4854, %v4850
    %v4935 = vpack.c.b16 %v4855, %v4851
    %v4936 = vpack.c.b16 %v4856, %v4852
    %v4937 = vpack.c.b16 %v4857, %v4853
    %v4938 = vpack.c.b16 %v4862, %v4858
    %v4939 = vpack.c.b16 %v4863, %v4859
    %v4940 = vpack.c.b16 %v4864, %v4860
    %v4941 = vpack.c.b16 %v4865, %v4861
    %v4942 = vpack.c.b16 %v4870, %v4866
    %v4943 = vpack.c.b16 %v4871, %v4867
    %v4944 = vpack.c.b16 %v4872, %v4868
    %v4945 = vpack.c.b16 %v4873, %v4869
    %v4946 = vpack.c.b16 %v4878, %v4874
    %v4947 = vpack.c.b16 %v4879, %v4875
    %v4948 = vpack.c.b16 %v4880, %v4876
    %v4949 = vpack.c.b16 %v4881, %v4877
    %v4950 = vpack.c.b16 %v4886, %v4882
    %v4951 = vpack.c.b16 %v4887, %v4883
    %v4952 = vpack.c.b16 %v4888, %v4884
    %v4953 = vpack.c.b16 %v4889, %v4885
    %5018 = vmatprep.subr.bf16.mxu0 %v4891
    %5019 = vmatpush1.bf16.msra.mxu0 %v4890
    %5020 = vmatprep.subr.bf16.mxu0 %v4895
    %5021 = vmatpush1.bf16.msra.mxu0 %v4894
    %5022 = vmatprep.subr.bf16.mxu0 %v4899
    %5023 = vmatpush1.bf16.msra.mxu0 %v4898
    %5024 = vmatprep.subr.bf16.mxu0 %v4903
    %5025 = vmatpush1.bf16.msra.mxu0 %v4902
    %5026 = vmatprep.subr.bf16.mxu0 %v4907
    %5027 = vmatpush1.bf16.msra.mxu0 %v4906
    %5028 = vmatprep.subr.bf16.mxu0 %v4911
    %5029 = vmatpush1.bf16.msra.mxu0 %v4910
    %5030 = vmatprep.subr.bf16.mxu0 %v4915
    %5031 = vmatpush1.bf16.msra.mxu0 %v4914
    %5032 = vmatprep.subr.bf16.mxu0 %v4919
    %5033 = vmatpush1.bf16.msra.mxu0 %v4918
    %5034 = vmatprep.subr.bf16.mxu0 %v4923
    %5035 = vmatpush1.bf16.msra.mxu0 %v4922
    %5036 = vmatprep.subr.bf16.mxu0 %v4927
    %5037 = vmatpush1.bf16.msra.mxu0 %v4926
    %5038 = vmatprep.subr.bf16.mxu0 %v4931
    %5039 = vmatpush1.bf16.msra.mxu0 %v4930
    %5040 = vmatprep.subr.bf16.mxu0 %v4935
    %5041 = vmatpush1.bf16.msra.mxu0 %v4934
    %5042 = vmatprep.subr.bf16.mxu0 %v4939
    %5043 = vmatpush1.bf16.msra.mxu0 %v4938
    %5044 = vmatprep.subr.bf16.mxu0 %v4943
    %5045 = vmatpush1.bf16.msra.mxu0 %v4942
    %5046 = vmatprep.subr.bf16.mxu0 %v4947
    %5047 = vmatpush1.bf16.msra.mxu0 %v4946
    %5048 = vmatprep.subr.bf16.mxu0 %v4951
    %5049 = vmatpush1.bf16.msra.mxu0 %v4950
    %5050 = vmatprep.mubr.bf16.mxu0 %v4633
    %5051 = vmatmul.mubr.bf16.gmra.mrb[0].mxu0 %v4632
    %v5052 = vpop.f32.mrb[0].mxu0
    %v5053 = vadd.f32 %v706, %v5052
    %v5054 = vpop.f32.mrb[0].mxu0
    %v5055 = vadd.f32 %v710, %v5054
    %v5056 = vpop.f32.mrb[0].mxu0
    %v5057 = vpop.f32.mrb[0].mxu0
    %5058 = vdwg.mxu0
    %5059 = vmatprep.subr.bf16.mxu0 %v4893
    %5060 = vmatpush1.bf16.msra.mxu0 %v4892
    %5061 = vmatprep.subr.bf16.mxu0 %v4897
    %5062 = vmatpush1.bf16.msra.mxu0 %v4896
    %5063 = vmatprep.subr.bf16.mxu0 %v4901
    %5064 = vmatpush1.bf16.msra.mxu0 %v4900
    %5065 = vmatprep.subr.bf16.mxu0 %v4905
    %5066 = vmatpush1.bf16.msra.mxu0 %v4904
    %5067 = vmatprep.subr.bf16.mxu0 %v4909
    %5068 = vmatpush1.bf16.msra.mxu0 %v4908
    %5069 = vmatprep.subr.bf16.mxu0 %v4913
    %5070 = vmatpush1.bf16.msra.mxu0 %v4912
    %5071 = vmatprep.subr.bf16.mxu0 %v4917
    %5072 = vmatpush1.bf16.msra.mxu0 %v4916
    %5073 = vmatprep.subr.bf16.mxu0 %v4921
    %5074 = vmatpush1.bf16.msra.mxu0 %v4920
    %5075 = vmatprep.subr.bf16.mxu0 %v4925
    %5076 = vmatpush1.bf16.msra.mxu0 %v4924
    %5077 = vmatprep.subr.bf16.mxu0 %v4929
    %5078 = vmatpush1.bf16.msra.mxu0 %v4928
    %5079 = vmatprep.subr.bf16.mxu0 %v4933
    %5080 = vmatpush1.bf16.msra.mxu0 %v4932
    %5081 = vmatprep.subr.bf16.mxu0 %v4937
    %5082 = vmatpush1.bf16.msra.mxu0 %v4936
    %5083 = vmatprep.subr.bf16.mxu0 %v4941
    %5084 = vmatpush1.bf16.msra.mxu0 %v4940
    %5085 = vmatprep.subr.bf16.mxu0 %v4945
    %5086 = vmatpush1.bf16.msra.mxu0 %v4944
    %5087 = vmatprep.subr.bf16.mxu0 %v4949
    %5088 = vmatpush1.bf16.msra.mxu0 %v4948
    %5089 = vmatprep.subr.bf16.mxu0 %v4953
    %5090 = vmatpush1.bf16.msra.mxu0 %v4952
    %5091 = vmatprep.mubr.bf16.mxu0 %v4633
    %5092 = vmatmul.mubr.bf16.gmra.mrb[0].mxu0 %v4632
    %v5093 = vpop.f32.mrb[0].mxu0
    %v5094 = vadd.f32 %v714, %v5093
    %v5095 = vpop.f32.mrb[0].mxu0
    %v5096 = vadd.f32 %v718, %v5095
    %v5097 = vpop.f32.mrb[0].mxu0
    %v5098 = vpop.f32.mrb[0].mxu0
    %5099 = vdwg.mxu0
    %v5100 = vxor.u32 %v5053, 2147483648
    %v5101 = vxor.u32 %v5055, 2147483648
    %v5102 = vmul.f32 %v5100, 1.442695
    %v5103 = vpow.pop %v5102
    %v5104 = vmul.f32 %v5101, 1.442695
    %v5105 = vpow.pop %v5104
    %v5106 = vadd.f32 %v5103, 1.0
    %v5107 = vadd.f32 %v5105, 1.0
    %v5108 = vrcp.pop %v5106
    %v5109 = vmul.f32 1.0, %v5108
    %v5110 = vrcp.pop %v5107
    %v5111 = vmul.f32 1.0, %v5110
    %v5112 = vtanh.pop %v5094
    %v5113 = vxor.u32 %v5096, 2147483648
    %v5114 = vmul.f32 %v5113, 1.442695
    %v5115 = vpow.pop %v5114
    %v5116 = vadd.f32 %v5115, 1.0
    %v5117 = vrcp.pop %v5116
    %v5118 = vmul.f32 1.0, %v5117
    %v5119 = vmul.f32 %v5111, %v4326
    %v5120 = vmul.f32 %v5109, %v5112
    %v5121 = vadd.f32 %v5119, %v5120
    %v5122 = vtanh.pop %v5121
    %v5123 = vmul.f32 %v5118, %v5122
    %5124 = vst [vmem:[#allocation3 + $0x28] sm:$0xff] %v5123
    %v5125 = vld [vmem:[#allocation5] sm:$0xff]
    %v5126 = vld [vmem:[#allocation5 + $0x8] sm:$0xff]
    %v5127 = vld [vmem:[#allocation5 + $0x10] sm:$0xff]
    %v5128 = vld [vmem:[#allocation5 + $0x18] sm:$0xff]
    %v5129 = vld [vmem:[#allocation5 + $0x20] sm:$0xff]
    %v5130 = vld [vmem:[#allocation5 + $0x28] sm:$0xff]
    %v5131 = vld [vmem:[#allocation5 + $0x30] sm:$0xff]
    %v5132 = vld [vmem:[#allocation5 + $0x38] sm:$0xff]
    %v5133 = vld [vmem:[#allocation5 + $0x40] sm:$0xff]
    %v5134 = vld [vmem:[#allocation5 + $0x48] sm:$0xff]
    %v5135 = vld [vmem:[#allocation5 + $0x50] sm:$0xff]
    %v5136 = vld [vmem:[#allocation5 + $0x58] sm:$0xff]
    %v5137 = vld [vmem:[#allocation5 + $0x60] sm:$0xff]
    %v5138 = vld [vmem:[#allocation5 + $0x68] sm:$0xff]
    %v5139 = vld [vmem:[#allocation5 + $0x70] sm:$0xff]
    %v5140 = vld [vmem:[#allocation5 + $0x78] sm:$0xff]
    %v5141 = vld [vmem:[#allocation5 + $0x80] sm:$0xff]
    %v5142 = vld [vmem:[#allocation5 + $0x88] sm:$0xff]
    %v5143 = vld [vmem:[#allocation5 + $0x90] sm:$0xff]
    %v5144 = vld [vmem:[#allocation5 + $0x98] sm:$0xff]
    %v5145 = vld [vmem:[#allocation5 + $0xa0] sm:$0xff]
    %v5146 = vld [vmem:[#allocation5 + $0xa8] sm:$0xff]
    %v5147 = vld [vmem:[#allocation5 + $0xb0] sm:$0xff]
    %v5148 = vld [vmem:[#allocation5 + $0xb8] sm:$0xff]
    %v5149 = vld [vmem:[#allocation5 + $0xc0] sm:$0xff]
    %v5150 = vld [vmem:[#allocation5 + $0xc8] sm:$0xff]
    %v5151 = vld [vmem:[#allocation5 + $0xd0] sm:$0xff]
    %v5152 = vld [vmem:[#allocation5 + $0xd8] sm:$0xff]
    %v5153 = vld [vmem:[#allocation5 + $0xe0] sm:$0xff]
    %v5154 = vld [vmem:[#allocation5 + $0xe8] sm:$0xff]
    %v5155 = vld [vmem:[#allocation5 + $0xf0] sm:$0xff]
    %v5156 = vld [vmem:[#allocation5 + $0xf8] sm:$0xff]
    %v5157 = vld [vmem:[#allocation2 + $0xc0] sm:$0xff]
    %v5158 = vld [vmem:[#allocation2 + $0xc8] sm:$0xff]
    %v5159 = vld [vmem:[#allocation2 + $0xd0] sm:$0xff]
    %v5160 = vld [vmem:[#allocation2 + $0xd8] sm:$0xff]
    %v5193 = vunpack.c.l.b16 %v5125
    %v5194 = vunpack.c.h.b16 %v5125
    %v5195 = vunpack.c.l.b16 %v5126
    %v5196 = vunpack.c.h.b16 %v5126
    %v5197 = vunpack.c.l.b16 %v5127
    %v5198 = vunpack.c.h.b16 %v5127
    %v5199 = vunpack.c.l.b16 %v5128
    %v5200 = vunpack.c.h.b16 %v5128
    %v5201 = vunpack.c.l.b16 %v5129
    %v5202 = vunpack.c.h.b16 %v5129
    %v5203 = vunpack.c.l.b16 %v5130
    %v5204 = vunpack.c.h.b16 %v5130
    %v5205 = vunpack.c.l.b16 %v5131
    %v5206 = vunpack.c.h.b16 %v5131
    %v5207 = vunpack.c.l.b16 %v5132
    %v5208 = vunpack.c.h.b16 %v5132
    %v5209 = vunpack.c.l.b16 %v5133
    %v5210 = vunpack.c.h.b16 %v5133
    %v5211 = vunpack.c.l.b16 %v5134
    %v5212 = vunpack.c.h.b16 %v5134
    %v5213 = vunpack.c.l.b16 %v5135
    %v5214 = vunpack.c.h.b16 %v5135
    %v5215 = vunpack.c.l.b16 %v5136
    %v5216 = vunpack.c.h.b16 %v5136
    %v5217 = vunpack.c.l.b16 %v5137
    %v5218 = vunpack.c.h.b16 %v5137
    %v5219 = vunpack.c.l.b16 %v5138
    %v5220 = vunpack.c.h.b16 %v5138
    %v5221 = vunpack.c.l.b16 %v5139
    %v5222 = vunpack.c.h.b16 %v5139
    %v5223 = vunpack.c.l.b16 %v5140
    %v5224 = vunpack.c.h.b16 %v5140
    %v5225 = vunpack.c.l.b16 %v5141
    %v5226 = vunpack.c.h.b16 %v5141
    %v5227 = vunpack.c.l.b16 %v5142
    %v5228 = vunpack.c.h.b16 %v5142
    %v5229 = vunpack.c.l.b16 %v5143
    %v5230 = vunpack.c.h.b16 %v5143
    %v5231 = vunpack.c.l.b16 %v5144
    %v5232 = vunpack.c.h.b16 %v5144
    %v5233 = vunpack.c.l.b16 %v5145
    %v5234 = vunpack.c.h.b16 %v5145
    %v5235 = vunpack.c.l.b16 %v5146
    %v5236 = vunpack.c.h.b16 %v5146
    %v5237 = vunpack.c.l.b16 %v5147
    %v5238 = vunpack.c.h.b16 %v5147
    %v5239 = vunpack.c.l.b16 %v5148
    %v5240 = vunpack.c.h.b16 %v5148
    %v5241 = vunpack.c.l.b16 %v5149
    %v5242 = vunpack.c.h.b16 %v5149
    %v5243 = vunpack.c.l.b16 %v5150
    %v5244 = vunpack.c.h.b16 %v5150
    %v5245 = vunpack.c.l.b16 %v5151
    %v5246 = vunpack.c.h.b16 %v5151
    %v5247 = vunpack.c.l.b16 %v5152
    %v5248 = vunpack.c.h.b16 %v5152
    %v5249 = vunpack.c.l.b16 %v5153
    %v5250 = vunpack.c.h.b16 %v5153
    %v5251 = vunpack.c.l.b16 %v5154
    %v5252 = vunpack.c.h.b16 %v5154
    %v5253 = vunpack.c.l.b16 %v5155
    %v5254 = vunpack.c.h.b16 %v5155
    %v5255 = vunpack.c.l.b16 %v5156
    %v5256 = vunpack.c.h.b16 %v5156
    %v5257 = vpack.c.b16 %v5197, %v5193
    %v5258 = vpack.c.b16 %v5198, %v5194
    %v5259 = vpack.c.b16 %v5199, %v5195
    %v5260 = vpack.c.b16 %v5200, %v5196
    %v5261 = vpack.c.b16 %v5205, %v5201
    %v5262 = vpack.c.b16 %v5206, %v5202
    %v5263 = vpack.c.b16 %v5207, %v5203
    %v5264 = vpack.c.b16 %v5208, %v5204
    %v5265 = vpack.c.b16 %v5213, %v5209
    %v5266 = vpack.c.b16 %v5214, %v5210
    %v5267 = vpack.c.b16 %v5215, %v5211
    %v5268 = vpack.c.b16 %v5216, %v5212
    %v5269 = vpack.c.b16 %v5221, %v5217
    %v5270 = vpack.c.b16 %v5222, %v5218
    %v5271 = vpack.c.b16 %v5223, %v5219
    %v5272 = vpack.c.b16 %v5224, %v5220
    %v5273 = vpack.c.b16 %v5229, %v5225
    %v5274 = vpack.c.b16 %v5230, %v5226
    %v5275 = vpack.c.b16 %v5231, %v5227
    %v5276 = vpack.c.b16 %v5232, %v5228
    %v5277 = vpack.c.b16 %v5237, %v5233
    %v5278 = vpack.c.b16 %v5238, %v5234
    %v5279 = vpack.c.b16 %v5239, %v5235
    %v5280 = vpack.c.b16 %v5240, %v5236
    %v5281 = vpack.c.b16 %v5245, %v5241
    %v5282 = vpack.c.b16 %v5246, %v5242
    %v5283 = vpack.c.b16 %v5247, %v5243
    %v5284 = vpack.c.b16 %v5248, %v5244
    %v5285 = vpack.c.b16 %v5253, %v5249
    %v5286 = vpack.c.b16 %v5254, %v5250
    %v5287 = vpack.c.b16 %v5255, %v5251
    %v5288 = vpack.c.b16 %v5256, %v5252
    %5321 = vmatprep.subr.bf16.mxu0 %v5258
    %5322 = vmatpush1.bf16.msra.mxu0 %v5257
    %5323 = vmatprep.subr.bf16.mxu0 %v5262
    %5324 = vmatpush1.bf16.msra.mxu0 %v5261
    %5325 = vmatprep.subr.bf16.mxu0 %v5266
    %5326 = vmatpush1.bf16.msra.mxu0 %v5265
    %5327 = vmatprep.subr.bf16.mxu0 %v5270
    %5328 = vmatpush1.bf16.msra.mxu0 %v5269
    %5329 = vmatprep.subr.bf16.mxu0 %v5274
    %5330 = vmatpush1.bf16.msra.mxu0 %v5273
    %5331 = vmatprep.subr.bf16.mxu0 %v5278
    %5332 = vmatpush1.bf16.msra.mxu0 %v5277
    %5333 = vmatprep.subr.bf16.mxu0 %v5282
    %5334 = vmatpush1.bf16.msra.mxu0 %v5281
    %5335 = vmatprep.subr.bf16.mxu0 %v5286
    %5336 = vmatpush1.bf16.msra.mxu0 %v5285
    %5337 = vmatprep.subr.bf16.mxu0 0
    %5338 = vmatpush1.bf16.msra.mxu0 0
    %5339 = vmatprep.subr.bf16.mxu0 0
    %5340 = vmatpush1.bf16.msra.mxu0 0
    %5341 = vmatprep.subr.bf16.mxu0 0
    %5342 = vmatpush1.bf16.msra.mxu0 0
    %5343 = vmatprep.subr.bf16.mxu0 0
    %5344 = vmatpush1.bf16.msra.mxu0 0
    %5345 = vmatprep.subr.bf16.mxu0 0
    %5346 = vmatpush1.bf16.msra.mxu0 0
    %5347 = vmatprep.subr.bf16.mxu0 0
    %5348 = vmatpush1.bf16.msra.mxu0 0
    %5349 = vmatprep.subr.bf16.mxu0 0
    %5350 = vmatpush1.bf16.msra.mxu0 0
    %5351 = vmatprep.subr.bf16.mxu0 0
    %5352 = vmatpush1.bf16.msra.mxu0 0
    %5353 = vmatprep.mubr.bf16.mxu0 0
    %5354 = vmatmul.mubr.bf16.gmra.mrb[0].mxu0 %v4632
    %v5355 = vpop.f32.mrb[0].mxu0
    %v5356 = vadd.f32 %v5157, %v5355
    %v5357 = vpop.f32.mrb[0].mxu0
    %v5358 = vadd.f32 %v5158, %v5357
    %v5359 = vpop.f32.mrb[0].mxu0
    %v5360 = vpop.f32.mrb[0].mxu0
    %5361 = vdwg.mxu0
    %5362 = vmatprep.subr.bf16.mxu0 %v5260
    %5363 = vmatpush1.bf16.msra.mxu0 %v5259
    %5364 = vmatprep.subr.bf16.mxu0 %v5264
    %5365 = vmatpush1.bf16.msra.mxu0 %v5263
    %5366 = vmatprep.subr.bf16.mxu0 %v5268
    %5367 = vmatpush1.bf16.msra.mxu0 %v5267
    %5368 = vmatprep.subr.bf16.mxu0 %v5272
    %5369 = vmatpush1.bf16.msra.mxu0 %v5271
    %5370 = vmatprep.subr.bf16.mxu0 %v5276
    %5371 = vmatpush1.bf16.msra.mxu0 %v5275
    %5372 = vmatprep.subr.bf16.mxu0 %v5280
    %5373 = vmatpush1.bf16.msra.mxu0 %v5279
    %5374 = vmatprep.subr.bf16.mxu0 %v5284
    %5375 = vmatpush1.bf16.msra.mxu0 %v5283
    %5376 = vmatprep.subr.bf16.mxu0 %v5288
    %5377 = vmatpush1.bf16.msra.mxu0 %v5287
    %5378 = vmatprep.subr.bf16.mxu0 0
    %5379 = vmatpush1.bf16.msra.mxu0 0
    %5380 = vmatprep.subr.bf16.mxu0 0
    %5381 = vmatpush1.bf16.msra.mxu0 0
    %5382 = vmatprep.subr.bf16.mxu0 0
    %5383 = vmatpush1.bf16.msra.mxu0 0
    %5384 = vmatprep.subr.bf16.mxu0 0
    %5385 = vmatpush1.bf16.msra.mxu0 0
    %5386 = vmatprep.subr.bf16.mxu0 0
    %5387 = vmatpush1.bf16.msra.mxu0 0
    %5388 = vmatprep.subr.bf16.mxu0 0
    %5389 = vmatpush1.bf16.msra.mxu0 0
    %5390 = vmatprep.subr.bf16.mxu0 0
    %5391 = vmatpush1.bf16.msra.mxu0 0
    %5392 = vmatprep.subr.bf16.mxu0 0
    %5393 = vmatpush1.bf16.msra.mxu0 0
    %5394 = vmatprep.mubr.bf16.mxu0 0
    %5395 = vmatmul.mubr.bf16.gmra.mrb[0].mxu0 %v4632
    %v5396 = vpop.f32.mrb[0].mxu0
    %v5397 = vadd.f32 %v5159, %v5396
    %v5398 = vpop.f32.mrb[0].mxu0
    %v5399 = vadd.f32 %v5160, %v5398
    %v5400 = vpop.f32.mrb[0].mxu0
    %v5401 = vpop.f32.mrb[0].mxu0
    %5402 = vdwg.mxu0
    %v5403 = vxor.u32 %v5356, 2147483648
    %v5404 = vxor.u32 %v5358, 2147483648
    %v5405 = vmul.f32 %v5403, 1.442695
    %v5406 = vpow.pop %v5405
    %v5407 = vmul.f32 %v5404, 1.442695
    %v5408 = vpow.pop %v5407
    %v5409 = vadd.f32 %v5406, 1.0
    %v5410 = vadd.f32 %v5408, 1.0
    %v5411 = vrcp.pop %v5409
    %v5412 = vmul.f32 1.0, %v5411
    %v5413 = vrcp.pop %v5410
    %v5414 = vmul.f32 1.0, %v5413
    %v5415 = vtanh.pop %v5397
    %v5416 = vxor.u32 %v5399, 2147483648
    %v5417 = vmul.f32 %v5416, 1.442695
    %v5418 = vpow.pop %v5417
    %v5419 = vadd.f32 %v5418, 1.0
    %v5420 = vrcp.pop %v5419
    %v5421 = vmul.f32 1.0, %v5420
    %v5422 = vmul.f32 %v5414, %v4629
    %v5423 = vmul.f32 %v5412, %v5415
    %v5424 = vadd.f32 %v5422, %v5423
    %v5425 = vtanh.pop %v5424
    %v5426 = vmul.f32 %v5421, %v5425
    %v5427 = vpack.c.bf16 %v5426, %v5426
    %v5428 = vpack.c.bf16 %v5123, %v5123
    %v5429 = vld [vmem:[#allocation8] sm:$0xff]
    %v5430 = vld [vmem:[#allocation8 + $0x8] sm:$0xff]
    %v5431 = vld [vmem:[#allocation8 + $0x10] sm:$0xff]
    %v5432 = vld [vmem:[#allocation8 + $0x18] sm:$0xff]
    %v5433 = vld [vmem:[#allocation8 + $0x20] sm:$0xff]
    %v5434 = vld [vmem:[#allocation8 + $0x28] sm:$0xff]
    %v5435 = vld [vmem:[#allocation8 + $0x30] sm:$0xff]
    %v5436 = vld [vmem:[#allocation8 + $0x38] sm:$0xff]
    %v5437 = vld [vmem:[#allocation8 + $0x40] sm:$0xff]
    %v5438 = vld [vmem:[#allocation8 + $0x48] sm:$0xff]
    %v5439 = vld [vmem:[#allocation8 + $0x50] sm:$0xff]
    %v5440 = vld [vmem:[#allocation8 + $0x58] sm:$0xff]
    %v5441 = vld [vmem:[#allocation8 + $0x60] sm:$0xff]
    %v5442 = vld [vmem:[#allocation8 + $0x68] sm:$0xff]
    %v5443 = vld [vmem:[#allocation8 + $0x70] sm:$0xff]
    %v5444 = vld [vmem:[#allocation8 + $0x78] sm:$0xff]
    %v5445 = vld [vmem:[#allocation8 + $0x80] sm:$0xff]
    %v5446 = vld [vmem:[#allocation8 + $0x88] sm:$0xff]
    %v5447 = vld [vmem:[#allocation8 + $0x90] sm:$0xff]
    %v5448 = vld [vmem:[#allocation8 + $0x98] sm:$0xff]
    %v5449 = vld [vmem:[#allocation8 + $0xa0] sm:$0xff]
    %v5450 = vld [vmem:[#allocation8 + $0xa8] sm:$0xff]
    %v5451 = vld [vmem:[#allocation8 + $0xb0] sm:$0xff]
    %v5452 = vld [vmem:[#allocation8 + $0xb8] sm:$0xff]
    %v5453 = vld [vmem:[#allocation8 + $0xc0] sm:$0xff]
    %v5454 = vld [vmem:[#allocation8 + $0xc8] sm:$0xff]
    %v5455 = vld [vmem:[#allocation8 + $0xd0] sm:$0xff]
    %v5456 = vld [vmem:[#allocation8 + $0xd8] sm:$0xff]
    %v5457 = vld [vmem:[#allocation8 + $0xe0] sm:$0xff]
    %v5458 = vld [vmem:[#allocation8 + $0xe8] sm:$0xff]
    %v5459 = vld [vmem:[#allocation8 + $0xf0] sm:$0xff]
    %v5460 = vld [vmem:[#allocation8 + $0xf8] sm:$0xff]
    %v5461 = vld [vmem:[#allocation8 + $0x100] sm:$0xff]
    %v5462 = vld [vmem:[#allocation8 + $0x108] sm:$0xff]
    %v5463 = vld [vmem:[#allocation8 + $0x110] sm:$0xff]
    %v5464 = vld [vmem:[#allocation8 + $0x118] sm:$0xff]
    %v5465 = vld [vmem:[#allocation8 + $0x120] sm:$0xff]
    %v5466 = vld [vmem:[#allocation8 + $0x128] sm:$0xff]
    %v5467 = vld [vmem:[#allocation8 + $0x130] sm:$0xff]
    %v5468 = vld [vmem:[#allocation8 + $0x138] sm:$0xff]
    %v5469 = vld [vmem:[#allocation8 + $0x140] sm:$0xff]
    %v5470 = vld [vmem:[#allocation8 + $0x148] sm:$0xff]
    %v5471 = vld [vmem:[#allocation8 + $0x150] sm:$0xff]
    %v5472 = vld [vmem:[#allocation8 + $0x158] sm:$0xff]
    %v5473 = vld [vmem:[#allocation8 + $0x160] sm:$0xff]
    %v5474 = vld [vmem:[#allocation8 + $0x168] sm:$0xff]
    %v5475 = vld [vmem:[#allocation8 + $0x170] sm:$0xff]
    %v5476 = vld [vmem:[#allocation8 + $0x178] sm:$0xff]
    %v5477 = vld [vmem:[#allocation8 + $0x180] sm:$0xff]
    %v5478 = vld [vmem:[#allocation8 + $0x188] sm:$0xff]
    %v5479 = vld [vmem:[#allocation8 + $0x190] sm:$0xff]
    %v5480 = vld [vmem:[#allocation8 + $0x198] sm:$0xff]
    %v5481 = vld [vmem:[#allocation8 + $0x1a0] sm:$0xff]
    %v5482 = vld [vmem:[#allocation8 + $0x1a8] sm:$0xff]
    %v5483 = vld [vmem:[#allocation8 + $0x1b0] sm:$0xff]
    %v5484 = vld [vmem:[#allocation8 + $0x1b8] sm:$0xff]
    %v5485 = vld [vmem:[#allocation8 + $0x1c0] sm:$0xff]
    %v5486 = vld [vmem:[#allocation8 + $0x1c8] sm:$0xff]
    %v5487 = vld [vmem:[#allocation8 + $0x1d0] sm:$0xff]
    %v5488 = vld [vmem:[#allocation8 + $0x1d8] sm:$0xff]
    %v5489 = vld [vmem:[#allocation8 + $0x1e0] sm:$0xff]
    %v5490 = vld [vmem:[#allocation8 + $0x1e8] sm:$0xff]
    %v5491 = vld [vmem:[#allocation8 + $0x1f0] sm:$0xff]
    %v5492 = vld [vmem:[#allocation8 + $0x1f8] sm:$0xff]
    %v5557 = vunpack.c.l.b16 %v5429
    %v5558 = vunpack.c.h.b16 %v5429
    %v5559 = vunpack.c.l.b16 %v5430
    %v5560 = vunpack.c.h.b16 %v5430
    %v5561 = vunpack.c.l.b16 %v5431
    %v5562 = vunpack.c.h.b16 %v5431
    %v5563 = vunpack.c.l.b16 %v5432
    %v5564 = vunpack.c.h.b16 %v5432
    %v5565 = vunpack.c.l.b16 %v5433
    %v5566 = vunpack.c.h.b16 %v5433
    %v5567 = vunpack.c.l.b16 %v5434
    %v5568 = vunpack.c.h.b16 %v5434
    %v5569 = vunpack.c.l.b16 %v5435
    %v5570 = vunpack.c.h.b16 %v5435
    %v5571 = vunpack.c.l.b16 %v5436
    %v5572 = vunpack.c.h.b16 %v5436
    %v5573 = vunpack.c.l.b16 %v5437
    %v5574 = vunpack.c.h.b16 %v5437
    %v5575 = vunpack.c.l.b16 %v5438
    %v5576 = vunpack.c.h.b16 %v5438
    %v5577 = vunpack.c.l.b16 %v5439
    %v5578 = vunpack.c.h.b16 %v5439
    %v5579 = vunpack.c.l.b16 %v5440
    %v5580 = vunpack.c.h.b16 %v5440
    %v5581 = vunpack.c.l.b16 %v5441
    %v5582 = vunpack.c.h.b16 %v5441
    %v5583 = vunpack.c.l.b16 %v5442
    %v5584 = vunpack.c.h.b16 %v5442
    %v5585 = vunpack.c.l.b16 %v5443
    %v5586 = vunpack.c.h.b16 %v5443
    %v5587 = vunpack.c.l.b16 %v5444
    %v5588 = vunpack.c.h.b16 %v5444
    %v5589 = vunpack.c.l.b16 %v5445
    %v5590 = vunpack.c.h.b16 %v5445
    %v5591 = vunpack.c.l.b16 %v5446
    %v5592 = vunpack.c.h.b16 %v5446
    %v5593 = vunpack.c.l.b16 %v5447
    %v5594 = vunpack.c.h.b16 %v5447
    %v5595 = vunpack.c.l.b16 %v5448
    %v5596 = vunpack.c.h.b16 %v5448
    %v5597 = vunpack.c.l.b16 %v5449
    %v5598 = vunpack.c.h.b16 %v5449
    %v5599 = vunpack.c.l.b16 %v5450
    %v5600 = vunpack.c.h.b16 %v5450
    %v5601 = vunpack.c.l.b16 %v5451
    %v5602 = vunpack.c.h.b16 %v5451
    %v5603 = vunpack.c.l.b16 %v5452
    %v5604 = vunpack.c.h.b16 %v5452
    %v5605 = vunpack.c.l.b16 %v5453
    %v5606 = vunpack.c.h.b16 %v5453
    %v5607 = vunpack.c.l.b16 %v5454
    %v5608 = vunpack.c.h.b16 %v5454
    %v5609 = vunpack.c.l.b16 %v5455
    %v5610 = vunpack.c.h.b16 %v5455
    %v5611 = vunpack.c.l.b16 %v5456
    %v5612 = vunpack.c.h.b16 %v5456
    %v5613 = vunpack.c.l.b16 %v5457
    %v5614 = vunpack.c.h.b16 %v5457
    %v5615 = vunpack.c.l.b16 %v5458
    %v5616 = vunpack.c.h.b16 %v5458
    %v5617 = vunpack.c.l.b16 %v5459
    %v5618 = vunpack.c.h.b16 %v5459
    %v5619 = vunpack.c.l.b16 %v5460
    %v5620 = vunpack.c.h.b16 %v5460
    %v5621 = vunpack.c.l.b16 %v5461
    %v5622 = vunpack.c.h.b16 %v5461
    %v5623 = vunpack.c.l.b16 %v5462
    %v5624 = vunpack.c.h.b16 %v5462
    %v5625 = vunpack.c.l.b16 %v5463
    %v5626 = vunpack.c.h.b16 %v5463
    %v5627 = vunpack.c.l.b16 %v5464
    %v5628 = vunpack.c.h.b16 %v5464
    %v5629 = vunpack.c.l.b16 %v5465
    %v5630 = vunpack.c.h.b16 %v5465
    %v5631 = vunpack.c.l.b16 %v5466
    %v5632 = vunpack.c.h.b16 %v5466
    %v5633 = vunpack.c.l.b16 %v5467
    %v5634 = vunpack.c.h.b16 %v5467
    %v5635 = vunpack.c.l.b16 %v5468
    %v5636 = vunpack.c.h.b16 %v5468
    %v5637 = vunpack.c.l.b16 %v5469
    %v5638 = vunpack.c.h.b16 %v5469
    %v5639 = vunpack.c.l.b16 %v5470
    %v5640 = vunpack.c.h.b16 %v5470
    %v5641 = vunpack.c.l.b16 %v5471
    %v5642 = vunpack.c.h.b16 %v5471
    %v5643 = vunpack.c.l.b16 %v5472
    %v5644 = vunpack.c.h.b16 %v5472
    %v5645 = vunpack.c.l.b16 %v5473
    %v5646 = vunpack.c.h.b16 %v5473
    %v5647 = vunpack.c.l.b16 %v5474
    %v5648 = vunpack.c.h.b16 %v5474
    %v5649 = vunpack.c.l.b16 %v5475
    %v5650 = vunpack.c.h.b16 %v5475
    %v5651 = vunpack.c.l.b16 %v5476
    %v5652 = vunpack.c.h.b16 %v5476
    %v5653 = vunpack.c.l.b16 %v5477
    %v5654 = vunpack.c.h.b16 %v5477
    %v5655 = vunpack.c.l.b16 %v5478
    %v5656 = vunpack.c.h.b16 %v5478
    %v5657 = vunpack.c.l.b16 %v5479
    %v5658 = vunpack.c.h.b16 %v5479
    %v5659 = vunpack.c.l.b16 %v5480
    %v5660 = vunpack.c.h.b16 %v5480
    %v5661 = vunpack.c.l.b16 %v5481
    %v5662 = vunpack.c.h.b16 %v5481
    %v5663 = vunpack.c.l.b16 %v5482
    %v5664 = vunpack.c.h.b16 %v5482
    %v5665 = vunpack.c.l.b16 %v5483
    %v5666 = vunpack.c.h.b16 %v5483
    %v5667 = vunpack.c.l.b16 %v5484
    %v5668 = vunpack.c.h.b16 %v5484
    %v5669 = vunpack.c.l.b16 %v5485
    %v5670 = vunpack.c.h.b16 %v5485
    %v5671 = vunpack.c.l.b16 %v5486
    %v5672 = vunpack.c.h.b16 %v5486
    %v5673 = vunpack.c.l.b16 %v5487
    %v5674 = vunpack.c.h.b16 %v5487
    %v5675 = vunpack.c.l.b16 %v5488
    %v5676 = vunpack.c.h.b16 %v5488
    %v5677 = vunpack.c.l.b16 %v5489
    %v5678 = vunpack.c.h.b16 %v5489
    %v5679 = vunpack.c.l.b16 %v5490
    %v5680 = vunpack.c.h.b16 %v5490
    %v5681 = vunpack.c.l.b16 %v5491
    %v5682 = vunpack.c.h.b16 %v5491
    %v5683 = vunpack.c.l.b16 %v5492
    %v5684 = vunpack.c.h.b16 %v5492
    %v5685 = vpack.c.b16 %v5561, %v5557
    %v5686 = vpack.c.b16 %v5562, %v5558
    %v5687 = vpack.c.b16 %v5563, %v5559
    %v5688 = vpack.c.b16 %v5564, %v5560
    %v5689 = vpack.c.b16 %v5569, %v5565
    %v5690 = vpack.c.b16 %v5570, %v5566
    %v5691 = vpack.c.b16 %v5571, %v5567
    %v5692 = vpack.c.b16 %v5572, %v5568
    %v5693 = vpack.c.b16 %v5577, %v5573
    %v5694 = vpack.c.b16 %v5578, %v5574
    %v5695 = vpack.c.b16 %v5579, %v5575
    %v5696 = vpack.c.b16 %v5580, %v5576
    %v5697 = vpack.c.b16 %v5585, %v5581
    %v5698 = vpack.c.b16 %v5586, %v5582
    %v5699 = vpack.c.b16 %v5587, %v5583
    %v5700 = vpack.c.b16 %v5588, %v5584
    %v5701 = vpack.c.b16 %v5593, %v5589
    %v5702 = vpack.c.b16 %v5594, %v5590
    %v5703 = vpack.c.b16 %v5595, %v5591
    %v5704 = vpack.c.b16 %v5596, %v5592
    %v5705 = vpack.c.b16 %v5601, %v5597
    %v5706 = vpack.c.b16 %v5602, %v5598
    %v5707 = vpack.c.b16 %v5603, %v5599
    %v5708 = vpack.c.b16 %v5604, %v5600
    %v5709 = vpack.c.b16 %v5609, %v5605
    %v5710 = vpack.c.b16 %v5610, %v5606
    %v5711 = vpack.c.b16 %v5611, %v5607
    %v5712 = vpack.c.b16 %v5612, %v5608
    %v5713 = vpack.c.b16 %v5617, %v5613
    %v5714 = vpack.c.b16 %v5618, %v5614
    %v5715 = vpack.c.b16 %v5619, %v5615
    %v5716 = vpack.c.b16 %v5620, %v5616
    %v5717 = vpack.c.b16 %v5625, %v5621
    %v5718 = vpack.c.b16 %v5626, %v5622
    %v5719 = vpack.c.b16 %v5627, %v5623
    %v5720 = vpack.c.b16 %v5628, %v5624
    %v5721 = vpack.c.b16 %v5633, %v5629
    %v5722 = vpack.c.b16 %v5634, %v5630
    %v5723 = vpack.c.b16 %v5635, %v5631
    %v5724 = vpack.c.b16 %v5636, %v5632
    %v5725 = vpack.c.b16 %v5641, %v5637
    %v5726 = vpack.c.b16 %v5642, %v5638
    %v5727 = vpack.c.b16 %v5643, %v5639
    %v5728 = vpack.c.b16 %v5644, %v5640
    %v5729 = vpack.c.b16 %v5649, %v5645
    %v5730 = vpack.c.b16 %v5650, %v5646
    %v5731 = vpack.c.b16 %v5651, %v5647
    %v5732 = vpack.c.b16 %v5652, %v5648
    %v5733 = vpack.c.b16 %v5657, %v5653
    %v5734 = vpack.c.b16 %v5658, %v5654
    %v5735 = vpack.c.b16 %v5659, %v5655
    %v5736 = vpack.c.b16 %v5660, %v5656
    %v5737 = vpack.c.b16 %v5665, %v5661
    %v5738 = vpack.c.b16 %v5666, %v5662
    %v5739 = vpack.c.b16 %v5667, %v5663
    %v5740 = vpack.c.b16 %v5668, %v5664
    %v5741 = vpack.c.b16 %v5673, %v5669
    %v5742 = vpack.c.b16 %v5674, %v5670
    %v5743 = vpack.c.b16 %v5675, %v5671
    %v5744 = vpack.c.b16 %v5676, %v5672
    %v5745 = vpack.c.b16 %v5681, %v5677
    %v5746 = vpack.c.b16 %v5682, %v5678
    %v5747 = vpack.c.b16 %v5683, %v5679
    %v5748 = vpack.c.b16 %v5684, %v5680
    %5813 = vmatprep.subr.bf16.mxu0 %v5686
    %5814 = vmatpush1.bf16.msra.mxu0 %v5685
    %5815 = vmatprep.subr.bf16.mxu0 %v5690
    %5816 = vmatpush1.bf16.msra.mxu0 %v5689
    %5817 = vmatprep.subr.bf16.mxu0 %v5694
    %5818 = vmatpush1.bf16.msra.mxu0 %v5693
    %5819 = vmatprep.subr.bf16.mxu0 %v5698
    %5820 = vmatpush1.bf16.msra.mxu0 %v5697
    %5821 = vmatprep.subr.bf16.mxu0 %v5702
    %5822 = vmatpush1.bf16.msra.mxu0 %v5701
    %5823 = vmatprep.subr.bf16.mxu0 %v5706
    %5824 = vmatpush1.bf16.msra.mxu0 %v5705
    %5825 = vmatprep.subr.bf16.mxu0 %v5710
    %5826 = vmatpush1.bf16.msra.mxu0 %v5709
    %5827 = vmatprep.subr.bf16.mxu0 %v5714
    %5828 = vmatpush1.bf16.msra.mxu0 %v5713
    %5829 = vmatprep.subr.bf16.mxu0 %v5718
    %5830 = vmatpush1.bf16.msra.mxu0 %v5717
    %5831 = vmatprep.subr.bf16.mxu0 %v5722
    %5832 = vmatpush1.bf16.msra.mxu0 %v5721
    %5833 = vmatprep.subr.bf16.mxu0 %v5726
    %5834 = vmatpush1.bf16.msra.mxu0 %v5725
    %5835 = vmatprep.subr.bf16.mxu0 %v5730
    %5836 = vmatpush1.bf16.msra.mxu0 %v5729
    %5837 = vmatprep.subr.bf16.mxu0 %v5734
    %5838 = vmatpush1.bf16.msra.mxu0 %v5733
    %5839 = vmatprep.subr.bf16.mxu0 %v5738
    %5840 = vmatpush1.bf16.msra.mxu0 %v5737
    %5841 = vmatprep.subr.bf16.mxu0 %v5742
    %5842 = vmatpush1.bf16.msra.mxu0 %v5741
    %5843 = vmatprep.subr.bf16.mxu0 %v5746
    %5844 = vmatpush1.bf16.msra.mxu0 %v5745
    %5845 = vmatprep.mubr.bf16.mxu0 %v5428
    %5846 = vmatmul.mubr.bf16.gmra.mrb[0].mxu0 %v5427
    %v5847 = vpop.f32.mrb[0].mxu0
    %v5848 = vadd.f32 %v706, %v5847
    %v5849 = vpop.f32.mrb[0].mxu0
    %v5850 = vadd.f32 %v710, %v5849
    %v5851 = vpop.f32.mrb[0].mxu0
    %v5852 = vpop.f32.mrb[0].mxu0
    %5853 = vdwg.mxu0
    %5854 = vmatprep.subr.bf16.mxu0 %v5688
    %5855 = vmatpush1.bf16.msra.mxu0 %v5687
    %5856 = vmatprep.subr.bf16.mxu0 %v5692
    %5857 = vmatpush1.bf16.msra.mxu0 %v5691
    %5858 = vmatprep.subr.bf16.mxu0 %v5696
    %5859 = vmatpush1.bf16.msra.mxu0 %v5695
    %5860 = vmatprep.subr.bf16.mxu0 %v5700
    %5861 = vmatpush1.bf16.msra.mxu0 %v5699
    %5862 = vmatprep.subr.bf16.mxu0 %v5704
    %5863 = vmatpush1.bf16.msra.mxu0 %v5703
    %5864 = vmatprep.subr.bf16.mxu0 %v5708
    %5865 = vmatpush1.bf16.msra.mxu0 %v5707
    %5866 = vmatprep.subr.bf16.mxu0 %v5712
    %5867 = vmatpush1.bf16.msra.mxu0 %v5711
    %5868 = vmatprep.subr.bf16.mxu0 %v5716
    %5869 = vmatpush1.bf16.msra.mxu0 %v5715
    %5870 = vmatprep.subr.bf16.mxu0 %v5720
    %5871 = vmatpush1.bf16.msra.mxu0 %v5719
    %5872 = vmatprep.subr.bf16.mxu0 %v5724
    %5873 = vmatpush1.bf16.msra.mxu0 %v5723
    %5874 = vmatprep.subr.bf16.mxu0 %v5728
    %5875 = vmatpush1.bf16.msra.mxu0 %v5727
    %5876 = vmatprep.subr.bf16.mxu0 %v5732
    %5877 = vmatpush1.bf16.msra.mxu0 %v5731
    %5878 = vmatprep.subr.bf16.mxu0 %v5736
    %5879 = vmatpush1.bf16.msra.mxu0 %v5735
    %5880 = vmatprep.subr.bf16.mxu0 %v5740
    %5881 = vmatpush1.bf16.msra.mxu0 %v5739
    %5882 = vmatprep.subr.bf16.mxu0 %v5744
    %5883 = vmatpush1.bf16.msra.mxu0 %v5743
    %5884 = vmatprep.subr.bf16.mxu0 %v5748
    %5885 = vmatpush1.bf16.msra.mxu0 %v5747
    %5886 = vmatprep.mubr.bf16.mxu0 %v5428
    %5887 = vmatmul.mubr.bf16.gmra.mrb[0].mxu0 %v5427
    %v5888 = vpop.f32.mrb[0].mxu0
    %v5889 = vadd.f32 %v714, %v5888
    %v5890 = vpop.f32.mrb[0].mxu0
    %v5891 = vadd.f32 %v718, %v5890
    %v5892 = vpop.f32.mrb[0].mxu0
    %v5893 = vpop.f32.mrb[0].mxu0
    %5894 = vdwg.mxu0
    %v5895 = vxor.u32 %v5848, 2147483648
    %v5896 = vxor.u32 %v5850, 2147483648
    %v5897 = vmul.f32 %v5895, 1.442695
    %v5898 = vpow.pop %v5897
    %v5899 = vmul.f32 %v5896, 1.442695
    %v5900 = vpow.pop %v5899
    %v5901 = vadd.f32 %v5898, 1.0
    %v5902 = vadd.f32 %v5900, 1.0
    %v5903 = vrcp.pop %v5901
    %v5904 = vmul.f32 1.0, %v5903
    %v5905 = vrcp.pop %v5902
    %v5906 = vmul.f32 1.0, %v5905
    %v5907 = vtanh.pop %v5889
    %v5908 = vxor.u32 %v5891, 2147483648
    %v5909 = vmul.f32 %v5908, 1.442695
    %v5910 = vpow.pop %v5909
    %v5911 = vadd.f32 %v5910, 1.0
    %v5912 = vrcp.pop %v5911
    %v5913 = vmul.f32 1.0, %v5912
    %v5914 = vmul.f32 %v5906, %v5121
    %v5915 = vmul.f32 %v5904, %v5907
    %v5916 = vadd.f32 %v5914, %v5915
    %v5917 = vtanh.pop %v5916
    %v5918 = vmul.f32 %v5913, %v5917
    %5919 = vst [vmem:[#allocation3 + $0x30] sm:$0xff] %v5918
    %v5920 = vld [vmem:[#allocation5] sm:$0xff]
    %v5921 = vld [vmem:[#allocation5 + $0x8] sm:$0xff]
    %v5922 = vld [vmem:[#allocation5 + $0x10] sm:$0xff]
    %v5923 = vld [vmem:[#allocation5 + $0x18] sm:$0xff]
    %v5924 = vld [vmem:[#allocation5 + $0x20] sm:$0xff]
    %v5925 = vld [vmem:[#allocation5 + $0x28] sm:$0xff]
    %v5926 = vld [vmem:[#allocation5 + $0x30] sm:$0xff]
    %v5927 = vld [vmem:[#allocation5 + $0x38] sm:$0xff]
    %v5928 = vld [vmem:[#allocation5 + $0x40] sm:$0xff]
    %v5929 = vld [vmem:[#allocation5 + $0x48] sm:$0xff]
    %v5930 = vld [vmem:[#allocation5 + $0x50] sm:$0xff]
    %v5931 = vld [vmem:[#allocation5 + $0x58] sm:$0xff]
    %v5932 = vld [vmem:[#allocation5 + $0x60] sm:$0xff]
    %v5933 = vld [vmem:[#allocation5 + $0x68] sm:$0xff]
    %v5934 = vld [vmem:[#allocation5 + $0x70] sm:$0xff]
    %v5935 = vld [vmem:[#allocation5 + $0x78] sm:$0xff]
    %v5936 = vld [vmem:[#allocation5 + $0x80] sm:$0xff]
    %v5937 = vld [vmem:[#allocation5 + $0x88] sm:$0xff]
    %v5938 = vld [vmem:[#allocation5 + $0x90] sm:$0xff]
    %v5939 = vld [vmem:[#allocation5 + $0x98] sm:$0xff]
    %v5940 = vld [vmem:[#allocation5 + $0xa0] sm:$0xff]
    %v5941 = vld [vmem:[#allocation5 + $0xa8] sm:$0xff]
    %v5942 = vld [vmem:[#allocation5 + $0xb0] sm:$0xff]
    %v5943 = vld [vmem:[#allocation5 + $0xb8] sm:$0xff]
    %v5944 = vld [vmem:[#allocation5 + $0xc0] sm:$0xff]
    %v5945 = vld [vmem:[#allocation5 + $0xc8] sm:$0xff]
    %v5946 = vld [vmem:[#allocation5 + $0xd0] sm:$0xff]
    %v5947 = vld [vmem:[#allocation5 + $0xd8] sm:$0xff]
    %v5948 = vld [vmem:[#allocation5 + $0xe0] sm:$0xff]
    %v5949 = vld [vmem:[#allocation5 + $0xe8] sm:$0xff]
    %v5950 = vld [vmem:[#allocation5 + $0xf0] sm:$0xff]
    %v5951 = vld [vmem:[#allocation5 + $0xf8] sm:$0xff]
    %v5952 = vld [vmem:[#allocation2 + $0xe0] sm:$0xff]
    %v5953 = vld [vmem:[#allocation2 + $0xe8] sm:$0xff]
    %v5954 = vld [vmem:[#allocation2 + $0xf0] sm:$0xff]
    %v5955 = vld [vmem:[#allocation2 + $0xf8] sm:$0xff]
    %v5988 = vunpack.c.l.b16 %v5920
    %v5989 = vunpack.c.h.b16 %v5920
    %v5990 = vunpack.c.l.b16 %v5921
    %v5991 = vunpack.c.h.b16 %v5921
    %v5992 = vunpack.c.l.b16 %v5922
    %v5993 = vunpack.c.h.b16 %v5922
    %v5994 = vunpack.c.l.b16 %v5923
    %v5995 = vunpack.c.h.b16 %v5923
    %v5996 = vunpack.c.l.b16 %v5924
    %v5997 = vunpack.c.h.b16 %v5924
    %v5998 = vunpack.c.l.b16 %v5925
    %v5999 = vunpack.c.h.b16 %v5925
    %v6000 = vunpack.c.l.b16 %v5926
    %v6001 = vunpack.c.h.b16 %v5926
    %v6002 = vunpack.c.l.b16 %v5927
    %v6003 = vunpack.c.h.b16 %v5927
    %v6004 = vunpack.c.l.b16 %v5928
    %v6005 = vunpack.c.h.b16 %v5928
    %v6006 = vunpack.c.l.b16 %v5929
    %v6007 = vunpack.c.h.b16 %v5929
    %v6008 = vunpack.c.l.b16 %v5930
    %v6009 = vunpack.c.h.b16 %v5930
    %v6010 = vunpack.c.l.b16 %v5931
    %v6011 = vunpack.c.h.b16 %v5931
    %v6012 = vunpack.c.l.b16 %v5932
    %v6013 = vunpack.c.h.b16 %v5932
    %v6014 = vunpack.c.l.b16 %v5933
    %v6015 = vunpack.c.h.b16 %v5933
    %v6016 = vunpack.c.l.b16 %v5934
    %v6017 = vunpack.c.h.b16 %v5934
    %v6018 = vunpack.c.l.b16 %v5935
    %v6019 = vunpack.c.h.b16 %v5935
    %v6020 = vunpack.c.l.b16 %v5936
    %v6021 = vunpack.c.h.b16 %v5936
    %v6022 = vunpack.c.l.b16 %v5937
    %v6023 = vunpack.c.h.b16 %v5937
    %v6024 = vunpack.c.l.b16 %v5938
    %v6025 = vunpack.c.h.b16 %v5938
    %v6026 = vunpack.c.l.b16 %v5939
    %v6027 = vunpack.c.h.b16 %v5939
    %v6028 = vunpack.c.l.b16 %v5940
    %v6029 = vunpack.c.h.b16 %v5940
    %v6030 = vunpack.c.l.b16 %v5941
    %v6031 = vunpack.c.h.b16 %v5941
    %v6032 = vunpack.c.l.b16 %v5942
    %v6033 = vunpack.c.h.b16 %v5942
    %v6034 = vunpack.c.l.b16 %v5943
    %v6035 = vunpack.c.h.b16 %v5943
    %v6036 = vunpack.c.l.b16 %v5944
    %v6037 = vunpack.c.h.b16 %v5944
    %v6038 = vunpack.c.l.b16 %v5945
    %v6039 = vunpack.c.h.b16 %v5945
    %v6040 = vunpack.c.l.b16 %v5946
    %v6041 = vunpack.c.h.b16 %v5946
    %v6042 = vunpack.c.l.b16 %v5947
    %v6043 = vunpack.c.h.b16 %v5947
    %v6044 = vunpack.c.l.b16 %v5948
    %v6045 = vunpack.c.h.b16 %v5948
    %v6046 = vunpack.c.l.b16 %v5949
    %v6047 = vunpack.c.h.b16 %v5949
    %v6048 = vunpack.c.l.b16 %v5950
    %v6049 = vunpack.c.h.b16 %v5950
    %v6050 = vunpack.c.l.b16 %v5951
    %v6051 = vunpack.c.h.b16 %v5951
    %v6052 = vpack.c.b16 %v5992, %v5988
    %v6053 = vpack.c.b16 %v5993, %v5989
    %v6054 = vpack.c.b16 %v5994, %v5990
    %v6055 = vpack.c.b16 %v5995, %v5991
    %v6056 = vpack.c.b16 %v6000, %v5996
    %v6057 = vpack.c.b16 %v6001, %v5997
    %v6058 = vpack.c.b16 %v6002, %v5998
    %v6059 = vpack.c.b16 %v6003, %v5999
    %v6060 = vpack.c.b16 %v6008, %v6004
    %v6061 = vpack.c.b16 %v6009, %v6005
    %v6062 = vpack.c.b16 %v6010, %v6006
    %v6063 = vpack.c.b16 %v6011, %v6007
    %v6064 = vpack.c.b16 %v6016, %v6012
    %v6065 = vpack.c.b16 %v6017, %v6013
    %v6066 = vpack.c.b16 %v6018, %v6014
    %v6067 = vpack.c.b16 %v6019, %v6015
    %v6068 = vpack.c.b16 %v6024, %v6020
    %v6069 = vpack.c.b16 %v6025, %v6021
    %v6070 = vpack.c.b16 %v6026, %v6022
    %v6071 = vpack.c.b16 %v6027, %v6023
    %v6072 = vpack.c.b16 %v6032, %v6028
    %v6073 = vpack.c.b16 %v6033, %v6029
    %v6074 = vpack.c.b16 %v6034, %v6030
    %v6075 = vpack.c.b16 %v6035, %v6031
    %v6076 = vpack.c.b16 %v6040, %v6036
    %v6077 = vpack.c.b16 %v6041, %v6037
    %v6078 = vpack.c.b16 %v6042, %v6038
    %v6079 = vpack.c.b16 %v6043, %v6039
    %v6080 = vpack.c.b16 %v6048, %v6044
    %v6081 = vpack.c.b16 %v6049, %v6045
    %v6082 = vpack.c.b16 %v6050, %v6046
    %v6083 = vpack.c.b16 %v6051, %v6047
    %6116 = vmatprep.subr.bf16.mxu0 %v6053
    %6117 = vmatpush1.bf16.msra.mxu0 %v6052
    %6118 = vmatprep.subr.bf16.mxu0 %v6057
    %6119 = vmatpush1.bf16.msra.mxu0 %v6056
    %6120 = vmatprep.subr.bf16.mxu0 %v6061
    %6121 = vmatpush1.bf16.msra.mxu0 %v6060
    %6122 = vmatprep.subr.bf16.mxu0 %v6065
    %6123 = vmatpush1.bf16.msra.mxu0 %v6064
    %6124 = vmatprep.subr.bf16.mxu0 %v6069
    %6125 = vmatpush1.bf16.msra.mxu0 %v6068
    %6126 = vmatprep.subr.bf16.mxu0 %v6073
    %6127 = vmatpush1.bf16.msra.mxu0 %v6072
    %6128 = vmatprep.subr.bf16.mxu0 %v6077
    %6129 = vmatpush1.bf16.msra.mxu0 %v6076
    %6130 = vmatprep.subr.bf16.mxu0 %v6081
    %6131 = vmatpush1.bf16.msra.mxu0 %v6080
    %6132 = vmatprep.subr.bf16.mxu0 0
    %6133 = vmatpush1.bf16.msra.mxu0 0
    %6134 = vmatprep.subr.bf16.mxu0 0
    %6135 = vmatpush1.bf16.msra.mxu0 0
    %6136 = vmatprep.subr.bf16.mxu0 0
    %6137 = vmatpush1.bf16.msra.mxu0 0
    %6138 = vmatprep.subr.bf16.mxu0 0
    %6139 = vmatpush1.bf16.msra.mxu0 0
    %6140 = vmatprep.subr.bf16.mxu0 0
    %6141 = vmatpush1.bf16.msra.mxu0 0
    %6142 = vmatprep.subr.bf16.mxu0 0
    %6143 = vmatpush1.bf16.msra.mxu0 0
    %6144 = vmatprep.subr.bf16.mxu0 0
    %6145 = vmatpush1.bf16.msra.mxu0 0
    %6146 = vmatprep.subr.bf16.mxu0 0
    %6147 = vmatpush1.bf16.msra.mxu0 0
    %6148 = vmatprep.mubr.bf16.mxu0 0
    %6149 = vmatmul.mubr.bf16.gmra.mrb[0].mxu0 %v5427
    %v6150 = vpop.f32.mrb[0].mxu0
    %v6151 = vadd.f32 %v5952, %v6150
    %v6152 = vpop.f32.mrb[0].mxu0
    %v6153 = vadd.f32 %v5953, %v6152
    %v6154 = vpop.f32.mrb[0].mxu0
    %v6155 = vpop.f32.mrb[0].mxu0
    %6156 = vdwg.mxu0
    %6157 = vmatprep.subr.bf16.mxu0 %v6055
    %6158 = vmatpush1.bf16.msra.mxu0 %v6054
    %6159 = vmatprep.subr.bf16.mxu0 %v6059
    %6160 = vmatpush1.bf16.msra.mxu0 %v6058
    %6161 = vmatprep.subr.bf16.mxu0 %v6063
    %6162 = vmatpush1.bf16.msra.mxu0 %v6062
    %6163 = vmatprep.subr.bf16.mxu0 %v6067
    %6164 = vmatpush1.bf16.msra.mxu0 %v6066
    %6165 = vmatprep.subr.bf16.mxu0 %v6071
    %6166 = vmatpush1.bf16.msra.mxu0 %v6070
    %6167 = vmatprep.subr.bf16.mxu0 %v6075
    %6168 = vmatpush1.bf16.msra.mxu0 %v6074
    %6169 = vmatprep.subr.bf16.mxu0 %v6079
    %6170 = vmatpush1.bf16.msra.mxu0 %v6078
    %6171 = vmatprep.subr.bf16.mxu0 %v6083
    %6172 = vmatpush1.bf16.msra.mxu0 %v6082
    %6173 = vmatprep.subr.bf16.mxu0 0
    %6174 = vmatpush1.bf16.msra.mxu0 0
    %6175 = vmatprep.subr.bf16.mxu0 0
    %6176 = vmatpush1.bf16.msra.mxu0 0
    %6177 = vmatprep.subr.bf16.mxu0 0
    %6178 = vmatpush1.bf16.msra.mxu0 0
    %6179 = vmatprep.subr.bf16.mxu0 0
    %6180 = vmatpush1.bf16.msra.mxu0 0
    %6181 = vmatprep.subr.bf16.mxu0 0
    %6182 = vmatpush1.bf16.msra.mxu0 0
    %6183 = vmatprep.subr.bf16.mxu0 0
    %6184 = vmatpush1.bf16.msra.mxu0 0
    %6185 = vmatprep.subr.bf16.mxu0 0
    %6186 = vmatpush1.bf16.msra.mxu0 0
    %6187 = vmatprep.subr.bf16.mxu0 0
    %6188 = vmatpush1.bf16.msra.mxu0 0
    %6189 = vmatprep.mubr.bf16.mxu0 0
    %6190 = vmatmul.mubr.bf16.gmra.mrb[0].mxu0 %v5427
    %v6191 = vpop.f32.mrb[0].mxu0
    %v6192 = vadd.f32 %v5954, %v6191
    %v6193 = vpop.f32.mrb[0].mxu0
    %v6194 = vadd.f32 %v5955, %v6193
    %v6195 = vpop.f32.mrb[0].mxu0
    %v6196 = vpop.f32.mrb[0].mxu0
    %6197 = vdwg.mxu0
    %v6198 = vxor.u32 %v6151, 2147483648
    %v6199 = vxor.u32 %v6153, 2147483648
    %v6200 = vmul.f32 %v6198, 1.442695
    %v6201 = vpow.pop %v6200
    %v6202 = vmul.f32 %v6199, 1.442695
    %v6203 = vpow.pop %v6202
    %v6204 = vadd.f32 %v6201, 1.0
    %v6205 = vadd.f32 %v6203, 1.0
    %v6206 = vrcp.pop %v6204
    %v6207 = vmul.f32 1.0, %v6206
    %v6208 = vrcp.pop %v6205
    %v6209 = vmul.f32 1.0, %v6208
    %v6210 = vtanh.pop %v6192
    %v6211 = vxor.u32 %v6194, 2147483648
    %v6212 = vmul.f32 %v6211, 1.442695
    %v6213 = vpow.pop %v6212
    %v6214 = vadd.f32 %v6213, 1.0
    %v6215 = vrcp.pop %v6214
    %v6216 = vmul.f32 1.0, %v6215
    %v6217 = vmul.f32 %v6209, %v5424
    %v6218 = vmul.f32 %v6207, %v6210
    %v6219 = vadd.f32 %v6217, %v6218
    %v6220 = vtanh.pop %v6219
    %v6221 = vmul.f32 %v6216, %v6220
    %v6222 = vpack.c.bf16 %v6221, %v6221
    %v6223 = vpack.c.bf16 %v5918, %v5918
    %v6224 = vld [vmem:[#allocation8] sm:$0xff]
    %v6225 = vld [vmem:[#allocation8 + $0x8] sm:$0xff]
    %v6226 = vld [vmem:[#allocation8 + $0x10] sm:$0xff]
    %v6227 = vld [vmem:[#allocation8 + $0x18] sm:$0xff]
    %v6228 = vld [vmem:[#allocation8 + $0x20] sm:$0xff]
    %v6229 = vld [vmem:[#allocation8 + $0x28] sm:$0xff]
    %v6230 = vld [vmem:[#allocation8 + $0x30] sm:$0xff]
    %v6231 = vld [vmem:[#allocation8 + $0x38] sm:$0xff]
    %v6232 = vld [vmem:[#allocation8 + $0x40] sm:$0xff]
    %v6233 = vld [vmem:[#allocation8 + $0x48] sm:$0xff]
    %v6234 = vld [vmem:[#allocation8 + $0x50] sm:$0xff]
    %v6235 = vld [vmem:[#allocation8 + $0x58] sm:$0xff]
    %v6236 = vld [vmem:[#allocation8 + $0x60] sm:$0xff]
    %v6237 = vld [vmem:[#allocation8 + $0x68] sm:$0xff]
    %v6238 = vld [vmem:[#allocation8 + $0x70] sm:$0xff]
    %v6239 = vld [vmem:[#allocation8 + $0x78] sm:$0xff]
    %v6240 = vld [vmem:[#allocation8 + $0x80] sm:$0xff]
    %v6241 = vld [vmem:[#allocation8 + $0x88] sm:$0xff]
    %v6242 = vld [vmem:[#allocation8 + $0x90] sm:$0xff]
    %v6243 = vld [vmem:[#allocation8 + $0x98] sm:$0xff]
    %v6244 = vld [vmem:[#allocation8 + $0xa0] sm:$0xff]
    %v6245 = vld [vmem:[#allocation8 + $0xa8] sm:$0xff]
    %v6246 = vld [vmem:[#allocation8 + $0xb0] sm:$0xff]
    %v6247 = vld [vmem:[#allocation8 + $0xb8] sm:$0xff]
    %v6248 = vld [vmem:[#allocation8 + $0xc0] sm:$0xff]
    %v6249 = vld [vmem:[#allocation8 + $0xc8] sm:$0xff]
    %v6250 = vld [vmem:[#allocation8 + $0xd0] sm:$0xff]
    %v6251 = vld [vmem:[#allocation8 + $0xd8] sm:$0xff]
    %v6252 = vld [vmem:[#allocation8 + $0xe0] sm:$0xff]
    %v6253 = vld [vmem:[#allocation8 + $0xe8] sm:$0xff]
    %v6254 = vld [vmem:[#allocation8 + $0xf0] sm:$0xff]
    %v6255 = vld [vmem:[#allocation8 + $0xf8] sm:$0xff]
    %v6256 = vld [vmem:[#allocation8 + $0x100] sm:$0xff]
    %v6257 = vld [vmem:[#allocation8 + $0x108] sm:$0xff]
    %v6258 = vld [vmem:[#allocation8 + $0x110] sm:$0xff]
    %v6259 = vld [vmem:[#allocation8 + $0x118] sm:$0xff]
    %v6260 = vld [vmem:[#allocation8 + $0x120] sm:$0xff]
    %v6261 = vld [vmem:[#allocation8 + $0x128] sm:$0xff]
    %v6262 = vld [vmem:[#allocation8 + $0x130] sm:$0xff]
    %v6263 = vld [vmem:[#allocation8 + $0x138] sm:$0xff]
    %v6264 = vld [vmem:[#allocation8 + $0x140] sm:$0xff]
    %v6265 = vld [vmem:[#allocation8 + $0x148] sm:$0xff]
    %v6266 = vld [vmem:[#allocation8 + $0x150] sm:$0xff]
    %v6267 = vld [vmem:[#allocation8 + $0x158] sm:$0xff]
    %v6268 = vld [vmem:[#allocation8 + $0x160] sm:$0xff]
    %v6269 = vld [vmem:[#allocation8 + $0x168] sm:$0xff]
    %v6270 = vld [vmem:[#allocation8 + $0x170] sm:$0xff]
    %v6271 = vld [vmem:[#allocation8 + $0x178] sm:$0xff]
    %v6272 = vld [vmem:[#allocation8 + $0x180] sm:$0xff]
    %v6273 = vld [vmem:[#allocation8 + $0x188] sm:$0xff]
    %v6274 = vld [vmem:[#allocation8 + $0x190] sm:$0xff]
    %v6275 = vld [vmem:[#allocation8 + $0x198] sm:$0xff]
    %v6276 = vld [vmem:[#allocation8 + $0x1a0] sm:$0xff]
    %v6277 = vld [vmem:[#allocation8 + $0x1a8] sm:$0xff]
    %v6278 = vld [vmem:[#allocation8 + $0x1b0] sm:$0xff]
    %v6279 = vld [vmem:[#allocation8 + $0x1b8] sm:$0xff]
    %v6280 = vld [vmem:[#allocation8 + $0x1c0] sm:$0xff]
    %v6281 = vld [vmem:[#allocation8 + $0x1c8] sm:$0xff]
    %v6282 = vld [vmem:[#allocation8 + $0x1d0] sm:$0xff]
    %v6283 = vld [vmem:[#allocation8 + $0x1d8] sm:$0xff]
    %v6284 = vld [vmem:[#allocation8 + $0x1e0] sm:$0xff]
    %v6285 = vld [vmem:[#allocation8 + $0x1e8] sm:$0xff]
    %v6286 = vld [vmem:[#allocation8 + $0x1f0] sm:$0xff]
    %v6287 = vld [vmem:[#allocation8 + $0x1f8] sm:$0xff]
    %v6352 = vunpack.c.l.b16 %v6224
    %v6353 = vunpack.c.h.b16 %v6224
    %v6354 = vunpack.c.l.b16 %v6225
    %v6355 = vunpack.c.h.b16 %v6225
    %v6356 = vunpack.c.l.b16 %v6226
    %v6357 = vunpack.c.h.b16 %v6226
    %v6358 = vunpack.c.l.b16 %v6227
    %v6359 = vunpack.c.h.b16 %v6227
    %v6360 = vunpack.c.l.b16 %v6228
    %v6361 = vunpack.c.h.b16 %v6228
    %v6362 = vunpack.c.l.b16 %v6229
    %v6363 = vunpack.c.h.b16 %v6229
    %v6364 = vunpack.c.l.b16 %v6230
    %v6365 = vunpack.c.h.b16 %v6230
    %v6366 = vunpack.c.l.b16 %v6231
    %v6367 = vunpack.c.h.b16 %v6231
    %v6368 = vunpack.c.l.b16 %v6232
    %v6369 = vunpack.c.h.b16 %v6232
    %v6370 = vunpack.c.l.b16 %v6233
    %v6371 = vunpack.c.h.b16 %v6233
    %v6372 = vunpack.c.l.b16 %v6234
    %v6373 = vunpack.c.h.b16 %v6234
    %v6374 = vunpack.c.l.b16 %v6235
    %v6375 = vunpack.c.h.b16 %v6235
    %v6376 = vunpack.c.l.b16 %v6236
    %v6377 = vunpack.c.h.b16 %v6236
    %v6378 = vunpack.c.l.b16 %v6237
    %v6379 = vunpack.c.h.b16 %v6237
    %v6380 = vunpack.c.l.b16 %v6238
    %v6381 = vunpack.c.h.b16 %v6238
    %v6382 = vunpack.c.l.b16 %v6239
    %v6383 = vunpack.c.h.b16 %v6239
    %v6384 = vunpack.c.l.b16 %v6240
    %v6385 = vunpack.c.h.b16 %v6240
    %v6386 = vunpack.c.l.b16 %v6241
    %v6387 = vunpack.c.h.b16 %v6241
    %v6388 = vunpack.c.l.b16 %v6242
    %v6389 = vunpack.c.h.b16 %v6242
    %v6390 = vunpack.c.l.b16 %v6243
    %v6391 = vunpack.c.h.b16 %v6243
    %v6392 = vunpack.c.l.b16 %v6244
    %v6393 = vunpack.c.h.b16 %v6244
    %v6394 = vunpack.c.l.b16 %v6245
    %v6395 = vunpack.c.h.b16 %v6245
    %v6396 = vunpack.c.l.b16 %v6246
    %v6397 = vunpack.c.h.b16 %v6246
    %v6398 = vunpack.c.l.b16 %v6247
    %v6399 = vunpack.c.h.b16 %v6247
    %v6400 = vunpack.c.l.b16 %v6248
    %v6401 = vunpack.c.h.b16 %v6248
    %v6402 = vunpack.c.l.b16 %v6249
    %v6403 = vunpack.c.h.b16 %v6249
    %v6404 = vunpack.c.l.b16 %v6250
    %v6405 = vunpack.c.h.b16 %v6250
    %v6406 = vunpack.c.l.b16 %v6251
    %v6407 = vunpack.c.h.b16 %v6251
    %v6408 = vunpack.c.l.b16 %v6252
    %v6409 = vunpack.c.h.b16 %v6252
    %v6410 = vunpack.c.l.b16 %v6253
    %v6411 = vunpack.c.h.b16 %v6253
    %v6412 = vunpack.c.l.b16 %v6254
    %v6413 = vunpack.c.h.b16 %v6254
    %v6414 = vunpack.c.l.b16 %v6255
    %v6415 = vunpack.c.h.b16 %v6255
    %v6416 = vunpack.c.l.b16 %v6256
    %v6417 = vunpack.c.h.b16 %v6256
    %v6418 = vunpack.c.l.b16 %v6257
    %v6419 = vunpack.c.h.b16 %v6257
    %v6420 = vunpack.c.l.b16 %v6258
    %v6421 = vunpack.c.h.b16 %v6258
    %v6422 = vunpack.c.l.b16 %v6259
    %v6423 = vunpack.c.h.b16 %v6259
    %v6424 = vunpack.c.l.b16 %v6260
    %v6425 = vunpack.c.h.b16 %v6260
    %v6426 = vunpack.c.l.b16 %v6261
    %v6427 = vunpack.c.h.b16 %v6261
    %v6428 = vunpack.c.l.b16 %v6262
    %v6429 = vunpack.c.h.b16 %v6262
    %v6430 = vunpack.c.l.b16 %v6263
    %v6431 = vunpack.c.h.b16 %v6263
    %v6432 = vunpack.c.l.b16 %v6264
    %v6433 = vunpack.c.h.b16 %v6264
    %v6434 = vunpack.c.l.b16 %v6265
    %v6435 = vunpack.c.h.b16 %v6265
    %v6436 = vunpack.c.l.b16 %v6266
    %v6437 = vunpack.c.h.b16 %v6266
    %v6438 = vunpack.c.l.b16 %v6267
    %v6439 = vunpack.c.h.b16 %v6267
    %v6440 = vunpack.c.l.b16 %v6268
    %v6441 = vunpack.c.h.b16 %v6268
    %v6442 = vunpack.c.l.b16 %v6269
    %v6443 = vunpack.c.h.b16 %v6269
    %v6444 = vunpack.c.l.b16 %v6270
    %v6445 = vunpack.c.h.b16 %v6270
    %v6446 = vunpack.c.l.b16 %v6271
    %v6447 = vunpack.c.h.b16 %v6271
    %v6448 = vunpack.c.l.b16 %v6272
    %v6449 = vunpack.c.h.b16 %v6272
    %v6450 = vunpack.c.l.b16 %v6273
    %v6451 = vunpack.c.h.b16 %v6273
    %v6452 = vunpack.c.l.b16 %v6274
    %v6453 = vunpack.c.h.b16 %v6274
    %v6454 = vunpack.c.l.b16 %v6275
    %v6455 = vunpack.c.h.b16 %v6275
    %v6456 = vunpack.c.l.b16 %v6276
    %v6457 = vunpack.c.h.b16 %v6276
    %v6458 = vunpack.c.l.b16 %v6277
    %v6459 = vunpack.c.h.b16 %v6277
    %v6460 = vunpack.c.l.b16 %v6278
    %v6461 = vunpack.c.h.b16 %v6278
    %v6462 = vunpack.c.l.b16 %v6279
    %v6463 = vunpack.c.h.b16 %v6279
    %v6464 = vunpack.c.l.b16 %v6280
    %v6465 = vunpack.c.h.b16 %v6280
    %v6466 = vunpack.c.l.b16 %v6281
    %v6467 = vunpack.c.h.b16 %v6281
    %v6468 = vunpack.c.l.b16 %v6282
    %v6469 = vunpack.c.h.b16 %v6282
    %v6470 = vunpack.c.l.b16 %v6283
    %v6471 = vunpack.c.h.b16 %v6283
    %v6472 = vunpack.c.l.b16 %v6284
    %v6473 = vunpack.c.h.b16 %v6284
    %v6474 = vunpack.c.l.b16 %v6285
    %v6475 = vunpack.c.h.b16 %v6285
    %v6476 = vunpack.c.l.b16 %v6286
    %v6477 = vunpack.c.h.b16 %v6286
    %v6478 = vunpack.c.l.b16 %v6287
    %v6479 = vunpack.c.h.b16 %v6287
    %v6480 = vpack.c.b16 %v6356, %v6352
    %v6481 = vpack.c.b16 %v6357, %v6353
    %v6482 = vpack.c.b16 %v6358, %v6354
    %v6483 = vpack.c.b16 %v6359, %v6355
    %v6484 = vpack.c.b16 %v6364, %v6360
    %v6485 = vpack.c.b16 %v6365, %v6361
    %v6486 = vpack.c.b16 %v6366, %v6362
    %v6487 = vpack.c.b16 %v6367, %v6363
    %v6488 = vpack.c.b16 %v6372, %v6368
    %v6489 = vpack.c.b16 %v6373, %v6369
    %v6490 = vpack.c.b16 %v6374, %v6370
    %v6491 = vpack.c.b16 %v6375, %v6371
    %v6492 = vpack.c.b16 %v6380, %v6376
    %v6493 = vpack.c.b16 %v6381, %v6377
    %v6494 = vpack.c.b16 %v6382, %v6378
    %v6495 = vpack.c.b16 %v6383, %v6379
    %v6496 = vpack.c.b16 %v6388, %v6384
    %v6497 = vpack.c.b16 %v6389, %v6385
    %v6498 = vpack.c.b16 %v6390, %v6386
    %v6499 = vpack.c.b16 %v6391, %v6387
    %v6500 = vpack.c.b16 %v6396, %v6392
    %v6501 = vpack.c.b16 %v6397, %v6393
    %v6502 = vpack.c.b16 %v6398, %v6394
    %v6503 = vpack.c.b16 %v6399, %v6395
    %v6504 = vpack.c.b16 %v6404, %v6400
    %v6505 = vpack.c.b16 %v6405, %v6401
    %v6506 = vpack.c.b16 %v6406, %v6402
    %v6507 = vpack.c.b16 %v6407, %v6403
    %v6508 = vpack.c.b16 %v6412, %v6408
    %v6509 = vpack.c.b16 %v6413, %v6409
    %v6510 = vpack.c.b16 %v6414, %v6410
    %v6511 = vpack.c.b16 %v6415, %v6411
    %v6512 = vpack.c.b16 %v6420, %v6416
    %v6513 = vpack.c.b16 %v6421, %v6417
    %v6514 = vpack.c.b16 %v6422, %v6418
    %v6515 = vpack.c.b16 %v6423, %v6419
    %v6516 = vpack.c.b16 %v6428, %v6424
    %v6517 = vpack.c.b16 %v6429, %v6425
    %v6518 = vpack.c.b16 %v6430, %v6426
    %v6519 = vpack.c.b16 %v6431, %v6427
    %v6520 = vpack.c.b16 %v6436, %v6432
    %v6521 = vpack.c.b16 %v6437, %v6433
    %v6522 = vpack.c.b16 %v6438, %v6434
    %v6523 = vpack.c.b16 %v6439, %v6435
    %v6524 = vpack.c.b16 %v6444, %v6440
    %v6525 = vpack.c.b16 %v6445, %v6441
    %v6526 = vpack.c.b16 %v6446, %v6442
    %v6527 = vpack.c.b16 %v6447, %v6443
    %v6528 = vpack.c.b16 %v6452, %v6448
    %v6529 = vpack.c.b16 %v6453, %v6449
    %v6530 = vpack.c.b16 %v6454, %v6450
    %v6531 = vpack.c.b16 %v6455, %v6451
    %v6532 = vpack.c.b16 %v6460, %v6456
    %v6533 = vpack.c.b16 %v6461, %v6457
    %v6534 = vpack.c.b16 %v6462, %v6458
    %v6535 = vpack.c.b16 %v6463, %v6459
    %v6536 = vpack.c.b16 %v6468, %v6464
    %v6537 = vpack.c.b16 %v6469, %v6465
    %v6538 = vpack.c.b16 %v6470, %v6466
    %v6539 = vpack.c.b16 %v6471, %v6467
    %v6540 = vpack.c.b16 %v6476, %v6472
    %v6541 = vpack.c.b16 %v6477, %v6473
    %v6542 = vpack.c.b16 %v6478, %v6474
    %v6543 = vpack.c.b16 %v6479, %v6475
    %6608 = vmatprep.subr.bf16.mxu0 %v6481
    %6609 = vmatpush1.bf16.msra.mxu0 %v6480
    %6610 = vmatprep.subr.bf16.mxu0 %v6485
    %6611 = vmatpush1.bf16.msra.mxu0 %v6484
    %6612 = vmatprep.subr.bf16.mxu0 %v6489
    %6613 = vmatpush1.bf16.msra.mxu0 %v6488
    %6614 = vmatprep.subr.bf16.mxu0 %v6493
    %6615 = vmatpush1.bf16.msra.mxu0 %v6492
    %6616 = vmatprep.subr.bf16.mxu0 %v6497
    %6617 = vmatpush1.bf16.msra.mxu0 %v6496
    %6618 = vmatprep.subr.bf16.mxu0 %v6501
    %6619 = vmatpush1.bf16.msra.mxu0 %v6500
    %6620 = vmatprep.subr.bf16.mxu0 %v6505
    %6621 = vmatpush1.bf16.msra.mxu0 %v6504
    %6622 = vmatprep.subr.bf16.mxu0 %v6509
    %6623 = vmatpush1.bf16.msra.mxu0 %v6508
    %6624 = vmatprep.subr.bf16.mxu0 %v6513
    %6625 = vmatpush1.bf16.msra.mxu0 %v6512
    %6626 = vmatprep.subr.bf16.mxu0 %v6517
    %6627 = vmatpush1.bf16.msra.mxu0 %v6516
    %6628 = vmatprep.subr.bf16.mxu0 %v6521
    %6629 = vmatpush1.bf16.msra.mxu0 %v6520
    %6630 = vmatprep.subr.bf16.mxu0 %v6525
    %6631 = vmatpush1.bf16.msra.mxu0 %v6524
    %6632 = vmatprep.subr.bf16.mxu0 %v6529
    %6633 = vmatpush1.bf16.msra.mxu0 %v6528
    %6634 = vmatprep.subr.bf16.mxu0 %v6533
    %6635 = vmatpush1.bf16.msra.mxu0 %v6532
    %6636 = vmatprep.subr.bf16.mxu0 %v6537
    %6637 = vmatpush1.bf16.msra.mxu0 %v6536
    %6638 = vmatprep.subr.bf16.mxu0 %v6541
    %6639 = vmatpush1.bf16.msra.mxu0 %v6540
    %6640 = vmatprep.mubr.bf16.mxu0 %v6223
    %6641 = vmatmul.mubr.bf16.gmra.mrb[0].mxu0 %v6222
    %v6642 = vpop.f32.mrb[0].mxu0
    %v6643 = vadd.f32 %v706, %v6642
    %v6644 = vpop.f32.mrb[0].mxu0
    %v6645 = vadd.f32 %v710, %v6644
    %v6646 = vpop.f32.mrb[0].mxu0
    %v6647 = vpop.f32.mrb[0].mxu0
    %6648 = vdwg.mxu0
    %6649 = vmatprep.subr.bf16.mxu0 %v6483
    %6650 = vmatpush1.bf16.msra.mxu0 %v6482
    %6651 = vmatprep.subr.bf16.mxu0 %v6487
    %6652 = vmatpush1.bf16.msra.mxu0 %v6486
    %6653 = vmatprep.subr.bf16.mxu0 %v6491
    %6654 = vmatpush1.bf16.msra.mxu0 %v6490
    %6655 = vmatprep.subr.bf16.mxu0 %v6495
    %6656 = vmatpush1.bf16.msra.mxu0 %v6494
    %6657 = vmatprep.subr.bf16.mxu0 %v6499
    %6658 = vmatpush1.bf16.msra.mxu0 %v6498
    %6659 = vmatprep.subr.bf16.mxu0 %v6503
    %6660 = vmatpush1.bf16.msra.mxu0 %v6502
    %6661 = vmatprep.subr.bf16.mxu0 %v6507
    %6662 = vmatpush1.bf16.msra.mxu0 %v6506
    %6663 = vmatprep.subr.bf16.mxu0 %v6511
    %6664 = vmatpush1.bf16.msra.mxu0 %v6510
    %6665 = vmatprep.subr.bf16.mxu0 %v6515
    %6666 = vmatpush1.bf16.msra.mxu0 %v6514
    %6667 = vmatprep.subr.bf16.mxu0 %v6519
    %6668 = vmatpush1.bf16.msra.mxu0 %v6518
    %6669 = vmatprep.subr.bf16.mxu0 %v6523
    %6670 = vmatpush1.bf16.msra.mxu0 %v6522
    %6671 = vmatprep.subr.bf16.mxu0 %v6527
    %6672 = vmatpush1.bf16.msra.mxu0 %v6526
    %6673 = vmatprep.subr.bf16.mxu0 %v6531
    %6674 = vmatpush1.bf16.msra.mxu0 %v6530
    %6675 = vmatprep.subr.bf16.mxu0 %v6535
    %6676 = vmatpush1.bf16.msra.mxu0 %v6534
    %6677 = vmatprep.subr.bf16.mxu0 %v6539
    %6678 = vmatpush1.bf16.msra.mxu0 %v6538
    %6679 = vmatprep.subr.bf16.mxu0 %v6543
    %6680 = vmatpush1.bf16.msra.mxu0 %v6542
    %6681 = vmatprep.mubr.bf16.mxu0 %v6223
    %6682 = vmatmul.mubr.bf16.gmra.mrb[0].mxu0 %v6222
    %v6683 = vpop.f32.mrb[0].mxu0
    %v6684 = vadd.f32 %v714, %v6683
    %v6685 = vpop.f32.mrb[0].mxu0
    %v6686 = vadd.f32 %v718, %v6685
    %v6687 = vpop.f32.mrb[0].mxu0
    %v6688 = vpop.f32.mrb[0].mxu0
    %6689 = vdwg.mxu0
    %v6690 = vxor.u32 %v6643, 2147483648
    %v6691 = vxor.u32 %v6645, 2147483648
    %v6692 = vmul.f32 %v6690, 1.442695
    %v6693 = vpow.pop %v6692
    %v6694 = vmul.f32 %v6691, 1.442695
    %v6695 = vpow.pop %v6694
    %v6696 = vadd.f32 %v6693, 1.0
    %v6697 = vadd.f32 %v6695, 1.0
    %v6698 = vrcp.pop %v6696
    %v6699 = vmul.f32 1.0, %v6698
    %v6700 = vrcp.pop %v6697
    %v6701 = vmul.f32 1.0, %v6700
    %v6702 = vtanh.pop %v6684
    %v6703 = vxor.u32 %v6686, 2147483648
    %v6704 = vmul.f32 %v6703, 1.442695
    %v6705 = vpow.pop %v6704
    %v6706 = vadd.f32 %v6705, 1.0
    %v6707 = vrcp.pop %v6706
    %v6708 = vmul.f32 1.0, %v6707
    %v6709 = vmul.f32 %v6701, %v5916
    %v6710 = vmul.f32 %v6699, %v6702
    %v6711 = vadd.f32 %v6709, %v6710
    %v6712 = vtanh.pop %v6711
    %v6713 = vmul.f32 %v6708, %v6712
    %6714 = vst [vmem:[#allocation3 + $0x38] sm:$0xff] %v6713
    %v6715 = vld [vmem:[#allocation3] sm:$0xff]
    %v6716 = vld [vmem:[#allocation3 + $0x8] sm:$0xff]
    %v6717 = vld [vmem:[#allocation3 + $0x10] sm:$0xff]
    %v6718 = vld [vmem:[#allocation3 + $0x18] sm:$0xff]
    %v6719 = vld [vmem:[#allocation3 + $0x20] sm:$0xff]
    %v6720 = vld [vmem:[#allocation3 + $0x28] sm:$0xff]
    %v6721 = vld [vmem:[#allocation3 + $0x30] sm:$0xff]
    %v6722 = vld [vmem:[#allocation3 + $0x38] sm:$0xff]
    %v6723 = vpack.c.bf16 %v6716, %v6715
    %v6724 = vpack.c.bf16 %v6718, %v6717
    %v6725 = vpack.c.bf16 %v6720, %v6719
    %v6726 = vpack.c.bf16 %v6722, %v6721
    %v6727 = vld [vmem:[%s6] sm:$0xf]
    %v6728 = vld [vmem:[%s6 + $0x4] sm:$0xf]
    %v6729 = vld [vmem:[%s6 + $0x8] sm:$0xf]
    %v6730 = vld [vmem:[%s6 + $0xc] sm:$0xf]
    %v6731 = vld [vmem:[%s6 + $0x10] sm:$0xf]
    %v6732 = vld [vmem:[%s6 + $0x14] sm:$0xf]
    %v6733 = vld [vmem:[%s6 + $0x18] sm:$0xf]
    %v6734 = vld [vmem:[%s6 + $0x1c] sm:$0xf]
    %v6735 = vld [vmem:[%s6 + $0x20] sm:$0xf]
    %v6736 = vld [vmem:[%s6 + $0x24] sm:$0xf]
    %v6737 = vld [vmem:[%s6 + $0x28] sm:$0xf]
    %v6738 = vld [vmem:[%s6 + $0x2c] sm:$0xf]
    %v6739 = vld [vmem:[%s6 + $0x30] sm:$0xf]
    %v6740 = vld [vmem:[%s6 + $0x34] sm:$0xf]
    %v6741 = vld [vmem:[%s6 + $0x38] sm:$0xf]
    %v6742 = vld [vmem:[%s6 + $0x3c] sm:$0xf]
    %v6743 = vld [vmem:[%s7] sm:$0x1]
    %v6745 = vlaneseq
    %v6746 = vshrl.u32 %v6745, 7
    %v6747 = vsub.s32 0, %v6746
    %v6748 = vrot.slane %v6743, %v6747
    %v6766 = vunpack.c.l.b16 %v6727
    %v6767 = vunpack.c.l.b16 %v6728
    %v6768 = vunpack.c.l.b16 %v6729
    %v6769 = vunpack.c.l.b16 %v6730
    %v6770 = vunpack.c.l.b16 %v6731
    %v6771 = vunpack.c.l.b16 %v6732
    %v6772 = vunpack.c.l.b16 %v6733
    %v6773 = vunpack.c.l.b16 %v6734
    %v6774 = vunpack.c.l.b16 %v6735
    %v6775 = vunpack.c.l.b16 %v6736
    %v6776 = vunpack.c.l.b16 %v6737
    %v6777 = vunpack.c.l.b16 %v6738
    %v6778 = vunpack.c.l.b16 %v6739
    %v6779 = vunpack.c.l.b16 %v6740
    %v6780 = vunpack.c.l.b16 %v6741
    %v6781 = vunpack.c.l.b16 %v6742
    %v6782 = vpack.c.b16 %v6767, %v6766
    %v6783 = vpack.c.b16 %v6769, %v6768
    %v6784 = vpack.c.b16 %v6771, %v6770
    %v6785 = vpack.c.b16 %v6773, %v6772
    %v6786 = vpack.c.b16 %v6775, %v6774
    %v6787 = vpack.c.b16 %v6777, %v6776
    %v6788 = vpack.c.b16 %v6779, %v6778
    %v6789 = vpack.c.b16 %v6781, %v6780
    %6798 = vmatprep.subr.bf16.mxu0 0
    %6799 = vmatpush1.bf16.msra.mxu0 %v6782
    %6800 = vmatprep.subr.bf16.mxu0 0
    %6801 = vmatpush1.bf16.msra.mxu0 %v6783
    %6802 = vmatprep.subr.bf16.mxu0 0
    %6803 = vmatpush1.bf16.msra.mxu0 %v6784
    %6804 = vmatprep.subr.bf16.mxu0 0
    %6805 = vmatpush1.bf16.msra.mxu0 %v6785
    %6806 = vmatprep.subr.bf16.mxu0 0
    %6807 = vmatpush1.bf16.msra.mxu0 %v6786
    %6808 = vmatprep.subr.bf16.mxu0 0
    %6809 = vmatpush1.bf16.msra.mxu0 %v6787
    %6810 = vmatprep.subr.bf16.mxu0 0
    %6811 = vmatpush1.bf16.msra.mxu0 %v6788
    %6812 = vmatprep.subr.bf16.mxu0 0
    %6813 = vmatpush1.bf16.msra.mxu0 %v6789
    %6814 = vmatprep.subr.bf16.mxu0 0
    %6815 = vmatpush1.bf16.msra.mxu0 0
    %6816 = vmatprep.subr.bf16.mxu0 0
    %6817 = vmatpush1.bf16.msra.mxu0 0
    %6818 = vmatprep.subr.bf16.mxu0 0
    %6819 = vmatpush1.bf16.msra.mxu0 0
    %6820 = vmatprep.subr.bf16.mxu0 0
    %6821 = vmatpush1.bf16.msra.mxu0 0
    %6822 = vmatprep.subr.bf16.mxu0 0
    %6823 = vmatpush1.bf16.msra.mxu0 0
    %6824 = vmatprep.subr.bf16.mxu0 0
    %6825 = vmatpush1.bf16.msra.mxu0 0
    %6826 = vmatprep.subr.bf16.mxu0 0
    %6827 = vmatpush1.bf16.msra.mxu0 0
    %6828 = vmatprep.subr.bf16.mxu0 0
    %6829 = vmatpush1.bf16.msra.mxu0 0
    %6830 = vmatprep.mubr.bf16.mxu0 0
    %6831 = vmatmul.mubr.bf16.gmra.mrb[0].mxu0 %v6723
    %v6832 = vpop.f32.mrb[0].mxu0
    %v6833 = vadd.f32 %v6748, %v6832
    %v6834 = vpop.f32.mrb[0].mxu0
    %v6835 = vpop.f32.mrb[0].mxu0
    %v6836 = vadd.f32 %v6748, %v6835
    %v6837 = vpop.f32.mrb[0].mxu0
    %6838 = vmatprep.mubr.bf16.mxu0 0
    %6839 = vmatmul.mubr.bf16.gmra.mrb[0].mxu0 %v6724
    %v6840 = vpop.f32.mrb[0].mxu0
    %v6841 = vadd.f32 %v6748, %v6840
    %v6842 = vpop.f32.mrb[0].mxu0
    %v6843 = vpop.f32.mrb[0].mxu0
    %v6844 = vadd.f32 %v6748, %v6843
    %v6845 = vpop.f32.mrb[0].mxu0
    %6846 = vmatprep.mubr.bf16.mxu0 0
    %6847 = vmatmul.mubr.bf16.gmra.mrb[0].mxu0 %v6725
    %v6848 = vpop.f32.mrb[0].mxu0
    %v6849 = vadd.f32 %v6748, %v6848
    %v6850 = vpop.f32.mrb[0].mxu0
    %v6851 = vpop.f32.mrb[0].mxu0
    %v6852 = vadd.f32 %v6748, %v6851
    %v6853 = vpop.f32.mrb[0].mxu0
    %6854 = vmatprep.mubr.bf16.mxu0 0
    %6855 = vmatmul.mubr.bf16.gmra.mrb[0].mxu0 %v6726
    %v6856 = vpop.f32.mrb[0].mxu0
    %v6857 = vadd.f32 %v6748, %v6856
    %v6858 = vpop.f32.mrb[0].mxu0
    %v6859 = vpop.f32.mrb[0].mxu0
    %v6860 = vadd.f32 %v6748, %v6859
    %v6861 = vpop.f32.mrb[0].mxu0
    %6862 = vdwg.mxu0
    %v6863 = vmax.f32 %v6833, 0.0
    %v6864 = vmax.f32 %v6836, 0.0
    %v6865 = vmax.f32 %v6841, 0.0
    %v6866 = vmax.f32 %v6844, 0.0
    %v6867 = vmax.f32 %v6849, 0.0
    %v6868 = vmax.f32 %v6852, 0.0
    %v6869 = vmax.f32 %v6857, 0.0
    %v6870 = vmax.f32 %v6860, 0.0
    %v6871 = vld [vmem:[%s8] sm:$0x1]
    %v6873 = vlaneseq
    %v6874 = vshrl.u32 %v6873, 7
    %v6875 = vsub.s32 0, %v6874
    %v6876 = vrot.slane %v6871, %v6875
    %v6878 = vmul.f32 %v6863, %v6876
    %v6879 = vmul.f32 %v6864, %v6876
    %v6880 = vmul.f32 %v6865, %v6876
    %v6881 = vmul.f32 %v6866, %v6876
    %v6882 = vmul.f32 %v6867, %v6876
    %v6883 = vmul.f32 %v6868, %v6876
    %v6884 = vmul.f32 %v6869, %v6876
    %v6885 = vmul.f32 %v6870, %v6876
    %vm6886 = vcmask 523264
    %v6887 = vsel %vm6886, %v6878, 0.0
    %6888 = vadd.xlane.f32.xlu0 %v6887
    %v6889 = vpop.xlane.xlu0 %6888
    %v6890 = vsel %vm6886, %v6879, 0.0
    %6891 = vadd.xlane.f32.xlu0 %v6890
    %v6892 = vpop.xlane.xlu0 %6891
    %v6893 = vsel %vm6886, %v6880, 0.0
    %6894 = vadd.xlane.f32.xlu0 %v6893
    %v6895 = vpop.xlane.xlu0 %6894
    %v6896 = vsel %vm6886, %v6881, 0.0
    %6897 = vadd.xlane.f32.xlu0 %v6896
    %v6898 = vpop.xlane.xlu0 %6897
    %v6899 = vsel %vm6886, %v6882, 0.0
    %6900 = vadd.xlane.f32.xlu0 %v6899
    %v6901 = vpop.xlane.xlu0 %6900
    %v6902 = vsel %vm6886, %v6883, 0.0
    %6903 = vadd.xlane.f32.xlu0 %v6902
    %v6904 = vpop.xlane.xlu0 %6903
    %v6905 = vsel %vm6886, %v6884, 0.0
    %6906 = vadd.xlane.f32.xlu0 %v6905
    %v6907 = vpop.xlane.xlu0 %6906
    %v6908 = vsel %vm6886, %v6885, 0.0
    %6909 = vadd.xlane.f32.xlu0 %v6908
    %v6910 = vpop.xlane.xlu0 %6909
    %v6911 = vld [vmem:[#allocation4] sm:$0x1]
    %v6913 = vlaneseq
    %v6914 = vshrl.u32 %v6913, 7
    %v6915 = vsub.s32 0, %v6914
    %v6916 = vrot.slane %v6911, %v6915
    %6917 = vset.pattern.permute.xlu0 0
    %6918 = vperm.xlu0 %6917, %v6916
    %v6919 = vpop.permute.xlu0 %6918
    %v6921 = vadd.f32 %v6889, %v6919
    %v6922 = vadd.f32 %v6892, %v6919
    %v6923 = vadd.f32 %v6895, %v6919
    %v6924 = vadd.f32 %v6898, %v6919
    %v6925 = vadd.f32 %v6901, %v6919
    %v6926 = vadd.f32 %v6904, %v6919
    %v6927 = vadd.f32 %v6907, %v6919
    %v6928 = vadd.f32 %v6910, %v6919
    %v6937 = vlaneseq
    %v6938 = vand.u32 %v6937, 127
    %v6939 = vlaneseq
    %v6940 = vshrl.u32 %v6939, 7
    %v6941 = vsub.s32 %v6938, %v6940
    %v6942 = vrot.slane %v6921, %v6941
    %v6943 = vlaneseq
    %v6944 = vshrl.u32 %v6943, 7
    %v6945 = vsub.s32 %v6938, %v6944
    %v6946 = vrot.slane %v6922, %v6945
    %v6947 = vlaneseq
    %v6948 = vshrl.u32 %v6947, 7
    %v6949 = vsub.s32 %v6938, %v6948
    %v6950 = vrot.slane %v6923, %v6949
    %v6951 = vlaneseq
    %v6952 = vshrl.u32 %v6951, 7
    %v6953 = vsub.s32 %v6938, %v6952
    %v6954 = vrot.slane %v6924, %v6953
    %v6955 = vlaneseq
    %v6956 = vshrl.u32 %v6955, 7
    %v6957 = vsub.s32 %v6938, %v6956
    %v6958 = vrot.slane %v6925, %v6957
    %v6959 = vlaneseq
    %v6960 = vshrl.u32 %v6959, 7
    %v6961 = vsub.s32 %v6938, %v6960
    %v6962 = vrot.slane %v6926, %v6961
    %v6963 = vlaneseq
    %v6964 = vshrl.u32 %v6963, 7
    %v6965 = vsub.s32 %v6938, %v6964
    %v6966 = vrot.slane %v6927, %v6965
    %v6967 = vlaneseq
    %v6968 = vshrl.u32 %v6967, 7
    %v6969 = vsub.s32 %v6938, %v6968
    %v6970 = vrot.slane %v6928, %v6969
    %vm6971 = vcmask 1041409
    %v6972 = vsel %vm6971, %v6946, %v6942
    %vm6973 = vcmask 1042434
    %v6974 = vsel %vm6973, %v6950, %v6972
    %vm6975 = vcmask 1043459
    %v6976 = vsel %vm6975, %v6954, %v6974
    %vm6977 = vcmask 1044484
    %v6978 = vsel %vm6977, %v6958, %v6976
    %vm6979 = vcmask 1045509
    %v6980 = vsel %vm6979, %v6962, %v6978
    %vm6981 = vcmask 1046534
    %v6982 = vsel %vm6981, %v6966, %v6980
    %vm6983 = vcmask 1047559
    %v6984 = vsel %vm6983, %v6970, %v6982
    %vm6986 = vcmask 64512
    %6987 = vst.msk [vmem:[#allocation10] sm:$0xff] %vm6986, %v6984
    // Predicated region
    $region50: #{tpu_custom_call.1} parent=1 // pred_check
      _
    $region51: #{tpu_custom_call.1} parent=1 // pred_check_branch
      %6989 = sbr.rel (0) target = $region53
    $region52: #{tpu_custom_call.1} parent=1 // pred_region
      %s6991 = ssub.s32 128, 128
      %6992 = vsyncadd [#allocation7], %s6991
      %s6994 = sshll.u32 [#allocation10], 4
      %s6995 = int_to_ptr.vmem [resolvable:$true] %s6994
      %6997 = dma.vmem_to_hbm [thread:$0]  %s6995, 128, %s10, [#allocation7]
    $region53: #{tpu_custom_call.1} parent=1 // pred_fallthru
      _
    // Predicated region
    $region54: #{tpu_custom_call.1} parent=1 // pred_check
      _
    $region55: #{tpu_custom_call.1} parent=1 // pred_check_branch
      %6999 = sbr.rel (0) target = $region57
    $region56: #{tpu_custom_call.1} parent=1 // pred_region
      %7000 = dma.done [#allocation7], 128
    $region57: #{tpu_custom_call.1} parent=1 // pred_fallthru
      _
    %7001 = vsyncpa [#allocation6], 1
    %7002 = vsyncpa [#allocation9], 1
    %7003 = vsyncpa [#allocation7], 1

</llo_original>
